<compile_context>
chip_gen: v6e
topology: v6e:2x2x1
jax: 0.10.0
libtpu: 0.0.40
codegen_flags: <defaults>
</compile_context>

<pallas_src>
import numpy as np
import jax
import jax.numpy as jnp
from jax.experimental import pallas as pl
from jax.experimental.pallas import tpu as pltpu


# ----------------------------------------------------------------------------
# Fused kernel: one grid step == one batch element.
# ----------------------------------------------------------------------------
def _qnet_kernel(p1_ref, w1_ref, b1_ref, s2_ref, w2_ref, b2_ref,
                 s3_ref, w3_ref, b3_ref, wf1_ref, bf1_ref, wo_ref, bo_ref,
                 o_ref):
    # ---- conv1 (im2col GEMM) + bias + ReLU, with the 2x2 max-pool fused ----
    # p1_ref: (1, 4, 100, 256); axis 1 = pool quadrant (dh, dw),
    # axis 2 = pooled position (10x10 row-major), axis 3 = (kh, kw, cin).
    w1 = w1_ref[...]                                   # (256, 32) bf16
    b1 = b1_ref[...]                                   # (1, 32)  f32

    def conv1_quadrant(d):
        h = jnp.dot(p1_ref[0, d], w1, preferred_element_type=jnp.float32)
        return jnp.maximum(h + b1, 0.0)                # (100, 32) f32

    pooled = jnp.maximum(jnp.maximum(conv1_quadrant(0), conv1_quadrant(1)),
                         jnp.maximum(conv1_quadrant(2), conv1_quadrant(3)))
    pooled = pooled.astype(jnp.bfloat16)               # (100, 32)

    # ---- conv2: k=4,s=2,p=1 as 16 taps: one-hot select @ x @ W_tap ----------
    acc2 = jnp.zeros((25, 64), jnp.float32)
    for t in range(16):
        xt = jnp.dot(s2_ref[t], pooled,
                     preferred_element_type=jnp.float32).astype(jnp.bfloat16)
        acc2 = acc2 + jnp.dot(xt, w2_ref[t], preferred_element_type=jnp.float32)
    a2 = jnp.maximum(acc2 + b2_ref[...], 0.0).astype(jnp.bfloat16)   # (25, 64)

    # ---- conv3: k=3,s=1,p=1 as 9 taps --------------------------------------
    acc3 = jnp.zeros((25, 64), jnp.float32)
    for t in range(9):
        xt = jnp.dot(s3_ref[t], a2,
                     preferred_element_type=jnp.float32).astype(jnp.bfloat16)
        acc3 = acc3 + jnp.dot(xt, w3_ref[t], preferred_element_type=jnp.float32)
    a3 = jnp.maximum(acc3 + b3_ref[...], 0.0)                        # (25, 64) f32

    # ---- fc1 (+ReLU): contraction over (spatial=25, channels=64) ------------
    # wf1_ref is pre-permuted to (hw, c, n), so a3 is consumed directly.
    accf = jnp.zeros((1, 256), jnp.float32)
    for hw in range(25):
        row = a3[hw:hw + 1, :].astype(jnp.bfloat16)                  # (1, 64)
        accf = accf + jnp.dot(row, wf1_ref[hw],
                              preferred_element_type=jnp.float32)
    f1 = jnp.maximum(accf + bf1_ref[...], 0.0).astype(jnp.bfloat16)  # (1, 256)

    # ---- final linear (padded to 128 output lanes; cols 2..127 are zero) ----
    y = jnp.dot(f1, wo_ref[...], preferred_element_type=jnp.float32) + bo_ref[...]
    o_ref[...] = y.reshape(1, 1, 128)


# ----------------------------------------------------------------------------
# Wrapper-side glue (reshape/slice/concat only; no gathers).
# ----------------------------------------------------------------------------
def _conv1_patches(x_nchw):
    """(B,4,80,80) NCHW -> (B, 4, 100, 256) bf16 conv1 im2col patches.

    axis 1 = pool quadrant (dh, dw) of the later 2x2 max-pool,
    axis 2 = pooled output position (10x10 row-major),
    axis 3 = (kh, kw, cin) patch features (matches the packed conv1 weight).
    """
    B = x_nchw.shape[0]
    x = jnp.transpose(x_nchw, (0, 2, 3, 1)).astype(jnp.bfloat16)       # (B,80,80,4)
    x = jnp.pad(x, ((0, 0), (2, 6), (2, 6), (0, 0)))                   # (B,88,88,4)
    xb = x.reshape(B, 22, 4, 22, 4, 4)                                 # 4x4 blocks
    rows = jnp.concatenate([xb[:, 0:20], xb[:, 1:21]], axis=2)         # (B,20,8,22,4,4)
    pat = jnp.concatenate([rows[:, :, :, 0:20], rows[:, :, :, 1:21]], axis=4)
    pat = jnp.transpose(pat, (0, 1, 3, 2, 4, 5))                       # (B,oh,ow,kh,kw,c)
    pat = pat.reshape(B, 10, 2, 10, 2, 256)                            # (B,i,dh,j,dw,K)
    pat = jnp.transpose(pat, (0, 2, 4, 1, 3, 5))                       # (B,dh,dw,i,j,K)
    return pat.reshape(B, 4, 100, 256)


def _selection_matrices(in_hw, k, stride, pad):
    """One-hot (k*k, out_hw^2, in_hw^2) tap-selection matrices (zero rows
    implement zero padding).  Built once with numpy; exact in bf16."""
    out_hw = (in_hw + 2 * pad - k) // stride + 1
    s = np.zeros((k * k, out_hw * out_hw, in_hw * in_hw), np.float32)
    for kh in range(k):
        for kw in range(k):
            t = kh * k + kw
            for oh in range(out_hw):
                for ow in range(out_hw):
                    ih = oh * stride - pad + kh
                    iw = ow * stride - pad + kw
                    if 0 <= ih < in_hw and 0 <= iw < in_hw:
                        s[t, oh * out_hw + ow, ih * in_hw + iw] = 1.0
    return jnp.asarray(s, jnp.bfloat16)


def pack_params(params):
    """One-time repack of the PyTorch-layout weights into MXU-ready layouts."""
    w1 = jnp.transpose(params["w1"], (2, 3, 1, 0)).reshape(256, 32).astype(jnp.bfloat16)
    w2 = jnp.transpose(params["w2"], (2, 3, 1, 0)).reshape(16, 32, 64).astype(jnp.bfloat16)
    w3 = jnp.transpose(params["w3"], (2, 3, 1, 0)).reshape(9, 64, 64).astype(jnp.bfloat16)
    # torch flatten order is (c, h, w): permute fc1 rows to (hw, c, n) so the
    # kernel consumes the (25, 64) conv3 activation directly (no transpose).
    wf1 = params["wf1"].reshape(64, 25, 256).transpose(1, 0, 2).astype(jnp.bfloat16)
    wo = jnp.pad(params["wo"], ((0, 0), (0, 126))).astype(jnp.bfloat16)     # (256,128)
    bo = jnp.pad(params["bo"], (0, 126)).reshape(1, 128).astype(jnp.float32)
    return dict(
        w1=w1, b1=params["b1"].reshape(1, 32).astype(jnp.float32),
        s2=_selection_matrices(10, 4, 2, 1), w2=w2,
        b2=params["b2"].reshape(1, 64).astype(jnp.float32),
        s3=_selection_matrices(5, 3, 1, 1), w3=w3,
        b3=params["b3"].reshape(1, 64).astype(jnp.float32),
        wf1=wf1, bf1=params["bf1"].reshape(1, 256).astype(jnp.float32),
        wo=wo, bo=bo)


def qnet_forward(packed, x_nchw):
    B = x_nchw.shape[0]
    p1 = _conv1_patches(x_nchw)

    flops = 2 * B * (4 * 100 * 256 * 32                     # conv1 GEMM
                     + 16 * (25 * 100 * 32 + 25 * 32 * 64)  # conv2 select+proj
                     + 9 * (25 * 25 * 64 + 25 * 64 * 64)    # conv3 select+proj
                     + 25 * 64 * 256 + 256 * 128)           # fc1 + out
    bytes_accessed = (p1.size * 2
                      + sum(int(np.prod(v.shape)) * v.dtype.itemsize
                            for v in packed.values())
                      + B * 128 * 4)

    full2 = lambda b: (0, 0)
    full3 = lambda b: (0, 0, 0)
    out = pl.pallas_call(
        _qnet_kernel,
        out_shape=jax.ShapeDtypeStruct((B, 1, 128), jnp.float32),
        grid=(B,),
        in_specs=[
            pl.BlockSpec((1, 4, 100, 256), lambda b: (b, 0, 0, 0)),  # patches
            pl.BlockSpec((256, 32), full2),      # w1
            pl.BlockSpec((1, 32), full2),        # b1
            pl.BlockSpec((16, 25, 100), full3),  # conv2 selection
            pl.BlockSpec((16, 32, 64), full3),   # w2 taps
            pl.BlockSpec((1, 64), full2),        # b2
            pl.BlockSpec((9, 25, 25), full3),    # conv3 selection
            pl.BlockSpec((9, 64, 64), full3),    # w3 taps
            pl.BlockSpec((1, 64), full2),        # b3
            pl.BlockSpec((25, 64, 256), full3),  # fc1 weight (hw, c, n)
            pl.BlockSpec((1, 256), full2),       # fc1 bias
            pl.BlockSpec((256, 128), full2),     # out weight (padded)
            pl.BlockSpec((1, 128), full2),       # out bias (padded)
        ],
        out_specs=pl.BlockSpec((1, 1, 128), lambda b: (b, 0, 0)),
        compiler_params=pltpu.CompilerParams(
            dimension_semantics=("parallel",)),   # both TensorCores on v7x
        cost_estimate=pl.CostEstimate(flops=flops, transcendentals=0,
                                      bytes_accessed=bytes_accessed),
    )(p1, packed["w1"], packed["b1"], packed["s2"], packed["w2"], packed["b2"],
      packed["s3"], packed["w3"], packed["b3"], packed["wf1"], packed["bf1"],
      packed["wo"], packed["bo"])
    return out.reshape(B, 128)[:, :2]


# ----------------------------------------------------------------------------
# Parameter init (same layouts as the PyTorch module, Linear stored as (in,out))
# ----------------------------------------------------------------------------
def init_params(key):
    ks = jax.random.split(key, 10)

    def nrm(k, shape, scale):
        return scale * jax.random.normal(k, shape, dtype=jnp.float32)

    return dict(
        w1=nrm(ks[0], (32, 4, 8, 8), 0.05),   b1=nrm(ks[1], (32,), 0.05),
        w2=nrm(ks[2], (64, 32, 4, 4), 0.05),  b2=nrm(ks[3], (64,), 0.05),
        w3=nrm(ks[4], (64, 64, 3, 3), 0.05),  b3=nrm(ks[5], (64,), 0.05),
        wf1=nrm(ks[6], (1600, 256), 0.02),    bf1=nrm(ks[7], (256,), 0.02),
        wo=nrm(ks[8], (256, 2), 0.05),        bo=nrm(ks[9], (2,), 0.05),
    )


if __name__ == "__main__":
    key = jax.random.PRNGKey(0)
    pkey, xkey = jax.random.split(key)
    params = init_params(pkey)
    packed = pack_params(params)          # one-time weight repack (outside jit)
    # QNet's fc1 expects 1600 = 64*5*5 features, which pins the input to 80x80.
    x = jax.random.normal(xkey, (2, 4, 80, 80), dtype=jnp.float32)

    fwd = jax.jit(qnet_forward)
    y = fwd(packed, x)
    jax.block_until_ready(y)
    assert y.shape == (2, 2) and bool(jnp.all(jnp.isfinite(y)))
    print("KERNEL_OK")
</pallas_src>

<mosaic_0001>
module attributes {stable_mosaic.version = 11 : i64} {
  func.func @_qnet_kernel(%arg0: i32, %arg1: memref<1x4x100x256xbf16, #tpu.memory_space<vmem>>, %arg2: memref<256x32xbf16, #tpu.memory_space<vmem>>, %arg3: memref<1x32xf32, #tpu.memory_space<vmem>>, %arg4: memref<16x25x100xbf16, #tpu.memory_space<vmem>>, %arg5: memref<16x32x64xbf16, #tpu.memory_space<vmem>>, %arg6: memref<1x64xf32, #tpu.memory_space<vmem>>, %arg7: memref<9x25x25xbf16, #tpu.memory_space<vmem>>, %arg8: memref<9x64x64xbf16, #tpu.memory_space<vmem>>, %arg9: memref<1x64xf32, #tpu.memory_space<vmem>>, %arg10: memref<25x64x256xbf16, #tpu.memory_space<vmem>>, %arg11: memref<1x256xf32, #tpu.memory_space<vmem>>, %arg12: memref<256x128xbf16, #tpu.memory_space<vmem>>, %arg13: memref<1x128xf32, #tpu.memory_space<vmem>>, %arg14: memref<1x1x128xf32, #tpu.memory_space<vmem>>) attributes {dimension_semantics = [#tpu.dimension_semantics<parallel>], iteration_bounds = array<i64: 2>, scalar_prefetch = 0 : i64, scratch_operands = 0 : i64, tpu.core_type = #tpu.core_type<tc>, window_params = [{transform_indices = @transform_0, window_bounds = array<i64: 1, 4, 100, 256>}, {pipeline_mode = #tpu.pipeline_mode<synchronous>, transform_indices = @transform_1, window_bounds = array<i64: 256, 32>}, {pipeline_mode = #tpu.pipeline_mode<synchronous>, transform_indices = @transform_2, window_bounds = array<i64: 1, 32>}, {pipeline_mode = #tpu.pipeline_mode<synchronous>, transform_indices = @transform_3, window_bounds = array<i64: 16, 25, 100>}, {pipeline_mode = #tpu.pipeline_mode<synchronous>, transform_indices = @transform_4, window_bounds = array<i64: 16, 32, 64>}, {pipeline_mode = #tpu.pipeline_mode<synchronous>, transform_indices = @transform_5, window_bounds = array<i64: 1, 64>}, {pipeline_mode = #tpu.pipeline_mode<synchronous>, transform_indices = @transform_6, window_bounds = array<i64: 9, 25, 25>}, {pipeline_mode = #tpu.pipeline_mode<synchronous>, transform_indices = @transform_7, window_bounds = array<i64: 9, 64, 64>}, {pipeline_mode = #tpu.pipeline_mode<synchronous>, transform_indices = @transform_8, window_bounds = array<i64: 1, 64>}, {pipeline_mode = #tpu.pipeline_mode<synchronous>, transform_indices = @transform_9, window_bounds = array<i64: 25, 64, 256>}, {pipeline_mode = #tpu.pipeline_mode<synchronous>, transform_indices = @transform_10, window_bounds = array<i64: 1, 256>}, {pipeline_mode = #tpu.pipeline_mode<synchronous>, transform_indices = @transform_11, window_bounds = array<i64: 256, 128>}, {pipeline_mode = #tpu.pipeline_mode<synchronous>, transform_indices = @transform_12, window_bounds = array<i64: 1, 128>}, {transform_indices = @transform_13, window_bounds = array<i64: 1, 1, 128>}]} {
    %c0 = arith.constant 0 : index
    %c0_0 = arith.constant 0 : index
    %0 = vector.load %arg2[%c0, %c0_0] : memref<256x32xbf16, #tpu.memory_space<vmem>>, vector<256x32xbf16>
    %c0_1 = arith.constant 0 : index
    %c0_2 = arith.constant 0 : index
    %1 = vector.load %arg3[%c0_1, %c0_2] : memref<1x32xf32, #tpu.memory_space<vmem>>, vector<1x32xf32>
    %c0_3 = arith.constant 0 : index
    %c0_4 = arith.constant 0 : index
    %c0_5 = arith.constant 0 : index
    %c0_6 = arith.constant 0 : index
    %2 = vector.load %arg1[%c0_3, %c0_4, %c0_5, %c0_6] : memref<1x4x100x256xbf16, #tpu.memory_space<vmem>>, vector<1x1x100x256xbf16>
    %3 = vector.shape_cast %2 : vector<1x1x100x256xbf16> to vector<100x256xbf16>
    %cst = arith.constant dense<0.000000e+00> : vector<100x32xf32>
    %4 = tpu.matmul %3, %0, %cst {dimension_numbers = #tpu.dot_dimension_numbers<[1], [0], [0], [1], [0, 0, 1, 1], [], []>} : vector<100x256xbf16>, vector<256x32xbf16>, vector<100x32xf32> -> vector<100x32xf32>
    %5 = vector.broadcast %1 : vector<1x32xf32> to vector<100x32xf32>
    %6 = arith.addf %4, %5 : vector<100x32xf32>
    %cst_7 = arith.constant 0.000000e+00 : f32
    %7 = vector.broadcast %cst_7 : f32 to vector<100x32xf32>
    %8 = arith.maximumf %6, %7 : vector<100x32xf32>
    %c0_8 = arith.constant 0 : index
    %c1 = arith.constant 1 : index
    %c0_9 = arith.constant 0 : index
    %c0_10 = arith.constant 0 : index
    %9 = vector.load %arg1[%c0_8, %c1, %c0_9, %c0_10] : memref<1x4x100x256xbf16, #tpu.memory_space<vmem>>, vector<1x1x100x256xbf16>
    %10 = vector.shape_cast %9 : vector<1x1x100x256xbf16> to vector<100x256xbf16>
    %cst_11 = arith.constant dense<0.000000e+00> : vector<100x32xf32>
    %11 = tpu.matmul %10, %0, %cst_11 {dimension_numbers = #tpu.dot_dimension_numbers<[1], [0], [0], [1], [0, 0, 1, 1], [], []>} : vector<100x256xbf16>, vector<256x32xbf16>, vector<100x32xf32> -> vector<100x32xf32>
    %12 = vector.broadcast %1 : vector<1x32xf32> to vector<100x32xf32>
    %13 = arith.addf %11, %12 : vector<100x32xf32>
    %cst_12 = arith.constant 0.000000e+00 : f32
    %14 = vector.broadcast %cst_12 : f32 to vector<100x32xf32>
    %15 = arith.maximumf %13, %14 : vector<100x32xf32>
    %16 = arith.maximumf %8, %15 : vector<100x32xf32>
    %c0_13 = arith.constant 0 : index
    %c2 = arith.constant 2 : index
    %c0_14 = arith.constant 0 : index
    %c0_15 = arith.constant 0 : index
    %17 = vector.load %arg1[%c0_13, %c2, %c0_14, %c0_15] : memref<1x4x100x256xbf16, #tpu.memory_space<vmem>>, vector<1x1x100x256xbf16>
    %18 = vector.shape_cast %17 : vector<1x1x100x256xbf16> to vector<100x256xbf16>
    %cst_16 = arith.constant dense<0.000000e+00> : vector<100x32xf32>
    %19 = tpu.matmul %18, %0, %cst_16 {dimension_numbers = #tpu.dot_dimension_numbers<[1], [0], [0], [1], [0, 0, 1, 1], [], []>} : vector<100x256xbf16>, vector<256x32xbf16>, vector<100x32xf32> -> vector<100x32xf32>
    %20 = vector.broadcast %1 : vector<1x32xf32> to vector<100x32xf32>
    %21 = arith.addf %19, %20 : vector<100x32xf32>
    %cst_17 = arith.constant 0.000000e+00 : f32
    %22 = vector.broadcast %cst_17 : f32 to vector<100x32xf32>
    %23 = arith.maximumf %21, %22 : vector<100x32xf32>
    %c0_18 = arith.constant 0 : index
    %c3 = arith.constant 3 : index
    %c0_19 = arith.constant 0 : index
    %c0_20 = arith.constant 0 : index
    %24 = vector.load %arg1[%c0_18, %c3, %c0_19, %c0_20] : memref<1x4x100x256xbf16, #tpu.memory_space<vmem>>, vector<1x1x100x256xbf16>
    %25 = vector.shape_cast %24 : vector<1x1x100x256xbf16> to vector<100x256xbf16>
    %cst_21 = arith.constant dense<0.000000e+00> : vector<100x32xf32>
    %26 = tpu.matmul %25, %0, %cst_21 {dimension_numbers = #tpu.dot_dimension_numbers<[1], [0], [0], [1], [0, 0, 1, 1], [], []>} : vector<100x256xbf16>, vector<256x32xbf16>, vector<100x32xf32> -> vector<100x32xf32>
    %27 = vector.broadcast %1 : vector<1x32xf32> to vector<100x32xf32>
    %28 = arith.addf %26, %27 : vector<100x32xf32>
    %cst_22 = arith.constant 0.000000e+00 : f32
    %29 = vector.broadcast %cst_22 : f32 to vector<100x32xf32>
    %30 = arith.maximumf %28, %29 : vector<100x32xf32>
    %31 = arith.maximumf %23, %30 : vector<100x32xf32>
    %32 = arith.maximumf %16, %31 : vector<100x32xf32>
    %33 = arith.truncf %32 : vector<100x32xf32> to vector<100x32xbf16>
    %cst_23 = arith.constant 0.000000e+00 : f32
    %34 = vector.broadcast %cst_23 : f32 to vector<25x64xf32>
    %c0_24 = arith.constant 0 : index
    %c0_25 = arith.constant 0 : index
    %c0_26 = arith.constant 0 : index
    %35 = vector.load %arg4[%c0_24, %c0_25, %c0_26] : memref<16x25x100xbf16, #tpu.memory_space<vmem>>, vector<1x25x100xbf16>
    %36 = vector.shape_cast %35 : vector<1x25x100xbf16> to vector<25x100xbf16>
    %cst_27 = arith.constant dense<0.000000e+00> : vector<25x32xf32>
    %37 = tpu.matmul %36, %33, %cst_27 {dimension_numbers = #tpu.dot_dimension_numbers<[1], [0], [0], [1], [0, 0, 1, 1], [], []>} : vector<25x100xbf16>, vector<100x32xbf16>, vector<25x32xf32> -> vector<25x32xf32>
    %38 = arith.truncf %37 : vector<25x32xf32> to vector<25x32xbf16>
    %c0_28 = arith.constant 0 : index
    %c0_29 = arith.constant 0 : index
    %c0_30 = arith.constant 0 : index
    %39 = vector.load %arg5[%c0_28, %c0_29, %c0_30] : memref<16x32x64xbf16, #tpu.memory_space<vmem>>, vector<1x32x64xbf16>
    %40 = vector.shape_cast %39 : vector<1x32x64xbf16> to vector<32x64xbf16>
    %cst_31 = arith.constant dense<0.000000e+00> : vector<25x64xf32>
    %41 = tpu.matmul %38, %40, %cst_31 {dimension_numbers = #tpu.dot_dimension_numbers<[1], [0], [0], [1], [0, 0, 1, 1], [], []>} : vector<25x32xbf16>, vector<32x64xbf16>, vector<25x64xf32> -> vector<25x64xf32>
    %42 = arith.addf %34, %41 : vector<25x64xf32>
    %c1_32 = arith.constant 1 : index
    %c0_33 = arith.constant 0 : index
    %c0_34 = arith.constant 0 : index
    %43 = vector.load %arg4[%c1_32, %c0_33, %c0_34] : memref<16x25x100xbf16, #tpu.memory_space<vmem>>, vector<1x25x100xbf16>
    %44 = vector.shape_cast %43 : vector<1x25x100xbf16> to vector<25x100xbf16>
    %cst_35 = arith.constant dense<0.000000e+00> : vector<25x32xf32>
    %45 = tpu.matmul %44, %33, %cst_35 {dimension_numbers = #tpu.dot_dimension_numbers<[1], [0], [0], [1], [0, 0, 1, 1], [], []>} : vector<25x100xbf16>, vector<100x32xbf16>, vector<25x32xf32> -> vector<25x32xf32>
    %46 = arith.truncf %45 : vector<25x32xf32> to vector<25x32xbf16>
    %c1_36 = arith.constant 1 : index
    %c0_37 = arith.constant 0 : index
    %c0_38 = arith.constant 0 : index
    %47 = vector.load %arg5[%c1_36, %c0_37, %c0_38] : memref<16x32x64xbf16, #tpu.memory_space<vmem>>, vector<1x32x64xbf16>
    %48 = vector.shape_cast %47 : vector<1x32x64xbf16> to vector<32x64xbf16>
    %cst_39 = arith.constant dense<0.000000e+00> : vector<25x64xf32>
    %49 = tpu.matmul %46, %48, %cst_39 {dimension_numbers = #tpu.dot_dimension_numbers<[1], [0], [0], [1], [0, 0, 1, 1], [], []>} : vector<25x32xbf16>, vector<32x64xbf16>, vector<25x64xf32> -> vector<25x64xf32>
    %50 = arith.addf %42, %49 : vector<25x64xf32>
    %c2_40 = arith.constant 2 : index
    %c0_41 = arith.constant 0 : index
    %c0_42 = arith.constant 0 : index
    %51 = vector.load %arg4[%c2_40, %c0_41, %c0_42] : memref<16x25x100xbf16, #tpu.memory_space<vmem>>, vector<1x25x100xbf16>
    %52 = vector.shape_cast %51 : vector<1x25x100xbf16> to vector<25x100xbf16>
    %cst_43 = arith.constant dense<0.000000e+00> : vector<25x32xf32>
    %53 = tpu.matmul %52, %33, %cst_43 {dimension_numbers = #tpu.dot_dimension_numbers<[1], [0], [0], [1], [0, 0, 1, 1], [], []>} : vector<25x100xbf16>, vector<100x32xbf16>, vector<25x32xf32> -> vector<25x32xf32>
    %54 = arith.truncf %53 : vector<25x32xf32> to vector<25x32xbf16>
    %c2_44 = arith.constant 2 : index
    %c0_45 = arith.constant 0 : index
    %c0_46 = arith.constant 0 : index
    %55 = vector.load %arg5[%c2_44, %c0_45, %c0_46] : memref<16x32x64xbf16, #tpu.memory_space<vmem>>, vector<1x32x64xbf16>
    %56 = vector.shape_cast %55 : vector<1x32x64xbf16> to vector<32x64xbf16>
    %cst_47 = arith.constant dense<0.000000e+00> : vector<25x64xf32>
    %57 = tpu.matmul %54, %56, %cst_47 {dimension_numbers = #tpu.dot_dimension_numbers<[1], [0], [0], [1], [0, 0, 1, 1], [], []>} : vector<25x32xbf16>, vector<32x64xbf16>, vector<25x64xf32> -> vector<25x64xf32>
    %58 = arith.addf %50, %57 : vector<25x64xf32>
    %c3_48 = arith.constant 3 : index
    %c0_49 = arith.constant 0 : index
    %c0_50 = arith.constant 0 : index
    %59 = vector.load %arg4[%c3_48, %c0_49, %c0_50] : memref<16x25x100xbf16, #tpu.memory_space<vmem>>, vector<1x25x100xbf16>
    %60 = vector.shape_cast %59 : vector<1x25x100xbf16> to vector<25x100xbf16>
    %cst_51 = arith.constant dense<0.000000e+00> : vector<25x32xf32>
    %61 = tpu.matmul %60, %33, %cst_51 {dimension_numbers = #tpu.dot_dimension_numbers<[1], [0], [0], [1], [0, 0, 1, 1], [], []>} : vector<25x100xbf16>, vector<100x32xbf16>, vector<25x32xf32> -> vector<25x32xf32>
    %62 = arith.truncf %61 : vector<25x32xf32> to vector<25x32xbf16>
    %c3_52 = arith.constant 3 : index
    %c0_53 = arith.constant 0 : index
    %c0_54 = arith.constant 0 : index
    %63 = vector.load %arg5[%c3_52, %c0_53, %c0_54] : memref<16x32x64xbf16, #tpu.memory_space<vmem>>, vector<1x32x64xbf16>
    %64 = vector.shape_cast %63 : vector<1x32x64xbf16> to vector<32x64xbf16>
    %cst_55 = arith.constant dense<0.000000e+00> : vector<25x64xf32>
    %65 = tpu.matmul %62, %64, %cst_55 {dimension_numbers = #tpu.dot_dimension_numbers<[1], [0], [0], [1], [0, 0, 1, 1], [], []>} : vector<25x32xbf16>, vector<32x64xbf16>, vector<25x64xf32> -> vector<25x64xf32>
    %66 = arith.addf %58, %65 : vector<25x64xf32>
    %c4 = arith.constant 4 : index
    %c0_56 = arith.constant 0 : index
    %c0_57 = arith.constant 0 : index
    %67 = vector.load %arg4[%c4, %c0_56, %c0_57] : memref<16x25x100xbf16, #tpu.memory_space<vmem>>, vector<1x25x100xbf16>
    %68 = vector.shape_cast %67 : vector<1x25x100xbf16> to vector<25x100xbf16>
    %cst_58 = arith.constant dense<0.000000e+00> : vector<25x32xf32>
    %69 = tpu.matmul %68, %33, %cst_58 {dimension_numbers = #tpu.dot_dimension_numbers<[1], [0], [0], [1], [0, 0, 1, 1], [], []>} : vector<25x100xbf16>, vector<100x32xbf16>, vector<25x32xf32> -> vector<25x32xf32>
    %70 = arith.truncf %69 : vector<25x32xf32> to vector<25x32xbf16>
    %c4_59 = arith.constant 4 : index
    %c0_60 = arith.constant 0 : index
    %c0_61 = arith.constant 0 : index
    %71 = vector.load %arg5[%c4_59, %c0_60, %c0_61] : memref<16x32x64xbf16, #tpu.memory_space<vmem>>, vector<1x32x64xbf16>
    %72 = vector.shape_cast %71 : vector<1x32x64xbf16> to vector<32x64xbf16>
    %cst_62 = arith.constant dense<0.000000e+00> : vector<25x64xf32>
    %73 = tpu.matmul %70, %72, %cst_62 {dimension_numbers = #tpu.dot_dimension_numbers<[1], [0], [0], [1], [0, 0, 1, 1], [], []>} : vector<25x32xbf16>, vector<32x64xbf16>, vector<25x64xf32> -> vector<25x64xf32>
    %74 = arith.addf %66, %73 : vector<25x64xf32>
    %c5 = arith.constant 5 : index
    %c0_63 = arith.constant 0 : index
    %c0_64 = arith.constant 0 : index
    %75 = vector.load %arg4[%c5, %c0_63, %c0_64] : memref<16x25x100xbf16, #tpu.memory_space<vmem>>, vector<1x25x100xbf16>
    %76 = vector.shape_cast %75 : vector<1x25x100xbf16> to vector<25x100xbf16>
    %cst_65 = arith.constant dense<0.000000e+00> : vector<25x32xf32>
    %77 = tpu.matmul %76, %33, %cst_65 {dimension_numbers = #tpu.dot_dimension_numbers<[1], [0], [0], [1], [0, 0, 1, 1], [], []>} : vector<25x100xbf16>, vector<100x32xbf16>, vector<25x32xf32> -> vector<25x32xf32>
    %78 = arith.truncf %77 : vector<25x32xf32> to vector<25x32xbf16>
    %c5_66 = arith.constant 5 : index
    %c0_67 = arith.constant 0 : index
    %c0_68 = arith.constant 0 : index
    %79 = vector.load %arg5[%c5_66, %c0_67, %c0_68] : memref<16x32x64xbf16, #tpu.memory_space<vmem>>, vector<1x32x64xbf16>
    %80 = vector.shape_cast %79 : vector<1x32x64xbf16> to vector<32x64xbf16>
    %cst_69 = arith.constant dense<0.000000e+00> : vector<25x64xf32>
    %81 = tpu.matmul %78, %80, %cst_69 {dimension_numbers = #tpu.dot_dimension_numbers<[1], [0], [0], [1], [0, 0, 1, 1], [], []>} : vector<25x32xbf16>, vector<32x64xbf16>, vector<25x64xf32> -> vector<25x64xf32>
    %82 = arith.addf %74, %81 : vector<25x64xf32>
    %c6 = arith.constant 6 : index
    %c0_70 = arith.constant 0 : index
    %c0_71 = arith.constant 0 : index
    %83 = vector.load %arg4[%c6, %c0_70, %c0_71] : memref<16x25x100xbf16, #tpu.memory_space<vmem>>, vector<1x25x100xbf16>
    %84 = vector.shape_cast %83 : vector<1x25x100xbf16> to vector<25x100xbf16>
    %cst_72 = arith.constant dense<0.000000e+00> : vector<25x32xf32>
    %85 = tpu.matmul %84, %33, %cst_72 {dimension_numbers = #tpu.dot_dimension_numbers<[1], [0], [0], [1], [0, 0, 1, 1], [], []>} : vector<25x100xbf16>, vector<100x32xbf16>, vector<25x32xf32> -> vector<25x32xf32>
    %86 = arith.truncf %85 : vector<25x32xf32> to vector<25x32xbf16>
    %c6_73 = arith.constant 6 : index
    %c0_74 = arith.constant 0 : index
    %c0_75 = arith.constant 0 : index
    %87 = vector.load %arg5[%c6_73, %c0_74, %c0_75] : memref<16x32x64xbf16, #tpu.memory_space<vmem>>, vector<1x32x64xbf16>
    %88 = vector.shape_cast %87 : vector<1x32x64xbf16> to vector<32x64xbf16>
    %cst_76 = arith.constant dense<0.000000e+00> : vector<25x64xf32>
    %89 = tpu.matmul %86, %88, %cst_76 {dimension_numbers = #tpu.dot_dimension_numbers<[1], [0], [0], [1], [0, 0, 1, 1], [], []>} : vector<25x32xbf16>, vector<32x64xbf16>, vector<25x64xf32> -> vector<25x64xf32>
    %90 = arith.addf %82, %89 : vector<25x64xf32>
    %c7 = arith.constant 7 : index
    %c0_77 = arith.constant 0 : index
    %c0_78 = arith.constant 0 : index
    %91 = vector.load %arg4[%c7, %c0_77, %c0_78] : memref<16x25x100xbf16, #tpu.memory_space<vmem>>, vector<1x25x100xbf16>
    %92 = vector.shape_cast %91 : vector<1x25x100xbf16> to vector<25x100xbf16>
    %cst_79 = arith.constant dense<0.000000e+00> : vector<25x32xf32>
    %93 = tpu.matmul %92, %33, %cst_79 {dimension_numbers = #tpu.dot_dimension_numbers<[1], [0], [0], [1], [0, 0, 1, 1], [], []>} : vector<25x100xbf16>, vector<100x32xbf16>, vector<25x32xf32> -> vector<25x32xf32>
    %94 = arith.truncf %93 : vector<25x32xf32> to vector<25x32xbf16>
    %c7_80 = arith.constant 7 : index
    %c0_81 = arith.constant 0 : index
    %c0_82 = arith.constant 0 : index
    %95 = vector.load %arg5[%c7_80, %c0_81, %c0_82] : memref<16x32x64xbf16, #tpu.memory_space<vmem>>, vector<1x32x64xbf16>
    %96 = vector.shape_cast %95 : vector<1x32x64xbf16> to vector<32x64xbf16>
    %cst_83 = arith.constant dense<0.000000e+00> : vector<25x64xf32>
    %97 = tpu.matmul %94, %96, %cst_83 {dimension_numbers = #tpu.dot_dimension_numbers<[1], [0], [0], [1], [0, 0, 1, 1], [], []>} : vector<25x32xbf16>, vector<32x64xbf16>, vector<25x64xf32> -> vector<25x64xf32>
    %98 = arith.addf %90, %97 : vector<25x64xf32>
    %c8 = arith.constant 8 : index
    %c0_84 = arith.constant 0 : index
    %c0_85 = arith.constant 0 : index
    %99 = vector.load %arg4[%c8, %c0_84, %c0_85] : memref<16x25x100xbf16, #tpu.memory_space<vmem>>, vector<1x25x100xbf16>
    %100 = vector.shape_cast %99 : vector<1x25x100xbf16> to vector<25x100xbf16>
    %cst_86 = arith.constant dense<0.000000e+00> : vector<25x32xf32>
    %101 = tpu.matmul %100, %33, %cst_86 {dimension_numbers = #tpu.dot_dimension_numbers<[1], [0], [0], [1], [0, 0, 1, 1], [], []>} : vector<25x100xbf16>, vector<100x32xbf16>, vector<25x32xf32> -> vector<25x32xf32>
    %102 = arith.truncf %101 : vector<25x32xf32> to vector<25x32xbf16>
    %c8_87 = arith.constant 8 : index
    %c0_88 = arith.constant 0 : index
    %c0_89 = arith.constant 0 : index
    %103 = vector.load %arg5[%c8_87, %c0_88, %c0_89] : memref<16x32x64xbf16, #tpu.memory_space<vmem>>, vector<1x32x64xbf16>
    %104 = vector.shape_cast %103 : vector<1x32x64xbf16> to vector<32x64xbf16>
    %cst_90 = arith.constant dense<0.000000e+00> : vector<25x64xf32>
    %105 = tpu.matmul %102, %104, %cst_90 {dimension_numbers = #tpu.dot_dimension_numbers<[1], [0], [0], [1], [0, 0, 1, 1], [], []>} : vector<25x32xbf16>, vector<32x64xbf16>, vector<25x64xf32> -> vector<25x64xf32>
    %106 = arith.addf %98, %105 : vector<25x64xf32>
    %c9 = arith.constant 9 : index
    %c0_91 = arith.constant 0 : index
    %c0_92 = arith.constant 0 : index
    %107 = vector.load %arg4[%c9, %c0_91, %c0_92] : memref<16x25x100xbf16, #tpu.memory_space<vmem>>, vector<1x25x100xbf16>
    %108 = vector.shape_cast %107 : vector<1x25x100xbf16> to vector<25x100xbf16>
    %cst_93 = arith.constant dense<0.000000e+00> : vector<25x32xf32>
    %109 = tpu.matmul %108, %33, %cst_93 {dimension_numbers = #tpu.dot_dimension_numbers<[1], [0], [0], [1], [0, 0, 1, 1], [], []>} : vector<25x100xbf16>, vector<100x32xbf16>, vector<25x32xf32> -> vector<25x32xf32>
    %110 = arith.truncf %109 : vector<25x32xf32> to vector<25x32xbf16>
    %c9_94 = arith.constant 9 : index
    %c0_95 = arith.constant 0 : index
    %c0_96 = arith.constant 0 : index
    %111 = vector.load %arg5[%c9_94, %c0_95, %c0_96] : memref<16x32x64xbf16, #tpu.memory_space<vmem>>, vector<1x32x64xbf16>
    %112 = vector.shape_cast %111 : vector<1x32x64xbf16> to vector<32x64xbf16>
    %cst_97 = arith.constant dense<0.000000e+00> : vector<25x64xf32>
    %113 = tpu.matmul %110, %112, %cst_97 {dimension_numbers = #tpu.dot_dimension_numbers<[1], [0], [0], [1], [0, 0, 1, 1], [], []>} : vector<25x32xbf16>, vector<32x64xbf16>, vector<25x64xf32> -> vector<25x64xf32>
    %114 = arith.addf %106, %113 : vector<25x64xf32>
    %c10 = arith.constant 10 : index
    %c0_98 = arith.constant 0 : index
    %c0_99 = arith.constant 0 : index
    %115 = vector.load %arg4[%c10, %c0_98, %c0_99] : memref<16x25x100xbf16, #tpu.memory_space<vmem>>, vector<1x25x100xbf16>
    %116 = vector.shape_cast %115 : vector<1x25x100xbf16> to vector<25x100xbf16>
    %cst_100 = arith.constant dense<0.000000e+00> : vector<25x32xf32>
    %117 = tpu.matmul %116, %33, %cst_100 {dimension_numbers = #tpu.dot_dimension_numbers<[1], [0], [0], [1], [0, 0, 1, 1], [], []>} : vector<25x100xbf16>, vector<100x32xbf16>, vector<25x32xf32> -> vector<25x32xf32>
    %118 = arith.truncf %117 : vector<25x32xf32> to vector<25x32xbf16>
    %c10_101 = arith.constant 10 : index
    %c0_102 = arith.constant 0 : index
    %c0_103 = arith.constant 0 : index
    %119 = vector.load %arg5[%c10_101, %c0_102, %c0_103] : memref<16x32x64xbf16, #tpu.memory_space<vmem>>, vector<1x32x64xbf16>
    %120 = vector.shape_cast %119 : vector<1x32x64xbf16> to vector<32x64xbf16>
    %cst_104 = arith.constant dense<0.000000e+00> : vector<25x64xf32>
    %121 = tpu.matmul %118, %120, %cst_104 {dimension_numbers = #tpu.dot_dimension_numbers<[1], [0], [0], [1], [0, 0, 1, 1], [], []>} : vector<25x32xbf16>, vector<32x64xbf16>, vector<25x64xf32> -> vector<25x64xf32>
    %122 = arith.addf %114, %121 : vector<25x64xf32>
    %c11 = arith.constant 11 : index
    %c0_105 = arith.constant 0 : index
    %c0_106 = arith.constant 0 : index
    %123 = vector.load %arg4[%c11, %c0_105, %c0_106] : memref<16x25x100xbf16, #tpu.memory_space<vmem>>, vector<1x25x100xbf16>
    %124 = vector.shape_cast %123 : vector<1x25x100xbf16> to vector<25x100xbf16>
    %cst_107 = arith.constant dense<0.000000e+00> : vector<25x32xf32>
    %125 = tpu.matmul %124, %33, %cst_107 {dimension_numbers = #tpu.dot_dimension_numbers<[1], [0], [0], [1], [0, 0, 1, 1], [], []>} : vector<25x100xbf16>, vector<100x32xbf16>, vector<25x32xf32> -> vector<25x32xf32>
    %126 = arith.truncf %125 : vector<25x32xf32> to vector<25x32xbf16>
    %c11_108 = arith.constant 11 : index
    %c0_109 = arith.constant 0 : index
    %c0_110 = arith.constant 0 : index
    %127 = vector.load %arg5[%c11_108, %c0_109, %c0_110] : memref<16x32x64xbf16, #tpu.memory_space<vmem>>, vector<1x32x64xbf16>
    %128 = vector.shape_cast %127 : vector<1x32x64xbf16> to vector<32x64xbf16>
    %cst_111 = arith.constant dense<0.000000e+00> : vector<25x64xf32>
    %129 = tpu.matmul %126, %128, %cst_111 {dimension_numbers = #tpu.dot_dimension_numbers<[1], [0], [0], [1], [0, 0, 1, 1], [], []>} : vector<25x32xbf16>, vector<32x64xbf16>, vector<25x64xf32> -> vector<25x64xf32>
    %130 = arith.addf %122, %129 : vector<25x64xf32>
    %c12 = arith.constant 12 : index
    %c0_112 = arith.constant 0 : index
    %c0_113 = arith.constant 0 : index
    %131 = vector.load %arg4[%c12, %c0_112, %c0_113] : memref<16x25x100xbf16, #tpu.memory_space<vmem>>, vector<1x25x100xbf16>
    %132 = vector.shape_cast %131 : vector<1x25x100xbf16> to vector<25x100xbf16>
    %cst_114 = arith.constant dense<0.000000e+00> : vector<25x32xf32>
    %133 = tpu.matmul %132, %33, %cst_114 {dimension_numbers = #tpu.dot_dimension_numbers<[1], [0], [0], [1], [0, 0, 1, 1], [], []>} : vector<25x100xbf16>, vector<100x32xbf16>, vector<25x32xf32> -> vector<25x32xf32>
    %134 = arith.truncf %133 : vector<25x32xf32> to vector<25x32xbf16>
    %c12_115 = arith.constant 12 : index
    %c0_116 = arith.constant 0 : index
    %c0_117 = arith.constant 0 : index
    %135 = vector.load %arg5[%c12_115, %c0_116, %c0_117] : memref<16x32x64xbf16, #tpu.memory_space<vmem>>, vector<1x32x64xbf16>
    %136 = vector.shape_cast %135 : vector<1x32x64xbf16> to vector<32x64xbf16>
    %cst_118 = arith.constant dense<0.000000e+00> : vector<25x64xf32>
    %137 = tpu.matmul %134, %136, %cst_118 {dimension_numbers = #tpu.dot_dimension_numbers<[1], [0], [0], [1], [0, 0, 1, 1], [], []>} : vector<25x32xbf16>, vector<32x64xbf16>, vector<25x64xf32> -> vector<25x64xf32>
    %138 = arith.addf %130, %137 : vector<25x64xf32>
    %c13 = arith.constant 13 : index
    %c0_119 = arith.constant 0 : index
    %c0_120 = arith.constant 0 : index
    %139 = vector.load %arg4[%c13, %c0_119, %c0_120] : memref<16x25x100xbf16, #tpu.memory_space<vmem>>, vector<1x25x100xbf16>
    %140 = vector.shape_cast %139 : vector<1x25x100xbf16> to vector<25x100xbf16>
    %cst_121 = arith.constant dense<0.000000e+00> : vector<25x32xf32>
    %141 = tpu.matmul %140, %33, %cst_121 {dimension_numbers = #tpu.dot_dimension_numbers<[1], [0], [0], [1], [0, 0, 1, 1], [], []>} : vector<25x100xbf16>, vector<100x32xbf16>, vector<25x32xf32> -> vector<25x32xf32>
    %142 = arith.truncf %141 : vector<25x32xf32> to vector<25x32xbf16>
    %c13_122 = arith.constant 13 : index
    %c0_123 = arith.constant 0 : index
    %c0_124 = arith.constant 0 : index
    %143 = vector.load %arg5[%c13_122, %c0_123, %c0_124] : memref<16x32x64xbf16, #tpu.memory_space<vmem>>, vector<1x32x64xbf16>
    %144 = vector.shape_cast %143 : vector<1x32x64xbf16> to vector<32x64xbf16>
    %cst_125 = arith.constant dense<0.000000e+00> : vector<25x64xf32>
    %145 = tpu.matmul %142, %144, %cst_125 {dimension_numbers = #tpu.dot_dimension_numbers<[1], [0], [0], [1], [0, 0, 1, 1], [], []>} : vector<25x32xbf16>, vector<32x64xbf16>, vector<25x64xf32> -> vector<25x64xf32>
    %146 = arith.addf %138, %145 : vector<25x64xf32>
    %c14 = arith.constant 14 : index
    %c0_126 = arith.constant 0 : index
    %c0_127 = arith.constant 0 : index
    %147 = vector.load %arg4[%c14, %c0_126, %c0_127] : memref<16x25x100xbf16, #tpu.memory_space<vmem>>, vector<1x25x100xbf16>
    %148 = vector.shape_cast %147 : vector<1x25x100xbf16> to vector<25x100xbf16>
    %cst_128 = arith.constant dense<0.000000e+00> : vector<25x32xf32>
    %149 = tpu.matmul %148, %33, %cst_128 {dimension_numbers = #tpu.dot_dimension_numbers<[1], [0], [0], [1], [0, 0, 1, 1], [], []>} : vector<25x100xbf16>, vector<100x32xbf16>, vector<25x32xf32> -> vector<25x32xf32>
    %150 = arith.truncf %149 : vector<25x32xf32> to vector<25x32xbf16>
    %c14_129 = arith.constant 14 : index
    %c0_130 = arith.constant 0 : index
    %c0_131 = arith.constant 0 : index
    %151 = vector.load %arg5[%c14_129, %c0_130, %c0_131] : memref<16x32x64xbf16, #tpu.memory_space<vmem>>, vector<1x32x64xbf16>
    %152 = vector.shape_cast %151 : vector<1x32x64xbf16> to vector<32x64xbf16>
    %cst_132 = arith.constant dense<0.000000e+00> : vector<25x64xf32>
    %153 = tpu.matmul %150, %152, %cst_132 {dimension_numbers = #tpu.dot_dimension_numbers<[1], [0], [0], [1], [0, 0, 1, 1], [], []>} : vector<25x32xbf16>, vector<32x64xbf16>, vector<25x64xf32> -> vector<25x64xf32>
    %154 = arith.addf %146, %153 : vector<25x64xf32>
    %c15 = arith.constant 15 : index
    %c0_133 = arith.constant 0 : index
    %c0_134 = arith.constant 0 : index
    %155 = vector.load %arg4[%c15, %c0_133, %c0_134] : memref<16x25x100xbf16, #tpu.memory_space<vmem>>, vector<1x25x100xbf16>
    %156 = vector.shape_cast %155 : vector<1x25x100xbf16> to vector<25x100xbf16>
    %cst_135 = arith.constant dense<0.000000e+00> : vector<25x32xf32>
    %157 = tpu.matmul %156, %33, %cst_135 {dimension_numbers = #tpu.dot_dimension_numbers<[1], [0], [0], [1], [0, 0, 1, 1], [], []>} : vector<25x100xbf16>, vector<100x32xbf16>, vector<25x32xf32> -> vector<25x32xf32>
    %158 = arith.truncf %157 : vector<25x32xf32> to vector<25x32xbf16>
    %c15_136 = arith.constant 15 : index
    %c0_137 = arith.constant 0 : index
    %c0_138 = arith.constant 0 : index
    %159 = vector.load %arg5[%c15_136, %c0_137, %c0_138] : memref<16x32x64xbf16, #tpu.memory_space<vmem>>, vector<1x32x64xbf16>
    %160 = vector.shape_cast %159 : vector<1x32x64xbf16> to vector<32x64xbf16>
    %cst_139 = arith.constant dense<0.000000e+00> : vector<25x64xf32>
    %161 = tpu.matmul %158, %160, %cst_139 {dimension_numbers = #tpu.dot_dimension_numbers<[1], [0], [0], [1], [0, 0, 1, 1], [], []>} : vector<25x32xbf16>, vector<32x64xbf16>, vector<25x64xf32> -> vector<25x64xf32>
    %162 = arith.addf %154, %161 : vector<25x64xf32>
    %c0_140 = arith.constant 0 : index
    %c0_141 = arith.constant 0 : index
    %163 = vector.load %arg6[%c0_140, %c0_141] : memref<1x64xf32, #tpu.memory_space<vmem>>, vector<1x64xf32>
    %164 = vector.broadcast %163 : vector<1x64xf32> to vector<25x64xf32>
    %165 = arith.addf %162, %164 : vector<25x64xf32>
    %cst_142 = arith.constant 0.000000e+00 : f32
    %166 = vector.broadcast %cst_142 : f32 to vector<25x64xf32>
    %167 = arith.maximumf %165, %166 : vector<25x64xf32>
    %168 = arith.truncf %167 : vector<25x64xf32> to vector<25x64xbf16>
    %cst_143 = arith.constant 0.000000e+00 : f32
    %169 = vector.broadcast %cst_143 : f32 to vector<25x64xf32>
    %c0_144 = arith.constant 0 : index
    %c0_145 = arith.constant 0 : index
    %c0_146 = arith.constant 0 : index
    %170 = vector.load %arg7[%c0_144, %c0_145, %c0_146] : memref<9x25x25xbf16, #tpu.memory_space<vmem>>, vector<1x25x25xbf16>
    %171 = vector.shape_cast %170 : vector<1x25x25xbf16> to vector<25x25xbf16>
    %cst_147 = arith.constant dense<0.000000e+00> : vector<25x64xf32>
    %172 = tpu.matmul %171, %168, %cst_147 {dimension_numbers = #tpu.dot_dimension_numbers<[1], [0], [0], [1], [0, 0, 1, 1], [], []>} : vector<25x25xbf16>, vector<25x64xbf16>, vector<25x64xf32> -> vector<25x64xf32>
    %173 = arith.truncf %172 : vector<25x64xf32> to vector<25x64xbf16>
    %c0_148 = arith.constant 0 : index
    %c0_149 = arith.constant 0 : index
    %c0_150 = arith.constant 0 : index
    %174 = vector.load %arg8[%c0_148, %c0_149, %c0_150] : memref<9x64x64xbf16, #tpu.memory_space<vmem>>, vector<1x64x64xbf16>
    %175 = vector.shape_cast %174 : vector<1x64x64xbf16> to vector<64x64xbf16>
    %cst_151 = arith.constant dense<0.000000e+00> : vector<25x64xf32>
    %176 = tpu.matmul %173, %175, %cst_151 {dimension_numbers = #tpu.dot_dimension_numbers<[1], [0], [0], [1], [0, 0, 1, 1], [], []>} : vector<25x64xbf16>, vector<64x64xbf16>, vector<25x64xf32> -> vector<25x64xf32>
    %177 = arith.addf %169, %176 : vector<25x64xf32>
    %c1_152 = arith.constant 1 : index
    %c0_153 = arith.constant 0 : index
    %c0_154 = arith.constant 0 : index
    %178 = vector.load %arg7[%c1_152, %c0_153, %c0_154] : memref<9x25x25xbf16, #tpu.memory_space<vmem>>, vector<1x25x25xbf16>
    %179 = vector.shape_cast %178 : vector<1x25x25xbf16> to vector<25x25xbf16>
    %cst_155 = arith.constant dense<0.000000e+00> : vector<25x64xf32>
    %180 = tpu.matmul %179, %168, %cst_155 {dimension_numbers = #tpu.dot_dimension_numbers<[1], [0], [0], [1], [0, 0, 1, 1], [], []>} : vector<25x25xbf16>, vector<25x64xbf16>, vector<25x64xf32> -> vector<25x64xf32>
    %181 = arith.truncf %180 : vector<25x64xf32> to vector<25x64xbf16>
    %c1_156 = arith.constant 1 : index
    %c0_157 = arith.constant 0 : index
    %c0_158 = arith.constant 0 : index
    %182 = vector.load %arg8[%c1_156, %c0_157, %c0_158] : memref<9x64x64xbf16, #tpu.memory_space<vmem>>, vector<1x64x64xbf16>
    %183 = vector.shape_cast %182 : vector<1x64x64xbf16> to vector<64x64xbf16>
    %cst_159 = arith.constant dense<0.000000e+00> : vector<25x64xf32>
    %184 = tpu.matmul %181, %183, %cst_159 {dimension_numbers = #tpu.dot_dimension_numbers<[1], [0], [0], [1], [0, 0, 1, 1], [], []>} : vector<25x64xbf16>, vector<64x64xbf16>, vector<25x64xf32> -> vector<25x64xf32>
    %185 = arith.addf %177, %184 : vector<25x64xf32>
    %c2_160 = arith.constant 2 : index
    %c0_161 = arith.constant 0 : index
    %c0_162 = arith.constant 0 : index
    %186 = vector.load %arg7[%c2_160, %c0_161, %c0_162] : memref<9x25x25xbf16, #tpu.memory_space<vmem>>, vector<1x25x25xbf16>
    %187 = vector.shape_cast %186 : vector<1x25x25xbf16> to vector<25x25xbf16>
    %cst_163 = arith.constant dense<0.000000e+00> : vector<25x64xf32>
    %188 = tpu.matmul %187, %168, %cst_163 {dimension_numbers = #tpu.dot_dimension_numbers<[1], [0], [0], [1], [0, 0, 1, 1], [], []>} : vector<25x25xbf16>, vector<25x64xbf16>, vector<25x64xf32> -> vector<25x64xf32>
    %189 = arith.truncf %188 : vector<25x64xf32> to vector<25x64xbf16>
    %c2_164 = arith.constant 2 : index
    %c0_165 = arith.constant 0 : index
    %c0_166 = arith.constant 0 : index
    %190 = vector.load %arg8[%c2_164, %c0_165, %c0_166] : memref<9x64x64xbf16, #tpu.memory_space<vmem>>, vector<1x64x64xbf16>
    %191 = vector.shape_cast %190 : vector<1x64x64xbf16> to vector<64x64xbf16>
    %cst_167 = arith.constant dense<0.000000e+00> : vector<25x64xf32>
    %192 = tpu.matmul %189, %191, %cst_167 {dimension_numbers = #tpu.dot_dimension_numbers<[1], [0], [0], [1], [0, 0, 1, 1], [], []>} : vector<25x64xbf16>, vector<64x64xbf16>, vector<25x64xf32> -> vector<25x64xf32>
    %193 = arith.addf %185, %192 : vector<25x64xf32>
    %c3_168 = arith.constant 3 : index
    %c0_169 = arith.constant 0 : index
    %c0_170 = arith.constant 0 : index
    %194 = vector.load %arg7[%c3_168, %c0_169, %c0_170] : memref<9x25x25xbf16, #tpu.memory_space<vmem>>, vector<1x25x25xbf16>
    %195 = vector.shape_cast %194 : vector<1x25x25xbf16> to vector<25x25xbf16>
    %cst_171 = arith.constant dense<0.000000e+00> : vector<25x64xf32>
    %196 = tpu.matmul %195, %168, %cst_171 {dimension_numbers = #tpu.dot_dimension_numbers<[1], [0], [0], [1], [0, 0, 1, 1], [], []>} : vector<25x25xbf16>, vector<25x64xbf16>, vector<25x64xf32> -> vector<25x64xf32>
    %197 = arith.truncf %196 : vector<25x64xf32> to vector<25x64xbf16>
    %c3_172 = arith.constant 3 : index
    %c0_173 = arith.constant 0 : index
    %c0_174 = arith.constant 0 : index
    %198 = vector.load %arg8[%c3_172, %c0_173, %c0_174] : memref<9x64x64xbf16, #tpu.memory_space<vmem>>, vector<1x64x64xbf16>
    %199 = vector.shape_cast %198 : vector<1x64x64xbf16> to vector<64x64xbf16>
    %cst_175 = arith.constant dense<0.000000e+00> : vector<25x64xf32>
    %200 = tpu.matmul %197, %199, %cst_175 {dimension_numbers = #tpu.dot_dimension_numbers<[1], [0], [0], [1], [0, 0, 1, 1], [], []>} : vector<25x64xbf16>, vector<64x64xbf16>, vector<25x64xf32> -> vector<25x64xf32>
    %201 = arith.addf %193, %200 : vector<25x64xf32>
    %c4_176 = arith.constant 4 : index
    %c0_177 = arith.constant 0 : index
    %c0_178 = arith.constant 0 : index
    %202 = vector.load %arg7[%c4_176, %c0_177, %c0_178] : memref<9x25x25xbf16, #tpu.memory_space<vmem>>, vector<1x25x25xbf16>
    %203 = vector.shape_cast %202 : vector<1x25x25xbf16> to vector<25x25xbf16>
    %cst_179 = arith.constant dense<0.000000e+00> : vector<25x64xf32>
    %204 = tpu.matmul %203, %168, %cst_179 {dimension_numbers = #tpu.dot_dimension_numbers<[1], [0], [0], [1], [0, 0, 1, 1], [], []>} : vector<25x25xbf16>, vector<25x64xbf16>, vector<25x64xf32> -> vector<25x64xf32>
    %205 = arith.truncf %204 : vector<25x64xf32> to vector<25x64xbf16>
    %c4_180 = arith.constant 4 : index
    %c0_181 = arith.constant 0 : index
    %c0_182 = arith.constant 0 : index
    %206 = vector.load %arg8[%c4_180, %c0_181, %c0_182] : memref<9x64x64xbf16, #tpu.memory_space<vmem>>, vector<1x64x64xbf16>
    %207 = vector.shape_cast %206 : vector<1x64x64xbf16> to vector<64x64xbf16>
    %cst_183 = arith.constant dense<0.000000e+00> : vector<25x64xf32>
    %208 = tpu.matmul %205, %207, %cst_183 {dimension_numbers = #tpu.dot_dimension_numbers<[1], [0], [0], [1], [0, 0, 1, 1], [], []>} : vector<25x64xbf16>, vector<64x64xbf16>, vector<25x64xf32> -> vector<25x64xf32>
    %209 = arith.addf %201, %208 : vector<25x64xf32>
    %c5_184 = arith.constant 5 : index
    %c0_185 = arith.constant 0 : index
    %c0_186 = arith.constant 0 : index
    %210 = vector.load %arg7[%c5_184, %c0_185, %c0_186] : memref<9x25x25xbf16, #tpu.memory_space<vmem>>, vector<1x25x25xbf16>
    %211 = vector.shape_cast %210 : vector<1x25x25xbf16> to vector<25x25xbf16>
    %cst_187 = arith.constant dense<0.000000e+00> : vector<25x64xf32>
    %212 = tpu.matmul %211, %168, %cst_187 {dimension_numbers = #tpu.dot_dimension_numbers<[1], [0], [0], [1], [0, 0, 1, 1], [], []>} : vector<25x25xbf16>, vector<25x64xbf16>, vector<25x64xf32> -> vector<25x64xf32>
    %213 = arith.truncf %212 : vector<25x64xf32> to vector<25x64xbf16>
    %c5_188 = arith.constant 5 : index
    %c0_189 = arith.constant 0 : index
    %c0_190 = arith.constant 0 : index
    %214 = vector.load %arg8[%c5_188, %c0_189, %c0_190] : memref<9x64x64xbf16, #tpu.memory_space<vmem>>, vector<1x64x64xbf16>
    %215 = vector.shape_cast %214 : vector<1x64x64xbf16> to vector<64x64xbf16>
    %cst_191 = arith.constant dense<0.000000e+00> : vector<25x64xf32>
    %216 = tpu.matmul %213, %215, %cst_191 {dimension_numbers = #tpu.dot_dimension_numbers<[1], [0], [0], [1], [0, 0, 1, 1], [], []>} : vector<25x64xbf16>, vector<64x64xbf16>, vector<25x64xf32> -> vector<25x64xf32>
    %217 = arith.addf %209, %216 : vector<25x64xf32>
    %c6_192 = arith.constant 6 : index
    %c0_193 = arith.constant 0 : index
    %c0_194 = arith.constant 0 : index
    %218 = vector.load %arg7[%c6_192, %c0_193, %c0_194] : memref<9x25x25xbf16, #tpu.memory_space<vmem>>, vector<1x25x25xbf16>
    %219 = vector.shape_cast %218 : vector<1x25x25xbf16> to vector<25x25xbf16>
    %cst_195 = arith.constant dense<0.000000e+00> : vector<25x64xf32>
    %220 = tpu.matmul %219, %168, %cst_195 {dimension_numbers = #tpu.dot_dimension_numbers<[1], [0], [0], [1], [0, 0, 1, 1], [], []>} : vector<25x25xbf16>, vector<25x64xbf16>, vector<25x64xf32> -> vector<25x64xf32>
    %221 = arith.truncf %220 : vector<25x64xf32> to vector<25x64xbf16>
    %c6_196 = arith.constant 6 : index
    %c0_197 = arith.constant 0 : index
    %c0_198 = arith.constant 0 : index
    %222 = vector.load %arg8[%c6_196, %c0_197, %c0_198] : memref<9x64x64xbf16, #tpu.memory_space<vmem>>, vector<1x64x64xbf16>
    %223 = vector.shape_cast %222 : vector<1x64x64xbf16> to vector<64x64xbf16>
    %cst_199 = arith.constant dense<0.000000e+00> : vector<25x64xf32>
    %224 = tpu.matmul %221, %223, %cst_199 {dimension_numbers = #tpu.dot_dimension_numbers<[1], [0], [0], [1], [0, 0, 1, 1], [], []>} : vector<25x64xbf16>, vector<64x64xbf16>, vector<25x64xf32> -> vector<25x64xf32>
    %225 = arith.addf %217, %224 : vector<25x64xf32>
    %c7_200 = arith.constant 7 : index
    %c0_201 = arith.constant 0 : index
    %c0_202 = arith.constant 0 : index
    %226 = vector.load %arg7[%c7_200, %c0_201, %c0_202] : memref<9x25x25xbf16, #tpu.memory_space<vmem>>, vector<1x25x25xbf16>
    %227 = vector.shape_cast %226 : vector<1x25x25xbf16> to vector<25x25xbf16>
    %cst_203 = arith.constant dense<0.000000e+00> : vector<25x64xf32>
    %228 = tpu.matmul %227, %168, %cst_203 {dimension_numbers = #tpu.dot_dimension_numbers<[1], [0], [0], [1], [0, 0, 1, 1], [], []>} : vector<25x25xbf16>, vector<25x64xbf16>, vector<25x64xf32> -> vector<25x64xf32>
    %229 = arith.truncf %228 : vector<25x64xf32> to vector<25x64xbf16>
    %c7_204 = arith.constant 7 : index
    %c0_205 = arith.constant 0 : index
    %c0_206 = arith.constant 0 : index
    %230 = vector.load %arg8[%c7_204, %c0_205, %c0_206] : memref<9x64x64xbf16, #tpu.memory_space<vmem>>, vector<1x64x64xbf16>
    %231 = vector.shape_cast %230 : vector<1x64x64xbf16> to vector<64x64xbf16>
    %cst_207 = arith.constant dense<0.000000e+00> : vector<25x64xf32>
    %232 = tpu.matmul %229, %231, %cst_207 {dimension_numbers = #tpu.dot_dimension_numbers<[1], [0], [0], [1], [0, 0, 1, 1], [], []>} : vector<25x64xbf16>, vector<64x64xbf16>, vector<25x64xf32> -> vector<25x64xf32>
    %233 = arith.addf %225, %232 : vector<25x64xf32>
    %c8_208 = arith.constant 8 : index
    %c0_209 = arith.constant 0 : index
    %c0_210 = arith.constant 0 : index
    %234 = vector.load %arg7[%c8_208, %c0_209, %c0_210] : memref<9x25x25xbf16, #tpu.memory_space<vmem>>, vector<1x25x25xbf16>
    %235 = vector.shape_cast %234 : vector<1x25x25xbf16> to vector<25x25xbf16>
    %cst_211 = arith.constant dense<0.000000e+00> : vector<25x64xf32>
    %236 = tpu.matmul %235, %168, %cst_211 {dimension_numbers = #tpu.dot_dimension_numbers<[1], [0], [0], [1], [0, 0, 1, 1], [], []>} : vector<25x25xbf16>, vector<25x64xbf16>, vector<25x64xf32> -> vector<25x64xf32>
    %237 = arith.truncf %236 : vector<25x64xf32> to vector<25x64xbf16>
    %c8_212 = arith.constant 8 : index
    %c0_213 = arith.constant 0 : index
    %c0_214 = arith.constant 0 : index
    %238 = vector.load %arg8[%c8_212, %c0_213, %c0_214] : memref<9x64x64xbf16, #tpu.memory_space<vmem>>, vector<1x64x64xbf16>
    %239 = vector.shape_cast %238 : vector<1x64x64xbf16> to vector<64x64xbf16>
    %cst_215 = arith.constant dense<0.000000e+00> : vector<25x64xf32>
    %240 = tpu.matmul %237, %239, %cst_215 {dimension_numbers = #tpu.dot_dimension_numbers<[1], [0], [0], [1], [0, 0, 1, 1], [], []>} : vector<25x64xbf16>, vector<64x64xbf16>, vector<25x64xf32> -> vector<25x64xf32>
    %241 = arith.addf %233, %240 : vector<25x64xf32>
    %c0_216 = arith.constant 0 : index
    %c0_217 = arith.constant 0 : index
    %242 = vector.load %arg9[%c0_216, %c0_217] : memref<1x64xf32, #tpu.memory_space<vmem>>, vector<1x64xf32>
    %243 = vector.broadcast %242 : vector<1x64xf32> to vector<25x64xf32>
    %244 = arith.addf %241, %243 : vector<25x64xf32>
    %cst_218 = arith.constant 0.000000e+00 : f32
    %245 = vector.broadcast %cst_218 : f32 to vector<25x64xf32>
    %246 = arith.maximumf %244, %245 : vector<25x64xf32>
    %cst_219 = arith.constant 0.000000e+00 : f32
    %247 = vector.broadcast %cst_219 : f32 to vector<1x256xf32>
    %248 = vector.extract_strided_slice %246 {offsets = [0, 0], sizes = [1, 64], strides = [1, 1]} : vector<25x64xf32> to vector<1x64xf32>
    %249 = arith.truncf %248 : vector<1x64xf32> to vector<1x64xbf16>
    %c0_220 = arith.constant 0 : index
    %c0_221 = arith.constant 0 : index
    %c0_222 = arith.constant 0 : index
    %250 = vector.load %arg10[%c0_220, %c0_221, %c0_222] : memref<25x64x256xbf16, #tpu.memory_space<vmem>>, vector<1x64x256xbf16>
    %251 = vector.shape_cast %250 : vector<1x64x256xbf16> to vector<64x256xbf16>
    %cst_223 = arith.constant dense<0.000000e+00> : vector<1x256xf32>
    %252 = tpu.matmul %249, %251, %cst_223 {dimension_numbers = #tpu.dot_dimension_numbers<[1], [0], [0], [1], [0, 0, 1, 1], [], []>} : vector<1x64xbf16>, vector<64x256xbf16>, vector<1x256xf32> -> vector<1x256xf32>
    %253 = arith.addf %247, %252 : vector<1x256xf32>
    %254 = vector.extract_strided_slice %246 {offsets = [1, 0], sizes = [1, 64], strides = [1, 1]} : vector<25x64xf32> to vector<1x64xf32>
    %255 = arith.truncf %254 : vector<1x64xf32> to vector<1x64xbf16>
    %c1_224 = arith.constant 1 : index
    %c0_225 = arith.constant 0 : index
    %c0_226 = arith.constant 0 : index
    %256 = vector.load %arg10[%c1_224, %c0_225, %c0_226] : memref<25x64x256xbf16, #tpu.memory_space<vmem>>, vector<1x64x256xbf16>
    %257 = vector.shape_cast %256 : vector<1x64x256xbf16> to vector<64x256xbf16>
    %cst_227 = arith.constant dense<0.000000e+00> : vector<1x256xf32>
    %258 = tpu.matmul %255, %257, %cst_227 {dimension_numbers = #tpu.dot_dimension_numbers<[1], [0], [0], [1], [0, 0, 1, 1], [], []>} : vector<1x64xbf16>, vector<64x256xbf16>, vector<1x256xf32> -> vector<1x256xf32>
    %259 = arith.addf %253, %258 : vector<1x256xf32>
    %260 = vector.extract_strided_slice %246 {offsets = [2, 0], sizes = [1, 64], strides = [1, 1]} : vector<25x64xf32> to vector<1x64xf32>
    %261 = arith.truncf %260 : vector<1x64xf32> to vector<1x64xbf16>
    %c2_228 = arith.constant 2 : index
    %c0_229 = arith.constant 0 : index
    %c0_230 = arith.constant 0 : index
    %262 = vector.load %arg10[%c2_228, %c0_229, %c0_230] : memref<25x64x256xbf16, #tpu.memory_space<vmem>>, vector<1x64x256xbf16>
    %263 = vector.shape_cast %262 : vector<1x64x256xbf16> to vector<64x256xbf16>
    %cst_231 = arith.constant dense<0.000000e+00> : vector<1x256xf32>
    %264 = tpu.matmul %261, %263, %cst_231 {dimension_numbers = #tpu.dot_dimension_numbers<[1], [0], [0], [1], [0, 0, 1, 1], [], []>} : vector<1x64xbf16>, vector<64x256xbf16>, vector<1x256xf32> -> vector<1x256xf32>
    %265 = arith.addf %259, %264 : vector<1x256xf32>
    %266 = vector.extract_strided_slice %246 {offsets = [3, 0], sizes = [1, 64], strides = [1, 1]} : vector<25x64xf32> to vector<1x64xf32>
    %267 = arith.truncf %266 : vector<1x64xf32> to vector<1x64xbf16>
    %c3_232 = arith.constant 3 : index
    %c0_233 = arith.constant 0 : index
    %c0_234 = arith.constant 0 : index
    %268 = vector.load %arg10[%c3_232, %c0_233, %c0_234] : memref<25x64x256xbf16, #tpu.memory_space<vmem>>, vector<1x64x256xbf16>
    %269 = vector.shape_cast %268 : vector<1x64x256xbf16> to vector<64x256xbf16>
    %cst_235 = arith.constant dense<0.000000e+00> : vector<1x256xf32>
    %270 = tpu.matmul %267, %269, %cst_235 {dimension_numbers = #tpu.dot_dimension_numbers<[1], [0], [0], [1], [0, 0, 1, 1], [], []>} : vector<1x64xbf16>, vector<64x256xbf16>, vector<1x256xf32> -> vector<1x256xf32>
    %271 = arith.addf %265, %270 : vector<1x256xf32>
    %272 = vector.extract_strided_slice %246 {offsets = [4, 0], sizes = [1, 64], strides = [1, 1]} : vector<25x64xf32> to vector<1x64xf32>
    %273 = arith.truncf %272 : vector<1x64xf32> to vector<1x64xbf16>
    %c4_236 = arith.constant 4 : index
    %c0_237 = arith.constant 0 : index
    %c0_238 = arith.constant 0 : index
    %274 = vector.load %arg10[%c4_236, %c0_237, %c0_238] : memref<25x64x256xbf16, #tpu.memory_space<vmem>>, vector<1x64x256xbf16>
    %275 = vector.shape_cast %274 : vector<1x64x256xbf16> to vector<64x256xbf16>
    %cst_239 = arith.constant dense<0.000000e+00> : vector<1x256xf32>
    %276 = tpu.matmul %273, %275, %cst_239 {dimension_numbers = #tpu.dot_dimension_numbers<[1], [0], [0], [1], [0, 0, 1, 1], [], []>} : vector<1x64xbf16>, vector<64x256xbf16>, vector<1x256xf32> -> vector<1x256xf32>
    %277 = arith.addf %271, %276 : vector<1x256xf32>
    %278 = vector.extract_strided_slice %246 {offsets = [5, 0], sizes = [1, 64], strides = [1, 1]} : vector<25x64xf32> to vector<1x64xf32>
    %279 = arith.truncf %278 : vector<1x64xf32> to vector<1x64xbf16>
    %c5_240 = arith.constant 5 : index
    %c0_241 = arith.constant 0 : index
    %c0_242 = arith.constant 0 : index
    %280 = vector.load %arg10[%c5_240, %c0_241, %c0_242] : memref<25x64x256xbf16, #tpu.memory_space<vmem>>, vector<1x64x256xbf16>
    %281 = vector.shape_cast %280 : vector<1x64x256xbf16> to vector<64x256xbf16>
    %cst_243 = arith.constant dense<0.000000e+00> : vector<1x256xf32>
    %282 = tpu.matmul %279, %281, %cst_243 {dimension_numbers = #tpu.dot_dimension_numbers<[1], [0], [0], [1], [0, 0, 1, 1], [], []>} : vector<1x64xbf16>, vector<64x256xbf16>, vector<1x256xf32> -> vector<1x256xf32>
    %283 = arith.addf %277, %282 : vector<1x256xf32>
    %284 = vector.extract_strided_slice %246 {offsets = [6, 0], sizes = [1, 64], strides = [1, 1]} : vector<25x64xf32> to vector<1x64xf32>
    %285 = arith.truncf %284 : vector<1x64xf32> to vector<1x64xbf16>
    %c6_244 = arith.constant 6 : index
    %c0_245 = arith.constant 0 : index
    %c0_246 = arith.constant 0 : index
    %286 = vector.load %arg10[%c6_244, %c0_245, %c0_246] : memref<25x64x256xbf16, #tpu.memory_space<vmem>>, vector<1x64x256xbf16>
    %287 = vector.shape_cast %286 : vector<1x64x256xbf16> to vector<64x256xbf16>
    %cst_247 = arith.constant dense<0.000000e+00> : vector<1x256xf32>
    %288 = tpu.matmul %285, %287, %cst_247 {dimension_numbers = #tpu.dot_dimension_numbers<[1], [0], [0], [1], [0, 0, 1, 1], [], []>} : vector<1x64xbf16>, vector<64x256xbf16>, vector<1x256xf32> -> vector<1x256xf32>
    %289 = arith.addf %283, %288 : vector<1x256xf32>
    %290 = vector.extract_strided_slice %246 {offsets = [7, 0], sizes = [1, 64], strides = [1, 1]} : vector<25x64xf32> to vector<1x64xf32>
    %291 = arith.truncf %290 : vector<1x64xf32> to vector<1x64xbf16>
    %c7_248 = arith.constant 7 : index
    %c0_249 = arith.constant 0 : index
    %c0_250 = arith.constant 0 : index
    %292 = vector.load %arg10[%c7_248, %c0_249, %c0_250] : memref<25x64x256xbf16, #tpu.memory_space<vmem>>, vector<1x64x256xbf16>
    %293 = vector.shape_cast %292 : vector<1x64x256xbf16> to vector<64x256xbf16>
    %cst_251 = arith.constant dense<0.000000e+00> : vector<1x256xf32>
    %294 = tpu.matmul %291, %293, %cst_251 {dimension_numbers = #tpu.dot_dimension_numbers<[1], [0], [0], [1], [0, 0, 1, 1], [], []>} : vector<1x64xbf16>, vector<64x256xbf16>, vector<1x256xf32> -> vector<1x256xf32>
    %295 = arith.addf %289, %294 : vector<1x256xf32>
    %296 = vector.extract_strided_slice %246 {offsets = [8, 0], sizes = [1, 64], strides = [1, 1]} : vector<25x64xf32> to vector<1x64xf32>
    %297 = arith.truncf %296 : vector<1x64xf32> to vector<1x64xbf16>
    %c8_252 = arith.constant 8 : index
    %c0_253 = arith.constant 0 : index
    %c0_254 = arith.constant 0 : index
    %298 = vector.load %arg10[%c8_252, %c0_253, %c0_254] : memref<25x64x256xbf16, #tpu.memory_space<vmem>>, vector<1x64x256xbf16>
    %299 = vector.shape_cast %298 : vector<1x64x256xbf16> to vector<64x256xbf16>
    %cst_255 = arith.constant dense<0.000000e+00> : vector<1x256xf32>
    %300 = tpu.matmul %297, %299, %cst_255 {dimension_numbers = #tpu.dot_dimension_numbers<[1], [0], [0], [1], [0, 0, 1, 1], [], []>} : vector<1x64xbf16>, vector<64x256xbf16>, vector<1x256xf32> -> vector<1x256xf32>
    %301 = arith.addf %295, %300 : vector<1x256xf32>
    %302 = vector.extract_strided_slice %246 {offsets = [9, 0], sizes = [1, 64], strides = [1, 1]} : vector<25x64xf32> to vector<1x64xf32>
    %303 = arith.truncf %302 : vector<1x64xf32> to vector<1x64xbf16>
    %c9_256 = arith.constant 9 : index
    %c0_257 = arith.constant 0 : index
    %c0_258 = arith.constant 0 : index
    %304 = vector.load %arg10[%c9_256, %c0_257, %c0_258] : memref<25x64x256xbf16, #tpu.memory_space<vmem>>, vector<1x64x256xbf16>
    %305 = vector.shape_cast %304 : vector<1x64x256xbf16> to vector<64x256xbf16>
    %cst_259 = arith.constant dense<0.000000e+00> : vector<1x256xf32>
    %306 = tpu.matmul %303, %305, %cst_259 {dimension_numbers = #tpu.dot_dimension_numbers<[1], [0], [0], [1], [0, 0, 1, 1], [], []>} : vector<1x64xbf16>, vector<64x256xbf16>, vector<1x256xf32> -> vector<1x256xf32>
    %307 = arith.addf %301, %306 : vector<1x256xf32>
    %308 = vector.extract_strided_slice %246 {offsets = [10, 0], sizes = [1, 64], strides = [1, 1]} : vector<25x64xf32> to vector<1x64xf32>
    %309 = arith.truncf %308 : vector<1x64xf32> to vector<1x64xbf16>
    %c10_260 = arith.constant 10 : index
    %c0_261 = arith.constant 0 : index
    %c0_262 = arith.constant 0 : index
    %310 = vector.load %arg10[%c10_260, %c0_261, %c0_262] : memref<25x64x256xbf16, #tpu.memory_space<vmem>>, vector<1x64x256xbf16>
    %311 = vector.shape_cast %310 : vector<1x64x256xbf16> to vector<64x256xbf16>
    %cst_263 = arith.constant dense<0.000000e+00> : vector<1x256xf32>
    %312 = tpu.matmul %309, %311, %cst_263 {dimension_numbers = #tpu.dot_dimension_numbers<[1], [0], [0], [1], [0, 0, 1, 1], [], []>} : vector<1x64xbf16>, vector<64x256xbf16>, vector<1x256xf32> -> vector<1x256xf32>
    %313 = arith.addf %307, %312 : vector<1x256xf32>
    %314 = vector.extract_strided_slice %246 {offsets = [11, 0], sizes = [1, 64], strides = [1, 1]} : vector<25x64xf32> to vector<1x64xf32>
    %315 = arith.truncf %314 : vector<1x64xf32> to vector<1x64xbf16>
    %c11_264 = arith.constant 11 : index
    %c0_265 = arith.constant 0 : index
    %c0_266 = arith.constant 0 : index
    %316 = vector.load %arg10[%c11_264, %c0_265, %c0_266] : memref<25x64x256xbf16, #tpu.memory_space<vmem>>, vector<1x64x256xbf16>
    %317 = vector.shape_cast %316 : vector<1x64x256xbf16> to vector<64x256xbf16>
    %cst_267 = arith.constant dense<0.000000e+00> : vector<1x256xf32>
    %318 = tpu.matmul %315, %317, %cst_267 {dimension_numbers = #tpu.dot_dimension_numbers<[1], [0], [0], [1], [0, 0, 1, 1], [], []>} : vector<1x64xbf16>, vector<64x256xbf16>, vector<1x256xf32> -> vector<1x256xf32>
    %319 = arith.addf %313, %318 : vector<1x256xf32>
    %320 = vector.extract_strided_slice %246 {offsets = [12, 0], sizes = [1, 64], strides = [1, 1]} : vector<25x64xf32> to vector<1x64xf32>
    %321 = arith.truncf %320 : vector<1x64xf32> to vector<1x64xbf16>
    %c12_268 = arith.constant 12 : index
    %c0_269 = arith.constant 0 : index
    %c0_270 = arith.constant 0 : index
    %322 = vector.load %arg10[%c12_268, %c0_269, %c0_270] : memref<25x64x256xbf16, #tpu.memory_space<vmem>>, vector<1x64x256xbf16>
    %323 = vector.shape_cast %322 : vector<1x64x256xbf16> to vector<64x256xbf16>
    %cst_271 = arith.constant dense<0.000000e+00> : vector<1x256xf32>
    %324 = tpu.matmul %321, %323, %cst_271 {dimension_numbers = #tpu.dot_dimension_numbers<[1], [0], [0], [1], [0, 0, 1, 1], [], []>} : vector<1x64xbf16>, vector<64x256xbf16>, vector<1x256xf32> -> vector<1x256xf32>
    %325 = arith.addf %319, %324 : vector<1x256xf32>
    %326 = vector.extract_strided_slice %246 {offsets = [13, 0], sizes = [1, 64], strides = [1, 1]} : vector<25x64xf32> to vector<1x64xf32>
    %327 = arith.truncf %326 : vector<1x64xf32> to vector<1x64xbf16>
    %c13_272 = arith.constant 13 : index
    %c0_273 = arith.constant 0 : index
    %c0_274 = arith.constant 0 : index
    %328 = vector.load %arg10[%c13_272, %c0_273, %c0_274] : memref<25x64x256xbf16, #tpu.memory_space<vmem>>, vector<1x64x256xbf16>
    %329 = vector.shape_cast %328 : vector<1x64x256xbf16> to vector<64x256xbf16>
    %cst_275 = arith.constant dense<0.000000e+00> : vector<1x256xf32>
    %330 = tpu.matmul %327, %329, %cst_275 {dimension_numbers = #tpu.dot_dimension_numbers<[1], [0], [0], [1], [0, 0, 1, 1], [], []>} : vector<1x64xbf16>, vector<64x256xbf16>, vector<1x256xf32> -> vector<1x256xf32>
    %331 = arith.addf %325, %330 : vector<1x256xf32>
    %332 = vector.extract_strided_slice %246 {offsets = [14, 0], sizes = [1, 64], strides = [1, 1]} : vector<25x64xf32> to vector<1x64xf32>
    %333 = arith.truncf %332 : vector<1x64xf32> to vector<1x64xbf16>
    %c14_276 = arith.constant 14 : index
    %c0_277 = arith.constant 0 : index
    %c0_278 = arith.constant 0 : index
    %334 = vector.load %arg10[%c14_276, %c0_277, %c0_278] : memref<25x64x256xbf16, #tpu.memory_space<vmem>>, vector<1x64x256xbf16>
    %335 = vector.shape_cast %334 : vector<1x64x256xbf16> to vector<64x256xbf16>
    %cst_279 = arith.constant dense<0.000000e+00> : vector<1x256xf32>
    %336 = tpu.matmul %333, %335, %cst_279 {dimension_numbers = #tpu.dot_dimension_numbers<[1], [0], [0], [1], [0, 0, 1, 1], [], []>} : vector<1x64xbf16>, vector<64x256xbf16>, vector<1x256xf32> -> vector<1x256xf32>
    %337 = arith.addf %331, %336 : vector<1x256xf32>
    %338 = vector.extract_strided_slice %246 {offsets = [15, 0], sizes = [1, 64], strides = [1, 1]} : vector<25x64xf32> to vector<1x64xf32>
    %339 = arith.truncf %338 : vector<1x64xf32> to vector<1x64xbf16>
    %c15_280 = arith.constant 15 : index
    %c0_281 = arith.constant 0 : index
    %c0_282 = arith.constant 0 : index
    %340 = vector.load %arg10[%c15_280, %c0_281, %c0_282] : memref<25x64x256xbf16, #tpu.memory_space<vmem>>, vector<1x64x256xbf16>
    %341 = vector.shape_cast %340 : vector<1x64x256xbf16> to vector<64x256xbf16>
    %cst_283 = arith.constant dense<0.000000e+00> : vector<1x256xf32>
    %342 = tpu.matmul %339, %341, %cst_283 {dimension_numbers = #tpu.dot_dimension_numbers<[1], [0], [0], [1], [0, 0, 1, 1], [], []>} : vector<1x64xbf16>, vector<64x256xbf16>, vector<1x256xf32> -> vector<1x256xf32>
    %343 = arith.addf %337, %342 : vector<1x256xf32>
    %344 = vector.extract_strided_slice %246 {offsets = [16, 0], sizes = [1, 64], strides = [1, 1]} : vector<25x64xf32> to vector<1x64xf32>
    %345 = arith.truncf %344 : vector<1x64xf32> to vector<1x64xbf16>
    %c16 = arith.constant 16 : index
    %c0_284 = arith.constant 0 : index
    %c0_285 = arith.constant 0 : index
    %346 = vector.load %arg10[%c16, %c0_284, %c0_285] : memref<25x64x256xbf16, #tpu.memory_space<vmem>>, vector<1x64x256xbf16>
    %347 = vector.shape_cast %346 : vector<1x64x256xbf16> to vector<64x256xbf16>
    %cst_286 = arith.constant dense<0.000000e+00> : vector<1x256xf32>
    %348 = tpu.matmul %345, %347, %cst_286 {dimension_numbers = #tpu.dot_dimension_numbers<[1], [0], [0], [1], [0, 0, 1, 1], [], []>} : vector<1x64xbf16>, vector<64x256xbf16>, vector<1x256xf32> -> vector<1x256xf32>
    %349 = arith.addf %343, %348 : vector<1x256xf32>
    %350 = vector.extract_strided_slice %246 {offsets = [17, 0], sizes = [1, 64], strides = [1, 1]} : vector<25x64xf32> to vector<1x64xf32>
    %351 = arith.truncf %350 : vector<1x64xf32> to vector<1x64xbf16>
    %c17 = arith.constant 17 : index
    %c0_287 = arith.constant 0 : index
    %c0_288 = arith.constant 0 : index
    %352 = vector.load %arg10[%c17, %c0_287, %c0_288] : memref<25x64x256xbf16, #tpu.memory_space<vmem>>, vector<1x64x256xbf16>
    %353 = vector.shape_cast %352 : vector<1x64x256xbf16> to vector<64x256xbf16>
    %cst_289 = arith.constant dense<0.000000e+00> : vector<1x256xf32>
    %354 = tpu.matmul %351, %353, %cst_289 {dimension_numbers = #tpu.dot_dimension_numbers<[1], [0], [0], [1], [0, 0, 1, 1], [], []>} : vector<1x64xbf16>, vector<64x256xbf16>, vector<1x256xf32> -> vector<1x256xf32>
    %355 = arith.addf %349, %354 : vector<1x256xf32>
    %356 = vector.extract_strided_slice %246 {offsets = [18, 0], sizes = [1, 64], strides = [1, 1]} : vector<25x64xf32> to vector<1x64xf32>
    %357 = arith.truncf %356 : vector<1x64xf32> to vector<1x64xbf16>
    %c18 = arith.constant 18 : index
    %c0_290 = arith.constant 0 : index
    %c0_291 = arith.constant 0 : index
    %358 = vector.load %arg10[%c18, %c0_290, %c0_291] : memref<25x64x256xbf16, #tpu.memory_space<vmem>>, vector<1x64x256xbf16>
    %359 = vector.shape_cast %358 : vector<1x64x256xbf16> to vector<64x256xbf16>
    %cst_292 = arith.constant dense<0.000000e+00> : vector<1x256xf32>
    %360 = tpu.matmul %357, %359, %cst_292 {dimension_numbers = #tpu.dot_dimension_numbers<[1], [0], [0], [1], [0, 0, 1, 1], [], []>} : vector<1x64xbf16>, vector<64x256xbf16>, vector<1x256xf32> -> vector<1x256xf32>
    %361 = arith.addf %355, %360 : vector<1x256xf32>
    %362 = vector.extract_strided_slice %246 {offsets = [19, 0], sizes = [1, 64], strides = [1, 1]} : vector<25x64xf32> to vector<1x64xf32>
    %363 = arith.truncf %362 : vector<1x64xf32> to vector<1x64xbf16>
    %c19 = arith.constant 19 : index
    %c0_293 = arith.constant 0 : index
    %c0_294 = arith.constant 0 : index
    %364 = vector.load %arg10[%c19, %c0_293, %c0_294] : memref<25x64x256xbf16, #tpu.memory_space<vmem>>, vector<1x64x256xbf16>
    %365 = vector.shape_cast %364 : vector<1x64x256xbf16> to vector<64x256xbf16>
    %cst_295 = arith.constant dense<0.000000e+00> : vector<1x256xf32>
    %366 = tpu.matmul %363, %365, %cst_295 {dimension_numbers = #tpu.dot_dimension_numbers<[1], [0], [0], [1], [0, 0, 1, 1], [], []>} : vector<1x64xbf16>, vector<64x256xbf16>, vector<1x256xf32> -> vector<1x256xf32>
    %367 = arith.addf %361, %366 : vector<1x256xf32>
    %368 = vector.extract_strided_slice %246 {offsets = [20, 0], sizes = [1, 64], strides = [1, 1]} : vector<25x64xf32> to vector<1x64xf32>
    %369 = arith.truncf %368 : vector<1x64xf32> to vector<1x64xbf16>
    %c20 = arith.constant 20 : index
    %c0_296 = arith.constant 0 : index
    %c0_297 = arith.constant 0 : index
    %370 = vector.load %arg10[%c20, %c0_296, %c0_297] : memref<25x64x256xbf16, #tpu.memory_space<vmem>>, vector<1x64x256xbf16>
    %371 = vector.shape_cast %370 : vector<1x64x256xbf16> to vector<64x256xbf16>
    %cst_298 = arith.constant dense<0.000000e+00> : vector<1x256xf32>
    %372 = tpu.matmul %369, %371, %cst_298 {dimension_numbers = #tpu.dot_dimension_numbers<[1], [0], [0], [1], [0, 0, 1, 1], [], []>} : vector<1x64xbf16>, vector<64x256xbf16>, vector<1x256xf32> -> vector<1x256xf32>
    %373 = arith.addf %367, %372 : vector<1x256xf32>
    %374 = vector.extract_strided_slice %246 {offsets = [21, 0], sizes = [1, 64], strides = [1, 1]} : vector<25x64xf32> to vector<1x64xf32>
    %375 = arith.truncf %374 : vector<1x64xf32> to vector<1x64xbf16>
    %c21 = arith.constant 21 : index
    %c0_299 = arith.constant 0 : index
    %c0_300 = arith.constant 0 : index
    %376 = vector.load %arg10[%c21, %c0_299, %c0_300] : memref<25x64x256xbf16, #tpu.memory_space<vmem>>, vector<1x64x256xbf16>
    %377 = vector.shape_cast %376 : vector<1x64x256xbf16> to vector<64x256xbf16>
    %cst_301 = arith.constant dense<0.000000e+00> : vector<1x256xf32>
    %378 = tpu.matmul %375, %377, %cst_301 {dimension_numbers = #tpu.dot_dimension_numbers<[1], [0], [0], [1], [0, 0, 1, 1], [], []>} : vector<1x64xbf16>, vector<64x256xbf16>, vector<1x256xf32> -> vector<1x256xf32>
    %379 = arith.addf %373, %378 : vector<1x256xf32>
    %380 = vector.extract_strided_slice %246 {offsets = [22, 0], sizes = [1, 64], strides = [1, 1]} : vector<25x64xf32> to vector<1x64xf32>
    %381 = arith.truncf %380 : vector<1x64xf32> to vector<1x64xbf16>
    %c22 = arith.constant 22 : index
    %c0_302 = arith.constant 0 : index
    %c0_303 = arith.constant 0 : index
    %382 = vector.load %arg10[%c22, %c0_302, %c0_303] : memref<25x64x256xbf16, #tpu.memory_space<vmem>>, vector<1x64x256xbf16>
    %383 = vector.shape_cast %382 : vector<1x64x256xbf16> to vector<64x256xbf16>
    %cst_304 = arith.constant dense<0.000000e+00> : vector<1x256xf32>
    %384 = tpu.matmul %381, %383, %cst_304 {dimension_numbers = #tpu.dot_dimension_numbers<[1], [0], [0], [1], [0, 0, 1, 1], [], []>} : vector<1x64xbf16>, vector<64x256xbf16>, vector<1x256xf32> -> vector<1x256xf32>
    %385 = arith.addf %379, %384 : vector<1x256xf32>
    %386 = vector.extract_strided_slice %246 {offsets = [23, 0], sizes = [1, 64], strides = [1, 1]} : vector<25x64xf32> to vector<1x64xf32>
    %387 = arith.truncf %386 : vector<1x64xf32> to vector<1x64xbf16>
    %c23 = arith.constant 23 : index
    %c0_305 = arith.constant 0 : index
    %c0_306 = arith.constant 0 : index
    %388 = vector.load %arg10[%c23, %c0_305, %c0_306] : memref<25x64x256xbf16, #tpu.memory_space<vmem>>, vector<1x64x256xbf16>
    %389 = vector.shape_cast %388 : vector<1x64x256xbf16> to vector<64x256xbf16>
    %cst_307 = arith.constant dense<0.000000e+00> : vector<1x256xf32>
    %390 = tpu.matmul %387, %389, %cst_307 {dimension_numbers = #tpu.dot_dimension_numbers<[1], [0], [0], [1], [0, 0, 1, 1], [], []>} : vector<1x64xbf16>, vector<64x256xbf16>, vector<1x256xf32> -> vector<1x256xf32>
    %391 = arith.addf %385, %390 : vector<1x256xf32>
    %392 = vector.extract_strided_slice %246 {offsets = [24, 0], sizes = [1, 64], strides = [1, 1]} : vector<25x64xf32> to vector<1x64xf32>
    %393 = arith.truncf %392 : vector<1x64xf32> to vector<1x64xbf16>
    %c24 = arith.constant 24 : index
    %c0_308 = arith.constant 0 : index
    %c0_309 = arith.constant 0 : index
    %394 = vector.load %arg10[%c24, %c0_308, %c0_309] : memref<25x64x256xbf16, #tpu.memory_space<vmem>>, vector<1x64x256xbf16>
    %395 = vector.shape_cast %394 : vector<1x64x256xbf16> to vector<64x256xbf16>
    %cst_310 = arith.constant dense<0.000000e+00> : vector<1x256xf32>
    %396 = tpu.matmul %393, %395, %cst_310 {dimension_numbers = #tpu.dot_dimension_numbers<[1], [0], [0], [1], [0, 0, 1, 1], [], []>} : vector<1x64xbf16>, vector<64x256xbf16>, vector<1x256xf32> -> vector<1x256xf32>
    %397 = arith.addf %391, %396 : vector<1x256xf32>
    %c0_311 = arith.constant 0 : index
    %c0_312 = arith.constant 0 : index
    %398 = vector.load %arg11[%c0_311, %c0_312] : memref<1x256xf32, #tpu.memory_space<vmem>>, vector<1x256xf32>
    %399 = arith.addf %397, %398 : vector<1x256xf32>
    %cst_313 = arith.constant 0.000000e+00 : f32
    %400 = vector.broadcast %cst_313 : f32 to vector<1x256xf32>
    %401 = arith.maximumf %399, %400 : vector<1x256xf32>
    %402 = arith.truncf %401 : vector<1x256xf32> to vector<1x256xbf16>
    %c0_314 = arith.constant 0 : index
    %c0_315 = arith.constant 0 : index
    %403 = vector.load %arg12[%c0_314, %c0_315] : memref<256x128xbf16, #tpu.memory_space<vmem>>, vector<256x128xbf16>
    %cst_316 = arith.constant dense<0.000000e+00> : vector<1x128xf32>
    %404 = tpu.matmul %402, %403, %cst_316 {dimension_numbers = #tpu.dot_dimension_numbers<[1], [0], [0], [1], [0, 0, 1, 1], [], []>} : vector<1x256xbf16>, vector<256x128xbf16>, vector<1x128xf32> -> vector<1x128xf32>
    %c0_317 = arith.constant 0 : index
    %c0_318 = arith.constant 0 : index
    %405 = vector.load %arg13[%c0_317, %c0_318] : memref<1x128xf32, #tpu.memory_space<vmem>>, vector<1x128xf32>
    %406 = arith.addf %404, %405 : vector<1x128xf32>
    %407 = vector.shape_cast %406 : vector<1x128xf32> to vector<1x1x128xf32>
    %c0_319 = arith.constant 0 : index
    %c0_320 = arith.constant 0 : index
    %c0_321 = arith.constant 0 : index
    %408 = vector.load %arg14[%c0_319, %c0_320, %c0_321] : memref<1x1x128xf32, #tpu.memory_space<vmem>>, vector<1x1x128xf32>
    tpu.vector_store %arg14[%c0_319, %c0_320, %c0_321], %407 {strides = array<i32>} : memref<1x1x128xf32, #tpu.memory_space<vmem>>, vector<1x1x128xf32>,
    return
  }
  func.func @transform_0(%arg0: i32) -> (i32, i32, i32, i32) {
    %c0_i32 = arith.constant 0 : i32
    %c0_i32_0 = arith.constant 0 : i32
    %c0_i32_1 = arith.constant 0 : i32
    %c0_i32_2 = arith.constant 0 : i32
    return %arg0, %c0_i32, %c0_i32_0, %c0_i32_1 : i32, i32, i32, i32
  }
  func.func @transform_1(%arg0: i32) -> (i32, i32) {
    %c0_i32 = arith.constant 0 : i32
    %c0_i32_0 = arith.constant 0 : i32
    %c0_i32_1 = arith.constant 0 : i32
    return %c0_i32, %c0_i32_0 : i32, i32
  }
  func.func @transform_2(%arg0: i32) -> (i32, i32) {
    %c0_i32 = arith.constant 0 : i32
    %c0_i32_0 = arith.constant 0 : i32
    %c0_i32_1 = arith.constant 0 : i32
    return %c0_i32, %c0_i32_0 : i32, i32
  }
  func.func @transform_3(%arg0: i32) -> (i32, i32, i32) {
    %c0_i32 = arith.constant 0 : i32
    %c0_i32_0 = arith.constant 0 : i32
    %c0_i32_1 = arith.constant 0 : i32
    %c0_i32_2 = arith.constant 0 : i32
    return %c0_i32, %c0_i32_0, %c0_i32_1 : i32, i32, i32
  }
  func.func @transform_4(%arg0: i32) -> (i32, i32, i32) {
    %c0_i32 = arith.constant 0 : i32
    %c0_i32_0 = arith.constant 0 : i32
    %c0_i32_1 = arith.constant 0 : i32
    %c0_i32_2 = arith.constant 0 : i32
    return %c0_i32, %c0_i32_0, %c0_i32_1 : i32, i32, i32
  }
  func.func @transform_5(%arg0: i32) -> (i32, i32) {
    %c0_i32 = arith.constant 0 : i32
    %c0_i32_0 = arith.constant 0 : i32
    %c0_i32_1 = arith.constant 0 : i32
    return %c0_i32, %c0_i32_0 : i32, i32
  }
  func.func @transform_6(%arg0: i32) -> (i32, i32, i32) {
    %c0_i32 = arith.constant 0 : i32
    %c0_i32_0 = arith.constant 0 : i32
    %c0_i32_1 = arith.constant 0 : i32
    %c0_i32_2 = arith.constant 0 : i32
    return %c0_i32, %c0_i32_0, %c0_i32_1 : i32, i32, i32
  }
  func.func @transform_7(%arg0: i32) -> (i32, i32, i32) {
    %c0_i32 = arith.constant 0 : i32
    %c0_i32_0 = arith.constant 0 : i32
    %c0_i32_1 = arith.constant 0 : i32
    %c0_i32_2 = arith.constant 0 : i32
    return %c0_i32, %c0_i32_0, %c0_i32_1 : i32, i32, i32
  }
  func.func @transform_8(%arg0: i32) -> (i32, i32) {
    %c0_i32 = arith.constant 0 : i32
    %c0_i32_0 = arith.constant 0 : i32
    %c0_i32_1 = arith.constant 0 : i32
    return %c0_i32, %c0_i32_0 : i32, i32
  }
  func.func @transform_9(%arg0: i32) -> (i32, i32, i32) {
    %c0_i32 = arith.constant 0 : i32
    %c0_i32_0 = arith.constant 0 : i32
    %c0_i32_1 = arith.constant 0 : i32
    %c0_i32_2 = arith.constant 0 : i32
    return %c0_i32, %c0_i32_0, %c0_i32_1 : i32, i32, i32
  }
  func.func @transform_10(%arg0: i32) -> (i32, i32) {
    %c0_i32 = arith.constant 0 : i32
    %c0_i32_0 = arith.constant 0 : i32
    %c0_i32_1 = arith.constant 0 : i32
    return %c0_i32, %c0_i32_0 : i32, i32
  }
  func.func @transform_11(%arg0: i32) -> (i32, i32) {
    %c0_i32 = arith.constant 0 : i32
    %c0_i32_0 = arith.constant 0 : i32
    %c0_i32_1 = arith.constant 0 : i32
    return %c0_i32, %c0_i32_0 : i32, i32
  }
  func.func @transform_12(%arg0: i32) -> (i32, i32) {
    %c0_i32 = arith.constant 0 : i32
    %c0_i32_0 = arith.constant 0 : i32
    %c0_i32_1 = arith.constant 0 : i32
    return %c0_i32, %c0_i32_0 : i32, i32
  }
  func.func @transform_13(%arg0: i32) -> (i32, i32, i32) {
    %c0_i32 = arith.constant 0 : i32
    %c0_i32_0 = arith.constant 0 : i32
    %c0_i32_1 = arith.constant 0 : i32
    return %arg0, %c0_i32, %c0_i32_0 : i32, i32, i32
  }
}

</mosaic_0001>

<llo_original>
// kernel: qnet_forward.1
$region0: #{qnet_forward.1}
  #allocation0 [shape = 'u32[]', space=smem, size = 0x4, offset = 0x4, fixed_abs, tag = 'smem constant byte address 0x4 - core index']
  #allocation1 [shape = 'u32[144,128]{1,0:T(1,128)}', space=vmem, size = 0x12000, scoped, tag = 'internal scratch']
  %s0 = inlined_call_operand.vmem [shape: bf16[2,4,100,256], index: 0, kind: input, shape index: {}]
  %s1 = inlined_call_operand.vmem [shape: bf16[256,32], index: 1, kind: input, shape index: {}]
  %s2 = inlined_call_operand.vmem [shape: f32[1,32], index: 2, kind: input, shape index: {}]
  %s3 = inlined_call_operand.vmem [shape: bf16[16,25,100], index: 3, kind: input, shape index: {}]
  %s4 = inlined_call_operand.vmem [shape: bf16[16,32,64], index: 4, kind: input, shape index: {}]
  %s5 = inlined_call_operand.vmem [shape: f32[1,64], index: 5, kind: input, shape index: {}]
  %s6 = inlined_call_operand.vmem [shape: bf16[9,25,25], index: 6, kind: input, shape index: {}]
  %s7 = inlined_call_operand.vmem [shape: bf16[9,64,64], index: 7, kind: input, shape index: {}]
  %s8 = inlined_call_operand.vmem [shape: f32[1,64], index: 8, kind: input, shape index: {}]
  %s9 = inlined_call_operand.vmem [shape: bf16[25,64,256], index: 9, kind: input, shape index: {}]
  %s10 = inlined_call_operand.vmem [shape: f32[1,256], index: 10, kind: input, shape index: {}]
  %s11 = inlined_call_operand.vmem [shape: bf16[256,128], index: 11, kind: input, shape index: {}]
  %s12 = inlined_call_operand.vmem [shape: f32[1,128], index: 12, kind: input, shape index: {}]
  %s13 = inlined_call_operand.hbm [shape: f32[2,1,128], index: 13, kind: output, shape index: {}]
  %s14 = sld [smem:[#allocation0]]
  $region85: #{qnet_forward.1} parent=0
    _
  %s16 = ssub.s32 1, %s14
  %s17 = scalar_select 0, %s16, %s14
  $region1: #{qnet_forward.1} parent=0
    #allocation2 [shape = 'u8[1024]{0}', space=vmem, size = 0x400, scoped, tag = 'output window, operand 0']
    #allocation3 [shape = 's32[2]{0}', space=sflag, size = 0x8, scoped, tag = 'scoped memory for qnet_forward.1']
    %18 = vsyncpa [#allocation3], 0
    %s19 = scalar_lea.sflag [#allocation3], 1
    %20 = vsyncpa %s19, 0
    loop: start=0, step=1, limit=4
    $region2: #{qnet_forward.1} parent=1 // loop_pre_header
      _
    $region3: #{qnet_forward.1} parent=1 // loop_header
      %s22 = sphi 0, %s26
      %p23 = scmp.ge.s32.totalorder %s22, 4
      %s32 = sphi 0, %s34
      %s35 = sphi 0, %s32
      %s36 = sphi 0, %s35
      %s52 = sphi 0, %s36
      %s56 = sphi 0, %s56
      %s58 = sphi 0, %s56
      %s59 = sphi 0, %s58
      %s73 = sphi 0, %s59
      %s77 = sphi 0, %s77
      %s79 = sphi 0, %s77
      %s80 = sphi 0, %s79
      %s94 = sphi 0, %s80
      %s98 = sphi 0, %s98
      %s100 = sphi 0, %s98
      %s101 = sphi 0, %s100
      %s115 = sphi 0, %s101
      %s119 = sphi 0, %s119
      %s121 = sphi 0, %s119
      %s122 = sphi 0, %s121
      %s136 = sphi 0, %s122
      %s140 = sphi 0, %s140
      %s142 = sphi 0, %s140
      %s143 = sphi 0, %s142
      %s157 = sphi 0, %s143
      %s161 = sphi 0, %s161
      %s163 = sphi 0, %s161
      %s164 = sphi 0, %s163
      %s178 = sphi 0, %s164
      %s182 = sphi 0, %s182
      %s184 = sphi 0, %s182
      %s185 = sphi 0, %s184
      %s199 = sphi 0, %s185
      %s203 = sphi 0, %s203
      %s205 = sphi 0, %s203
      %s206 = sphi 0, %s205
      %s220 = sphi 0, %s206
      %s224 = sphi 0, %s224
      %s226 = sphi 0, %s224
      %s227 = sphi 0, %s226
      %s241 = sphi 0, %s227
      %s245 = sphi 0, %s245
      %s247 = sphi 0, %s245
      %s248 = sphi 0, %s247
      %s262 = sphi 0, %s248
      %s266 = sphi 0, %s266
      %s268 = sphi 0, %s266
      %s269 = sphi 0, %s268
      %s283 = sphi 0, %s269
      %s287 = sphi 0, %s287
      %s289 = sphi 0, %s287
      %s290 = sphi 0, %s289
      %s304 = sphi 0, %s290
      %s310 = sphi 0, %s312
      %s313 = sphi 0, %s310
      %s314 = sphi 0, %s313
      %s330 = sphi 0, %s314
    $region4: #{qnet_forward.1} parent=1 // loop_header_branch
      %25 = sbr.rel (%p23) target = $region8
    $region5: #{qnet_forward.1} parent=1 // loop_body
      %s27 = ssub.s32 %s22, 1
      %s28 = ssub.s32 %s22, 2
      %s29 = sadd.s32 %s22, 1
      %s30 = ssub.s32 %s22, %s29
      %p31 = scmp.eq.s32.totalorder %s30, 0
      %s33 = sadd.s32 %s32, 1
      %s34 = scalar_select %p31, %s32, %s33
      %p37 = pneg %p31
      %p38 = scmp.eq.s32.totalorder %s22, 1
      %p39 = por %p37, %p38
      %p40 = scmp.ne.s32.totalorder %s32, %s35
      %p41 = scmp.eq.s32.totalorder %s22, 0
      %p42 = por %p40, %p41
      %p43 = scmp.ne.s32.totalorder %s32, %s35
      %p44 = scmp.eq.s32.totalorder %s27, 1
      %p45 = por %p43, %p44
      %p46 = scmp.ne.s32.totalorder %s35, %s36
      %p47 = scmp.eq.s32.totalorder %s27, 0
      %p48 = por %p46, %p47
      %p49 = scmp.ne.s32.totalorder %s35, %s36
      %p50 = scmp.eq.s32.totalorder %s28, 1
      %p51 = por %p49, %p50
      %p53 = scmp.ne.s32.totalorder %s36, %s52
      %p54 = scmp.eq.s32.totalorder %s28, 0
      %p55 = por %p53, %p54
      %s57 = sadd.s32 %s56, 1
      %p60 = scmp.eq.s32.totalorder %s22, 1
      %p61 = scmp.ne.s32.totalorder %s56, %s58
      %p62 = scmp.eq.s32.totalorder %s22, 0
      %p63 = por %p61, %p62
      %p64 = scmp.ne.s32.totalorder %s56, %s58
      %p65 = scmp.eq.s32.totalorder %s27, 1
      %p66 = por %p64, %p65
      %p67 = scmp.ne.s32.totalorder %s58, %s59
      %p68 = scmp.eq.s32.totalorder %s27, 0
      %p69 = por %p67, %p68
      %p70 = scmp.ne.s32.totalorder %s58, %s59
      %p71 = scmp.eq.s32.totalorder %s28, 1
      %p72 = por %p70, %p71
      %p74 = scmp.ne.s32.totalorder %s59, %s73
      %p75 = scmp.eq.s32.totalorder %s28, 0
      %p76 = por %p74, %p75
      %s78 = sadd.s32 %s77, 1
      %p81 = scmp.eq.s32.totalorder %s22, 1
      %p82 = scmp.ne.s32.totalorder %s77, %s79
      %p83 = scmp.eq.s32.totalorder %s22, 0
      %p84 = por %p82, %p83
      %p85 = scmp.ne.s32.totalorder %s77, %s79
      %p86 = scmp.eq.s32.totalorder %s27, 1
      %p87 = por %p85, %p86
      %p88 = scmp.ne.s32.totalorder %s79, %s80
      %p89 = scmp.eq.s32.totalorder %s27, 0
      %p90 = por %p88, %p89
      %p91 = scmp.ne.s32.totalorder %s79, %s80
      %p92 = scmp.eq.s32.totalorder %s28, 1
      %p93 = por %p91, %p92
      %p95 = scmp.ne.s32.totalorder %s80, %s94
      %p96 = scmp.eq.s32.totalorder %s28, 0
      %p97 = por %p95, %p96
      %s99 = sadd.s32 %s98, 1
      %p102 = scmp.eq.s32.totalorder %s22, 1
      %p103 = scmp.ne.s32.totalorder %s98, %s100
      %p104 = scmp.eq.s32.totalorder %s22, 0
      %p105 = por %p103, %p104
      %p106 = scmp.ne.s32.totalorder %s98, %s100
      %p107 = scmp.eq.s32.totalorder %s27, 1
      %p108 = por %p106, %p107
      %p109 = scmp.ne.s32.totalorder %s100, %s101
      %p110 = scmp.eq.s32.totalorder %s27, 0
      %p111 = por %p109, %p110
      %p112 = scmp.ne.s32.totalorder %s100, %s101
      %p113 = scmp.eq.s32.totalorder %s28, 1
      %p114 = por %p112, %p113
      %p116 = scmp.ne.s32.totalorder %s101, %s115
      %p117 = scmp.eq.s32.totalorder %s28, 0
      %p118 = por %p116, %p117
      %s120 = sadd.s32 %s119, 1
      %p123 = scmp.eq.s32.totalorder %s22, 1
      %p124 = scmp.ne.s32.totalorder %s119, %s121
      %p125 = scmp.eq.s32.totalorder %s22, 0
      %p126 = por %p124, %p125
      %p127 = scmp.ne.s32.totalorder %s119, %s121
      %p128 = scmp.eq.s32.totalorder %s27, 1
      %p129 = por %p127, %p128
      %p130 = scmp.ne.s32.totalorder %s121, %s122
      %p131 = scmp.eq.s32.totalorder %s27, 0
      %p132 = por %p130, %p131
      %p133 = scmp.ne.s32.totalorder %s121, %s122
      %p134 = scmp.eq.s32.totalorder %s28, 1
      %p135 = por %p133, %p134
      %p137 = scmp.ne.s32.totalorder %s122, %s136
      %p138 = scmp.eq.s32.totalorder %s28, 0
      %p139 = por %p137, %p138
      %s141 = sadd.s32 %s140, 1
      %p144 = scmp.eq.s32.totalorder %s22, 1
      %p145 = scmp.ne.s32.totalorder %s140, %s142
      %p146 = scmp.eq.s32.totalorder %s22, 0
      %p147 = por %p145, %p146
      %p148 = scmp.ne.s32.totalorder %s140, %s142
      %p149 = scmp.eq.s32.totalorder %s27, 1
      %p150 = por %p148, %p149
      %p151 = scmp.ne.s32.totalorder %s142, %s143
      %p152 = scmp.eq.s32.totalorder %s27, 0
      %p153 = por %p151, %p152
      %p154 = scmp.ne.s32.totalorder %s142, %s143
      %p155 = scmp.eq.s32.totalorder %s28, 1
      %p156 = por %p154, %p155
      %p158 = scmp.ne.s32.totalorder %s143, %s157
      %p159 = scmp.eq.s32.totalorder %s28, 0
      %p160 = por %p158, %p159
      %s162 = sadd.s32 %s161, 1
      %p165 = scmp.eq.s32.totalorder %s22, 1
      %p166 = scmp.ne.s32.totalorder %s161, %s163
      %p167 = scmp.eq.s32.totalorder %s22, 0
      %p168 = por %p166, %p167
      %p169 = scmp.ne.s32.totalorder %s161, %s163
      %p170 = scmp.eq.s32.totalorder %s27, 1
      %p171 = por %p169, %p170
      %p172 = scmp.ne.s32.totalorder %s163, %s164
      %p173 = scmp.eq.s32.totalorder %s27, 0
      %p174 = por %p172, %p173
      %p175 = scmp.ne.s32.totalorder %s163, %s164
      %p176 = scmp.eq.s32.totalorder %s28, 1
      %p177 = por %p175, %p176
      %p179 = scmp.ne.s32.totalorder %s164, %s178
      %p180 = scmp.eq.s32.totalorder %s28, 0
      %p181 = por %p179, %p180
      %s183 = sadd.s32 %s182, 1
      %p186 = scmp.eq.s32.totalorder %s22, 1
      %p187 = scmp.ne.s32.totalorder %s182, %s184
      %p188 = scmp.eq.s32.totalorder %s22, 0
      %p189 = por %p187, %p188
      %p190 = scmp.ne.s32.totalorder %s182, %s184
      %p191 = scmp.eq.s32.totalorder %s27, 1
      %p192 = por %p190, %p191
      %p193 = scmp.ne.s32.totalorder %s184, %s185
      %p194 = scmp.eq.s32.totalorder %s27, 0
      %p195 = por %p193, %p194
      %p196 = scmp.ne.s32.totalorder %s184, %s185
      %p197 = scmp.eq.s32.totalorder %s28, 1
      %p198 = por %p196, %p197
      %p200 = scmp.ne.s32.totalorder %s185, %s199
      %p201 = scmp.eq.s32.totalorder %s28, 0
      %p202 = por %p200, %p201
      %s204 = sadd.s32 %s203, 1
      %p207 = scmp.eq.s32.totalorder %s22, 1
      %p208 = scmp.ne.s32.totalorder %s203, %s205
      %p209 = scmp.eq.s32.totalorder %s22, 0
      %p210 = por %p208, %p209
      %p211 = scmp.ne.s32.totalorder %s203, %s205
      %p212 = scmp.eq.s32.totalorder %s27, 1
      %p213 = por %p211, %p212
      %p214 = scmp.ne.s32.totalorder %s205, %s206
      %p215 = scmp.eq.s32.totalorder %s27, 0
      %p216 = por %p214, %p215
      %p217 = scmp.ne.s32.totalorder %s205, %s206
      %p218 = scmp.eq.s32.totalorder %s28, 1
      %p219 = por %p217, %p218
      %p221 = scmp.ne.s32.totalorder %s206, %s220
      %p222 = scmp.eq.s32.totalorder %s28, 0
      %p223 = por %p221, %p222
      %s225 = sadd.s32 %s224, 1
      %p228 = scmp.eq.s32.totalorder %s22, 1
      %p229 = scmp.ne.s32.totalorder %s224, %s226
      %p230 = scmp.eq.s32.totalorder %s22, 0
      %p231 = por %p229, %p230
      %p232 = scmp.ne.s32.totalorder %s224, %s226
      %p233 = scmp.eq.s32.totalorder %s27, 1
      %p234 = por %p232, %p233
      %p235 = scmp.ne.s32.totalorder %s226, %s227
      %p236 = scmp.eq.s32.totalorder %s27, 0
      %p237 = por %p235, %p236
      %p238 = scmp.ne.s32.totalorder %s226, %s227
      %p239 = scmp.eq.s32.totalorder %s28, 1
      %p240 = por %p238, %p239
      %p242 = scmp.ne.s32.totalorder %s227, %s241
      %p243 = scmp.eq.s32.totalorder %s28, 0
      %p244 = por %p242, %p243
      %s246 = sadd.s32 %s245, 1
      %p249 = scmp.eq.s32.totalorder %s22, 1
      %p250 = scmp.ne.s32.totalorder %s245, %s247
      %p251 = scmp.eq.s32.totalorder %s22, 0
      %p252 = por %p250, %p251
      %p253 = scmp.ne.s32.totalorder %s245, %s247
      %p254 = scmp.eq.s32.totalorder %s27, 1
      %p255 = por %p253, %p254
      %p256 = scmp.ne.s32.totalorder %s247, %s248
      %p257 = scmp.eq.s32.totalorder %s27, 0
      %p258 = por %p256, %p257
      %p259 = scmp.ne.s32.totalorder %s247, %s248
      %p260 = scmp.eq.s32.totalorder %s28, 1
      %p261 = por %p259, %p260
      %p263 = scmp.ne.s32.totalorder %s248, %s262
      %p264 = scmp.eq.s32.totalorder %s28, 0
      %p265 = por %p263, %p264
      %s267 = sadd.s32 %s266, 1
      %p270 = scmp.eq.s32.totalorder %s22, 1
      %p271 = scmp.ne.s32.totalorder %s266, %s268
      %p272 = scmp.eq.s32.totalorder %s22, 0
      %p273 = por %p271, %p272
      %p274 = scmp.ne.s32.totalorder %s266, %s268
      %p275 = scmp.eq.s32.totalorder %s27, 1
      %p276 = por %p274, %p275
      %p277 = scmp.ne.s32.totalorder %s268, %s269
      %p278 = scmp.eq.s32.totalorder %s27, 0
      %p279 = por %p277, %p278
      %p280 = scmp.ne.s32.totalorder %s268, %s269
      %p281 = scmp.eq.s32.totalorder %s28, 1
      %p282 = por %p280, %p281
      %p284 = scmp.ne.s32.totalorder %s269, %s283
      %p285 = scmp.eq.s32.totalorder %s28, 0
      %p286 = por %p284, %p285
      %s288 = sadd.s32 %s287, 1
      %p291 = scmp.eq.s32.totalorder %s22, 1
      %p292 = scmp.ne.s32.totalorder %s287, %s289
      %p293 = scmp.eq.s32.totalorder %s22, 0
      %p294 = por %p292, %p293
      %p295 = scmp.ne.s32.totalorder %s287, %s289
      %p296 = scmp.eq.s32.totalorder %s27, 1
      %p297 = por %p295, %p296
      %p298 = scmp.ne.s32.totalorder %s289, %s290
      %p299 = scmp.eq.s32.totalorder %s27, 0
      %p300 = por %p298, %p299
      %p301 = scmp.ne.s32.totalorder %s289, %s290
      %p302 = scmp.eq.s32.totalorder %s28, 1
      %p303 = por %p301, %p302
      %p305 = scmp.ne.s32.totalorder %s290, %s304
      %p306 = scmp.eq.s32.totalorder %s28, 0
      %p307 = por %p305, %p306
      %s308 = ssub.s32 %s22, %s29
      %p309 = scmp.eq.s32.totalorder %s308, 0
      %s311 = sadd.s32 %s310, 1
      %s312 = scalar_select %p309, %s310, %s311
      %p315 = pneg %p309
      %p316 = scmp.eq.s32.totalorder %s22, 1
      %p317 = por %p315, %p316
      %p318 = scmp.ne.s32.totalorder %s310, %s313
      %p319 = scmp.eq.s32.totalorder %s22, 0
      %p320 = por %p318, %p319
      %p321 = scmp.ne.s32.totalorder %s310, %s313
      %p322 = scmp.eq.s32.totalorder %s27, 1
      %p323 = por %p321, %p322
      %p324 = scmp.ne.s32.totalorder %s313, %s314
      %p325 = scmp.eq.s32.totalorder %s27, 0
      %p326 = por %p324, %p325
      %p327 = scmp.ne.s32.totalorder %s313, %s314
      %p328 = scmp.eq.s32.totalorder %s28, 1
      %p329 = por %p327, %p328
      %p331 = scmp.ne.s32.totalorder %s314, %s330
      %p332 = scmp.eq.s32.totalorder %s28, 0
      %p333 = por %p331, %p332
      %p334 = scmp.le.s32.totalorder 1, %s22
      %p335 = scmp.lt.s32.totalorder %s22, 3
      %p336 = pnand %p334, %p335
      %p337 = pneg %p336
      // Predicated region
      $region9: #{qnet_forward.1} parent=5 // pred_check
        _
      $region10: #{qnet_forward.1} parent=5 // pred_check_branch
        %339 = sbr.rel (%p336) target = $region12
      $region11: #{qnet_forward.1} parent=5 // pred_region
        %s340 = ssub.s32 %s22, 1
        // Predicated region
        $region13: #{qnet_forward.1} parent=11 // pred_check
          %p341 = pneg %p69
        $region14: #{qnet_forward.1} parent=11 // pred_check_branch
          %343 = sbr.rel (%p341) target = $region16
        $region15: #{qnet_forward.1} parent=11 // pred_region
          _
        $region16: #{qnet_forward.1} parent=11 // pred_fallthru
          _
        // Predicated region
        $region17: #{qnet_forward.1} parent=11 // pred_check
          %p344 = pneg %p90
        $region18: #{qnet_forward.1} parent=11 // pred_check_branch
          %346 = sbr.rel (%p344) target = $region20
        $region19: #{qnet_forward.1} parent=11 // pred_region
          _
        $region20: #{qnet_forward.1} parent=11 // pred_fallthru
          _
        // Predicated region
        $region21: #{qnet_forward.1} parent=11 // pred_check
          %p347 = pneg %p111
        $region22: #{qnet_forward.1} parent=11 // pred_check_branch
          %349 = sbr.rel (%p347) target = $region24
        $region23: #{qnet_forward.1} parent=11 // pred_region
          _
        $region24: #{qnet_forward.1} parent=11 // pred_fallthru
          _
        // Predicated region
        $region25: #{qnet_forward.1} parent=11 // pred_check
          %p350 = pneg %p132
        $region26: #{qnet_forward.1} parent=11 // pred_check_branch
          %352 = sbr.rel (%p350) target = $region28
        $region27: #{qnet_forward.1} parent=11 // pred_region
          _
        $region28: #{qnet_forward.1} parent=11 // pred_fallthru
          _
        // Predicated region
        $region29: #{qnet_forward.1} parent=11 // pred_check
          %p353 = pneg %p153
        $region30: #{qnet_forward.1} parent=11 // pred_check_branch
          %355 = sbr.rel (%p353) target = $region32
        $region31: #{qnet_forward.1} parent=11 // pred_region
          _
        $region32: #{qnet_forward.1} parent=11 // pred_fallthru
          _
        // Predicated region
        $region33: #{qnet_forward.1} parent=11 // pred_check
          %p356 = pneg %p174
        $region34: #{qnet_forward.1} parent=11 // pred_check_branch
          %358 = sbr.rel (%p356) target = $region36
        $region35: #{qnet_forward.1} parent=11 // pred_region
          _
        $region36: #{qnet_forward.1} parent=11 // pred_fallthru
          _
        // Predicated region
        $region37: #{qnet_forward.1} parent=11 // pred_check
          %p359 = pneg %p195
        $region38: #{qnet_forward.1} parent=11 // pred_check_branch
          %361 = sbr.rel (%p359) target = $region40
        $region39: #{qnet_forward.1} parent=11 // pred_region
          _
        $region40: #{qnet_forward.1} parent=11 // pred_fallthru
          _
        // Predicated region
        $region41: #{qnet_forward.1} parent=11 // pred_check
          %p362 = pneg %p216
        $region42: #{qnet_forward.1} parent=11 // pred_check_branch
          %364 = sbr.rel (%p362) target = $region44
        $region43: #{qnet_forward.1} parent=11 // pred_region
          _
        $region44: #{qnet_forward.1} parent=11 // pred_fallthru
          _
        // Predicated region
        $region45: #{qnet_forward.1} parent=11 // pred_check
          %p365 = pneg %p237
        $region46: #{qnet_forward.1} parent=11 // pred_check_branch
          %367 = sbr.rel (%p365) target = $region48
        $region47: #{qnet_forward.1} parent=11 // pred_region
          _
        $region48: #{qnet_forward.1} parent=11 // pred_fallthru
          _
        // Predicated region
        $region49: #{qnet_forward.1} parent=11 // pred_check
          %p368 = pneg %p258
        $region50: #{qnet_forward.1} parent=11 // pred_check_branch
          %370 = sbr.rel (%p368) target = $region52
        $region51: #{qnet_forward.1} parent=11 // pred_region
          _
        $region52: #{qnet_forward.1} parent=11 // pred_fallthru
          _
        // Predicated region
        $region53: #{qnet_forward.1} parent=11 // pred_check
          %p371 = pneg %p279
        $region54: #{qnet_forward.1} parent=11 // pred_check_branch
          %373 = sbr.rel (%p371) target = $region56
        $region55: #{qnet_forward.1} parent=11 // pred_region
          _
        $region56: #{qnet_forward.1} parent=11 // pred_fallthru
          _
        // Predicated region
        $region57: #{qnet_forward.1} parent=11 // pred_check
          %p374 = pneg %p300
        $region58: #{qnet_forward.1} parent=11 // pred_check_branch
          %376 = sbr.rel (%p374) target = $region60
        $region59: #{qnet_forward.1} parent=11 // pred_region
          _
        $region60: #{qnet_forward.1} parent=11 // pred_fallthru
          _
      $region12: #{qnet_forward.1} parent=5 // pred_fallthru
        _
      %p377 = scmp.lt.s32.totalorder %s22, 2
      // Predicated region
      $region61: #{qnet_forward.1} parent=5 // pred_check
        %p378 = pneg %p377
      $region62: #{qnet_forward.1} parent=5 // pred_check_branch
        %380 = sbr.rel (%p378) target = $region64
      $region63: #{qnet_forward.1} parent=5 // pred_region
        // Predicated region
        $region65: #{qnet_forward.1} parent=63 // pred_check
          %p381 = pneg %p42
        $region66: #{qnet_forward.1} parent=63 // pred_check_branch
          %383 = sbr.rel (%p381) target = $region68
        $region67: #{qnet_forward.1} parent=63 // pred_region
          %p384 = scmp.lt.s32.totalorder %s22, 1
          %s385 = scalar_select %p384, %s22, 1
          %s386 = smul.addr %s385, 104
          %s387 = smul.addr %s386, 4
          %s388 = scalar_lea.vmem %s0, %s387
        $region68: #{qnet_forward.1} parent=63 // pred_fallthru
          _
      $region64: #{qnet_forward.1} parent=5 // pred_fallthru
        _
      %p389 = scmp.le.s32.totalorder 1, %s22
      %p390 = scmp.lt.s32.totalorder %s22, 3
      %p391 = pnand %p389, %p390
      %p392 = pneg %p391
      // Predicated region
      $region69: #{qnet_forward.1} parent=5 // pred_check
        _
      $region70: #{qnet_forward.1} parent=5 // pred_check_branch
        %394 = sbr.rel (%p391) target = $region72
      $region71: #{qnet_forward.1} parent=5 // pred_region
        %s395 = ssub.s32 %s22, 1
        %p396 = scmp.lt.s32.totalorder %s27, 1
        %s397 = scalar_select %p396, %s27, 1
        %s398 = smul.addr %s397, 104
        %s399 = smul.addr %s398, 4
        %s400 = scalar_lea.vmem %s0, %s399
        %p401 = pneg %p48
        %p402 = pneg %p45
        %p403 = pneg %p69
        %p404 = pneg %p66
        %p405 = pneg %p90
        %p406 = pneg %p87
        %p407 = pneg %p111
        %p408 = pneg %p108
        %p409 = pneg %p132
        %p410 = pneg %p129
        %p411 = pneg %p153
        %p412 = pneg %p150
        %p413 = pneg %p174
        %p414 = pneg %p171
        %p415 = pneg %p195
        %p416 = pneg %p192
        %p417 = pneg %p216
        %p418 = pneg %p213
        %p419 = pneg %p237
        %p420 = pneg %p234
        %p421 = pneg %p258
        %p422 = pneg %p255
        %p423 = pneg %p279
        %p424 = pneg %p276
        %p425 = pneg %p300
        %p426 = pneg %p297
        %p427 = pneg %p326
        %p428 = pneg %p323
        %s429 = sand.u32 %s313, 1
        %s430 = scalar_lea.sflag [#allocation3], %s429
        %s431 = sand.u32 %s313, 1
        %s432 = scalar_lea.vmem [#allocation2], %s431
        %p433 = scmp.lt.s32.totalorder %s27, 1
        %s434 = scalar_select %p433, %s27, 1
        %s435 = smul.addr %s434, 104
        %s436 = smul.addr %s435, 4
        %s437 = scalar_lea.vmem %s0, %s436
        %v439 = vld [vmem:[%s1] sm:$0xf]
        %v440 = vld [vmem:[%s1 + $0x4] sm:$0xf]
        %v441 = vld [vmem:[%s1 + $0x8] sm:$0xf]
        %v442 = vld [vmem:[%s1 + $0xc] sm:$0xf]
        %v443 = vld [vmem:[%s1 + $0x10] sm:$0xf]
        %v444 = vld [vmem:[%s1 + $0x14] sm:$0xf]
        %v445 = vld [vmem:[%s1 + $0x18] sm:$0xf]
        %v446 = vld [vmem:[%s1 + $0x1c] sm:$0xf]
        %v447 = vld [vmem:[%s1 + $0x20] sm:$0xf]
        %v448 = vld [vmem:[%s1 + $0x24] sm:$0xf]
        %v449 = vld [vmem:[%s1 + $0x28] sm:$0xf]
        %v450 = vld [vmem:[%s1 + $0x2c] sm:$0xf]
        %v451 = vld [vmem:[%s1 + $0x30] sm:$0xf]
        %v452 = vld [vmem:[%s1 + $0x34] sm:$0xf]
        %v453 = vld [vmem:[%s1 + $0x38] sm:$0xf]
        %v454 = vld [vmem:[%s1 + $0x3c] sm:$0xf]
        %v455 = vld [vmem:[%s1 + $0x40] sm:$0xf]
        %v456 = vld [vmem:[%s1 + $0x44] sm:$0xf]
        %v457 = vld [vmem:[%s1 + $0x48] sm:$0xf]
        %v458 = vld [vmem:[%s1 + $0x4c] sm:$0xf]
        %v459 = vld [vmem:[%s1 + $0x50] sm:$0xf]
        %v460 = vld [vmem:[%s1 + $0x54] sm:$0xf]
        %v461 = vld [vmem:[%s1 + $0x58] sm:$0xf]
        %v462 = vld [vmem:[%s1 + $0x5c] sm:$0xf]
        %v463 = vld [vmem:[%s1 + $0x60] sm:$0xf]
        %v464 = vld [vmem:[%s1 + $0x64] sm:$0xf]
        %v465 = vld [vmem:[%s1 + $0x68] sm:$0xf]
        %v466 = vld [vmem:[%s1 + $0x6c] sm:$0xf]
        %v467 = vld [vmem:[%s1 + $0x70] sm:$0xf]
        %v468 = vld [vmem:[%s1 + $0x74] sm:$0xf]
        %v469 = vld [vmem:[%s1 + $0x78] sm:$0xf]
        %v470 = vld [vmem:[%s1 + $0x7c] sm:$0xf]
        %v471 = vld [vmem:[%s2] sm:$0x1]
        %v472 = vld [vmem:[%s437] sm:$0xff]
        %v473 = vld [vmem:[%s437 + $0x8] sm:$0xff]
        %v474 = vld [vmem:[%s437 + $0x10] sm:$0xff]
        %v475 = vld [vmem:[%s437 + $0x18] sm:$0xff]
        %v476 = vld [vmem:[%s437 + $0x20] sm:$0xff]
        %v477 = vld [vmem:[%s437 + $0x28] sm:$0xff]
        %v478 = vld [vmem:[%s437 + $0x30] sm:$0xff]
        %v479 = vld [vmem:[%s437 + $0x38] sm:$0xff]
        %v480 = vld [vmem:[%s437 + $0x40] sm:$0xff]
        %v481 = vld [vmem:[%s437 + $0x48] sm:$0xff]
        %v482 = vld [vmem:[%s437 + $0x50] sm:$0xff]
        %v483 = vld [vmem:[%s437 + $0x58] sm:$0xff]
        %v484 = vld [vmem:[%s437 + $0x60] sm:$0x33]
        %v486 = vlaneseq
        %v487 = vshrl.u32 %v486, 7
        %v488 = vsub.s32 0, %v487
        %v489 = vrot.slane %v471, %v488
        %v504 = vunpack.c.l.b16 %v472
        %v505 = vunpack.c.h.b16 %v472
        %v506 = vunpack.c.l.b16 %v473
        %v507 = vunpack.c.h.b16 %v473
        %v508 = vunpack.c.l.b16 %v474
        %v509 = vunpack.c.h.b16 %v474
        %v510 = vunpack.c.l.b16 %v475
        %v511 = vunpack.c.h.b16 %v475
        %v512 = vunpack.c.l.b16 %v476
        %v513 = vunpack.c.h.b16 %v476
        %v514 = vunpack.c.l.b16 %v477
        %v515 = vunpack.c.h.b16 %v477
        %v516 = vunpack.c.l.b16 %v478
        %v517 = vunpack.c.h.b16 %v478
        %v518 = vunpack.c.l.b16 %v479
        %v519 = vunpack.c.h.b16 %v479
        %v520 = vunpack.c.l.b16 %v480
        %v521 = vunpack.c.h.b16 %v480
        %v522 = vunpack.c.l.b16 %v481
        %v523 = vunpack.c.h.b16 %v481
        %v524 = vunpack.c.l.b16 %v482
        %v525 = vunpack.c.h.b16 %v482
        %v526 = vunpack.c.l.b16 %v483
        %v527 = vunpack.c.h.b16 %v483
        %v528 = vunpack.c.l.b16 %v484
        %v529 = vunpack.c.h.b16 %v484
        %v530 = vpack.c.b16 %v506, %v504
        %v531 = vpack.c.b16 %v507, %v505
        %v532 = vpack.c.b16 %v510, %v508
        %v533 = vpack.c.b16 %v511, %v509
        %v534 = vpack.c.b16 %v514, %v512
        %v535 = vpack.c.b16 %v515, %v513
        %v536 = vpack.c.b16 %v518, %v516
        %v537 = vpack.c.b16 %v519, %v517
        %v538 = vpack.c.b16 %v522, %v520
        %v539 = vpack.c.b16 %v523, %v521
        %v540 = vpack.c.b16 %v526, %v524
        %v541 = vpack.c.b16 %v527, %v525
        %v542 = vpack.c.b16 %v528, %v528
        %v543 = vpack.c.b16 %v529, %v529
        %v590 = vunpack.c.l.b16 %v439
        %v591 = vunpack.c.l.b16 %v440
        %v592 = vunpack.c.l.b16 %v441
        %v593 = vunpack.c.l.b16 %v442
        %v594 = vunpack.c.l.b16 %v443
        %v595 = vunpack.c.l.b16 %v444
        %v596 = vunpack.c.l.b16 %v445
        %v597 = vunpack.c.l.b16 %v446
        %v598 = vunpack.c.l.b16 %v447
        %v599 = vunpack.c.l.b16 %v448
        %v600 = vunpack.c.l.b16 %v449
        %v601 = vunpack.c.l.b16 %v450
        %v602 = vunpack.c.l.b16 %v451
        %v603 = vunpack.c.l.b16 %v452
        %v604 = vunpack.c.l.b16 %v453
        %v605 = vunpack.c.l.b16 %v454
        %v606 = vunpack.c.l.b16 %v455
        %v607 = vunpack.c.l.b16 %v456
        %v608 = vunpack.c.l.b16 %v457
        %v609 = vunpack.c.l.b16 %v458
        %v610 = vunpack.c.l.b16 %v459
        %v611 = vunpack.c.l.b16 %v460
        %v612 = vunpack.c.l.b16 %v461
        %v613 = vunpack.c.l.b16 %v462
        %v614 = vunpack.c.l.b16 %v463
        %v615 = vunpack.c.l.b16 %v464
        %v616 = vunpack.c.l.b16 %v465
        %v617 = vunpack.c.l.b16 %v466
        %v618 = vunpack.c.l.b16 %v467
        %v619 = vunpack.c.l.b16 %v468
        %v620 = vunpack.c.l.b16 %v469
        %v621 = vunpack.c.l.b16 %v470
        %v622 = vpack.c.b16 %v591, %v590
        %v623 = vpack.c.b16 %v593, %v592
        %v624 = vpack.c.b16 %v595, %v594
        %v625 = vpack.c.b16 %v597, %v596
        %v626 = vpack.c.b16 %v599, %v598
        %v627 = vpack.c.b16 %v601, %v600
        %v628 = vpack.c.b16 %v603, %v602
        %v629 = vpack.c.b16 %v605, %v604
        %v630 = vpack.c.b16 %v607, %v606
        %v631 = vpack.c.b16 %v609, %v608
        %v632 = vpack.c.b16 %v611, %v610
        %v633 = vpack.c.b16 %v613, %v612
        %v634 = vpack.c.b16 %v615, %v614
        %v635 = vpack.c.b16 %v617, %v616
        %v636 = vpack.c.b16 %v619, %v618
        %v637 = vpack.c.b16 %v621, %v620
        %654 = vmatprep.subr.bf16.mxu0 0
        %655 = vmatpush1.bf16.msra.mxu0 %v629
        %656 = vmatprep.subr.bf16.mxu0 0
        %657 = vmatpush1.bf16.msra.mxu0 %v628
        %658 = vmatprep.subr.bf16.mxu0 0
        %659 = vmatpush1.bf16.msra.mxu0 %v627
        %660 = vmatprep.subr.bf16.mxu0 0
        %661 = vmatpush1.bf16.msra.mxu0 %v626
        %662 = vmatprep.subr.bf16.mxu0 0
        %663 = vmatpush1.bf16.msra.mxu0 %v625
        %664 = vmatprep.subr.bf16.mxu0 0
        %665 = vmatpush1.bf16.msra.mxu0 %v624
        %666 = vmatprep.subr.bf16.mxu0 0
        %667 = vmatpush1.bf16.msra.mxu0 %v623
        %668 = vmatprep.subr.bf16.mxu0 0
        %669 = vmatpush1.bf16.msra.mxu0 %v622
        %670 = vmatprep.subr.bf16.mxu0 0
        %671 = vmatpush2.bf16.msra.mxu0 %v637
        %672 = vmatprep.subr.bf16.mxu0 0
        %673 = vmatpush2.bf16.msra.mxu0 %v636
        %674 = vmatprep.subr.bf16.mxu0 0
        %675 = vmatpush2.bf16.msra.mxu0 %v635
        %676 = vmatprep.subr.bf16.mxu0 0
        %677 = vmatpush2.bf16.msra.mxu0 %v634
        %678 = vmatprep.subr.bf16.mxu0 0
        %679 = vmatpush2.bf16.msra.mxu0 %v633
        %680 = vmatprep.subr.bf16.mxu0 0
        %681 = vmatpush2.bf16.msra.mxu0 %v632
        %682 = vmatprep.subr.bf16.mxu0 0
        %683 = vmatpush2.bf16.msra.mxu0 %v631
        %684 = vmatprep.subr.bf16.mxu0 0
        %685 = vmatpush2.bf16.msra.mxu0 %v630
        %686 = vmatprep.mubr.bf16.mxu0 %v531
        %687 = vmatmul.mubr.bf16.gmra.mxu0 %v530
        %v688 = vpop.f32.mrf.mxu0
        %v689 = vadd.f32 %v489, %v688
        %v690 = vpop.f32.mrf.mxu0
        %v691 = vpop.f32.mrf.mxu0
        %v692 = vadd.f32 %v489, %v691
        %v693 = vpop.f32.mrf.mxu0
        %694 = vmatprep.mubr.bf16.mxu0 %v533
        %695 = vmatmul.mubr.bf16.gmra.mxu0 %v532
        %v696 = vpop.f32.mrf.mxu0
        %v697 = vadd.f32 %v489, %v696
        %v698 = vpop.f32.mrf.mxu0
        %v699 = vpop.f32.mrf.mxu0
        %v700 = vadd.f32 %v489, %v699
        %v701 = vpop.f32.mrf.mxu0
        %702 = vmatprep.mubr.bf16.mxu0 %v535
        %703 = vmatmul.mubr.bf16.gmra.mxu0 %v534
        %v704 = vpop.f32.mrf.mxu0
        %v705 = vadd.f32 %v489, %v704
        %v706 = vpop.f32.mrf.mxu0
        %v707 = vpop.f32.mrf.mxu0
        %v708 = vadd.f32 %v489, %v707
        %v709 = vpop.f32.mrf.mxu0
        %710 = vmatprep.mubr.bf16.mxu0 %v537
        %711 = vmatmul.mubr.bf16.gmra.mxu0 %v536
        %v712 = vpop.f32.mrf.mxu0
        %v713 = vadd.f32 %v489, %v712
        %v714 = vpop.f32.mrf.mxu0
        %v715 = vpop.f32.mrf.mxu0
        %v716 = vadd.f32 %v489, %v715
        %v717 = vpop.f32.mrf.mxu0
        %718 = vmatprep.mubr.bf16.mxu0 %v539
        %719 = vmatmul.mubr.bf16.gmra.mxu0 %v538
        %v720 = vpop.f32.mrf.mxu0
        %v721 = vadd.f32 %v489, %v720
        %v722 = vpop.f32.mrf.mxu0
        %v723 = vpop.f32.mrf.mxu0
        %v724 = vadd.f32 %v489, %v723
        %v725 = vpop.f32.mrf.mxu0
        %726 = vmatprep.mubr.bf16.mxu0 %v541
        %727 = vmatmul.mubr.bf16.gmra.mxu0 %v540
        %v728 = vpop.f32.mrf.mxu0
        %v729 = vadd.f32 %v489, %v728
        %v730 = vpop.f32.mrf.mxu0
        %v731 = vpop.f32.mrf.mxu0
        %v732 = vadd.f32 %v489, %v731
        %v733 = vpop.f32.mrf.mxu0
        %734 = vmatprep.mubr.bf16.mxu0 %v543
        %735 = vmatmul.mubr.bf16.gmra.mxu0 %v542
        %v736 = vpop.f32.mrf.mxu0
        %v737 = vadd.f32 %v489, %v736
        %v738 = vpop.f32.mrf.mxu0
        %v739 = vpop.f32.mrf.mxu0
        %v740 = vpop.f32.mrf.mxu0
        %741 = vdwg.mxu0
        %v742 = vmax.f32 %v689, 0.0
        %v743 = vmax.f32 %v692, 0.0
        %v744 = vmax.f32 %v697, 0.0
        %v745 = vmax.f32 %v700, 0.0
        %v746 = vmax.f32 %v705, 0.0
        %v747 = vmax.f32 %v708, 0.0
        %v748 = vmax.f32 %v713, 0.0
        %v749 = vmax.f32 %v716, 0.0
        %v750 = vmax.f32 %v721, 0.0
        %v751 = vmax.f32 %v724, 0.0
        %v752 = vmax.f32 %v729, 0.0
        %v753 = vmax.f32 %v732, 0.0
        %v754 = vmax.f32 %v737, 0.0
        %s755 = scalar_lea.vmem %s437, 104
        %v756 = vld [vmem:[%s755] sm:$0xff]
        %v757 = vld [vmem:[%s755 + $0x8] sm:$0xff]
        %v758 = vld [vmem:[%s755 + $0x10] sm:$0xff]
        %v759 = vld [vmem:[%s755 + $0x18] sm:$0xff]
        %v760 = vld [vmem:[%s755 + $0x20] sm:$0xff]
        %v761 = vld [vmem:[%s755 + $0x28] sm:$0xff]
        %v762 = vld [vmem:[%s755 + $0x30] sm:$0xff]
        %v763 = vld [vmem:[%s755 + $0x38] sm:$0xff]
        %v764 = vld [vmem:[%s755 + $0x40] sm:$0xff]
        %v765 = vld [vmem:[%s755 + $0x48] sm:$0xff]
        %v766 = vld [vmem:[%s755 + $0x50] sm:$0xff]
        %v767 = vld [vmem:[%s755 + $0x58] sm:$0xff]
        %v768 = vld [vmem:[%s755 + $0x60] sm:$0x33]
        %v782 = vunpack.c.l.b16 %v756
        %v783 = vunpack.c.h.b16 %v756
        %v784 = vunpack.c.l.b16 %v757
        %v785 = vunpack.c.h.b16 %v757
        %v786 = vunpack.c.l.b16 %v758
        %v787 = vunpack.c.h.b16 %v758
        %v788 = vunpack.c.l.b16 %v759
        %v789 = vunpack.c.h.b16 %v759
        %v790 = vunpack.c.l.b16 %v760
        %v791 = vunpack.c.h.b16 %v760
        %v792 = vunpack.c.l.b16 %v761
        %v793 = vunpack.c.h.b16 %v761
        %v794 = vunpack.c.l.b16 %v762
        %v795 = vunpack.c.h.b16 %v762
        %v796 = vunpack.c.l.b16 %v763
        %v797 = vunpack.c.h.b16 %v763
        %v798 = vunpack.c.l.b16 %v764
        %v799 = vunpack.c.h.b16 %v764
        %v800 = vunpack.c.l.b16 %v765
        %v801 = vunpack.c.h.b16 %v765
        %v802 = vunpack.c.l.b16 %v766
        %v803 = vunpack.c.h.b16 %v766
        %v804 = vunpack.c.l.b16 %v767
        %v805 = vunpack.c.h.b16 %v767
        %v806 = vunpack.c.l.b16 %v768
        %v807 = vunpack.c.h.b16 %v768
        %v808 = vpack.c.b16 %v784, %v782
        %v809 = vpack.c.b16 %v785, %v783
        %v810 = vpack.c.b16 %v788, %v786
        %v811 = vpack.c.b16 %v789, %v787
        %v812 = vpack.c.b16 %v792, %v790
        %v813 = vpack.c.b16 %v793, %v791
        %v814 = vpack.c.b16 %v796, %v794
        %v815 = vpack.c.b16 %v797, %v795
        %v816 = vpack.c.b16 %v800, %v798
        %v817 = vpack.c.b16 %v801, %v799
        %v818 = vpack.c.b16 %v804, %v802
        %v819 = vpack.c.b16 %v805, %v803
        %v820 = vpack.c.b16 %v806, %v806
        %v821 = vpack.c.b16 %v807, %v807
        %836 = vmatprep.subr.bf16.mxu0 0
        %837 = vmatpush1.bf16.msra.mxu0 %v629
        %838 = vmatprep.subr.bf16.mxu0 0
        %839 = vmatpush1.bf16.msra.mxu0 %v628
        %840 = vmatprep.subr.bf16.mxu0 0
        %841 = vmatpush1.bf16.msra.mxu0 %v627
        %842 = vmatprep.subr.bf16.mxu0 0
        %843 = vmatpush1.bf16.msra.mxu0 %v626
        %844 = vmatprep.subr.bf16.mxu0 0
        %845 = vmatpush1.bf16.msra.mxu0 %v625
        %846 = vmatprep.subr.bf16.mxu0 0
        %847 = vmatpush1.bf16.msra.mxu0 %v624
        %848 = vmatprep.subr.bf16.mxu0 0
        %849 = vmatpush1.bf16.msra.mxu0 %v623
        %850 = vmatprep.subr.bf16.mxu0 0
        %851 = vmatpush1.bf16.msra.mxu0 %v622
        %852 = vmatprep.subr.bf16.mxu0 0
        %853 = vmatpush2.bf16.msra.mxu0 %v637
        %854 = vmatprep.subr.bf16.mxu0 0
        %855 = vmatpush2.bf16.msra.mxu0 %v636
        %856 = vmatprep.subr.bf16.mxu0 0
        %857 = vmatpush2.bf16.msra.mxu0 %v635
        %858 = vmatprep.subr.bf16.mxu0 0
        %859 = vmatpush2.bf16.msra.mxu0 %v634
        %860 = vmatprep.subr.bf16.mxu0 0
        %861 = vmatpush2.bf16.msra.mxu0 %v633
        %862 = vmatprep.subr.bf16.mxu0 0
        %863 = vmatpush2.bf16.msra.mxu0 %v632
        %864 = vmatprep.subr.bf16.mxu0 0
        %865 = vmatpush2.bf16.msra.mxu0 %v631
        %866 = vmatprep.subr.bf16.mxu0 0
        %867 = vmatpush2.bf16.msra.mxu0 %v630
        %868 = vmatprep.mubr.bf16.mxu0 %v809
        %869 = vmatmul.mubr.bf16.gmra.mxu0 %v808
        %v870 = vpop.f32.mrf.mxu0
        %v871 = vadd.f32 %v489, %v870
        %v872 = vpop.f32.mrf.mxu0
        %v873 = vpop.f32.mrf.mxu0
        %v874 = vadd.f32 %v489, %v873
        %v875 = vpop.f32.mrf.mxu0
        %876 = vmatprep.mubr.bf16.mxu0 %v811
        %877 = vmatmul.mubr.bf16.gmra.mxu0 %v810
        %v878 = vpop.f32.mrf.mxu0
        %v879 = vadd.f32 %v489, %v878
        %v880 = vpop.f32.mrf.mxu0
        %v881 = vpop.f32.mrf.mxu0
        %v882 = vadd.f32 %v489, %v881
        %v883 = vpop.f32.mrf.mxu0
        %884 = vmatprep.mubr.bf16.mxu0 %v813
        %885 = vmatmul.mubr.bf16.gmra.mxu0 %v812
        %v886 = vpop.f32.mrf.mxu0
        %v887 = vadd.f32 %v489, %v886
        %v888 = vpop.f32.mrf.mxu0
        %v889 = vpop.f32.mrf.mxu0
        %v890 = vadd.f32 %v489, %v889
        %v891 = vpop.f32.mrf.mxu0
        %892 = vmatprep.mubr.bf16.mxu0 %v815
        %893 = vmatmul.mubr.bf16.gmra.mxu0 %v814
        %v894 = vpop.f32.mrf.mxu0
        %v895 = vadd.f32 %v489, %v894
        %v896 = vpop.f32.mrf.mxu0
        %v897 = vpop.f32.mrf.mxu0
        %v898 = vadd.f32 %v489, %v897
        %v899 = vpop.f32.mrf.mxu0
        %900 = vmatprep.mubr.bf16.mxu0 %v817
        %901 = vmatmul.mubr.bf16.gmra.mxu0 %v816
        %v902 = vpop.f32.mrf.mxu0
        %v903 = vadd.f32 %v489, %v902
        %v904 = vpop.f32.mrf.mxu0
        %v905 = vpop.f32.mrf.mxu0
        %v906 = vadd.f32 %v489, %v905
        %v907 = vpop.f32.mrf.mxu0
        %908 = vmatprep.mubr.bf16.mxu0 %v819
        %909 = vmatmul.mubr.bf16.gmra.mxu0 %v818
        %v910 = vpop.f32.mrf.mxu0
        %v911 = vadd.f32 %v489, %v910
        %v912 = vpop.f32.mrf.mxu0
        %v913 = vpop.f32.mrf.mxu0
        %v914 = vadd.f32 %v489, %v913
        %v915 = vpop.f32.mrf.mxu0
        %916 = vmatprep.mubr.bf16.mxu0 %v821
        %917 = vmatmul.mubr.bf16.gmra.mxu0 %v820
        %v918 = vpop.f32.mrf.mxu0
        %v919 = vadd.f32 %v489, %v918
        %v920 = vpop.f32.mrf.mxu0
        %v921 = vpop.f32.mrf.mxu0
        %v922 = vpop.f32.mrf.mxu0
        %923 = vdwg.mxu0
        %v924 = vmax.f32 %v871, 0.0
        %v925 = vmax.f32 %v874, 0.0
        %v926 = vmax.f32 %v879, 0.0
        %v927 = vmax.f32 %v882, 0.0
        %v928 = vmax.f32 %v887, 0.0
        %v929 = vmax.f32 %v890, 0.0
        %v930 = vmax.f32 %v895, 0.0
        %v931 = vmax.f32 %v898, 0.0
        %v932 = vmax.f32 %v903, 0.0
        %v933 = vmax.f32 %v906, 0.0
        %v934 = vmax.f32 %v911, 0.0
        %v935 = vmax.f32 %v914, 0.0
        %v936 = vmax.f32 %v919, 0.0
        %v937 = vmax.f32 %v742, %v924
        %v938 = vmax.f32 %v743, %v925
        %v939 = vmax.f32 %v744, %v926
        %v940 = vmax.f32 %v745, %v927
        %v941 = vmax.f32 %v746, %v928
        %v942 = vmax.f32 %v747, %v929
        %v943 = vmax.f32 %v748, %v930
        %v944 = vmax.f32 %v749, %v931
        %v945 = vmax.f32 %v750, %v932
        %v946 = vmax.f32 %v751, %v933
        %v947 = vmax.f32 %v752, %v934
        %v948 = vmax.f32 %v753, %v935
        %v949 = vmax.f32 %v754, %v936
        %s950 = scalar_lea.vmem %s437, 208
        %v951 = vld [vmem:[%s950] sm:$0xff]
        %v952 = vld [vmem:[%s950 + $0x8] sm:$0xff]
        %v953 = vld [vmem:[%s950 + $0x10] sm:$0xff]
        %v954 = vld [vmem:[%s950 + $0x18] sm:$0xff]
        %v955 = vld [vmem:[%s950 + $0x20] sm:$0xff]
        %v956 = vld [vmem:[%s950 + $0x28] sm:$0xff]
        %v957 = vld [vmem:[%s950 + $0x30] sm:$0xff]
        %v958 = vld [vmem:[%s950 + $0x38] sm:$0xff]
        %v959 = vld [vmem:[%s950 + $0x40] sm:$0xff]
        %v960 = vld [vmem:[%s950 + $0x48] sm:$0xff]
        %v961 = vld [vmem:[%s950 + $0x50] sm:$0xff]
        %v962 = vld [vmem:[%s950 + $0x58] sm:$0xff]
        %v963 = vld [vmem:[%s950 + $0x60] sm:$0x33]
        %v977 = vunpack.c.l.b16 %v951
        %v978 = vunpack.c.h.b16 %v951
        %v979 = vunpack.c.l.b16 %v952
        %v980 = vunpack.c.h.b16 %v952
        %v981 = vunpack.c.l.b16 %v953
        %v982 = vunpack.c.h.b16 %v953
        %v983 = vunpack.c.l.b16 %v954
        %v984 = vunpack.c.h.b16 %v954
        %v985 = vunpack.c.l.b16 %v955
        %v986 = vunpack.c.h.b16 %v955
        %v987 = vunpack.c.l.b16 %v956
        %v988 = vunpack.c.h.b16 %v956
        %v989 = vunpack.c.l.b16 %v957
        %v990 = vunpack.c.h.b16 %v957
        %v991 = vunpack.c.l.b16 %v958
        %v992 = vunpack.c.h.b16 %v958
        %v993 = vunpack.c.l.b16 %v959
        %v994 = vunpack.c.h.b16 %v959
        %v995 = vunpack.c.l.b16 %v960
        %v996 = vunpack.c.h.b16 %v960
        %v997 = vunpack.c.l.b16 %v961
        %v998 = vunpack.c.h.b16 %v961
        %v999 = vunpack.c.l.b16 %v962
        %v1000 = vunpack.c.h.b16 %v962
        %v1001 = vunpack.c.l.b16 %v963
        %v1002 = vunpack.c.h.b16 %v963
        %v1003 = vpack.c.b16 %v979, %v977
        %v1004 = vpack.c.b16 %v980, %v978
        %v1005 = vpack.c.b16 %v983, %v981
        %v1006 = vpack.c.b16 %v984, %v982
        %v1007 = vpack.c.b16 %v987, %v985
        %v1008 = vpack.c.b16 %v988, %v986
        %v1009 = vpack.c.b16 %v991, %v989
        %v1010 = vpack.c.b16 %v992, %v990
        %v1011 = vpack.c.b16 %v995, %v993
        %v1012 = vpack.c.b16 %v996, %v994
        %v1013 = vpack.c.b16 %v999, %v997
        %v1014 = vpack.c.b16 %v1000, %v998
        %v1015 = vpack.c.b16 %v1001, %v1001
        %v1016 = vpack.c.b16 %v1002, %v1002
        %1031 = vmatprep.subr.bf16.mxu0 0
        %1032 = vmatpush1.bf16.msra.mxu0 %v629
        %1033 = vmatprep.subr.bf16.mxu0 0
        %1034 = vmatpush1.bf16.msra.mxu0 %v628
        %1035 = vmatprep.subr.bf16.mxu0 0
        %1036 = vmatpush1.bf16.msra.mxu0 %v627
        %1037 = vmatprep.subr.bf16.mxu0 0
        %1038 = vmatpush1.bf16.msra.mxu0 %v626
        %1039 = vmatprep.subr.bf16.mxu0 0
        %1040 = vmatpush1.bf16.msra.mxu0 %v625
        %1041 = vmatprep.subr.bf16.mxu0 0
        %1042 = vmatpush1.bf16.msra.mxu0 %v624
        %1043 = vmatprep.subr.bf16.mxu0 0
        %1044 = vmatpush1.bf16.msra.mxu0 %v623
        %1045 = vmatprep.subr.bf16.mxu0 0
        %1046 = vmatpush1.bf16.msra.mxu0 %v622
        %1047 = vmatprep.subr.bf16.mxu0 0
        %1048 = vmatpush2.bf16.msra.mxu0 %v637
        %1049 = vmatprep.subr.bf16.mxu0 0
        %1050 = vmatpush2.bf16.msra.mxu0 %v636
        %1051 = vmatprep.subr.bf16.mxu0 0
        %1052 = vmatpush2.bf16.msra.mxu0 %v635
        %1053 = vmatprep.subr.bf16.mxu0 0
        %1054 = vmatpush2.bf16.msra.mxu0 %v634
        %1055 = vmatprep.subr.bf16.mxu0 0
        %1056 = vmatpush2.bf16.msra.mxu0 %v633
        %1057 = vmatprep.subr.bf16.mxu0 0
        %1058 = vmatpush2.bf16.msra.mxu0 %v632
        %1059 = vmatprep.subr.bf16.mxu0 0
        %1060 = vmatpush2.bf16.msra.mxu0 %v631
        %1061 = vmatprep.subr.bf16.mxu0 0
        %1062 = vmatpush2.bf16.msra.mxu0 %v630
        %1063 = vmatprep.mubr.bf16.mxu0 %v1004
        %1064 = vmatmul.mubr.bf16.gmra.mxu0 %v1003
        %v1065 = vpop.f32.mrf.mxu0
        %v1066 = vadd.f32 %v489, %v1065
        %v1067 = vpop.f32.mrf.mxu0
        %v1068 = vpop.f32.mrf.mxu0
        %v1069 = vadd.f32 %v489, %v1068
        %v1070 = vpop.f32.mrf.mxu0
        %1071 = vmatprep.mubr.bf16.mxu0 %v1006
        %1072 = vmatmul.mubr.bf16.gmra.mxu0 %v1005
        %v1073 = vpop.f32.mrf.mxu0
        %v1074 = vadd.f32 %v489, %v1073
        %v1075 = vpop.f32.mrf.mxu0
        %v1076 = vpop.f32.mrf.mxu0
        %v1077 = vadd.f32 %v489, %v1076
        %v1078 = vpop.f32.mrf.mxu0
        %1079 = vmatprep.mubr.bf16.mxu0 %v1008
        %1080 = vmatmul.mubr.bf16.gmra.mxu0 %v1007
        %v1081 = vpop.f32.mrf.mxu0
        %v1082 = vadd.f32 %v489, %v1081
        %v1083 = vpop.f32.mrf.mxu0
        %v1084 = vpop.f32.mrf.mxu0
        %v1085 = vadd.f32 %v489, %v1084
        %v1086 = vpop.f32.mrf.mxu0
        %1087 = vmatprep.mubr.bf16.mxu0 %v1010
        %1088 = vmatmul.mubr.bf16.gmra.mxu0 %v1009
        %v1089 = vpop.f32.mrf.mxu0
        %v1090 = vadd.f32 %v489, %v1089
        %v1091 = vpop.f32.mrf.mxu0
        %v1092 = vpop.f32.mrf.mxu0
        %v1093 = vadd.f32 %v489, %v1092
        %v1094 = vpop.f32.mrf.mxu0
        %1095 = vmatprep.mubr.bf16.mxu0 %v1012
        %1096 = vmatmul.mubr.bf16.gmra.mxu0 %v1011
        %v1097 = vpop.f32.mrf.mxu0
        %v1098 = vadd.f32 %v489, %v1097
        %v1099 = vpop.f32.mrf.mxu0
        %v1100 = vpop.f32.mrf.mxu0
        %v1101 = vadd.f32 %v489, %v1100
        %v1102 = vpop.f32.mrf.mxu0
        %1103 = vmatprep.mubr.bf16.mxu0 %v1014
        %1104 = vmatmul.mubr.bf16.gmra.mxu0 %v1013
        %v1105 = vpop.f32.mrf.mxu0
        %v1106 = vadd.f32 %v489, %v1105
        %v1107 = vpop.f32.mrf.mxu0
        %v1108 = vpop.f32.mrf.mxu0
        %v1109 = vadd.f32 %v489, %v1108
        %v1110 = vpop.f32.mrf.mxu0
        %1111 = vmatprep.mubr.bf16.mxu0 %v1016
        %1112 = vmatmul.mubr.bf16.gmra.mxu0 %v1015
        %v1113 = vpop.f32.mrf.mxu0
        %v1114 = vadd.f32 %v489, %v1113
        %v1115 = vpop.f32.mrf.mxu0
        %v1116 = vpop.f32.mrf.mxu0
        %v1117 = vpop.f32.mrf.mxu0
        %1118 = vdwg.mxu0
        %v1119 = vmax.f32 %v1066, 0.0
        %v1120 = vmax.f32 %v1069, 0.0
        %v1121 = vmax.f32 %v1074, 0.0
        %v1122 = vmax.f32 %v1077, 0.0
        %v1123 = vmax.f32 %v1082, 0.0
        %v1124 = vmax.f32 %v1085, 0.0
        %v1125 = vmax.f32 %v1090, 0.0
        %v1126 = vmax.f32 %v1093, 0.0
        %v1127 = vmax.f32 %v1098, 0.0
        %v1128 = vmax.f32 %v1101, 0.0
        %v1129 = vmax.f32 %v1106, 0.0
        %v1130 = vmax.f32 %v1109, 0.0
        %v1131 = vmax.f32 %v1114, 0.0
        %s1132 = scalar_lea.vmem %s437, 312
        %v1133 = vld [vmem:[%s1132] sm:$0xff]
        %v1134 = vld [vmem:[%s1132 + $0x8] sm:$0xff]
        %v1135 = vld [vmem:[%s1132 + $0x10] sm:$0xff]
        %v1136 = vld [vmem:[%s1132 + $0x18] sm:$0xff]
        %v1137 = vld [vmem:[%s1132 + $0x20] sm:$0xff]
        %v1138 = vld [vmem:[%s1132 + $0x28] sm:$0xff]
        %v1139 = vld [vmem:[%s1132 + $0x30] sm:$0xff]
        %v1140 = vld [vmem:[%s1132 + $0x38] sm:$0xff]
        %v1141 = vld [vmem:[%s1132 + $0x40] sm:$0xff]
        %v1142 = vld [vmem:[%s1132 + $0x48] sm:$0xff]
        %v1143 = vld [vmem:[%s1132 + $0x50] sm:$0xff]
        %v1144 = vld [vmem:[%s1132 + $0x58] sm:$0xff]
        %v1145 = vld [vmem:[%s1132 + $0x60] sm:$0x33]
        %v1159 = vunpack.c.l.b16 %v1133
        %v1160 = vunpack.c.h.b16 %v1133
        %v1161 = vunpack.c.l.b16 %v1134
        %v1162 = vunpack.c.h.b16 %v1134
        %v1163 = vunpack.c.l.b16 %v1135
        %v1164 = vunpack.c.h.b16 %v1135
        %v1165 = vunpack.c.l.b16 %v1136
        %v1166 = vunpack.c.h.b16 %v1136
        %v1167 = vunpack.c.l.b16 %v1137
        %v1168 = vunpack.c.h.b16 %v1137
        %v1169 = vunpack.c.l.b16 %v1138
        %v1170 = vunpack.c.h.b16 %v1138
        %v1171 = vunpack.c.l.b16 %v1139
        %v1172 = vunpack.c.h.b16 %v1139
        %v1173 = vunpack.c.l.b16 %v1140
        %v1174 = vunpack.c.h.b16 %v1140
        %v1175 = vunpack.c.l.b16 %v1141
        %v1176 = vunpack.c.h.b16 %v1141
        %v1177 = vunpack.c.l.b16 %v1142
        %v1178 = vunpack.c.h.b16 %v1142
        %v1179 = vunpack.c.l.b16 %v1143
        %v1180 = vunpack.c.h.b16 %v1143
        %v1181 = vunpack.c.l.b16 %v1144
        %v1182 = vunpack.c.h.b16 %v1144
        %v1183 = vunpack.c.l.b16 %v1145
        %v1184 = vunpack.c.h.b16 %v1145
        %v1185 = vpack.c.b16 %v1161, %v1159
        %v1186 = vpack.c.b16 %v1162, %v1160
        %v1187 = vpack.c.b16 %v1165, %v1163
        %v1188 = vpack.c.b16 %v1166, %v1164
        %v1189 = vpack.c.b16 %v1169, %v1167
        %v1190 = vpack.c.b16 %v1170, %v1168
        %v1191 = vpack.c.b16 %v1173, %v1171
        %v1192 = vpack.c.b16 %v1174, %v1172
        %v1193 = vpack.c.b16 %v1177, %v1175
        %v1194 = vpack.c.b16 %v1178, %v1176
        %v1195 = vpack.c.b16 %v1181, %v1179
        %v1196 = vpack.c.b16 %v1182, %v1180
        %v1197 = vpack.c.b16 %v1183, %v1183
        %v1198 = vpack.c.b16 %v1184, %v1184
        %1213 = vmatprep.subr.bf16.mxu0 0
        %1214 = vmatpush1.bf16.msra.mxu0 %v629
        %1215 = vmatprep.subr.bf16.mxu0 0
        %1216 = vmatpush1.bf16.msra.mxu0 %v628
        %1217 = vmatprep.subr.bf16.mxu0 0
        %1218 = vmatpush1.bf16.msra.mxu0 %v627
        %1219 = vmatprep.subr.bf16.mxu0 0
        %1220 = vmatpush1.bf16.msra.mxu0 %v626
        %1221 = vmatprep.subr.bf16.mxu0 0
        %1222 = vmatpush1.bf16.msra.mxu0 %v625
        %1223 = vmatprep.subr.bf16.mxu0 0
        %1224 = vmatpush1.bf16.msra.mxu0 %v624
        %1225 = vmatprep.subr.bf16.mxu0 0
        %1226 = vmatpush1.bf16.msra.mxu0 %v623
        %1227 = vmatprep.subr.bf16.mxu0 0
        %1228 = vmatpush1.bf16.msra.mxu0 %v622
        %1229 = vmatprep.subr.bf16.mxu0 0
        %1230 = vmatpush2.bf16.msra.mxu0 %v637
        %1231 = vmatprep.subr.bf16.mxu0 0
        %1232 = vmatpush2.bf16.msra.mxu0 %v636
        %1233 = vmatprep.subr.bf16.mxu0 0
        %1234 = vmatpush2.bf16.msra.mxu0 %v635
        %1235 = vmatprep.subr.bf16.mxu0 0
        %1236 = vmatpush2.bf16.msra.mxu0 %v634
        %1237 = vmatprep.subr.bf16.mxu0 0
        %1238 = vmatpush2.bf16.msra.mxu0 %v633
        %1239 = vmatprep.subr.bf16.mxu0 0
        %1240 = vmatpush2.bf16.msra.mxu0 %v632
        %1241 = vmatprep.subr.bf16.mxu0 0
        %1242 = vmatpush2.bf16.msra.mxu0 %v631
        %1243 = vmatprep.subr.bf16.mxu0 0
        %1244 = vmatpush2.bf16.msra.mxu0 %v630
        %1245 = vmatprep.mubr.bf16.mxu0 %v1186
        %1246 = vmatmul.mubr.bf16.gmra.mxu0 %v1185
        %v1247 = vpop.f32.mrf.mxu0
        %v1248 = vadd.f32 %v489, %v1247
        %v1249 = vpop.f32.mrf.mxu0
        %v1250 = vpop.f32.mrf.mxu0
        %v1251 = vadd.f32 %v489, %v1250
        %v1252 = vpop.f32.mrf.mxu0
        %1253 = vmatprep.mubr.bf16.mxu0 %v1188
        %1254 = vmatmul.mubr.bf16.gmra.mxu0 %v1187
        %v1255 = vpop.f32.mrf.mxu0
        %v1256 = vadd.f32 %v489, %v1255
        %v1257 = vpop.f32.mrf.mxu0
        %v1258 = vpop.f32.mrf.mxu0
        %v1259 = vadd.f32 %v489, %v1258
        %v1260 = vpop.f32.mrf.mxu0
        %1261 = vmatprep.mubr.bf16.mxu0 %v1190
        %1262 = vmatmul.mubr.bf16.gmra.mxu0 %v1189
        %v1263 = vpop.f32.mrf.mxu0
        %v1264 = vadd.f32 %v489, %v1263
        %v1265 = vpop.f32.mrf.mxu0
        %v1266 = vpop.f32.mrf.mxu0
        %v1267 = vadd.f32 %v489, %v1266
        %v1268 = vpop.f32.mrf.mxu0
        %1269 = vmatprep.mubr.bf16.mxu0 %v1192
        %1270 = vmatmul.mubr.bf16.gmra.mxu0 %v1191
        %v1271 = vpop.f32.mrf.mxu0
        %v1272 = vadd.f32 %v489, %v1271
        %v1273 = vpop.f32.mrf.mxu0
        %v1274 = vpop.f32.mrf.mxu0
        %v1275 = vadd.f32 %v489, %v1274
        %v1276 = vpop.f32.mrf.mxu0
        %1277 = vmatprep.mubr.bf16.mxu0 %v1194
        %1278 = vmatmul.mubr.bf16.gmra.mxu0 %v1193
        %v1279 = vpop.f32.mrf.mxu0
        %v1280 = vadd.f32 %v489, %v1279
        %v1281 = vpop.f32.mrf.mxu0
        %v1282 = vpop.f32.mrf.mxu0
        %v1283 = vadd.f32 %v489, %v1282
        %v1284 = vpop.f32.mrf.mxu0
        %1285 = vmatprep.mubr.bf16.mxu0 %v1196
        %1286 = vmatmul.mubr.bf16.gmra.mxu0 %v1195
        %v1287 = vpop.f32.mrf.mxu0
        %v1288 = vadd.f32 %v489, %v1287
        %v1289 = vpop.f32.mrf.mxu0
        %v1290 = vpop.f32.mrf.mxu0
        %v1291 = vadd.f32 %v489, %v1290
        %v1292 = vpop.f32.mrf.mxu0
        %1293 = vmatprep.mubr.bf16.mxu0 %v1198
        %1294 = vmatmul.mubr.bf16.gmra.mxu0 %v1197
        %v1295 = vpop.f32.mrf.mxu0
        %v1296 = vadd.f32 %v489, %v1295
        %v1297 = vpop.f32.mrf.mxu0
        %v1298 = vpop.f32.mrf.mxu0
        %v1299 = vpop.f32.mrf.mxu0
        %1300 = vdwg.mxu0
        %v1301 = vmax.f32 %v1248, 0.0
        %v1302 = vmax.f32 %v1251, 0.0
        %v1303 = vmax.f32 %v1256, 0.0
        %v1304 = vmax.f32 %v1259, 0.0
        %v1305 = vmax.f32 %v1264, 0.0
        %v1306 = vmax.f32 %v1267, 0.0
        %v1307 = vmax.f32 %v1272, 0.0
        %v1308 = vmax.f32 %v1275, 0.0
        %v1309 = vmax.f32 %v1280, 0.0
        %v1310 = vmax.f32 %v1283, 0.0
        %v1311 = vmax.f32 %v1288, 0.0
        %v1312 = vmax.f32 %v1291, 0.0
        %v1313 = vmax.f32 %v1296, 0.0
        %v1314 = vmax.f32 %v1119, %v1301
        %v1315 = vmax.f32 %v1120, %v1302
        %v1316 = vmax.f32 %v1121, %v1303
        %v1317 = vmax.f32 %v1122, %v1304
        %v1318 = vmax.f32 %v1123, %v1305
        %v1319 = vmax.f32 %v1124, %v1306
        %v1320 = vmax.f32 %v1125, %v1307
        %v1321 = vmax.f32 %v1126, %v1308
        %v1322 = vmax.f32 %v1127, %v1309
        %v1323 = vmax.f32 %v1128, %v1310
        %v1324 = vmax.f32 %v1129, %v1311
        %v1325 = vmax.f32 %v1130, %v1312
        %v1326 = vmax.f32 %v1131, %v1313
        %v1327 = vmax.f32 %v937, %v1314
        %v1328 = vmax.f32 %v938, %v1315
        %v1329 = vmax.f32 %v939, %v1316
        %v1330 = vmax.f32 %v940, %v1317
        %v1331 = vmax.f32 %v941, %v1318
        %v1332 = vmax.f32 %v942, %v1319
        %v1333 = vmax.f32 %v943, %v1320
        %v1334 = vmax.f32 %v944, %v1321
        %v1335 = vmax.f32 %v945, %v1322
        %v1336 = vmax.f32 %v946, %v1323
        %v1337 = vmax.f32 %v947, %v1324
        %v1338 = vmax.f32 %v948, %v1325
        %v1339 = vmax.f32 %v949, %v1326
        %v1340 = vpack.c.bf16 %v1328, %v1327
        %v1341 = vpack.c.bf16 %v1330, %v1329
        %v1342 = vpack.c.bf16 %v1332, %v1331
        %v1343 = vpack.c.bf16 %v1334, %v1333
        %v1344 = vpack.c.bf16 %v1336, %v1335
        %v1345 = vpack.c.bf16 %v1338, %v1337
        %v1346 = vpack.c.bf16 %v1339, %v1339
        %v1347 = vld [vmem:[%s3] sm:$0xf]
        %v1348 = vld [vmem:[%s3 + $0x4] sm:$0xf]
        %v1349 = vld [vmem:[%s3 + $0x8] sm:$0xf]
        %v1350 = vld [vmem:[%s3 + $0xc] sm:$0x1]
        %v1355 = vunpack.c.l.b16 %v1347
        %v1356 = vunpack.c.l.b16 %v1348
        %v1357 = vunpack.c.l.b16 %v1349
        %v1358 = vunpack.c.l.b16 %v1350
        %v1359 = vpack.c.b16 %v1356, %v1355
        %v1360 = vpack.c.b16 %v1358, %v1357
        %vm1361 = vcmask 818176
        %v1363 = vsel %vm1361, %v1359, 0
        %v1366 = vsel %vm1361, %v1360, 0
        %vm1368 = vcmask 1041408
        %v1370 = vsel %vm1368, %v1346, 0
        %1372 = vmatprep.subr.bf16.mxu0 0
        %1373 = vmatpush1.bf16.msra.mxu0 0
        %1374 = vmatprep.subr.bf16.mxu0 0
        %1375 = vmatpush1.bf16.msra.mxu0 %v1370
        %1376 = vmatprep.subr.bf16.mxu0 0
        %1377 = vmatpush1.bf16.msra.mxu0 %v1345
        %1378 = vmatprep.subr.bf16.mxu0 0
        %1379 = vmatpush1.bf16.msra.mxu0 %v1344
        %1380 = vmatprep.subr.bf16.mxu0 0
        %1381 = vmatpush1.bf16.msra.mxu0 %v1343
        %1382 = vmatprep.subr.bf16.mxu0 0
        %1383 = vmatpush1.bf16.msra.mxu0 %v1342
        %1384 = vmatprep.subr.bf16.mxu0 0
        %1385 = vmatpush1.bf16.msra.mxu0 %v1341
        %1386 = vmatprep.subr.bf16.mxu0 0
        %1387 = vmatpush1.bf16.msra.mxu0 %v1340
        %1388 = vmatprep.subr.bf16.mxu0 0
        %1389 = vmatpush2.bf16.msra.mxu0 0
        %1390 = vmatprep.subr.bf16.mxu0 0
        %1391 = vmatpush2.bf16.msra.mxu0 0
        %1392 = vmatprep.subr.bf16.mxu0 0
        %1393 = vmatpush2.bf16.msra.mxu0 0
        %1394 = vmatprep.subr.bf16.mxu0 0
        %1395 = vmatpush2.bf16.msra.mxu0 0
        %1396 = vmatprep.subr.bf16.mxu0 0
        %1397 = vmatpush2.bf16.msra.mxu0 0
        %1398 = vmatprep.subr.bf16.mxu0 0
        %1399 = vmatpush2.bf16.msra.mxu0 0
        %1400 = vmatprep.subr.bf16.mxu0 0
        %1401 = vmatpush2.bf16.msra.mxu0 0
        %1402 = vmatprep.subr.bf16.mxu0 0
        %1403 = vmatpush2.bf16.msra.mxu0 0
        %1404 = vmatprep.mubr.bf16.mxu0 0
        %1405 = vmatmul.mubr.bf16.gmra.mxu0 %v1363
        %v1406 = vpop.f32.mrf.mxu0
        %v1407 = vadd.f32 0.0, %v1406
        %v1408 = vpop.f32.mrf.mxu0
        %v1409 = vpop.f32.mrf.mxu0
        %v1410 = vadd.f32 0.0, %v1409
        %v1411 = vpop.f32.mrf.mxu0
        %1412 = vmatprep.mubr.bf16.mxu0 0
        %1413 = vmatmul.mubr.bf16.gmra.mxu0 %v1366
        %v1414 = vpop.f32.mrf.mxu0
        %v1415 = vadd.f32 0.0, %v1414
        %v1416 = vpop.f32.mrf.mxu0
        %v1417 = vpop.f32.mrf.mxu0
        %v1418 = vadd.f32 0.0, %v1417
        %v1419 = vpop.f32.mrf.mxu0
        %1420 = vdwg.mxu0
        %v1421 = vpack.c.bf16 %v1410, %v1407
        %v1422 = vpack.c.bf16 %v1418, %v1415
        %v1423 = vld [vmem:[%s4] sm:$0xf]
        %v1424 = vld [vmem:[%s4 + $0x4] sm:$0xf]
        %v1425 = vld [vmem:[%s4 + $0x8] sm:$0xf]
        %v1426 = vld [vmem:[%s4 + $0xc] sm:$0xf]
        %s1427 = scalar_lea.vmem %s3, 16
        %v1428 = vld [vmem:[%s1427] sm:$0xf]
        %v1429 = vld [vmem:[%s1427 + $0x4] sm:$0xf]
        %v1430 = vld [vmem:[%s1427 + $0x8] sm:$0xf]
        %v1431 = vld [vmem:[%s1427 + $0xc] sm:$0x1]
        %v1436 = vunpack.c.l.b16 %v1428
        %v1437 = vunpack.c.l.b16 %v1429
        %v1438 = vunpack.c.l.b16 %v1430
        %v1439 = vunpack.c.l.b16 %v1431
        %v1440 = vpack.c.b16 %v1437, %v1436
        %v1441 = vpack.c.b16 %v1439, %v1438
        %v1443 = vsel %vm1361, %v1440, 0
        %v1446 = vsel %vm1361, %v1441, 0
        %1448 = vmatprep.subr.bf16.mxu0 0
        %1449 = vmatpush1.bf16.msra.mxu0 0
        %1450 = vmatprep.subr.bf16.mxu0 0
        %1451 = vmatpush1.bf16.msra.mxu0 %v1370
        %1452 = vmatprep.subr.bf16.mxu0 0
        %1453 = vmatpush1.bf16.msra.mxu0 %v1345
        %1454 = vmatprep.subr.bf16.mxu0 0
        %1455 = vmatpush1.bf16.msra.mxu0 %v1344
        %1456 = vmatprep.subr.bf16.mxu0 0
        %1457 = vmatpush1.bf16.msra.mxu0 %v1343
        %1458 = vmatprep.subr.bf16.mxu0 0
        %1459 = vmatpush1.bf16.msra.mxu0 %v1342
        %1460 = vmatprep.subr.bf16.mxu0 0
        %1461 = vmatpush1.bf16.msra.mxu0 %v1341
        %1462 = vmatprep.subr.bf16.mxu0 0
        %1463 = vmatpush1.bf16.msra.mxu0 %v1340
        %1464 = vmatprep.subr.bf16.mxu0 0
        %1465 = vmatpush2.bf16.msra.mxu0 0
        %1466 = vmatprep.subr.bf16.mxu0 0
        %1467 = vmatpush2.bf16.msra.mxu0 0
        %1468 = vmatprep.subr.bf16.mxu0 0
        %1469 = vmatpush2.bf16.msra.mxu0 0
        %1470 = vmatprep.subr.bf16.mxu0 0
        %1471 = vmatpush2.bf16.msra.mxu0 0
        %1472 = vmatprep.subr.bf16.mxu0 0
        %1473 = vmatpush2.bf16.msra.mxu0 0
        %1474 = vmatprep.subr.bf16.mxu0 0
        %1475 = vmatpush2.bf16.msra.mxu0 0
        %1476 = vmatprep.subr.bf16.mxu0 0
        %1477 = vmatpush2.bf16.msra.mxu0 0
        %1478 = vmatprep.subr.bf16.mxu0 0
        %1479 = vmatpush2.bf16.msra.mxu0 0
        %1480 = vmatprep.mubr.bf16.mxu0 0
        %1481 = vmatmul.mubr.bf16.gmra.mxu0 %v1443
        %v1482 = vpop.f32.mrf.mxu0
        %v1483 = vadd.f32 0.0, %v1482
        %v1484 = vpop.f32.mrf.mxu0
        %v1485 = vpop.f32.mrf.mxu0
        %v1486 = vadd.f32 0.0, %v1485
        %v1487 = vpop.f32.mrf.mxu0
        %1488 = vmatprep.mubr.bf16.mxu0 0
        %1489 = vmatmul.mubr.bf16.gmra.mxu0 %v1446
        %v1490 = vpop.f32.mrf.mxu0
        %v1491 = vadd.f32 0.0, %v1490
        %v1492 = vpop.f32.mrf.mxu0
        %v1493 = vpop.f32.mrf.mxu0
        %v1494 = vadd.f32 0.0, %v1493
        %v1495 = vpop.f32.mrf.mxu0
        %1496 = vdwg.mxu0
        %v1497 = vpack.c.bf16 %v1486, %v1483
        %v1498 = vpack.c.bf16 %v1494, %v1491
        %s1499 = scalar_lea.vmem %s4, 16
        %v1500 = vld [vmem:[%s1499] sm:$0xf]
        %v1501 = vld [vmem:[%s1499 + $0x4] sm:$0xf]
        %v1502 = vld [vmem:[%s1499 + $0x8] sm:$0xf]
        %v1503 = vld [vmem:[%s1499 + $0xc] sm:$0xf]
        %v1508 = vunpack.c.l.b16 %v1500
        %v1509 = vunpack.c.l.b16 %v1501
        %v1510 = vunpack.c.l.b16 %v1502
        %v1511 = vunpack.c.l.b16 %v1503
        %v1512 = vpack.c.b16 %v1509, %v1508
        %v1513 = vpack.c.b16 %v1511, %v1510
        %vm1516 = vcmask 261120
        %v1518 = vsel %vm1516, %v1497, 0
        %v1521 = vsel %vm1516, %v1498, 0
        %1523 = vmatprep.subr.bf16.mxu0 0
        %1524 = vmatpush1.bf16.msra.mxu0 0
        %1525 = vmatprep.subr.bf16.mxu0 0
        %1526 = vmatpush1.bf16.msra.mxu0 0
        %1527 = vmatprep.subr.bf16.mxu0 0
        %1528 = vmatpush1.bf16.msra.mxu0 0
        %1529 = vmatprep.subr.bf16.mxu0 0
        %1530 = vmatpush1.bf16.msra.mxu0 0
        %1531 = vmatprep.subr.bf16.mxu0 0
        %1532 = vmatpush1.bf16.msra.mxu0 0
        %1533 = vmatprep.subr.bf16.mxu0 0
        %1534 = vmatpush1.bf16.msra.mxu0 0
        %1535 = vmatprep.subr.bf16.mxu0 0
        %1536 = vmatpush1.bf16.msra.mxu0 %v1513
        %1537 = vmatprep.subr.bf16.mxu0 0
        %1538 = vmatpush1.bf16.msra.mxu0 %v1512
        %1539 = vmatprep.subr.bf16.mxu0 0
        %1540 = vmatpush2.bf16.msra.mxu0 0
        %1541 = vmatprep.subr.bf16.mxu0 0
        %1542 = vmatpush2.bf16.msra.mxu0 0
        %1543 = vmatprep.subr.bf16.mxu0 0
        %1544 = vmatpush2.bf16.msra.mxu0 0
        %1545 = vmatprep.subr.bf16.mxu0 0
        %1546 = vmatpush2.bf16.msra.mxu0 0
        %1547 = vmatprep.subr.bf16.mxu0 0
        %1548 = vmatpush2.bf16.msra.mxu0 0
        %1549 = vmatprep.subr.bf16.mxu0 0
        %1550 = vmatpush2.bf16.msra.mxu0 0
        %1551 = vmatprep.subr.bf16.mxu0 0
        %1552 = vmatpush2.bf16.msra.mxu0 0
        %1553 = vmatprep.subr.bf16.mxu0 0
        %1554 = vmatpush2.bf16.msra.mxu0 0
        %1555 = vmatprep.mubr.bf16.mxu0 0
        %1556 = vmatmul.mubr.bf16.gmra.mxu0 %v1518
        %v1557 = vpop.f32.mrf.mxu0
        %v1558 = vadd.f32 0.0, %v1557
        %v1559 = vpop.f32.mrf.mxu0
        %v1560 = vpop.f32.mrf.mxu0
        %v1561 = vadd.f32 0.0, %v1560
        %v1562 = vpop.f32.mrf.mxu0
        %1563 = vmatprep.mubr.bf16.mxu0 0
        %1564 = vmatmul.mubr.bf16.gmra.mxu0 %v1521
        %v1565 = vpop.f32.mrf.mxu0
        %v1566 = vadd.f32 0.0, %v1565
        %v1567 = vpop.f32.mrf.mxu0
        %v1568 = vpop.f32.mrf.mxu0
        %v1569 = vadd.f32 0.0, %v1568
        %v1570 = vpop.f32.mrf.mxu0
        %1571 = vdwg.mxu0
        %v1576 = vunpack.c.l.b16 %v1423
        %v1577 = vunpack.c.l.b16 %v1424
        %v1578 = vunpack.c.l.b16 %v1425
        %v1579 = vunpack.c.l.b16 %v1426
        %v1580 = vpack.c.b16 %v1577, %v1576
        %v1581 = vpack.c.b16 %v1579, %v1578
        %v1585 = vsel %vm1516, %v1421, 0
        %v1588 = vsel %vm1516, %v1422, 0
        %1590 = vmatprep.subr.bf16.mxu0 0
        %1591 = vmatpush1.bf16.msra.mxu0 0
        %1592 = vmatprep.subr.bf16.mxu0 0
        %1593 = vmatpush1.bf16.msra.mxu0 0
        %1594 = vmatprep.subr.bf16.mxu0 0
        %1595 = vmatpush1.bf16.msra.mxu0 0
        %1596 = vmatprep.subr.bf16.mxu0 0
        %1597 = vmatpush1.bf16.msra.mxu0 0
        %1598 = vmatprep.subr.bf16.mxu0 0
        %1599 = vmatpush1.bf16.msra.mxu0 0
        %1600 = vmatprep.subr.bf16.mxu0 0
        %1601 = vmatpush1.bf16.msra.mxu0 0
        %1602 = vmatprep.subr.bf16.mxu0 0
        %1603 = vmatpush1.bf16.msra.mxu0 %v1581
        %1604 = vmatprep.subr.bf16.mxu0 0
        %1605 = vmatpush1.bf16.msra.mxu0 %v1580
        %1606 = vmatprep.subr.bf16.mxu0 0
        %1607 = vmatpush2.bf16.msra.mxu0 0
        %1608 = vmatprep.subr.bf16.mxu0 0
        %1609 = vmatpush2.bf16.msra.mxu0 0
        %1610 = vmatprep.subr.bf16.mxu0 0
        %1611 = vmatpush2.bf16.msra.mxu0 0
        %1612 = vmatprep.subr.bf16.mxu0 0
        %1613 = vmatpush2.bf16.msra.mxu0 0
        %1614 = vmatprep.subr.bf16.mxu0 0
        %1615 = vmatpush2.bf16.msra.mxu0 0
        %1616 = vmatprep.subr.bf16.mxu0 0
        %1617 = vmatpush2.bf16.msra.mxu0 0
        %1618 = vmatprep.subr.bf16.mxu0 0
        %1619 = vmatpush2.bf16.msra.mxu0 0
        %1620 = vmatprep.subr.bf16.mxu0 0
        %1621 = vmatpush2.bf16.msra.mxu0 0
        %1622 = vmatprep.mubr.bf16.mxu0 0
        %1623 = vmatmul.mubr.bf16.gmra.mxu0 %v1585
        %v1624 = vpop.f32.mrf.mxu0
        %v1625 = vadd.f32 %v1558, %v1624
        %v1626 = vpop.f32.mrf.mxu0
        %v1627 = vpop.f32.mrf.mxu0
        %v1628 = vadd.f32 %v1561, %v1627
        %v1629 = vpop.f32.mrf.mxu0
        %1630 = vmatprep.mubr.bf16.mxu0 0
        %1631 = vmatmul.mubr.bf16.gmra.mxu0 %v1588
        %v1632 = vpop.f32.mrf.mxu0
        %v1633 = vadd.f32 %v1566, %v1632
        %v1634 = vpop.f32.mrf.mxu0
        %v1635 = vpop.f32.mrf.mxu0
        %v1636 = vadd.f32 %v1569, %v1635
        %v1637 = vpop.f32.mrf.mxu0
        %1638 = vdwg.mxu0
        %s1639 = scalar_lea.vmem %s3, 32
        %v1640 = vld [vmem:[%s1639] sm:$0xf]
        %v1641 = vld [vmem:[%s1639 + $0x4] sm:$0xf]
        %v1642 = vld [vmem:[%s1639 + $0x8] sm:$0xf]
        %v1643 = vld [vmem:[%s1639 + $0xc] sm:$0x1]
        %v1648 = vunpack.c.l.b16 %v1640
        %v1649 = vunpack.c.l.b16 %v1641
        %v1650 = vunpack.c.l.b16 %v1642
        %v1651 = vunpack.c.l.b16 %v1643
        %v1652 = vpack.c.b16 %v1649, %v1648
        %v1653 = vpack.c.b16 %v1651, %v1650
        %v1655 = vsel %vm1361, %v1652, 0
        %v1658 = vsel %vm1361, %v1653, 0
        %1660 = vmatprep.subr.bf16.mxu0 0
        %1661 = vmatpush1.bf16.msra.mxu0 0
        %1662 = vmatprep.subr.bf16.mxu0 0
        %1663 = vmatpush1.bf16.msra.mxu0 %v1370
        %1664 = vmatprep.subr.bf16.mxu0 0
        %1665 = vmatpush1.bf16.msra.mxu0 %v1345
        %1666 = vmatprep.subr.bf16.mxu0 0
        %1667 = vmatpush1.bf16.msra.mxu0 %v1344
        %1668 = vmatprep.subr.bf16.mxu0 0
        %1669 = vmatpush1.bf16.msra.mxu0 %v1343
        %1670 = vmatprep.subr.bf16.mxu0 0
        %1671 = vmatpush1.bf16.msra.mxu0 %v1342
        %1672 = vmatprep.subr.bf16.mxu0 0
        %1673 = vmatpush1.bf16.msra.mxu0 %v1341
        %1674 = vmatprep.subr.bf16.mxu0 0
        %1675 = vmatpush1.bf16.msra.mxu0 %v1340
        %1676 = vmatprep.subr.bf16.mxu0 0
        %1677 = vmatpush2.bf16.msra.mxu0 0
        %1678 = vmatprep.subr.bf16.mxu0 0
        %1679 = vmatpush2.bf16.msra.mxu0 0
        %1680 = vmatprep.subr.bf16.mxu0 0
        %1681 = vmatpush2.bf16.msra.mxu0 0
        %1682 = vmatprep.subr.bf16.mxu0 0
        %1683 = vmatpush2.bf16.msra.mxu0 0
        %1684 = vmatprep.subr.bf16.mxu0 0
        %1685 = vmatpush2.bf16.msra.mxu0 0
        %1686 = vmatprep.subr.bf16.mxu0 0
        %1687 = vmatpush2.bf16.msra.mxu0 0
        %1688 = vmatprep.subr.bf16.mxu0 0
        %1689 = vmatpush2.bf16.msra.mxu0 0
        %1690 = vmatprep.subr.bf16.mxu0 0
        %1691 = vmatpush2.bf16.msra.mxu0 0
        %1692 = vmatprep.mubr.bf16.mxu0 0
        %1693 = vmatmul.mubr.bf16.gmra.mxu0 %v1655
        %v1694 = vpop.f32.mrf.mxu0
        %v1695 = vadd.f32 0.0, %v1694
        %v1696 = vpop.f32.mrf.mxu0
        %v1697 = vpop.f32.mrf.mxu0
        %v1698 = vadd.f32 0.0, %v1697
        %v1699 = vpop.f32.mrf.mxu0
        %1700 = vmatprep.mubr.bf16.mxu0 0
        %1701 = vmatmul.mubr.bf16.gmra.mxu0 %v1658
        %v1702 = vpop.f32.mrf.mxu0
        %v1703 = vadd.f32 0.0, %v1702
        %v1704 = vpop.f32.mrf.mxu0
        %v1705 = vpop.f32.mrf.mxu0
        %v1706 = vadd.f32 0.0, %v1705
        %v1707 = vpop.f32.mrf.mxu0
        %1708 = vdwg.mxu0
        %v1709 = vpack.c.bf16 %v1698, %v1695
        %v1710 = vpack.c.bf16 %v1706, %v1703
        %s1711 = scalar_lea.vmem %s4, 32
        %v1712 = vld [vmem:[%s1711] sm:$0xf]
        %v1713 = vld [vmem:[%s1711 + $0x4] sm:$0xf]
        %v1714 = vld [vmem:[%s1711 + $0x8] sm:$0xf]
        %v1715 = vld [vmem:[%s1711 + $0xc] sm:$0xf]
        %v1720 = vunpack.c.l.b16 %v1712
        %v1721 = vunpack.c.l.b16 %v1713
        %v1722 = vunpack.c.l.b16 %v1714
        %v1723 = vunpack.c.l.b16 %v1715
        %v1724 = vpack.c.b16 %v1721, %v1720
        %v1725 = vpack.c.b16 %v1723, %v1722
        %v1729 = vsel %vm1516, %v1709, 0
        %v1732 = vsel %vm1516, %v1710, 0
        %1734 = vmatprep.subr.bf16.mxu0 0
        %1735 = vmatpush1.bf16.msra.mxu0 0
        %1736 = vmatprep.subr.bf16.mxu0 0
        %1737 = vmatpush1.bf16.msra.mxu0 0
        %1738 = vmatprep.subr.bf16.mxu0 0
        %1739 = vmatpush1.bf16.msra.mxu0 0
        %1740 = vmatprep.subr.bf16.mxu0 0
        %1741 = vmatpush1.bf16.msra.mxu0 0
        %1742 = vmatprep.subr.bf16.mxu0 0
        %1743 = vmatpush1.bf16.msra.mxu0 0
        %1744 = vmatprep.subr.bf16.mxu0 0
        %1745 = vmatpush1.bf16.msra.mxu0 0
        %1746 = vmatprep.subr.bf16.mxu0 0
        %1747 = vmatpush1.bf16.msra.mxu0 %v1725
        %1748 = vmatprep.subr.bf16.mxu0 0
        %1749 = vmatpush1.bf16.msra.mxu0 %v1724
        %1750 = vmatprep.subr.bf16.mxu0 0
        %1751 = vmatpush2.bf16.msra.mxu0 0
        %1752 = vmatprep.subr.bf16.mxu0 0
        %1753 = vmatpush2.bf16.msra.mxu0 0
        %1754 = vmatprep.subr.bf16.mxu0 0
        %1755 = vmatpush2.bf16.msra.mxu0 0
        %1756 = vmatprep.subr.bf16.mxu0 0
        %1757 = vmatpush2.bf16.msra.mxu0 0
        %1758 = vmatprep.subr.bf16.mxu0 0
        %1759 = vmatpush2.bf16.msra.mxu0 0
        %1760 = vmatprep.subr.bf16.mxu0 0
        %1761 = vmatpush2.bf16.msra.mxu0 0
        %1762 = vmatprep.subr.bf16.mxu0 0
        %1763 = vmatpush2.bf16.msra.mxu0 0
        %1764 = vmatprep.subr.bf16.mxu0 0
        %1765 = vmatpush2.bf16.msra.mxu0 0
        %1766 = vmatprep.mubr.bf16.mxu0 0
        %1767 = vmatmul.mubr.bf16.gmra.mxu0 %v1729
        %v1768 = vpop.f32.mrf.mxu0
        %v1769 = vadd.f32 0.0, %v1768
        %v1770 = vpop.f32.mrf.mxu0
        %v1771 = vpop.f32.mrf.mxu0
        %v1772 = vadd.f32 0.0, %v1771
        %v1773 = vpop.f32.mrf.mxu0
        %1774 = vmatprep.mubr.bf16.mxu0 0
        %1775 = vmatmul.mubr.bf16.gmra.mxu0 %v1732
        %v1776 = vpop.f32.mrf.mxu0
        %v1777 = vadd.f32 0.0, %v1776
        %v1778 = vpop.f32.mrf.mxu0
        %v1779 = vpop.f32.mrf.mxu0
        %v1780 = vadd.f32 0.0, %v1779
        %v1781 = vpop.f32.mrf.mxu0
        %1782 = vdwg.mxu0
        %v1783 = vadd.f32 %v1625, %v1769
        %v1784 = vadd.f32 %v1628, %v1772
        %v1785 = vadd.f32 %v1633, %v1777
        %v1786 = vadd.f32 %v1636, %v1780
        %s1787 = scalar_lea.vmem %s3, 48
        %v1788 = vld [vmem:[%s1787] sm:$0xf]
        %v1789 = vld [vmem:[%s1787 + $0x4] sm:$0xf]
        %v1790 = vld [vmem:[%s1787 + $0x8] sm:$0xf]
        %v1791 = vld [vmem:[%s1787 + $0xc] sm:$0x1]
        %v1796 = vunpack.c.l.b16 %v1788
        %v1797 = vunpack.c.l.b16 %v1789
        %v1798 = vunpack.c.l.b16 %v1790
        %v1799 = vunpack.c.l.b16 %v1791
        %v1800 = vpack.c.b16 %v1797, %v1796
        %v1801 = vpack.c.b16 %v1799, %v1798
        %v1803 = vsel %vm1361, %v1800, 0
        %v1806 = vsel %vm1361, %v1801, 0
        %1808 = vmatprep.subr.bf16.mxu0 0
        %1809 = vmatpush1.bf16.msra.mxu0 0
        %1810 = vmatprep.subr.bf16.mxu0 0
        %1811 = vmatpush1.bf16.msra.mxu0 %v1370
        %1812 = vmatprep.subr.bf16.mxu0 0
        %1813 = vmatpush1.bf16.msra.mxu0 %v1345
        %1814 = vmatprep.subr.bf16.mxu0 0
        %1815 = vmatpush1.bf16.msra.mxu0 %v1344
        %1816 = vmatprep.subr.bf16.mxu0 0
        %1817 = vmatpush1.bf16.msra.mxu0 %v1343
        %1818 = vmatprep.subr.bf16.mxu0 0
        %1819 = vmatpush1.bf16.msra.mxu0 %v1342
        %1820 = vmatprep.subr.bf16.mxu0 0
        %1821 = vmatpush1.bf16.msra.mxu0 %v1341
        %1822 = vmatprep.subr.bf16.mxu0 0
        %1823 = vmatpush1.bf16.msra.mxu0 %v1340
        %1824 = vmatprep.subr.bf16.mxu0 0
        %1825 = vmatpush2.bf16.msra.mxu0 0
        %1826 = vmatprep.subr.bf16.mxu0 0
        %1827 = vmatpush2.bf16.msra.mxu0 0
        %1828 = vmatprep.subr.bf16.mxu0 0
        %1829 = vmatpush2.bf16.msra.mxu0 0
        %1830 = vmatprep.subr.bf16.mxu0 0
        %1831 = vmatpush2.bf16.msra.mxu0 0
        %1832 = vmatprep.subr.bf16.mxu0 0
        %1833 = vmatpush2.bf16.msra.mxu0 0
        %1834 = vmatprep.subr.bf16.mxu0 0
        %1835 = vmatpush2.bf16.msra.mxu0 0
        %1836 = vmatprep.subr.bf16.mxu0 0
        %1837 = vmatpush2.bf16.msra.mxu0 0
        %1838 = vmatprep.subr.bf16.mxu0 0
        %1839 = vmatpush2.bf16.msra.mxu0 0
        %1840 = vmatprep.mubr.bf16.mxu0 0
        %1841 = vmatmul.mubr.bf16.gmra.mxu0 %v1803
        %v1842 = vpop.f32.mrf.mxu0
        %v1843 = vadd.f32 0.0, %v1842
        %v1844 = vpop.f32.mrf.mxu0
        %v1845 = vpop.f32.mrf.mxu0
        %v1846 = vadd.f32 0.0, %v1845
        %v1847 = vpop.f32.mrf.mxu0
        %1848 = vmatprep.mubr.bf16.mxu0 0
        %1849 = vmatmul.mubr.bf16.gmra.mxu0 %v1806
        %v1850 = vpop.f32.mrf.mxu0
        %v1851 = vadd.f32 0.0, %v1850
        %v1852 = vpop.f32.mrf.mxu0
        %v1853 = vpop.f32.mrf.mxu0
        %v1854 = vadd.f32 0.0, %v1853
        %v1855 = vpop.f32.mrf.mxu0
        %1856 = vdwg.mxu0
        %v1857 = vpack.c.bf16 %v1846, %v1843
        %v1858 = vpack.c.bf16 %v1854, %v1851
        %s1859 = scalar_lea.vmem %s4, 48
        %v1860 = vld [vmem:[%s1859] sm:$0xf]
        %v1861 = vld [vmem:[%s1859 + $0x4] sm:$0xf]
        %v1862 = vld [vmem:[%s1859 + $0x8] sm:$0xf]
        %v1863 = vld [vmem:[%s1859 + $0xc] sm:$0xf]
        %v1868 = vunpack.c.l.b16 %v1860
        %v1869 = vunpack.c.l.b16 %v1861
        %v1870 = vunpack.c.l.b16 %v1862
        %v1871 = vunpack.c.l.b16 %v1863
        %v1872 = vpack.c.b16 %v1869, %v1868
        %v1873 = vpack.c.b16 %v1871, %v1870
        %v1877 = vsel %vm1516, %v1857, 0
        %v1880 = vsel %vm1516, %v1858, 0
        %1882 = vmatprep.subr.bf16.mxu0 0
        %1883 = vmatpush1.bf16.msra.mxu0 0
        %1884 = vmatprep.subr.bf16.mxu0 0
        %1885 = vmatpush1.bf16.msra.mxu0 0
        %1886 = vmatprep.subr.bf16.mxu0 0
        %1887 = vmatpush1.bf16.msra.mxu0 0
        %1888 = vmatprep.subr.bf16.mxu0 0
        %1889 = vmatpush1.bf16.msra.mxu0 0
        %1890 = vmatprep.subr.bf16.mxu0 0
        %1891 = vmatpush1.bf16.msra.mxu0 0
        %1892 = vmatprep.subr.bf16.mxu0 0
        %1893 = vmatpush1.bf16.msra.mxu0 0
        %1894 = vmatprep.subr.bf16.mxu0 0
        %1895 = vmatpush1.bf16.msra.mxu0 %v1873
        %1896 = vmatprep.subr.bf16.mxu0 0
        %1897 = vmatpush1.bf16.msra.mxu0 %v1872
        %1898 = vmatprep.subr.bf16.mxu0 0
        %1899 = vmatpush2.bf16.msra.mxu0 0
        %1900 = vmatprep.subr.bf16.mxu0 0
        %1901 = vmatpush2.bf16.msra.mxu0 0
        %1902 = vmatprep.subr.bf16.mxu0 0
        %1903 = vmatpush2.bf16.msra.mxu0 0
        %1904 = vmatprep.subr.bf16.mxu0 0
        %1905 = vmatpush2.bf16.msra.mxu0 0
        %1906 = vmatprep.subr.bf16.mxu0 0
        %1907 = vmatpush2.bf16.msra.mxu0 0
        %1908 = vmatprep.subr.bf16.mxu0 0
        %1909 = vmatpush2.bf16.msra.mxu0 0
        %1910 = vmatprep.subr.bf16.mxu0 0
        %1911 = vmatpush2.bf16.msra.mxu0 0
        %1912 = vmatprep.subr.bf16.mxu0 0
        %1913 = vmatpush2.bf16.msra.mxu0 0
        %1914 = vmatprep.mubr.bf16.mxu0 0
        %1915 = vmatmul.mubr.bf16.gmra.mxu0 %v1877
        %v1916 = vpop.f32.mrf.mxu0
        %v1917 = vadd.f32 0.0, %v1916
        %v1918 = vpop.f32.mrf.mxu0
        %v1919 = vpop.f32.mrf.mxu0
        %v1920 = vadd.f32 0.0, %v1919
        %v1921 = vpop.f32.mrf.mxu0
        %1922 = vmatprep.mubr.bf16.mxu0 0
        %1923 = vmatmul.mubr.bf16.gmra.mxu0 %v1880
        %v1924 = vpop.f32.mrf.mxu0
        %v1925 = vadd.f32 0.0, %v1924
        %v1926 = vpop.f32.mrf.mxu0
        %v1927 = vpop.f32.mrf.mxu0
        %v1928 = vadd.f32 0.0, %v1927
        %v1929 = vpop.f32.mrf.mxu0
        %1930 = vdwg.mxu0
        %v1931 = vadd.f32 %v1783, %v1917
        %v1932 = vadd.f32 %v1784, %v1920
        %v1933 = vadd.f32 %v1785, %v1925
        %v1934 = vadd.f32 %v1786, %v1928
        %s1935 = scalar_lea.vmem %s3, 64
        %v1936 = vld [vmem:[%s1935] sm:$0xf]
        %v1937 = vld [vmem:[%s1935 + $0x4] sm:$0xf]
        %v1938 = vld [vmem:[%s1935 + $0x8] sm:$0xf]
        %v1939 = vld [vmem:[%s1935 + $0xc] sm:$0x1]
        %v1944 = vunpack.c.l.b16 %v1936
        %v1945 = vunpack.c.l.b16 %v1937
        %v1946 = vunpack.c.l.b16 %v1938
        %v1947 = vunpack.c.l.b16 %v1939
        %v1948 = vpack.c.b16 %v1945, %v1944
        %v1949 = vpack.c.b16 %v1947, %v1946
        %v1951 = vsel %vm1361, %v1948, 0
        %v1954 = vsel %vm1361, %v1949, 0
        %1956 = vmatprep.subr.bf16.mxu0 0
        %1957 = vmatpush1.bf16.msra.mxu0 0
        %1958 = vmatprep.subr.bf16.mxu0 0
        %1959 = vmatpush1.bf16.msra.mxu0 %v1370
        %1960 = vmatprep.subr.bf16.mxu0 0
        %1961 = vmatpush1.bf16.msra.mxu0 %v1345
        %1962 = vmatprep.subr.bf16.mxu0 0
        %1963 = vmatpush1.bf16.msra.mxu0 %v1344
        %1964 = vmatprep.subr.bf16.mxu0 0
        %1965 = vmatpush1.bf16.msra.mxu0 %v1343
        %1966 = vmatprep.subr.bf16.mxu0 0
        %1967 = vmatpush1.bf16.msra.mxu0 %v1342
        %1968 = vmatprep.subr.bf16.mxu0 0
        %1969 = vmatpush1.bf16.msra.mxu0 %v1341
        %1970 = vmatprep.subr.bf16.mxu0 0
        %1971 = vmatpush1.bf16.msra.mxu0 %v1340
        %1972 = vmatprep.subr.bf16.mxu0 0
        %1973 = vmatpush2.bf16.msra.mxu0 0
        %1974 = vmatprep.subr.bf16.mxu0 0
        %1975 = vmatpush2.bf16.msra.mxu0 0
        %1976 = vmatprep.subr.bf16.mxu0 0
        %1977 = vmatpush2.bf16.msra.mxu0 0
        %1978 = vmatprep.subr.bf16.mxu0 0
        %1979 = vmatpush2.bf16.msra.mxu0 0
        %1980 = vmatprep.subr.bf16.mxu0 0
        %1981 = vmatpush2.bf16.msra.mxu0 0
        %1982 = vmatprep.subr.bf16.mxu0 0
        %1983 = vmatpush2.bf16.msra.mxu0 0
        %1984 = vmatprep.subr.bf16.mxu0 0
        %1985 = vmatpush2.bf16.msra.mxu0 0
        %1986 = vmatprep.subr.bf16.mxu0 0
        %1987 = vmatpush2.bf16.msra.mxu0 0
        %1988 = vmatprep.mubr.bf16.mxu0 0
        %1989 = vmatmul.mubr.bf16.gmra.mxu0 %v1951
        %v1990 = vpop.f32.mrf.mxu0
        %v1991 = vadd.f32 0.0, %v1990
        %v1992 = vpop.f32.mrf.mxu0
        %v1993 = vpop.f32.mrf.mxu0
        %v1994 = vadd.f32 0.0, %v1993
        %v1995 = vpop.f32.mrf.mxu0
        %1996 = vmatprep.mubr.bf16.mxu0 0
        %1997 = vmatmul.mubr.bf16.gmra.mxu0 %v1954
        %v1998 = vpop.f32.mrf.mxu0
        %v1999 = vadd.f32 0.0, %v1998
        %v2000 = vpop.f32.mrf.mxu0
        %v2001 = vpop.f32.mrf.mxu0
        %v2002 = vadd.f32 0.0, %v2001
        %v2003 = vpop.f32.mrf.mxu0
        %2004 = vdwg.mxu0
        %v2005 = vpack.c.bf16 %v1994, %v1991
        %v2006 = vpack.c.bf16 %v2002, %v1999
        %s2007 = scalar_lea.vmem %s4, 64
        %v2008 = vld [vmem:[%s2007] sm:$0xf]
        %v2009 = vld [vmem:[%s2007 + $0x4] sm:$0xf]
        %v2010 = vld [vmem:[%s2007 + $0x8] sm:$0xf]
        %v2011 = vld [vmem:[%s2007 + $0xc] sm:$0xf]
        %v2016 = vunpack.c.l.b16 %v2008
        %v2017 = vunpack.c.l.b16 %v2009
        %v2018 = vunpack.c.l.b16 %v2010
        %v2019 = vunpack.c.l.b16 %v2011
        %v2020 = vpack.c.b16 %v2017, %v2016
        %v2021 = vpack.c.b16 %v2019, %v2018
        %v2025 = vsel %vm1516, %v2005, 0
        %v2028 = vsel %vm1516, %v2006, 0
        %2030 = vmatprep.subr.bf16.mxu0 0
        %2031 = vmatpush1.bf16.msra.mxu0 0
        %2032 = vmatprep.subr.bf16.mxu0 0
        %2033 = vmatpush1.bf16.msra.mxu0 0
        %2034 = vmatprep.subr.bf16.mxu0 0
        %2035 = vmatpush1.bf16.msra.mxu0 0
        %2036 = vmatprep.subr.bf16.mxu0 0
        %2037 = vmatpush1.bf16.msra.mxu0 0
        %2038 = vmatprep.subr.bf16.mxu0 0
        %2039 = vmatpush1.bf16.msra.mxu0 0
        %2040 = vmatprep.subr.bf16.mxu0 0
        %2041 = vmatpush1.bf16.msra.mxu0 0
        %2042 = vmatprep.subr.bf16.mxu0 0
        %2043 = vmatpush1.bf16.msra.mxu0 %v2021
        %2044 = vmatprep.subr.bf16.mxu0 0
        %2045 = vmatpush1.bf16.msra.mxu0 %v2020
        %2046 = vmatprep.subr.bf16.mxu0 0
        %2047 = vmatpush2.bf16.msra.mxu0 0
        %2048 = vmatprep.subr.bf16.mxu0 0
        %2049 = vmatpush2.bf16.msra.mxu0 0
        %2050 = vmatprep.subr.bf16.mxu0 0
        %2051 = vmatpush2.bf16.msra.mxu0 0
        %2052 = vmatprep.subr.bf16.mxu0 0
        %2053 = vmatpush2.bf16.msra.mxu0 0
        %2054 = vmatprep.subr.bf16.mxu0 0
        %2055 = vmatpush2.bf16.msra.mxu0 0
        %2056 = vmatprep.subr.bf16.mxu0 0
        %2057 = vmatpush2.bf16.msra.mxu0 0
        %2058 = vmatprep.subr.bf16.mxu0 0
        %2059 = vmatpush2.bf16.msra.mxu0 0
        %2060 = vmatprep.subr.bf16.mxu0 0
        %2061 = vmatpush2.bf16.msra.mxu0 0
        %2062 = vmatprep.mubr.bf16.mxu0 0
        %2063 = vmatmul.mubr.bf16.gmra.mxu0 %v2025
        %v2064 = vpop.f32.mrf.mxu0
        %v2065 = vadd.f32 0.0, %v2064
        %v2066 = vpop.f32.mrf.mxu0
        %v2067 = vpop.f32.mrf.mxu0
        %v2068 = vadd.f32 0.0, %v2067
        %v2069 = vpop.f32.mrf.mxu0
        %2070 = vmatprep.mubr.bf16.mxu0 0
        %2071 = vmatmul.mubr.bf16.gmra.mxu0 %v2028
        %v2072 = vpop.f32.mrf.mxu0
        %v2073 = vadd.f32 0.0, %v2072
        %v2074 = vpop.f32.mrf.mxu0
        %v2075 = vpop.f32.mrf.mxu0
        %v2076 = vadd.f32 0.0, %v2075
        %v2077 = vpop.f32.mrf.mxu0
        %2078 = vdwg.mxu0
        %v2079 = vadd.f32 %v1931, %v2065
        %v2080 = vadd.f32 %v1932, %v2068
        %v2081 = vadd.f32 %v1933, %v2073
        %v2082 = vadd.f32 %v1934, %v2076
        %s2083 = scalar_lea.vmem %s3, 80
        %v2084 = vld [vmem:[%s2083] sm:$0xf]
        %v2085 = vld [vmem:[%s2083 + $0x4] sm:$0xf]
        %v2086 = vld [vmem:[%s2083 + $0x8] sm:$0xf]
        %v2087 = vld [vmem:[%s2083 + $0xc] sm:$0x1]
        %v2092 = vunpack.c.l.b16 %v2084
        %v2093 = vunpack.c.l.b16 %v2085
        %v2094 = vunpack.c.l.b16 %v2086
        %v2095 = vunpack.c.l.b16 %v2087
        %v2096 = vpack.c.b16 %v2093, %v2092
        %v2097 = vpack.c.b16 %v2095, %v2094
        %v2099 = vsel %vm1361, %v2096, 0
        %v2102 = vsel %vm1361, %v2097, 0
        %2104 = vmatprep.subr.bf16.mxu0 0
        %2105 = vmatpush1.bf16.msra.mxu0 0
        %2106 = vmatprep.subr.bf16.mxu0 0
        %2107 = vmatpush1.bf16.msra.mxu0 %v1370
        %2108 = vmatprep.subr.bf16.mxu0 0
        %2109 = vmatpush1.bf16.msra.mxu0 %v1345
        %2110 = vmatprep.subr.bf16.mxu0 0
        %2111 = vmatpush1.bf16.msra.mxu0 %v1344
        %2112 = vmatprep.subr.bf16.mxu0 0
        %2113 = vmatpush1.bf16.msra.mxu0 %v1343
        %2114 = vmatprep.subr.bf16.mxu0 0
        %2115 = vmatpush1.bf16.msra.mxu0 %v1342
        %2116 = vmatprep.subr.bf16.mxu0 0
        %2117 = vmatpush1.bf16.msra.mxu0 %v1341
        %2118 = vmatprep.subr.bf16.mxu0 0
        %2119 = vmatpush1.bf16.msra.mxu0 %v1340
        %2120 = vmatprep.subr.bf16.mxu0 0
        %2121 = vmatpush2.bf16.msra.mxu0 0
        %2122 = vmatprep.subr.bf16.mxu0 0
        %2123 = vmatpush2.bf16.msra.mxu0 0
        %2124 = vmatprep.subr.bf16.mxu0 0
        %2125 = vmatpush2.bf16.msra.mxu0 0
        %2126 = vmatprep.subr.bf16.mxu0 0
        %2127 = vmatpush2.bf16.msra.mxu0 0
        %2128 = vmatprep.subr.bf16.mxu0 0
        %2129 = vmatpush2.bf16.msra.mxu0 0
        %2130 = vmatprep.subr.bf16.mxu0 0
        %2131 = vmatpush2.bf16.msra.mxu0 0
        %2132 = vmatprep.subr.bf16.mxu0 0
        %2133 = vmatpush2.bf16.msra.mxu0 0
        %2134 = vmatprep.subr.bf16.mxu0 0
        %2135 = vmatpush2.bf16.msra.mxu0 0
        %2136 = vmatprep.mubr.bf16.mxu0 0
        %2137 = vmatmul.mubr.bf16.gmra.mxu0 %v2099
        %v2138 = vpop.f32.mrf.mxu0
        %v2139 = vadd.f32 0.0, %v2138
        %v2140 = vpop.f32.mrf.mxu0
        %v2141 = vpop.f32.mrf.mxu0
        %v2142 = vadd.f32 0.0, %v2141
        %v2143 = vpop.f32.mrf.mxu0
        %2144 = vmatprep.mubr.bf16.mxu0 0
        %2145 = vmatmul.mubr.bf16.gmra.mxu0 %v2102
        %v2146 = vpop.f32.mrf.mxu0
        %v2147 = vadd.f32 0.0, %v2146
        %v2148 = vpop.f32.mrf.mxu0
        %v2149 = vpop.f32.mrf.mxu0
        %v2150 = vadd.f32 0.0, %v2149
        %v2151 = vpop.f32.mrf.mxu0
        %2152 = vdwg.mxu0
        %v2153 = vpack.c.bf16 %v2142, %v2139
        %v2154 = vpack.c.bf16 %v2150, %v2147
        %s2155 = scalar_lea.vmem %s4, 80
        %v2156 = vld [vmem:[%s2155] sm:$0xf]
        %v2157 = vld [vmem:[%s2155 + $0x4] sm:$0xf]
        %v2158 = vld [vmem:[%s2155 + $0x8] sm:$0xf]
        %v2159 = vld [vmem:[%s2155 + $0xc] sm:$0xf]
        %v2164 = vunpack.c.l.b16 %v2156
        %v2165 = vunpack.c.l.b16 %v2157
        %v2166 = vunpack.c.l.b16 %v2158
        %v2167 = vunpack.c.l.b16 %v2159
        %v2168 = vpack.c.b16 %v2165, %v2164
        %v2169 = vpack.c.b16 %v2167, %v2166
        %v2173 = vsel %vm1516, %v2153, 0
        %v2176 = vsel %vm1516, %v2154, 0
        %2178 = vmatprep.subr.bf16.mxu0 0
        %2179 = vmatpush1.bf16.msra.mxu0 0
        %2180 = vmatprep.subr.bf16.mxu0 0
        %2181 = vmatpush1.bf16.msra.mxu0 0
        %2182 = vmatprep.subr.bf16.mxu0 0
        %2183 = vmatpush1.bf16.msra.mxu0 0
        %2184 = vmatprep.subr.bf16.mxu0 0
        %2185 = vmatpush1.bf16.msra.mxu0 0
        %2186 = vmatprep.subr.bf16.mxu0 0
        %2187 = vmatpush1.bf16.msra.mxu0 0
        %2188 = vmatprep.subr.bf16.mxu0 0
        %2189 = vmatpush1.bf16.msra.mxu0 0
        %2190 = vmatprep.subr.bf16.mxu0 0
        %2191 = vmatpush1.bf16.msra.mxu0 %v2169
        %2192 = vmatprep.subr.bf16.mxu0 0
        %2193 = vmatpush1.bf16.msra.mxu0 %v2168
        %2194 = vmatprep.subr.bf16.mxu0 0
        %2195 = vmatpush2.bf16.msra.mxu0 0
        %2196 = vmatprep.subr.bf16.mxu0 0
        %2197 = vmatpush2.bf16.msra.mxu0 0
        %2198 = vmatprep.subr.bf16.mxu0 0
        %2199 = vmatpush2.bf16.msra.mxu0 0
        %2200 = vmatprep.subr.bf16.mxu0 0
        %2201 = vmatpush2.bf16.msra.mxu0 0
        %2202 = vmatprep.subr.bf16.mxu0 0
        %2203 = vmatpush2.bf16.msra.mxu0 0
        %2204 = vmatprep.subr.bf16.mxu0 0
        %2205 = vmatpush2.bf16.msra.mxu0 0
        %2206 = vmatprep.subr.bf16.mxu0 0
        %2207 = vmatpush2.bf16.msra.mxu0 0
        %2208 = vmatprep.subr.bf16.mxu0 0
        %2209 = vmatpush2.bf16.msra.mxu0 0
        %2210 = vmatprep.mubr.bf16.mxu0 0
        %2211 = vmatmul.mubr.bf16.gmra.mxu0 %v2173
        %v2212 = vpop.f32.mrf.mxu0
        %v2213 = vadd.f32 0.0, %v2212
        %v2214 = vpop.f32.mrf.mxu0
        %v2215 = vpop.f32.mrf.mxu0
        %v2216 = vadd.f32 0.0, %v2215
        %v2217 = vpop.f32.mrf.mxu0
        %2218 = vmatprep.mubr.bf16.mxu0 0
        %2219 = vmatmul.mubr.bf16.gmra.mxu0 %v2176
        %v2220 = vpop.f32.mrf.mxu0
        %v2221 = vadd.f32 0.0, %v2220
        %v2222 = vpop.f32.mrf.mxu0
        %v2223 = vpop.f32.mrf.mxu0
        %v2224 = vadd.f32 0.0, %v2223
        %v2225 = vpop.f32.mrf.mxu0
        %2226 = vdwg.mxu0
        %v2227 = vadd.f32 %v2079, %v2213
        %v2228 = vadd.f32 %v2080, %v2216
        %v2229 = vadd.f32 %v2081, %v2221
        %v2230 = vadd.f32 %v2082, %v2224
        %s2231 = scalar_lea.vmem %s3, 96
        %v2232 = vld [vmem:[%s2231] sm:$0xf]
        %v2233 = vld [vmem:[%s2231 + $0x4] sm:$0xf]
        %v2234 = vld [vmem:[%s2231 + $0x8] sm:$0xf]
        %v2235 = vld [vmem:[%s2231 + $0xc] sm:$0x1]
        %v2240 = vunpack.c.l.b16 %v2232
        %v2241 = vunpack.c.l.b16 %v2233
        %v2242 = vunpack.c.l.b16 %v2234
        %v2243 = vunpack.c.l.b16 %v2235
        %v2244 = vpack.c.b16 %v2241, %v2240
        %v2245 = vpack.c.b16 %v2243, %v2242
        %v2247 = vsel %vm1361, %v2244, 0
        %v2250 = vsel %vm1361, %v2245, 0
        %2252 = vmatprep.subr.bf16.mxu0 0
        %2253 = vmatpush1.bf16.msra.mxu0 0
        %2254 = vmatprep.subr.bf16.mxu0 0
        %2255 = vmatpush1.bf16.msra.mxu0 %v1370
        %2256 = vmatprep.subr.bf16.mxu0 0
        %2257 = vmatpush1.bf16.msra.mxu0 %v1345
        %2258 = vmatprep.subr.bf16.mxu0 0
        %2259 = vmatpush1.bf16.msra.mxu0 %v1344
        %2260 = vmatprep.subr.bf16.mxu0 0
        %2261 = vmatpush1.bf16.msra.mxu0 %v1343
        %2262 = vmatprep.subr.bf16.mxu0 0
        %2263 = vmatpush1.bf16.msra.mxu0 %v1342
        %2264 = vmatprep.subr.bf16.mxu0 0
        %2265 = vmatpush1.bf16.msra.mxu0 %v1341
        %2266 = vmatprep.subr.bf16.mxu0 0
        %2267 = vmatpush1.bf16.msra.mxu0 %v1340
        %2268 = vmatprep.subr.bf16.mxu0 0
        %2269 = vmatpush2.bf16.msra.mxu0 0
        %2270 = vmatprep.subr.bf16.mxu0 0
        %2271 = vmatpush2.bf16.msra.mxu0 0
        %2272 = vmatprep.subr.bf16.mxu0 0
        %2273 = vmatpush2.bf16.msra.mxu0 0
        %2274 = vmatprep.subr.bf16.mxu0 0
        %2275 = vmatpush2.bf16.msra.mxu0 0
        %2276 = vmatprep.subr.bf16.mxu0 0
        %2277 = vmatpush2.bf16.msra.mxu0 0
        %2278 = vmatprep.subr.bf16.mxu0 0
        %2279 = vmatpush2.bf16.msra.mxu0 0
        %2280 = vmatprep.subr.bf16.mxu0 0
        %2281 = vmatpush2.bf16.msra.mxu0 0
        %2282 = vmatprep.subr.bf16.mxu0 0
        %2283 = vmatpush2.bf16.msra.mxu0 0
        %2284 = vmatprep.mubr.bf16.mxu0 0
        %2285 = vmatmul.mubr.bf16.gmra.mxu0 %v2247
        %v2286 = vpop.f32.mrf.mxu0
        %v2287 = vadd.f32 0.0, %v2286
        %v2288 = vpop.f32.mrf.mxu0
        %v2289 = vpop.f32.mrf.mxu0
        %v2290 = vadd.f32 0.0, %v2289
        %v2291 = vpop.f32.mrf.mxu0
        %2292 = vmatprep.mubr.bf16.mxu0 0
        %2293 = vmatmul.mubr.bf16.gmra.mxu0 %v2250
        %v2294 = vpop.f32.mrf.mxu0
        %v2295 = vadd.f32 0.0, %v2294
        %v2296 = vpop.f32.mrf.mxu0
        %v2297 = vpop.f32.mrf.mxu0
        %v2298 = vadd.f32 0.0, %v2297
        %v2299 = vpop.f32.mrf.mxu0
        %2300 = vdwg.mxu0
        %v2301 = vpack.c.bf16 %v2290, %v2287
        %v2302 = vpack.c.bf16 %v2298, %v2295
        %s2303 = scalar_lea.vmem %s4, 96
        %v2304 = vld [vmem:[%s2303] sm:$0xf]
        %v2305 = vld [vmem:[%s2303 + $0x4] sm:$0xf]
        %v2306 = vld [vmem:[%s2303 + $0x8] sm:$0xf]
        %v2307 = vld [vmem:[%s2303 + $0xc] sm:$0xf]
        %v2312 = vunpack.c.l.b16 %v2304
        %v2313 = vunpack.c.l.b16 %v2305
        %v2314 = vunpack.c.l.b16 %v2306
        %v2315 = vunpack.c.l.b16 %v2307
        %v2316 = vpack.c.b16 %v2313, %v2312
        %v2317 = vpack.c.b16 %v2315, %v2314
        %v2321 = vsel %vm1516, %v2301, 0
        %v2324 = vsel %vm1516, %v2302, 0
        %2326 = vmatprep.subr.bf16.mxu0 0
        %2327 = vmatpush1.bf16.msra.mxu0 0
        %2328 = vmatprep.subr.bf16.mxu0 0
        %2329 = vmatpush1.bf16.msra.mxu0 0
        %2330 = vmatprep.subr.bf16.mxu0 0
        %2331 = vmatpush1.bf16.msra.mxu0 0
        %2332 = vmatprep.subr.bf16.mxu0 0
        %2333 = vmatpush1.bf16.msra.mxu0 0
        %2334 = vmatprep.subr.bf16.mxu0 0
        %2335 = vmatpush1.bf16.msra.mxu0 0
        %2336 = vmatprep.subr.bf16.mxu0 0
        %2337 = vmatpush1.bf16.msra.mxu0 0
        %2338 = vmatprep.subr.bf16.mxu0 0
        %2339 = vmatpush1.bf16.msra.mxu0 %v2317
        %2340 = vmatprep.subr.bf16.mxu0 0
        %2341 = vmatpush1.bf16.msra.mxu0 %v2316
        %2342 = vmatprep.subr.bf16.mxu0 0
        %2343 = vmatpush2.bf16.msra.mxu0 0
        %2344 = vmatprep.subr.bf16.mxu0 0
        %2345 = vmatpush2.bf16.msra.mxu0 0
        %2346 = vmatprep.subr.bf16.mxu0 0
        %2347 = vmatpush2.bf16.msra.mxu0 0
        %2348 = vmatprep.subr.bf16.mxu0 0
        %2349 = vmatpush2.bf16.msra.mxu0 0
        %2350 = vmatprep.subr.bf16.mxu0 0
        %2351 = vmatpush2.bf16.msra.mxu0 0
        %2352 = vmatprep.subr.bf16.mxu0 0
        %2353 = vmatpush2.bf16.msra.mxu0 0
        %2354 = vmatprep.subr.bf16.mxu0 0
        %2355 = vmatpush2.bf16.msra.mxu0 0
        %2356 = vmatprep.subr.bf16.mxu0 0
        %2357 = vmatpush2.bf16.msra.mxu0 0
        %2358 = vmatprep.mubr.bf16.mxu0 0
        %2359 = vmatmul.mubr.bf16.gmra.mxu0 %v2321
        %v2360 = vpop.f32.mrf.mxu0
        %v2361 = vadd.f32 0.0, %v2360
        %v2362 = vpop.f32.mrf.mxu0
        %v2363 = vpop.f32.mrf.mxu0
        %v2364 = vadd.f32 0.0, %v2363
        %v2365 = vpop.f32.mrf.mxu0
        %2366 = vmatprep.mubr.bf16.mxu0 0
        %2367 = vmatmul.mubr.bf16.gmra.mxu0 %v2324
        %v2368 = vpop.f32.mrf.mxu0
        %v2369 = vadd.f32 0.0, %v2368
        %v2370 = vpop.f32.mrf.mxu0
        %v2371 = vpop.f32.mrf.mxu0
        %v2372 = vadd.f32 0.0, %v2371
        %v2373 = vpop.f32.mrf.mxu0
        %2374 = vdwg.mxu0
        %v2375 = vadd.f32 %v2227, %v2361
        %v2376 = vadd.f32 %v2228, %v2364
        %v2377 = vadd.f32 %v2229, %v2369
        %v2378 = vadd.f32 %v2230, %v2372
        %s2379 = scalar_lea.vmem %s3, 112
        %v2380 = vld [vmem:[%s2379] sm:$0xf]
        %v2381 = vld [vmem:[%s2379 + $0x4] sm:$0xf]
        %v2382 = vld [vmem:[%s2379 + $0x8] sm:$0xf]
        %v2383 = vld [vmem:[%s2379 + $0xc] sm:$0x1]
        %v2388 = vunpack.c.l.b16 %v2380
        %v2389 = vunpack.c.l.b16 %v2381
        %v2390 = vunpack.c.l.b16 %v2382
        %v2391 = vunpack.c.l.b16 %v2383
        %v2392 = vpack.c.b16 %v2389, %v2388
        %v2393 = vpack.c.b16 %v2391, %v2390
        %v2395 = vsel %vm1361, %v2392, 0
        %v2398 = vsel %vm1361, %v2393, 0
        %2400 = vmatprep.subr.bf16.mxu0 0
        %2401 = vmatpush1.bf16.msra.mxu0 0
        %2402 = vmatprep.subr.bf16.mxu0 0
        %2403 = vmatpush1.bf16.msra.mxu0 %v1370
        %2404 = vmatprep.subr.bf16.mxu0 0
        %2405 = vmatpush1.bf16.msra.mxu0 %v1345
        %2406 = vmatprep.subr.bf16.mxu0 0
        %2407 = vmatpush1.bf16.msra.mxu0 %v1344
        %2408 = vmatprep.subr.bf16.mxu0 0
        %2409 = vmatpush1.bf16.msra.mxu0 %v1343
        %2410 = vmatprep.subr.bf16.mxu0 0
        %2411 = vmatpush1.bf16.msra.mxu0 %v1342
        %2412 = vmatprep.subr.bf16.mxu0 0
        %2413 = vmatpush1.bf16.msra.mxu0 %v1341
        %2414 = vmatprep.subr.bf16.mxu0 0
        %2415 = vmatpush1.bf16.msra.mxu0 %v1340
        %2416 = vmatprep.subr.bf16.mxu0 0
        %2417 = vmatpush2.bf16.msra.mxu0 0
        %2418 = vmatprep.subr.bf16.mxu0 0
        %2419 = vmatpush2.bf16.msra.mxu0 0
        %2420 = vmatprep.subr.bf16.mxu0 0
        %2421 = vmatpush2.bf16.msra.mxu0 0
        %2422 = vmatprep.subr.bf16.mxu0 0
        %2423 = vmatpush2.bf16.msra.mxu0 0
        %2424 = vmatprep.subr.bf16.mxu0 0
        %2425 = vmatpush2.bf16.msra.mxu0 0
        %2426 = vmatprep.subr.bf16.mxu0 0
        %2427 = vmatpush2.bf16.msra.mxu0 0
        %2428 = vmatprep.subr.bf16.mxu0 0
        %2429 = vmatpush2.bf16.msra.mxu0 0
        %2430 = vmatprep.subr.bf16.mxu0 0
        %2431 = vmatpush2.bf16.msra.mxu0 0
        %2432 = vmatprep.mubr.bf16.mxu0 0
        %2433 = vmatmul.mubr.bf16.gmra.mxu0 %v2395
        %v2434 = vpop.f32.mrf.mxu0
        %v2435 = vadd.f32 0.0, %v2434
        %v2436 = vpop.f32.mrf.mxu0
        %v2437 = vpop.f32.mrf.mxu0
        %v2438 = vadd.f32 0.0, %v2437
        %v2439 = vpop.f32.mrf.mxu0
        %2440 = vmatprep.mubr.bf16.mxu0 0
        %2441 = vmatmul.mubr.bf16.gmra.mxu0 %v2398
        %v2442 = vpop.f32.mrf.mxu0
        %v2443 = vadd.f32 0.0, %v2442
        %v2444 = vpop.f32.mrf.mxu0
        %v2445 = vpop.f32.mrf.mxu0
        %v2446 = vadd.f32 0.0, %v2445
        %v2447 = vpop.f32.mrf.mxu0
        %2448 = vdwg.mxu0
        %v2449 = vpack.c.bf16 %v2438, %v2435
        %v2450 = vpack.c.bf16 %v2446, %v2443
        %s2451 = scalar_lea.vmem %s4, 112
        %v2452 = vld [vmem:[%s2451] sm:$0xf]
        %v2453 = vld [vmem:[%s2451 + $0x4] sm:$0xf]
        %v2454 = vld [vmem:[%s2451 + $0x8] sm:$0xf]
        %v2455 = vld [vmem:[%s2451 + $0xc] sm:$0xf]
        %v2460 = vunpack.c.l.b16 %v2452
        %v2461 = vunpack.c.l.b16 %v2453
        %v2462 = vunpack.c.l.b16 %v2454
        %v2463 = vunpack.c.l.b16 %v2455
        %v2464 = vpack.c.b16 %v2461, %v2460
        %v2465 = vpack.c.b16 %v2463, %v2462
        %v2469 = vsel %vm1516, %v2449, 0
        %v2472 = vsel %vm1516, %v2450, 0
        %2474 = vmatprep.subr.bf16.mxu0 0
        %2475 = vmatpush1.bf16.msra.mxu0 0
        %2476 = vmatprep.subr.bf16.mxu0 0
        %2477 = vmatpush1.bf16.msra.mxu0 0
        %2478 = vmatprep.subr.bf16.mxu0 0
        %2479 = vmatpush1.bf16.msra.mxu0 0
        %2480 = vmatprep.subr.bf16.mxu0 0
        %2481 = vmatpush1.bf16.msra.mxu0 0
        %2482 = vmatprep.subr.bf16.mxu0 0
        %2483 = vmatpush1.bf16.msra.mxu0 0
        %2484 = vmatprep.subr.bf16.mxu0 0
        %2485 = vmatpush1.bf16.msra.mxu0 0
        %2486 = vmatprep.subr.bf16.mxu0 0
        %2487 = vmatpush1.bf16.msra.mxu0 %v2465
        %2488 = vmatprep.subr.bf16.mxu0 0
        %2489 = vmatpush1.bf16.msra.mxu0 %v2464
        %2490 = vmatprep.subr.bf16.mxu0 0
        %2491 = vmatpush2.bf16.msra.mxu0 0
        %2492 = vmatprep.subr.bf16.mxu0 0
        %2493 = vmatpush2.bf16.msra.mxu0 0
        %2494 = vmatprep.subr.bf16.mxu0 0
        %2495 = vmatpush2.bf16.msra.mxu0 0
        %2496 = vmatprep.subr.bf16.mxu0 0
        %2497 = vmatpush2.bf16.msra.mxu0 0
        %2498 = vmatprep.subr.bf16.mxu0 0
        %2499 = vmatpush2.bf16.msra.mxu0 0
        %2500 = vmatprep.subr.bf16.mxu0 0
        %2501 = vmatpush2.bf16.msra.mxu0 0
        %2502 = vmatprep.subr.bf16.mxu0 0
        %2503 = vmatpush2.bf16.msra.mxu0 0
        %2504 = vmatprep.subr.bf16.mxu0 0
        %2505 = vmatpush2.bf16.msra.mxu0 0
        %2506 = vmatprep.mubr.bf16.mxu0 0
        %2507 = vmatmul.mubr.bf16.gmra.mxu0 %v2469
        %v2508 = vpop.f32.mrf.mxu0
        %v2509 = vadd.f32 0.0, %v2508
        %v2510 = vpop.f32.mrf.mxu0
        %v2511 = vpop.f32.mrf.mxu0
        %v2512 = vadd.f32 0.0, %v2511
        %v2513 = vpop.f32.mrf.mxu0
        %2514 = vmatprep.mubr.bf16.mxu0 0
        %2515 = vmatmul.mubr.bf16.gmra.mxu0 %v2472
        %v2516 = vpop.f32.mrf.mxu0
        %v2517 = vadd.f32 0.0, %v2516
        %v2518 = vpop.f32.mrf.mxu0
        %v2519 = vpop.f32.mrf.mxu0
        %v2520 = vadd.f32 0.0, %v2519
        %v2521 = vpop.f32.mrf.mxu0
        %2522 = vdwg.mxu0
        %v2523 = vadd.f32 %v2375, %v2509
        %v2524 = vadd.f32 %v2376, %v2512
        %v2525 = vadd.f32 %v2377, %v2517
        %v2526 = vadd.f32 %v2378, %v2520
        %s2527 = scalar_lea.vmem %s3, 128
        %v2528 = vld [vmem:[%s2527] sm:$0xf]
        %v2529 = vld [vmem:[%s2527 + $0x4] sm:$0xf]
        %v2530 = vld [vmem:[%s2527 + $0x8] sm:$0xf]
        %v2531 = vld [vmem:[%s2527 + $0xc] sm:$0x1]
        %v2536 = vunpack.c.l.b16 %v2528
        %v2537 = vunpack.c.l.b16 %v2529
        %v2538 = vunpack.c.l.b16 %v2530
        %v2539 = vunpack.c.l.b16 %v2531
        %v2540 = vpack.c.b16 %v2537, %v2536
        %v2541 = vpack.c.b16 %v2539, %v2538
        %v2543 = vsel %vm1361, %v2540, 0
        %v2546 = vsel %vm1361, %v2541, 0
        %2548 = vmatprep.subr.bf16.mxu0 0
        %2549 = vmatpush1.bf16.msra.mxu0 0
        %2550 = vmatprep.subr.bf16.mxu0 0
        %2551 = vmatpush1.bf16.msra.mxu0 %v1370
        %2552 = vmatprep.subr.bf16.mxu0 0
        %2553 = vmatpush1.bf16.msra.mxu0 %v1345
        %2554 = vmatprep.subr.bf16.mxu0 0
        %2555 = vmatpush1.bf16.msra.mxu0 %v1344
        %2556 = vmatprep.subr.bf16.mxu0 0
        %2557 = vmatpush1.bf16.msra.mxu0 %v1343
        %2558 = vmatprep.subr.bf16.mxu0 0
        %2559 = vmatpush1.bf16.msra.mxu0 %v1342
        %2560 = vmatprep.subr.bf16.mxu0 0
        %2561 = vmatpush1.bf16.msra.mxu0 %v1341
        %2562 = vmatprep.subr.bf16.mxu0 0
        %2563 = vmatpush1.bf16.msra.mxu0 %v1340
        %2564 = vmatprep.subr.bf16.mxu0 0
        %2565 = vmatpush2.bf16.msra.mxu0 0
        %2566 = vmatprep.subr.bf16.mxu0 0
        %2567 = vmatpush2.bf16.msra.mxu0 0
        %2568 = vmatprep.subr.bf16.mxu0 0
        %2569 = vmatpush2.bf16.msra.mxu0 0
        %2570 = vmatprep.subr.bf16.mxu0 0
        %2571 = vmatpush2.bf16.msra.mxu0 0
        %2572 = vmatprep.subr.bf16.mxu0 0
        %2573 = vmatpush2.bf16.msra.mxu0 0
        %2574 = vmatprep.subr.bf16.mxu0 0
        %2575 = vmatpush2.bf16.msra.mxu0 0
        %2576 = vmatprep.subr.bf16.mxu0 0
        %2577 = vmatpush2.bf16.msra.mxu0 0
        %2578 = vmatprep.subr.bf16.mxu0 0
        %2579 = vmatpush2.bf16.msra.mxu0 0
        %2580 = vmatprep.mubr.bf16.mxu0 0
        %2581 = vmatmul.mubr.bf16.gmra.mxu0 %v2543
        %v2582 = vpop.f32.mrf.mxu0
        %v2583 = vadd.f32 0.0, %v2582
        %v2584 = vpop.f32.mrf.mxu0
        %v2585 = vpop.f32.mrf.mxu0
        %v2586 = vadd.f32 0.0, %v2585
        %v2587 = vpop.f32.mrf.mxu0
        %2588 = vmatprep.mubr.bf16.mxu0 0
        %2589 = vmatmul.mubr.bf16.gmra.mxu0 %v2546
        %v2590 = vpop.f32.mrf.mxu0
        %v2591 = vadd.f32 0.0, %v2590
        %v2592 = vpop.f32.mrf.mxu0
        %v2593 = vpop.f32.mrf.mxu0
        %v2594 = vadd.f32 0.0, %v2593
        %v2595 = vpop.f32.mrf.mxu0
        %2596 = vdwg.mxu0
        %v2597 = vpack.c.bf16 %v2586, %v2583
        %v2598 = vpack.c.bf16 %v2594, %v2591
        %s2599 = scalar_lea.vmem %s4, 128
        %v2600 = vld [vmem:[%s2599] sm:$0xf]
        %v2601 = vld [vmem:[%s2599 + $0x4] sm:$0xf]
        %v2602 = vld [vmem:[%s2599 + $0x8] sm:$0xf]
        %v2603 = vld [vmem:[%s2599 + $0xc] sm:$0xf]
        %v2608 = vunpack.c.l.b16 %v2600
        %v2609 = vunpack.c.l.b16 %v2601
        %v2610 = vunpack.c.l.b16 %v2602
        %v2611 = vunpack.c.l.b16 %v2603
        %v2612 = vpack.c.b16 %v2609, %v2608
        %v2613 = vpack.c.b16 %v2611, %v2610
        %v2617 = vsel %vm1516, %v2597, 0
        %v2620 = vsel %vm1516, %v2598, 0
        %2622 = vmatprep.subr.bf16.mxu0 0
        %2623 = vmatpush1.bf16.msra.mxu0 0
        %2624 = vmatprep.subr.bf16.mxu0 0
        %2625 = vmatpush1.bf16.msra.mxu0 0
        %2626 = vmatprep.subr.bf16.mxu0 0
        %2627 = vmatpush1.bf16.msra.mxu0 0
        %2628 = vmatprep.subr.bf16.mxu0 0
        %2629 = vmatpush1.bf16.msra.mxu0 0
        %2630 = vmatprep.subr.bf16.mxu0 0
        %2631 = vmatpush1.bf16.msra.mxu0 0
        %2632 = vmatprep.subr.bf16.mxu0 0
        %2633 = vmatpush1.bf16.msra.mxu0 0
        %2634 = vmatprep.subr.bf16.mxu0 0
        %2635 = vmatpush1.bf16.msra.mxu0 %v2613
        %2636 = vmatprep.subr.bf16.mxu0 0
        %2637 = vmatpush1.bf16.msra.mxu0 %v2612
        %2638 = vmatprep.subr.bf16.mxu0 0
        %2639 = vmatpush2.bf16.msra.mxu0 0
        %2640 = vmatprep.subr.bf16.mxu0 0
        %2641 = vmatpush2.bf16.msra.mxu0 0
        %2642 = vmatprep.subr.bf16.mxu0 0
        %2643 = vmatpush2.bf16.msra.mxu0 0
        %2644 = vmatprep.subr.bf16.mxu0 0
        %2645 = vmatpush2.bf16.msra.mxu0 0
        %2646 = vmatprep.subr.bf16.mxu0 0
        %2647 = vmatpush2.bf16.msra.mxu0 0
        %2648 = vmatprep.subr.bf16.mxu0 0
        %2649 = vmatpush2.bf16.msra.mxu0 0
        %2650 = vmatprep.subr.bf16.mxu0 0
        %2651 = vmatpush2.bf16.msra.mxu0 0
        %2652 = vmatprep.subr.bf16.mxu0 0
        %2653 = vmatpush2.bf16.msra.mxu0 0
        %2654 = vmatprep.mubr.bf16.mxu0 0
        %2655 = vmatmul.mubr.bf16.gmra.mxu0 %v2617
        %v2656 = vpop.f32.mrf.mxu0
        %v2657 = vadd.f32 0.0, %v2656
        %v2658 = vpop.f32.mrf.mxu0
        %v2659 = vpop.f32.mrf.mxu0
        %v2660 = vadd.f32 0.0, %v2659
        %v2661 = vpop.f32.mrf.mxu0
        %2662 = vmatprep.mubr.bf16.mxu0 0
        %2663 = vmatmul.mubr.bf16.gmra.mxu0 %v2620
        %v2664 = vpop.f32.mrf.mxu0
        %v2665 = vadd.f32 0.0, %v2664
        %v2666 = vpop.f32.mrf.mxu0
        %v2667 = vpop.f32.mrf.mxu0
        %v2668 = vadd.f32 0.0, %v2667
        %v2669 = vpop.f32.mrf.mxu0
        %2670 = vdwg.mxu0
        %v2671 = vadd.f32 %v2523, %v2657
        %v2672 = vadd.f32 %v2524, %v2660
        %v2673 = vadd.f32 %v2525, %v2665
        %v2674 = vadd.f32 %v2526, %v2668
        %s2675 = scalar_lea.vmem %s3, 144
        %v2676 = vld [vmem:[%s2675] sm:$0xf]
        %v2677 = vld [vmem:[%s2675 + $0x4] sm:$0xf]
        %v2678 = vld [vmem:[%s2675 + $0x8] sm:$0xf]
        %v2679 = vld [vmem:[%s2675 + $0xc] sm:$0x1]
        %v2684 = vunpack.c.l.b16 %v2676
        %v2685 = vunpack.c.l.b16 %v2677
        %v2686 = vunpack.c.l.b16 %v2678
        %v2687 = vunpack.c.l.b16 %v2679
        %v2688 = vpack.c.b16 %v2685, %v2684
        %v2689 = vpack.c.b16 %v2687, %v2686
        %v2691 = vsel %vm1361, %v2688, 0
        %v2694 = vsel %vm1361, %v2689, 0
        %2696 = vmatprep.subr.bf16.mxu0 0
        %2697 = vmatpush1.bf16.msra.mxu0 0
        %2698 = vmatprep.subr.bf16.mxu0 0
        %2699 = vmatpush1.bf16.msra.mxu0 %v1370
        %2700 = vmatprep.subr.bf16.mxu0 0
        %2701 = vmatpush1.bf16.msra.mxu0 %v1345
        %2702 = vmatprep.subr.bf16.mxu0 0
        %2703 = vmatpush1.bf16.msra.mxu0 %v1344
        %2704 = vmatprep.subr.bf16.mxu0 0
        %2705 = vmatpush1.bf16.msra.mxu0 %v1343
        %2706 = vmatprep.subr.bf16.mxu0 0
        %2707 = vmatpush1.bf16.msra.mxu0 %v1342
        %2708 = vmatprep.subr.bf16.mxu0 0
        %2709 = vmatpush1.bf16.msra.mxu0 %v1341
        %2710 = vmatprep.subr.bf16.mxu0 0
        %2711 = vmatpush1.bf16.msra.mxu0 %v1340
        %2712 = vmatprep.subr.bf16.mxu0 0
        %2713 = vmatpush2.bf16.msra.mxu0 0
        %2714 = vmatprep.subr.bf16.mxu0 0
        %2715 = vmatpush2.bf16.msra.mxu0 0
        %2716 = vmatprep.subr.bf16.mxu0 0
        %2717 = vmatpush2.bf16.msra.mxu0 0
        %2718 = vmatprep.subr.bf16.mxu0 0
        %2719 = vmatpush2.bf16.msra.mxu0 0
        %2720 = vmatprep.subr.bf16.mxu0 0
        %2721 = vmatpush2.bf16.msra.mxu0 0
        %2722 = vmatprep.subr.bf16.mxu0 0
        %2723 = vmatpush2.bf16.msra.mxu0 0
        %2724 = vmatprep.subr.bf16.mxu0 0
        %2725 = vmatpush2.bf16.msra.mxu0 0
        %2726 = vmatprep.subr.bf16.mxu0 0
        %2727 = vmatpush2.bf16.msra.mxu0 0
        %2728 = vmatprep.mubr.bf16.mxu0 0
        %2729 = vmatmul.mubr.bf16.gmra.mxu0 %v2691
        %v2730 = vpop.f32.mrf.mxu0
        %v2731 = vadd.f32 0.0, %v2730
        %v2732 = vpop.f32.mrf.mxu0
        %v2733 = vpop.f32.mrf.mxu0
        %v2734 = vadd.f32 0.0, %v2733
        %v2735 = vpop.f32.mrf.mxu0
        %2736 = vmatprep.mubr.bf16.mxu0 0
        %2737 = vmatmul.mubr.bf16.gmra.mxu0 %v2694
        %v2738 = vpop.f32.mrf.mxu0
        %v2739 = vadd.f32 0.0, %v2738
        %v2740 = vpop.f32.mrf.mxu0
        %v2741 = vpop.f32.mrf.mxu0
        %v2742 = vadd.f32 0.0, %v2741
        %v2743 = vpop.f32.mrf.mxu0
        %2744 = vdwg.mxu0
        %v2745 = vpack.c.bf16 %v2734, %v2731
        %v2746 = vpack.c.bf16 %v2742, %v2739
        %s2747 = scalar_lea.vmem %s4, 144
        %v2748 = vld [vmem:[%s2747] sm:$0xf]
        %v2749 = vld [vmem:[%s2747 + $0x4] sm:$0xf]
        %v2750 = vld [vmem:[%s2747 + $0x8] sm:$0xf]
        %v2751 = vld [vmem:[%s2747 + $0xc] sm:$0xf]
        %v2756 = vunpack.c.l.b16 %v2748
        %v2757 = vunpack.c.l.b16 %v2749
        %v2758 = vunpack.c.l.b16 %v2750
        %v2759 = vunpack.c.l.b16 %v2751
        %v2760 = vpack.c.b16 %v2757, %v2756
        %v2761 = vpack.c.b16 %v2759, %v2758
        %v2765 = vsel %vm1516, %v2745, 0
        %v2768 = vsel %vm1516, %v2746, 0
        %2770 = vmatprep.subr.bf16.mxu0 0
        %2771 = vmatpush1.bf16.msra.mxu0 0
        %2772 = vmatprep.subr.bf16.mxu0 0
        %2773 = vmatpush1.bf16.msra.mxu0 0
        %2774 = vmatprep.subr.bf16.mxu0 0
        %2775 = vmatpush1.bf16.msra.mxu0 0
        %2776 = vmatprep.subr.bf16.mxu0 0
        %2777 = vmatpush1.bf16.msra.mxu0 0
        %2778 = vmatprep.subr.bf16.mxu0 0
        %2779 = vmatpush1.bf16.msra.mxu0 0
        %2780 = vmatprep.subr.bf16.mxu0 0
        %2781 = vmatpush1.bf16.msra.mxu0 0
        %2782 = vmatprep.subr.bf16.mxu0 0
        %2783 = vmatpush1.bf16.msra.mxu0 %v2761
        %2784 = vmatprep.subr.bf16.mxu0 0
        %2785 = vmatpush1.bf16.msra.mxu0 %v2760
        %2786 = vmatprep.subr.bf16.mxu0 0
        %2787 = vmatpush2.bf16.msra.mxu0 0
        %2788 = vmatprep.subr.bf16.mxu0 0
        %2789 = vmatpush2.bf16.msra.mxu0 0
        %2790 = vmatprep.subr.bf16.mxu0 0
        %2791 = vmatpush2.bf16.msra.mxu0 0
        %2792 = vmatprep.subr.bf16.mxu0 0
        %2793 = vmatpush2.bf16.msra.mxu0 0
        %2794 = vmatprep.subr.bf16.mxu0 0
        %2795 = vmatpush2.bf16.msra.mxu0 0
        %2796 = vmatprep.subr.bf16.mxu0 0
        %2797 = vmatpush2.bf16.msra.mxu0 0
        %2798 = vmatprep.subr.bf16.mxu0 0
        %2799 = vmatpush2.bf16.msra.mxu0 0
        %2800 = vmatprep.subr.bf16.mxu0 0
        %2801 = vmatpush2.bf16.msra.mxu0 0
        %2802 = vmatprep.mubr.bf16.mxu0 0
        %2803 = vmatmul.mubr.bf16.gmra.mxu0 %v2765
        %v2804 = vpop.f32.mrf.mxu0
        %v2805 = vadd.f32 0.0, %v2804
        %v2806 = vpop.f32.mrf.mxu0
        %v2807 = vpop.f32.mrf.mxu0
        %v2808 = vadd.f32 0.0, %v2807
        %v2809 = vpop.f32.mrf.mxu0
        %2810 = vmatprep.mubr.bf16.mxu0 0
        %2811 = vmatmul.mubr.bf16.gmra.mxu0 %v2768
        %v2812 = vpop.f32.mrf.mxu0
        %v2813 = vadd.f32 0.0, %v2812
        %v2814 = vpop.f32.mrf.mxu0
        %v2815 = vpop.f32.mrf.mxu0
        %v2816 = vadd.f32 0.0, %v2815
        %v2817 = vpop.f32.mrf.mxu0
        %2818 = vdwg.mxu0
        %v2819 = vadd.f32 %v2671, %v2805
        %v2820 = vadd.f32 %v2672, %v2808
        %v2821 = vadd.f32 %v2673, %v2813
        %v2822 = vadd.f32 %v2674, %v2816
        %s2823 = scalar_lea.vmem %s3, 160
        %v2824 = vld [vmem:[%s2823] sm:$0xf]
        %v2825 = vld [vmem:[%s2823 + $0x4] sm:$0xf]
        %v2826 = vld [vmem:[%s2823 + $0x8] sm:$0xf]
        %v2827 = vld [vmem:[%s2823 + $0xc] sm:$0x1]
        %v2832 = vunpack.c.l.b16 %v2824
        %v2833 = vunpack.c.l.b16 %v2825
        %v2834 = vunpack.c.l.b16 %v2826
        %v2835 = vunpack.c.l.b16 %v2827
        %v2836 = vpack.c.b16 %v2833, %v2832
        %v2837 = vpack.c.b16 %v2835, %v2834
        %v2839 = vsel %vm1361, %v2836, 0
        %v2842 = vsel %vm1361, %v2837, 0
        %2844 = vmatprep.subr.bf16.mxu0 0
        %2845 = vmatpush1.bf16.msra.mxu0 0
        %2846 = vmatprep.subr.bf16.mxu0 0
        %2847 = vmatpush1.bf16.msra.mxu0 %v1370
        %2848 = vmatprep.subr.bf16.mxu0 0
        %2849 = vmatpush1.bf16.msra.mxu0 %v1345
        %2850 = vmatprep.subr.bf16.mxu0 0
        %2851 = vmatpush1.bf16.msra.mxu0 %v1344
        %2852 = vmatprep.subr.bf16.mxu0 0
        %2853 = vmatpush1.bf16.msra.mxu0 %v1343
        %2854 = vmatprep.subr.bf16.mxu0 0
        %2855 = vmatpush1.bf16.msra.mxu0 %v1342
        %2856 = vmatprep.subr.bf16.mxu0 0
        %2857 = vmatpush1.bf16.msra.mxu0 %v1341
        %2858 = vmatprep.subr.bf16.mxu0 0
        %2859 = vmatpush1.bf16.msra.mxu0 %v1340
        %2860 = vmatprep.subr.bf16.mxu0 0
        %2861 = vmatpush2.bf16.msra.mxu0 0
        %2862 = vmatprep.subr.bf16.mxu0 0
        %2863 = vmatpush2.bf16.msra.mxu0 0
        %2864 = vmatprep.subr.bf16.mxu0 0
        %2865 = vmatpush2.bf16.msra.mxu0 0
        %2866 = vmatprep.subr.bf16.mxu0 0
        %2867 = vmatpush2.bf16.msra.mxu0 0
        %2868 = vmatprep.subr.bf16.mxu0 0
        %2869 = vmatpush2.bf16.msra.mxu0 0
        %2870 = vmatprep.subr.bf16.mxu0 0
        %2871 = vmatpush2.bf16.msra.mxu0 0
        %2872 = vmatprep.subr.bf16.mxu0 0
        %2873 = vmatpush2.bf16.msra.mxu0 0
        %2874 = vmatprep.subr.bf16.mxu0 0
        %2875 = vmatpush2.bf16.msra.mxu0 0
        %2876 = vmatprep.mubr.bf16.mxu0 0
        %2877 = vmatmul.mubr.bf16.gmra.mxu0 %v2839
        %v2878 = vpop.f32.mrf.mxu0
        %v2879 = vadd.f32 0.0, %v2878
        %v2880 = vpop.f32.mrf.mxu0
        %v2881 = vpop.f32.mrf.mxu0
        %v2882 = vadd.f32 0.0, %v2881
        %v2883 = vpop.f32.mrf.mxu0
        %2884 = vmatprep.mubr.bf16.mxu0 0
        %2885 = vmatmul.mubr.bf16.gmra.mxu0 %v2842
        %v2886 = vpop.f32.mrf.mxu0
        %v2887 = vadd.f32 0.0, %v2886
        %v2888 = vpop.f32.mrf.mxu0
        %v2889 = vpop.f32.mrf.mxu0
        %v2890 = vadd.f32 0.0, %v2889
        %v2891 = vpop.f32.mrf.mxu0
        %2892 = vdwg.mxu0
        %v2893 = vpack.c.bf16 %v2882, %v2879
        %v2894 = vpack.c.bf16 %v2890, %v2887
        %s2895 = scalar_lea.vmem %s4, 160
        %v2896 = vld [vmem:[%s2895] sm:$0xf]
        %v2897 = vld [vmem:[%s2895 + $0x4] sm:$0xf]
        %v2898 = vld [vmem:[%s2895 + $0x8] sm:$0xf]
        %v2899 = vld [vmem:[%s2895 + $0xc] sm:$0xf]
        %v2904 = vunpack.c.l.b16 %v2896
        %v2905 = vunpack.c.l.b16 %v2897
        %v2906 = vunpack.c.l.b16 %v2898
        %v2907 = vunpack.c.l.b16 %v2899
        %v2908 = vpack.c.b16 %v2905, %v2904
        %v2909 = vpack.c.b16 %v2907, %v2906
        %v2913 = vsel %vm1516, %v2893, 0
        %v2916 = vsel %vm1516, %v2894, 0
        %2918 = vmatprep.subr.bf16.mxu0 0
        %2919 = vmatpush1.bf16.msra.mxu0 0
        %2920 = vmatprep.subr.bf16.mxu0 0
        %2921 = vmatpush1.bf16.msra.mxu0 0
        %2922 = vmatprep.subr.bf16.mxu0 0
        %2923 = vmatpush1.bf16.msra.mxu0 0
        %2924 = vmatprep.subr.bf16.mxu0 0
        %2925 = vmatpush1.bf16.msra.mxu0 0
        %2926 = vmatprep.subr.bf16.mxu0 0
        %2927 = vmatpush1.bf16.msra.mxu0 0
        %2928 = vmatprep.subr.bf16.mxu0 0
        %2929 = vmatpush1.bf16.msra.mxu0 0
        %2930 = vmatprep.subr.bf16.mxu0 0
        %2931 = vmatpush1.bf16.msra.mxu0 %v2909
        %2932 = vmatprep.subr.bf16.mxu0 0
        %2933 = vmatpush1.bf16.msra.mxu0 %v2908
        %2934 = vmatprep.subr.bf16.mxu0 0
        %2935 = vmatpush2.bf16.msra.mxu0 0
        %2936 = vmatprep.subr.bf16.mxu0 0
        %2937 = vmatpush2.bf16.msra.mxu0 0
        %2938 = vmatprep.subr.bf16.mxu0 0
        %2939 = vmatpush2.bf16.msra.mxu0 0
        %2940 = vmatprep.subr.bf16.mxu0 0
        %2941 = vmatpush2.bf16.msra.mxu0 0
        %2942 = vmatprep.subr.bf16.mxu0 0
        %2943 = vmatpush2.bf16.msra.mxu0 0
        %2944 = vmatprep.subr.bf16.mxu0 0
        %2945 = vmatpush2.bf16.msra.mxu0 0
        %2946 = vmatprep.subr.bf16.mxu0 0
        %2947 = vmatpush2.bf16.msra.mxu0 0
        %2948 = vmatprep.subr.bf16.mxu0 0
        %2949 = vmatpush2.bf16.msra.mxu0 0
        %2950 = vmatprep.mubr.bf16.mxu0 0
        %2951 = vmatmul.mubr.bf16.gmra.mxu0 %v2913
        %v2952 = vpop.f32.mrf.mxu0
        %v2953 = vadd.f32 0.0, %v2952
        %v2954 = vpop.f32.mrf.mxu0
        %v2955 = vpop.f32.mrf.mxu0
        %v2956 = vadd.f32 0.0, %v2955
        %v2957 = vpop.f32.mrf.mxu0
        %2958 = vmatprep.mubr.bf16.mxu0 0
        %2959 = vmatmul.mubr.bf16.gmra.mxu0 %v2916
        %v2960 = vpop.f32.mrf.mxu0
        %v2961 = vadd.f32 0.0, %v2960
        %v2962 = vpop.f32.mrf.mxu0
        %v2963 = vpop.f32.mrf.mxu0
        %v2964 = vadd.f32 0.0, %v2963
        %v2965 = vpop.f32.mrf.mxu0
        %2966 = vdwg.mxu0
        %v2967 = vadd.f32 %v2819, %v2953
        %v2968 = vadd.f32 %v2820, %v2956
        %v2969 = vadd.f32 %v2821, %v2961
        %v2970 = vadd.f32 %v2822, %v2964
        %s2971 = scalar_lea.vmem %s3, 176
        %v2972 = vld [vmem:[%s2971] sm:$0xf]
        %v2973 = vld [vmem:[%s2971 + $0x4] sm:$0xf]
        %v2974 = vld [vmem:[%s2971 + $0x8] sm:$0xf]
        %v2975 = vld [vmem:[%s2971 + $0xc] sm:$0x1]
        %v2980 = vunpack.c.l.b16 %v2972
        %v2981 = vunpack.c.l.b16 %v2973
        %v2982 = vunpack.c.l.b16 %v2974
        %v2983 = vunpack.c.l.b16 %v2975
        %v2984 = vpack.c.b16 %v2981, %v2980
        %v2985 = vpack.c.b16 %v2983, %v2982
        %v2987 = vsel %vm1361, %v2984, 0
        %v2990 = vsel %vm1361, %v2985, 0
        %2992 = vmatprep.subr.bf16.mxu0 0
        %2993 = vmatpush1.bf16.msra.mxu0 0
        %2994 = vmatprep.subr.bf16.mxu0 0
        %2995 = vmatpush1.bf16.msra.mxu0 %v1370
        %2996 = vmatprep.subr.bf16.mxu0 0
        %2997 = vmatpush1.bf16.msra.mxu0 %v1345
        %2998 = vmatprep.subr.bf16.mxu0 0
        %2999 = vmatpush1.bf16.msra.mxu0 %v1344
        %3000 = vmatprep.subr.bf16.mxu0 0
        %3001 = vmatpush1.bf16.msra.mxu0 %v1343
        %3002 = vmatprep.subr.bf16.mxu0 0
        %3003 = vmatpush1.bf16.msra.mxu0 %v1342
        %3004 = vmatprep.subr.bf16.mxu0 0
        %3005 = vmatpush1.bf16.msra.mxu0 %v1341
        %3006 = vmatprep.subr.bf16.mxu0 0
        %3007 = vmatpush1.bf16.msra.mxu0 %v1340
        %3008 = vmatprep.subr.bf16.mxu0 0
        %3009 = vmatpush2.bf16.msra.mxu0 0
        %3010 = vmatprep.subr.bf16.mxu0 0
        %3011 = vmatpush2.bf16.msra.mxu0 0
        %3012 = vmatprep.subr.bf16.mxu0 0
        %3013 = vmatpush2.bf16.msra.mxu0 0
        %3014 = vmatprep.subr.bf16.mxu0 0
        %3015 = vmatpush2.bf16.msra.mxu0 0
        %3016 = vmatprep.subr.bf16.mxu0 0
        %3017 = vmatpush2.bf16.msra.mxu0 0
        %3018 = vmatprep.subr.bf16.mxu0 0
        %3019 = vmatpush2.bf16.msra.mxu0 0
        %3020 = vmatprep.subr.bf16.mxu0 0
        %3021 = vmatpush2.bf16.msra.mxu0 0
        %3022 = vmatprep.subr.bf16.mxu0 0
        %3023 = vmatpush2.bf16.msra.mxu0 0
        %3024 = vmatprep.mubr.bf16.mxu0 0
        %3025 = vmatmul.mubr.bf16.gmra.mxu0 %v2987
        %v3026 = vpop.f32.mrf.mxu0
        %v3027 = vadd.f32 0.0, %v3026
        %v3028 = vpop.f32.mrf.mxu0
        %v3029 = vpop.f32.mrf.mxu0
        %v3030 = vadd.f32 0.0, %v3029
        %v3031 = vpop.f32.mrf.mxu0
        %3032 = vmatprep.mubr.bf16.mxu0 0
        %3033 = vmatmul.mubr.bf16.gmra.mxu0 %v2990
        %v3034 = vpop.f32.mrf.mxu0
        %v3035 = vadd.f32 0.0, %v3034
        %v3036 = vpop.f32.mrf.mxu0
        %v3037 = vpop.f32.mrf.mxu0
        %v3038 = vadd.f32 0.0, %v3037
        %v3039 = vpop.f32.mrf.mxu0
        %3040 = vdwg.mxu0
        %v3041 = vpack.c.bf16 %v3030, %v3027
        %v3042 = vpack.c.bf16 %v3038, %v3035
        %s3043 = scalar_lea.vmem %s4, 176
        %v3044 = vld [vmem:[%s3043] sm:$0xf]
        %v3045 = vld [vmem:[%s3043 + $0x4] sm:$0xf]
        %v3046 = vld [vmem:[%s3043 + $0x8] sm:$0xf]
        %v3047 = vld [vmem:[%s3043 + $0xc] sm:$0xf]
        %v3052 = vunpack.c.l.b16 %v3044
        %v3053 = vunpack.c.l.b16 %v3045
        %v3054 = vunpack.c.l.b16 %v3046
        %v3055 = vunpack.c.l.b16 %v3047
        %v3056 = vpack.c.b16 %v3053, %v3052
        %v3057 = vpack.c.b16 %v3055, %v3054
        %v3061 = vsel %vm1516, %v3041, 0
        %v3064 = vsel %vm1516, %v3042, 0
        %3066 = vmatprep.subr.bf16.mxu0 0
        %3067 = vmatpush1.bf16.msra.mxu0 0
        %3068 = vmatprep.subr.bf16.mxu0 0
        %3069 = vmatpush1.bf16.msra.mxu0 0
        %3070 = vmatprep.subr.bf16.mxu0 0
        %3071 = vmatpush1.bf16.msra.mxu0 0
        %3072 = vmatprep.subr.bf16.mxu0 0
        %3073 = vmatpush1.bf16.msra.mxu0 0
        %3074 = vmatprep.subr.bf16.mxu0 0
        %3075 = vmatpush1.bf16.msra.mxu0 0
        %3076 = vmatprep.subr.bf16.mxu0 0
        %3077 = vmatpush1.bf16.msra.mxu0 0
        %3078 = vmatprep.subr.bf16.mxu0 0
        %3079 = vmatpush1.bf16.msra.mxu0 %v3057
        %3080 = vmatprep.subr.bf16.mxu0 0
        %3081 = vmatpush1.bf16.msra.mxu0 %v3056
        %3082 = vmatprep.subr.bf16.mxu0 0
        %3083 = vmatpush2.bf16.msra.mxu0 0
        %3084 = vmatprep.subr.bf16.mxu0 0
        %3085 = vmatpush2.bf16.msra.mxu0 0
        %3086 = vmatprep.subr.bf16.mxu0 0
        %3087 = vmatpush2.bf16.msra.mxu0 0
        %3088 = vmatprep.subr.bf16.mxu0 0
        %3089 = vmatpush2.bf16.msra.mxu0 0
        %3090 = vmatprep.subr.bf16.mxu0 0
        %3091 = vmatpush2.bf16.msra.mxu0 0
        %3092 = vmatprep.subr.bf16.mxu0 0
        %3093 = vmatpush2.bf16.msra.mxu0 0
        %3094 = vmatprep.subr.bf16.mxu0 0
        %3095 = vmatpush2.bf16.msra.mxu0 0
        %3096 = vmatprep.subr.bf16.mxu0 0
        %3097 = vmatpush2.bf16.msra.mxu0 0
        %3098 = vmatprep.mubr.bf16.mxu0 0
        %3099 = vmatmul.mubr.bf16.gmra.mxu0 %v3061
        %v3100 = vpop.f32.mrf.mxu0
        %v3101 = vadd.f32 0.0, %v3100
        %v3102 = vpop.f32.mrf.mxu0
        %v3103 = vpop.f32.mrf.mxu0
        %v3104 = vadd.f32 0.0, %v3103
        %v3105 = vpop.f32.mrf.mxu0
        %3106 = vmatprep.mubr.bf16.mxu0 0
        %3107 = vmatmul.mubr.bf16.gmra.mxu0 %v3064
        %v3108 = vpop.f32.mrf.mxu0
        %v3109 = vadd.f32 0.0, %v3108
        %v3110 = vpop.f32.mrf.mxu0
        %v3111 = vpop.f32.mrf.mxu0
        %v3112 = vadd.f32 0.0, %v3111
        %v3113 = vpop.f32.mrf.mxu0
        %3114 = vdwg.mxu0
        %v3115 = vadd.f32 %v2967, %v3101
        %v3116 = vadd.f32 %v2968, %v3104
        %v3117 = vadd.f32 %v2969, %v3109
        %v3118 = vadd.f32 %v2970, %v3112
        %s3119 = scalar_lea.vmem %s3, 192
        %v3120 = vld [vmem:[%s3119] sm:$0xf]
        %v3121 = vld [vmem:[%s3119 + $0x4] sm:$0xf]
        %v3122 = vld [vmem:[%s3119 + $0x8] sm:$0xf]
        %v3123 = vld [vmem:[%s3119 + $0xc] sm:$0x1]
        %v3128 = vunpack.c.l.b16 %v3120
        %v3129 = vunpack.c.l.b16 %v3121
        %v3130 = vunpack.c.l.b16 %v3122
        %v3131 = vunpack.c.l.b16 %v3123
        %v3132 = vpack.c.b16 %v3129, %v3128
        %v3133 = vpack.c.b16 %v3131, %v3130
        %v3135 = vsel %vm1361, %v3132, 0
        %v3138 = vsel %vm1361, %v3133, 0
        %3140 = vmatprep.subr.bf16.mxu0 0
        %3141 = vmatpush1.bf16.msra.mxu0 0
        %3142 = vmatprep.subr.bf16.mxu0 0
        %3143 = vmatpush1.bf16.msra.mxu0 %v1370
        %3144 = vmatprep.subr.bf16.mxu0 0
        %3145 = vmatpush1.bf16.msra.mxu0 %v1345
        %3146 = vmatprep.subr.bf16.mxu0 0
        %3147 = vmatpush1.bf16.msra.mxu0 %v1344
        %3148 = vmatprep.subr.bf16.mxu0 0
        %3149 = vmatpush1.bf16.msra.mxu0 %v1343
        %3150 = vmatprep.subr.bf16.mxu0 0
        %3151 = vmatpush1.bf16.msra.mxu0 %v1342
        %3152 = vmatprep.subr.bf16.mxu0 0
        %3153 = vmatpush1.bf16.msra.mxu0 %v1341
        %3154 = vmatprep.subr.bf16.mxu0 0
        %3155 = vmatpush1.bf16.msra.mxu0 %v1340
        %3156 = vmatprep.subr.bf16.mxu0 0
        %3157 = vmatpush2.bf16.msra.mxu0 0
        %3158 = vmatprep.subr.bf16.mxu0 0
        %3159 = vmatpush2.bf16.msra.mxu0 0
        %3160 = vmatprep.subr.bf16.mxu0 0
        %3161 = vmatpush2.bf16.msra.mxu0 0
        %3162 = vmatprep.subr.bf16.mxu0 0
        %3163 = vmatpush2.bf16.msra.mxu0 0
        %3164 = vmatprep.subr.bf16.mxu0 0
        %3165 = vmatpush2.bf16.msra.mxu0 0
        %3166 = vmatprep.subr.bf16.mxu0 0
        %3167 = vmatpush2.bf16.msra.mxu0 0
        %3168 = vmatprep.subr.bf16.mxu0 0
        %3169 = vmatpush2.bf16.msra.mxu0 0
        %3170 = vmatprep.subr.bf16.mxu0 0
        %3171 = vmatpush2.bf16.msra.mxu0 0
        %3172 = vmatprep.mubr.bf16.mxu0 0
        %3173 = vmatmul.mubr.bf16.gmra.mxu0 %v3135
        %v3174 = vpop.f32.mrf.mxu0
        %v3175 = vadd.f32 0.0, %v3174
        %v3176 = vpop.f32.mrf.mxu0
        %v3177 = vpop.f32.mrf.mxu0
        %v3178 = vadd.f32 0.0, %v3177
        %v3179 = vpop.f32.mrf.mxu0
        %3180 = vmatprep.mubr.bf16.mxu0 0
        %3181 = vmatmul.mubr.bf16.gmra.mxu0 %v3138
        %v3182 = vpop.f32.mrf.mxu0
        %v3183 = vadd.f32 0.0, %v3182
        %v3184 = vpop.f32.mrf.mxu0
        %v3185 = vpop.f32.mrf.mxu0
        %v3186 = vadd.f32 0.0, %v3185
        %v3187 = vpop.f32.mrf.mxu0
        %3188 = vdwg.mxu0
        %v3189 = vpack.c.bf16 %v3178, %v3175
        %v3190 = vpack.c.bf16 %v3186, %v3183
        %s3191 = scalar_lea.vmem %s4, 192
        %v3192 = vld [vmem:[%s3191] sm:$0xf]
        %v3193 = vld [vmem:[%s3191 + $0x4] sm:$0xf]
        %v3194 = vld [vmem:[%s3191 + $0x8] sm:$0xf]
        %v3195 = vld [vmem:[%s3191 + $0xc] sm:$0xf]
        %v3200 = vunpack.c.l.b16 %v3192
        %v3201 = vunpack.c.l.b16 %v3193
        %v3202 = vunpack.c.l.b16 %v3194
        %v3203 = vunpack.c.l.b16 %v3195
        %v3204 = vpack.c.b16 %v3201, %v3200
        %v3205 = vpack.c.b16 %v3203, %v3202
        %v3209 = vsel %vm1516, %v3189, 0
        %v3212 = vsel %vm1516, %v3190, 0
        %3214 = vmatprep.subr.bf16.mxu0 0
        %3215 = vmatpush1.bf16.msra.mxu0 0
        %3216 = vmatprep.subr.bf16.mxu0 0
        %3217 = vmatpush1.bf16.msra.mxu0 0
        %3218 = vmatprep.subr.bf16.mxu0 0
        %3219 = vmatpush1.bf16.msra.mxu0 0
        %3220 = vmatprep.subr.bf16.mxu0 0
        %3221 = vmatpush1.bf16.msra.mxu0 0
        %3222 = vmatprep.subr.bf16.mxu0 0
        %3223 = vmatpush1.bf16.msra.mxu0 0
        %3224 = vmatprep.subr.bf16.mxu0 0
        %3225 = vmatpush1.bf16.msra.mxu0 0
        %3226 = vmatprep.subr.bf16.mxu0 0
        %3227 = vmatpush1.bf16.msra.mxu0 %v3205
        %3228 = vmatprep.subr.bf16.mxu0 0
        %3229 = vmatpush1.bf16.msra.mxu0 %v3204
        %3230 = vmatprep.subr.bf16.mxu0 0
        %3231 = vmatpush2.bf16.msra.mxu0 0
        %3232 = vmatprep.subr.bf16.mxu0 0
        %3233 = vmatpush2.bf16.msra.mxu0 0
        %3234 = vmatprep.subr.bf16.mxu0 0
        %3235 = vmatpush2.bf16.msra.mxu0 0
        %3236 = vmatprep.subr.bf16.mxu0 0
        %3237 = vmatpush2.bf16.msra.mxu0 0
        %3238 = vmatprep.subr.bf16.mxu0 0
        %3239 = vmatpush2.bf16.msra.mxu0 0
        %3240 = vmatprep.subr.bf16.mxu0 0
        %3241 = vmatpush2.bf16.msra.mxu0 0
        %3242 = vmatprep.subr.bf16.mxu0 0
        %3243 = vmatpush2.bf16.msra.mxu0 0
        %3244 = vmatprep.subr.bf16.mxu0 0
        %3245 = vmatpush2.bf16.msra.mxu0 0
        %3246 = vmatprep.mubr.bf16.mxu0 0
        %3247 = vmatmul.mubr.bf16.gmra.mxu0 %v3209
        %v3248 = vpop.f32.mrf.mxu0
        %v3249 = vadd.f32 0.0, %v3248
        %v3250 = vpop.f32.mrf.mxu0
        %v3251 = vpop.f32.mrf.mxu0
        %v3252 = vadd.f32 0.0, %v3251
        %v3253 = vpop.f32.mrf.mxu0
        %3254 = vmatprep.mubr.bf16.mxu0 0
        %3255 = vmatmul.mubr.bf16.gmra.mxu0 %v3212
        %v3256 = vpop.f32.mrf.mxu0
        %v3257 = vadd.f32 0.0, %v3256
        %v3258 = vpop.f32.mrf.mxu0
        %v3259 = vpop.f32.mrf.mxu0
        %v3260 = vadd.f32 0.0, %v3259
        %v3261 = vpop.f32.mrf.mxu0
        %3262 = vdwg.mxu0
        %v3263 = vadd.f32 %v3115, %v3249
        %v3264 = vadd.f32 %v3116, %v3252
        %v3265 = vadd.f32 %v3117, %v3257
        %v3266 = vadd.f32 %v3118, %v3260
        %s3267 = scalar_lea.vmem %s3, 208
        %v3268 = vld [vmem:[%s3267] sm:$0xf]
        %v3269 = vld [vmem:[%s3267 + $0x4] sm:$0xf]
        %v3270 = vld [vmem:[%s3267 + $0x8] sm:$0xf]
        %v3271 = vld [vmem:[%s3267 + $0xc] sm:$0x1]
        %v3276 = vunpack.c.l.b16 %v3268
        %v3277 = vunpack.c.l.b16 %v3269
        %v3278 = vunpack.c.l.b16 %v3270
        %v3279 = vunpack.c.l.b16 %v3271
        %v3280 = vpack.c.b16 %v3277, %v3276
        %v3281 = vpack.c.b16 %v3279, %v3278
        %v3283 = vsel %vm1361, %v3280, 0
        %v3286 = vsel %vm1361, %v3281, 0
        %3288 = vmatprep.subr.bf16.mxu0 0
        %3289 = vmatpush1.bf16.msra.mxu0 0
        %3290 = vmatprep.subr.bf16.mxu0 0
        %3291 = vmatpush1.bf16.msra.mxu0 %v1370
        %3292 = vmatprep.subr.bf16.mxu0 0
        %3293 = vmatpush1.bf16.msra.mxu0 %v1345
        %3294 = vmatprep.subr.bf16.mxu0 0
        %3295 = vmatpush1.bf16.msra.mxu0 %v1344
        %3296 = vmatprep.subr.bf16.mxu0 0
        %3297 = vmatpush1.bf16.msra.mxu0 %v1343
        %3298 = vmatprep.subr.bf16.mxu0 0
        %3299 = vmatpush1.bf16.msra.mxu0 %v1342
        %3300 = vmatprep.subr.bf16.mxu0 0
        %3301 = vmatpush1.bf16.msra.mxu0 %v1341
        %3302 = vmatprep.subr.bf16.mxu0 0
        %3303 = vmatpush1.bf16.msra.mxu0 %v1340
        %3304 = vmatprep.subr.bf16.mxu0 0
        %3305 = vmatpush2.bf16.msra.mxu0 0
        %3306 = vmatprep.subr.bf16.mxu0 0
        %3307 = vmatpush2.bf16.msra.mxu0 0
        %3308 = vmatprep.subr.bf16.mxu0 0
        %3309 = vmatpush2.bf16.msra.mxu0 0
        %3310 = vmatprep.subr.bf16.mxu0 0
        %3311 = vmatpush2.bf16.msra.mxu0 0
        %3312 = vmatprep.subr.bf16.mxu0 0
        %3313 = vmatpush2.bf16.msra.mxu0 0
        %3314 = vmatprep.subr.bf16.mxu0 0
        %3315 = vmatpush2.bf16.msra.mxu0 0
        %3316 = vmatprep.subr.bf16.mxu0 0
        %3317 = vmatpush2.bf16.msra.mxu0 0
        %3318 = vmatprep.subr.bf16.mxu0 0
        %3319 = vmatpush2.bf16.msra.mxu0 0
        %3320 = vmatprep.mubr.bf16.mxu0 0
        %3321 = vmatmul.mubr.bf16.gmra.mxu0 %v3283
        %v3322 = vpop.f32.mrf.mxu0
        %v3323 = vadd.f32 0.0, %v3322
        %v3324 = vpop.f32.mrf.mxu0
        %v3325 = vpop.f32.mrf.mxu0
        %v3326 = vadd.f32 0.0, %v3325
        %v3327 = vpop.f32.mrf.mxu0
        %3328 = vmatprep.mubr.bf16.mxu0 0
        %3329 = vmatmul.mubr.bf16.gmra.mxu0 %v3286
        %v3330 = vpop.f32.mrf.mxu0
        %v3331 = vadd.f32 0.0, %v3330
        %v3332 = vpop.f32.mrf.mxu0
        %v3333 = vpop.f32.mrf.mxu0
        %v3334 = vadd.f32 0.0, %v3333
        %v3335 = vpop.f32.mrf.mxu0
        %3336 = vdwg.mxu0
        %v3337 = vpack.c.bf16 %v3326, %v3323
        %v3338 = vpack.c.bf16 %v3334, %v3331
        %s3339 = scalar_lea.vmem %s4, 208
        %v3340 = vld [vmem:[%s3339] sm:$0xf]
        %v3341 = vld [vmem:[%s3339 + $0x4] sm:$0xf]
        %v3342 = vld [vmem:[%s3339 + $0x8] sm:$0xf]
        %v3343 = vld [vmem:[%s3339 + $0xc] sm:$0xf]
        %v3348 = vunpack.c.l.b16 %v3340
        %v3349 = vunpack.c.l.b16 %v3341
        %v3350 = vunpack.c.l.b16 %v3342
        %v3351 = vunpack.c.l.b16 %v3343
        %v3352 = vpack.c.b16 %v3349, %v3348
        %v3353 = vpack.c.b16 %v3351, %v3350
        %v3357 = vsel %vm1516, %v3337, 0
        %v3360 = vsel %vm1516, %v3338, 0
        %3362 = vmatprep.subr.bf16.mxu0 0
        %3363 = vmatpush1.bf16.msra.mxu0 0
        %3364 = vmatprep.subr.bf16.mxu0 0
        %3365 = vmatpush1.bf16.msra.mxu0 0
        %3366 = vmatprep.subr.bf16.mxu0 0
        %3367 = vmatpush1.bf16.msra.mxu0 0
        %3368 = vmatprep.subr.bf16.mxu0 0
        %3369 = vmatpush1.bf16.msra.mxu0 0
        %3370 = vmatprep.subr.bf16.mxu0 0
        %3371 = vmatpush1.bf16.msra.mxu0 0
        %3372 = vmatprep.subr.bf16.mxu0 0
        %3373 = vmatpush1.bf16.msra.mxu0 0
        %3374 = vmatprep.subr.bf16.mxu0 0
        %3375 = vmatpush1.bf16.msra.mxu0 %v3353
        %3376 = vmatprep.subr.bf16.mxu0 0
        %3377 = vmatpush1.bf16.msra.mxu0 %v3352
        %3378 = vmatprep.subr.bf16.mxu0 0
        %3379 = vmatpush2.bf16.msra.mxu0 0
        %3380 = vmatprep.subr.bf16.mxu0 0
        %3381 = vmatpush2.bf16.msra.mxu0 0
        %3382 = vmatprep.subr.bf16.mxu0 0
        %3383 = vmatpush2.bf16.msra.mxu0 0
        %3384 = vmatprep.subr.bf16.mxu0 0
        %3385 = vmatpush2.bf16.msra.mxu0 0
        %3386 = vmatprep.subr.bf16.mxu0 0
        %3387 = vmatpush2.bf16.msra.mxu0 0
        %3388 = vmatprep.subr.bf16.mxu0 0
        %3389 = vmatpush2.bf16.msra.mxu0 0
        %3390 = vmatprep.subr.bf16.mxu0 0
        %3391 = vmatpush2.bf16.msra.mxu0 0
        %3392 = vmatprep.subr.bf16.mxu0 0
        %3393 = vmatpush2.bf16.msra.mxu0 0
        %3394 = vmatprep.mubr.bf16.mxu0 0
        %3395 = vmatmul.mubr.bf16.gmra.mxu0 %v3357
        %v3396 = vpop.f32.mrf.mxu0
        %v3397 = vadd.f32 0.0, %v3396
        %v3398 = vpop.f32.mrf.mxu0
        %v3399 = vpop.f32.mrf.mxu0
        %v3400 = vadd.f32 0.0, %v3399
        %v3401 = vpop.f32.mrf.mxu0
        %3402 = vmatprep.mubr.bf16.mxu0 0
        %3403 = vmatmul.mubr.bf16.gmra.mxu0 %v3360
        %v3404 = vpop.f32.mrf.mxu0
        %v3405 = vadd.f32 0.0, %v3404
        %v3406 = vpop.f32.mrf.mxu0
        %v3407 = vpop.f32.mrf.mxu0
        %v3408 = vadd.f32 0.0, %v3407
        %v3409 = vpop.f32.mrf.mxu0
        %3410 = vdwg.mxu0
        %v3411 = vadd.f32 %v3263, %v3397
        %v3412 = vadd.f32 %v3264, %v3400
        %v3413 = vadd.f32 %v3265, %v3405
        %v3414 = vadd.f32 %v3266, %v3408
        %s3415 = scalar_lea.vmem %s3, 224
        %v3416 = vld [vmem:[%s3415] sm:$0xf]
        %v3417 = vld [vmem:[%s3415 + $0x4] sm:$0xf]
        %v3418 = vld [vmem:[%s3415 + $0x8] sm:$0xf]
        %v3419 = vld [vmem:[%s3415 + $0xc] sm:$0x1]
        %v3424 = vunpack.c.l.b16 %v3416
        %v3425 = vunpack.c.l.b16 %v3417
        %v3426 = vunpack.c.l.b16 %v3418
        %v3427 = vunpack.c.l.b16 %v3419
        %v3428 = vpack.c.b16 %v3425, %v3424
        %v3429 = vpack.c.b16 %v3427, %v3426
        %v3431 = vsel %vm1361, %v3428, 0
        %v3434 = vsel %vm1361, %v3429, 0
        %3436 = vmatprep.subr.bf16.mxu0 0
        %3437 = vmatpush1.bf16.msra.mxu0 0
        %3438 = vmatprep.subr.bf16.mxu0 0
        %3439 = vmatpush1.bf16.msra.mxu0 %v1370
        %3440 = vmatprep.subr.bf16.mxu0 0
        %3441 = vmatpush1.bf16.msra.mxu0 %v1345
        %3442 = vmatprep.subr.bf16.mxu0 0
        %3443 = vmatpush1.bf16.msra.mxu0 %v1344
        %3444 = vmatprep.subr.bf16.mxu0 0
        %3445 = vmatpush1.bf16.msra.mxu0 %v1343
        %3446 = vmatprep.subr.bf16.mxu0 0
        %3447 = vmatpush1.bf16.msra.mxu0 %v1342
        %3448 = vmatprep.subr.bf16.mxu0 0
        %3449 = vmatpush1.bf16.msra.mxu0 %v1341
        %3450 = vmatprep.subr.bf16.mxu0 0
        %3451 = vmatpush1.bf16.msra.mxu0 %v1340
        %3452 = vmatprep.subr.bf16.mxu0 0
        %3453 = vmatpush2.bf16.msra.mxu0 0
        %3454 = vmatprep.subr.bf16.mxu0 0
        %3455 = vmatpush2.bf16.msra.mxu0 0
        %3456 = vmatprep.subr.bf16.mxu0 0
        %3457 = vmatpush2.bf16.msra.mxu0 0
        %3458 = vmatprep.subr.bf16.mxu0 0
        %3459 = vmatpush2.bf16.msra.mxu0 0
        %3460 = vmatprep.subr.bf16.mxu0 0
        %3461 = vmatpush2.bf16.msra.mxu0 0
        %3462 = vmatprep.subr.bf16.mxu0 0
        %3463 = vmatpush2.bf16.msra.mxu0 0
        %3464 = vmatprep.subr.bf16.mxu0 0
        %3465 = vmatpush2.bf16.msra.mxu0 0
        %3466 = vmatprep.subr.bf16.mxu0 0
        %3467 = vmatpush2.bf16.msra.mxu0 0
        %3468 = vmatprep.mubr.bf16.mxu0 0
        %3469 = vmatmul.mubr.bf16.gmra.mxu0 %v3431
        %v3470 = vpop.f32.mrf.mxu0
        %v3471 = vadd.f32 0.0, %v3470
        %v3472 = vpop.f32.mrf.mxu0
        %v3473 = vpop.f32.mrf.mxu0
        %v3474 = vadd.f32 0.0, %v3473
        %v3475 = vpop.f32.mrf.mxu0
        %3476 = vmatprep.mubr.bf16.mxu0 0
        %3477 = vmatmul.mubr.bf16.gmra.mxu0 %v3434
        %v3478 = vpop.f32.mrf.mxu0
        %v3479 = vadd.f32 0.0, %v3478
        %v3480 = vpop.f32.mrf.mxu0
        %v3481 = vpop.f32.mrf.mxu0
        %v3482 = vadd.f32 0.0, %v3481
        %v3483 = vpop.f32.mrf.mxu0
        %3484 = vdwg.mxu0
        %v3485 = vpack.c.bf16 %v3474, %v3471
        %v3486 = vpack.c.bf16 %v3482, %v3479
        %s3487 = scalar_lea.vmem %s4, 224
        %v3488 = vld [vmem:[%s3487] sm:$0xf]
        %v3489 = vld [vmem:[%s3487 + $0x4] sm:$0xf]
        %v3490 = vld [vmem:[%s3487 + $0x8] sm:$0xf]
        %v3491 = vld [vmem:[%s3487 + $0xc] sm:$0xf]
        %v3496 = vunpack.c.l.b16 %v3488
        %v3497 = vunpack.c.l.b16 %v3489
        %v3498 = vunpack.c.l.b16 %v3490
        %v3499 = vunpack.c.l.b16 %v3491
        %v3500 = vpack.c.b16 %v3497, %v3496
        %v3501 = vpack.c.b16 %v3499, %v3498
        %v3505 = vsel %vm1516, %v3485, 0
        %v3508 = vsel %vm1516, %v3486, 0
        %3510 = vmatprep.subr.bf16.mxu0 0
        %3511 = vmatpush1.bf16.msra.mxu0 0
        %3512 = vmatprep.subr.bf16.mxu0 0
        %3513 = vmatpush1.bf16.msra.mxu0 0
        %3514 = vmatprep.subr.bf16.mxu0 0
        %3515 = vmatpush1.bf16.msra.mxu0 0
        %3516 = vmatprep.subr.bf16.mxu0 0
        %3517 = vmatpush1.bf16.msra.mxu0 0
        %3518 = vmatprep.subr.bf16.mxu0 0
        %3519 = vmatpush1.bf16.msra.mxu0 0
        %3520 = vmatprep.subr.bf16.mxu0 0
        %3521 = vmatpush1.bf16.msra.mxu0 0
        %3522 = vmatprep.subr.bf16.mxu0 0
        %3523 = vmatpush1.bf16.msra.mxu0 %v3501
        %3524 = vmatprep.subr.bf16.mxu0 0
        %3525 = vmatpush1.bf16.msra.mxu0 %v3500
        %3526 = vmatprep.subr.bf16.mxu0 0
        %3527 = vmatpush2.bf16.msra.mxu0 0
        %3528 = vmatprep.subr.bf16.mxu0 0
        %3529 = vmatpush2.bf16.msra.mxu0 0
        %3530 = vmatprep.subr.bf16.mxu0 0
        %3531 = vmatpush2.bf16.msra.mxu0 0
        %3532 = vmatprep.subr.bf16.mxu0 0
        %3533 = vmatpush2.bf16.msra.mxu0 0
        %3534 = vmatprep.subr.bf16.mxu0 0
        %3535 = vmatpush2.bf16.msra.mxu0 0
        %3536 = vmatprep.subr.bf16.mxu0 0
        %3537 = vmatpush2.bf16.msra.mxu0 0
        %3538 = vmatprep.subr.bf16.mxu0 0
        %3539 = vmatpush2.bf16.msra.mxu0 0
        %3540 = vmatprep.subr.bf16.mxu0 0
        %3541 = vmatpush2.bf16.msra.mxu0 0
        %3542 = vmatprep.mubr.bf16.mxu0 0
        %3543 = vmatmul.mubr.bf16.gmra.mxu0 %v3505
        %v3544 = vpop.f32.mrf.mxu0
        %v3545 = vadd.f32 0.0, %v3544
        %v3546 = vpop.f32.mrf.mxu0
        %v3547 = vpop.f32.mrf.mxu0
        %v3548 = vadd.f32 0.0, %v3547
        %v3549 = vpop.f32.mrf.mxu0
        %3550 = vmatprep.mubr.bf16.mxu0 0
        %3551 = vmatmul.mubr.bf16.gmra.mxu0 %v3508
        %v3552 = vpop.f32.mrf.mxu0
        %v3553 = vadd.f32 0.0, %v3552
        %v3554 = vpop.f32.mrf.mxu0
        %v3555 = vpop.f32.mrf.mxu0
        %v3556 = vadd.f32 0.0, %v3555
        %v3557 = vpop.f32.mrf.mxu0
        %3558 = vdwg.mxu0
        %v3559 = vadd.f32 %v3411, %v3545
        %v3560 = vadd.f32 %v3412, %v3548
        %v3561 = vadd.f32 %v3413, %v3553
        %v3562 = vadd.f32 %v3414, %v3556
        %s3563 = scalar_lea.vmem %s3, 240
        %v3564 = vld [vmem:[%s3563] sm:$0xf]
        %v3565 = vld [vmem:[%s3563 + $0x4] sm:$0xf]
        %v3566 = vld [vmem:[%s3563 + $0x8] sm:$0xf]
        %v3567 = vld [vmem:[%s3563 + $0xc] sm:$0x1]
        %v3572 = vunpack.c.l.b16 %v3564
        %v3573 = vunpack.c.l.b16 %v3565
        %v3574 = vunpack.c.l.b16 %v3566
        %v3575 = vunpack.c.l.b16 %v3567
        %v3576 = vpack.c.b16 %v3573, %v3572
        %v3577 = vpack.c.b16 %v3575, %v3574
        %v3579 = vsel %vm1361, %v3576, 0
        %v3582 = vsel %vm1361, %v3577, 0
        %3584 = vmatprep.subr.bf16.mxu0 0
        %3585 = vmatpush1.bf16.msra.mxu0 0
        %3586 = vmatprep.subr.bf16.mxu0 0
        %3587 = vmatpush1.bf16.msra.mxu0 %v1370
        %3588 = vmatprep.subr.bf16.mxu0 0
        %3589 = vmatpush1.bf16.msra.mxu0 %v1345
        %3590 = vmatprep.subr.bf16.mxu0 0
        %3591 = vmatpush1.bf16.msra.mxu0 %v1344
        %3592 = vmatprep.subr.bf16.mxu0 0
        %3593 = vmatpush1.bf16.msra.mxu0 %v1343
        %3594 = vmatprep.subr.bf16.mxu0 0
        %3595 = vmatpush1.bf16.msra.mxu0 %v1342
        %3596 = vmatprep.subr.bf16.mxu0 0
        %3597 = vmatpush1.bf16.msra.mxu0 %v1341
        %3598 = vmatprep.subr.bf16.mxu0 0
        %3599 = vmatpush1.bf16.msra.mxu0 %v1340
        %3600 = vmatprep.subr.bf16.mxu0 0
        %3601 = vmatpush2.bf16.msra.mxu0 0
        %3602 = vmatprep.subr.bf16.mxu0 0
        %3603 = vmatpush2.bf16.msra.mxu0 0
        %3604 = vmatprep.subr.bf16.mxu0 0
        %3605 = vmatpush2.bf16.msra.mxu0 0
        %3606 = vmatprep.subr.bf16.mxu0 0
        %3607 = vmatpush2.bf16.msra.mxu0 0
        %3608 = vmatprep.subr.bf16.mxu0 0
        %3609 = vmatpush2.bf16.msra.mxu0 0
        %3610 = vmatprep.subr.bf16.mxu0 0
        %3611 = vmatpush2.bf16.msra.mxu0 0
        %3612 = vmatprep.subr.bf16.mxu0 0
        %3613 = vmatpush2.bf16.msra.mxu0 0
        %3614 = vmatprep.subr.bf16.mxu0 0
        %3615 = vmatpush2.bf16.msra.mxu0 0
        %3616 = vmatprep.mubr.bf16.mxu0 0
        %3617 = vmatmul.mubr.bf16.gmra.mxu0 %v3579
        %v3618 = vpop.f32.mrf.mxu0
        %v3619 = vadd.f32 0.0, %v3618
        %v3620 = vpop.f32.mrf.mxu0
        %v3621 = vpop.f32.mrf.mxu0
        %v3622 = vadd.f32 0.0, %v3621
        %v3623 = vpop.f32.mrf.mxu0
        %3624 = vmatprep.mubr.bf16.mxu0 0
        %3625 = vmatmul.mubr.bf16.gmra.mxu0 %v3582
        %v3626 = vpop.f32.mrf.mxu0
        %v3627 = vadd.f32 0.0, %v3626
        %v3628 = vpop.f32.mrf.mxu0
        %v3629 = vpop.f32.mrf.mxu0
        %v3630 = vadd.f32 0.0, %v3629
        %v3631 = vpop.f32.mrf.mxu0
        %3632 = vdwg.mxu0
        %v3633 = vpack.c.bf16 %v3622, %v3619
        %v3634 = vpack.c.bf16 %v3630, %v3627
        %s3635 = scalar_lea.vmem %s4, 240
        %v3636 = vld [vmem:[%s3635] sm:$0xf]
        %v3637 = vld [vmem:[%s3635 + $0x4] sm:$0xf]
        %v3638 = vld [vmem:[%s3635 + $0x8] sm:$0xf]
        %v3639 = vld [vmem:[%s3635 + $0xc] sm:$0xf]
        %v3644 = vunpack.c.l.b16 %v3636
        %v3645 = vunpack.c.l.b16 %v3637
        %v3646 = vunpack.c.l.b16 %v3638
        %v3647 = vunpack.c.l.b16 %v3639
        %v3648 = vpack.c.b16 %v3645, %v3644
        %v3649 = vpack.c.b16 %v3647, %v3646
        %v3653 = vsel %vm1516, %v3633, 0
        %v3656 = vsel %vm1516, %v3634, 0
        %3658 = vmatprep.subr.bf16.mxu0 0
        %3659 = vmatpush1.bf16.msra.mxu0 0
        %3660 = vmatprep.subr.bf16.mxu0 0
        %3661 = vmatpush1.bf16.msra.mxu0 0
        %3662 = vmatprep.subr.bf16.mxu0 0
        %3663 = vmatpush1.bf16.msra.mxu0 0
        %3664 = vmatprep.subr.bf16.mxu0 0
        %3665 = vmatpush1.bf16.msra.mxu0 0
        %3666 = vmatprep.subr.bf16.mxu0 0
        %3667 = vmatpush1.bf16.msra.mxu0 0
        %3668 = vmatprep.subr.bf16.mxu0 0
        %3669 = vmatpush1.bf16.msra.mxu0 0
        %3670 = vmatprep.subr.bf16.mxu0 0
        %3671 = vmatpush1.bf16.msra.mxu0 %v3649
        %3672 = vmatprep.subr.bf16.mxu0 0
        %3673 = vmatpush1.bf16.msra.mxu0 %v3648
        %3674 = vmatprep.subr.bf16.mxu0 0
        %3675 = vmatpush2.bf16.msra.mxu0 0
        %3676 = vmatprep.subr.bf16.mxu0 0
        %3677 = vmatpush2.bf16.msra.mxu0 0
        %3678 = vmatprep.subr.bf16.mxu0 0
        %3679 = vmatpush2.bf16.msra.mxu0 0
        %3680 = vmatprep.subr.bf16.mxu0 0
        %3681 = vmatpush2.bf16.msra.mxu0 0
        %3682 = vmatprep.subr.bf16.mxu0 0
        %3683 = vmatpush2.bf16.msra.mxu0 0
        %3684 = vmatprep.subr.bf16.mxu0 0
        %3685 = vmatpush2.bf16.msra.mxu0 0
        %3686 = vmatprep.subr.bf16.mxu0 0
        %3687 = vmatpush2.bf16.msra.mxu0 0
        %3688 = vmatprep.subr.bf16.mxu0 0
        %3689 = vmatpush2.bf16.msra.mxu0 0
        %3690 = vmatprep.mubr.bf16.mxu0 0
        %3691 = vmatmul.mubr.bf16.gmra.mxu0 %v3653
        %v3692 = vpop.f32.mrf.mxu0
        %v3693 = vadd.f32 0.0, %v3692
        %v3694 = vpop.f32.mrf.mxu0
        %v3695 = vpop.f32.mrf.mxu0
        %v3696 = vadd.f32 0.0, %v3695
        %v3697 = vpop.f32.mrf.mxu0
        %3698 = vmatprep.mubr.bf16.mxu0 0
        %3699 = vmatmul.mubr.bf16.gmra.mxu0 %v3656
        %v3700 = vpop.f32.mrf.mxu0
        %v3701 = vadd.f32 0.0, %v3700
        %v3702 = vpop.f32.mrf.mxu0
        %v3703 = vpop.f32.mrf.mxu0
        %v3704 = vadd.f32 0.0, %v3703
        %v3705 = vpop.f32.mrf.mxu0
        %3706 = vdwg.mxu0
        %v3707 = vadd.f32 %v3559, %v3693
        %v3708 = vadd.f32 %v3560, %v3696
        %v3709 = vadd.f32 %v3561, %v3701
        %v3710 = vadd.f32 %v3562, %v3704
        %v3711 = vld [vmem:[%s5] sm:$0x1]
        %v3713 = vlaneseq
        %v3714 = vshrl.u32 %v3713, 7
        %v3715 = vsub.s32 0, %v3714
        %v3716 = vrot.slane %v3711, %v3715
        %v3718 = vadd.f32 %v3707, %v3716
        %v3719 = vadd.f32 %v3708, %v3716
        %v3720 = vadd.f32 %v3709, %v3716
        %v3721 = vadd.f32 %v3710, %v3716
        %v3722 = vmax.f32 %v3718, 0.0
        %v3723 = vmax.f32 %v3719, 0.0
        %v3724 = vmax.f32 %v3720, 0.0
        %v3725 = vmax.f32 %v3721, 0.0
        %v3726 = vpack.c.bf16 %v3723, %v3722
        %v3727 = vpack.c.bf16 %v3725, %v3724
        %v3728 = vld [vmem:[%s6] sm:$0xf]
        %v3729 = vld [vmem:[%s6 + $0x4] sm:$0xf]
        %v3730 = vld [vmem:[%s6 + $0x8] sm:$0xf]
        %v3731 = vld [vmem:[%s6 + $0xc] sm:$0x1]
        %v3736 = vunpack.c.l.b16 %v3728
        %v3737 = vunpack.c.l.b16 %v3729
        %v3738 = vunpack.c.l.b16 %v3730
        %v3739 = vunpack.c.l.b16 %v3731
        %v3740 = vpack.c.b16 %v3737, %v3736
        %v3741 = vpack.c.b16 %v3739, %v3738
        %vm3742 = vcmask 203776
        %v3744 = vsel %vm3742, %v3740, 0
        %v3747 = vsel %vm3742, %v3741, 0
        %vm3749 = vcmask 1043456
        %vm3750 = vcmask 1044480
        %v3751 = vsel %vm3749, 4294967295, 65535
        %v3752 = vsel %vm3750, %v3751, 0
        %v3754 = vand.u32 %v3727, %v3752
        %3756 = vmatprep.subr.bf16.mxu0 0
        %3757 = vmatpush1.bf16.msra.mxu0 0
        %3758 = vmatprep.subr.bf16.mxu0 0
        %3759 = vmatpush1.bf16.msra.mxu0 0
        %3760 = vmatprep.subr.bf16.mxu0 0
        %3761 = vmatpush1.bf16.msra.mxu0 0
        %3762 = vmatprep.subr.bf16.mxu0 0
        %3763 = vmatpush1.bf16.msra.mxu0 0
        %3764 = vmatprep.subr.bf16.mxu0 0
        %3765 = vmatpush1.bf16.msra.mxu0 0
        %3766 = vmatprep.subr.bf16.mxu0 0
        %3767 = vmatpush1.bf16.msra.mxu0 0
        %3768 = vmatprep.subr.bf16.mxu0 0
        %3769 = vmatpush1.bf16.msra.mxu0 %v3754
        %3770 = vmatprep.subr.bf16.mxu0 0
        %3771 = vmatpush1.bf16.msra.mxu0 %v3726
        %3772 = vmatprep.subr.bf16.mxu0 0
        %3773 = vmatpush2.bf16.msra.mxu0 0
        %3774 = vmatprep.subr.bf16.mxu0 0
        %3775 = vmatpush2.bf16.msra.mxu0 0
        %3776 = vmatprep.subr.bf16.mxu0 0
        %3777 = vmatpush2.bf16.msra.mxu0 0
        %3778 = vmatprep.subr.bf16.mxu0 0
        %3779 = vmatpush2.bf16.msra.mxu0 0
        %3780 = vmatprep.subr.bf16.mxu0 0
        %3781 = vmatpush2.bf16.msra.mxu0 0
        %3782 = vmatprep.subr.bf16.mxu0 0
        %3783 = vmatpush2.bf16.msra.mxu0 0
        %3784 = vmatprep.subr.bf16.mxu0 0
        %3785 = vmatpush2.bf16.msra.mxu0 0
        %3786 = vmatprep.subr.bf16.mxu0 0
        %3787 = vmatpush2.bf16.msra.mxu0 0
        %3788 = vmatprep.mubr.bf16.mxu0 0
        %3789 = vmatmul.mubr.bf16.gmra.mxu0 %v3744
        %v3790 = vpop.f32.mrf.mxu0
        %v3791 = vadd.f32 0.0, %v3790
        %v3792 = vpop.f32.mrf.mxu0
        %v3793 = vpop.f32.mrf.mxu0
        %v3794 = vadd.f32 0.0, %v3793
        %v3795 = vpop.f32.mrf.mxu0
        %3796 = vmatprep.mubr.bf16.mxu0 0
        %3797 = vmatmul.mubr.bf16.gmra.mxu0 %v3747
        %v3798 = vpop.f32.mrf.mxu0
        %v3799 = vadd.f32 0.0, %v3798
        %v3800 = vpop.f32.mrf.mxu0
        %v3801 = vpop.f32.mrf.mxu0
        %v3802 = vadd.f32 0.0, %v3801
        %v3803 = vpop.f32.mrf.mxu0
        %3804 = vdwg.mxu0
        %v3805 = vpack.c.bf16 %v3794, %v3791
        %v3806 = vpack.c.bf16 %v3802, %v3799
        %v3807 = vld [vmem:[%s7] sm:$0xf]
        %v3808 = vld [vmem:[%s7 + $0x4] sm:$0xf]
        %v3809 = vld [vmem:[%s7 + $0x8] sm:$0xf]
        %v3810 = vld [vmem:[%s7 + $0xc] sm:$0xf]
        %v3811 = vld [vmem:[%s7 + $0x10] sm:$0xf]
        %v3812 = vld [vmem:[%s7 + $0x14] sm:$0xf]
        %v3813 = vld [vmem:[%s7 + $0x18] sm:$0xf]
        %v3814 = vld [vmem:[%s7 + $0x1c] sm:$0xf]
        %s3815 = scalar_lea.vmem %s6, 16
        %v3816 = vld [vmem:[%s3815] sm:$0xf]
        %v3817 = vld [vmem:[%s3815 + $0x4] sm:$0xf]
        %v3818 = vld [vmem:[%s3815 + $0x8] sm:$0xf]
        %v3819 = vld [vmem:[%s3815 + $0xc] sm:$0x1]
        %v3824 = vunpack.c.l.b16 %v3816
        %v3825 = vunpack.c.l.b16 %v3817
        %v3826 = vunpack.c.l.b16 %v3818
        %v3827 = vunpack.c.l.b16 %v3819
        %v3828 = vpack.c.b16 %v3825, %v3824
        %v3829 = vpack.c.b16 %v3827, %v3826
        %v3831 = vsel %vm3742, %v3828, 0
        %v3834 = vsel %vm3742, %v3829, 0
        %3836 = vmatprep.subr.bf16.mxu0 0
        %3837 = vmatpush1.bf16.msra.mxu0 0
        %3838 = vmatprep.subr.bf16.mxu0 0
        %3839 = vmatpush1.bf16.msra.mxu0 0
        %3840 = vmatprep.subr.bf16.mxu0 0
        %3841 = vmatpush1.bf16.msra.mxu0 0
        %3842 = vmatprep.subr.bf16.mxu0 0
        %3843 = vmatpush1.bf16.msra.mxu0 0
        %3844 = vmatprep.subr.bf16.mxu0 0
        %3845 = vmatpush1.bf16.msra.mxu0 0
        %3846 = vmatprep.subr.bf16.mxu0 0
        %3847 = vmatpush1.bf16.msra.mxu0 0
        %3848 = vmatprep.subr.bf16.mxu0 0
        %3849 = vmatpush1.bf16.msra.mxu0 %v3754
        %3850 = vmatprep.subr.bf16.mxu0 0
        %3851 = vmatpush1.bf16.msra.mxu0 %v3726
        %3852 = vmatprep.subr.bf16.mxu0 0
        %3853 = vmatpush2.bf16.msra.mxu0 0
        %3854 = vmatprep.subr.bf16.mxu0 0
        %3855 = vmatpush2.bf16.msra.mxu0 0
        %3856 = vmatprep.subr.bf16.mxu0 0
        %3857 = vmatpush2.bf16.msra.mxu0 0
        %3858 = vmatprep.subr.bf16.mxu0 0
        %3859 = vmatpush2.bf16.msra.mxu0 0
        %3860 = vmatprep.subr.bf16.mxu0 0
        %3861 = vmatpush2.bf16.msra.mxu0 0
        %3862 = vmatprep.subr.bf16.mxu0 0
        %3863 = vmatpush2.bf16.msra.mxu0 0
        %3864 = vmatprep.subr.bf16.mxu0 0
        %3865 = vmatpush2.bf16.msra.mxu0 0
        %3866 = vmatprep.subr.bf16.mxu0 0
        %3867 = vmatpush2.bf16.msra.mxu0 0
        %3868 = vmatprep.mubr.bf16.mxu0 0
        %3869 = vmatmul.mubr.bf16.gmra.mxu0 %v3831
        %v3870 = vpop.f32.mrf.mxu0
        %v3871 = vadd.f32 0.0, %v3870
        %v3872 = vpop.f32.mrf.mxu0
        %v3873 = vpop.f32.mrf.mxu0
        %v3874 = vadd.f32 0.0, %v3873
        %v3875 = vpop.f32.mrf.mxu0
        %3876 = vmatprep.mubr.bf16.mxu0 0
        %3877 = vmatmul.mubr.bf16.gmra.mxu0 %v3834
        %v3878 = vpop.f32.mrf.mxu0
        %v3879 = vadd.f32 0.0, %v3878
        %v3880 = vpop.f32.mrf.mxu0
        %v3881 = vpop.f32.mrf.mxu0
        %v3882 = vadd.f32 0.0, %v3881
        %v3883 = vpop.f32.mrf.mxu0
        %3884 = vdwg.mxu0
        %v3885 = vpack.c.bf16 %v3874, %v3871
        %v3886 = vpack.c.bf16 %v3882, %v3879
        %s3887 = scalar_lea.vmem %s7, 32
        %v3888 = vld [vmem:[%s3887] sm:$0xf]
        %v3889 = vld [vmem:[%s3887 + $0x4] sm:$0xf]
        %v3890 = vld [vmem:[%s3887 + $0x8] sm:$0xf]
        %v3891 = vld [vmem:[%s3887 + $0xc] sm:$0xf]
        %v3892 = vld [vmem:[%s3887 + $0x10] sm:$0xf]
        %v3893 = vld [vmem:[%s3887 + $0x14] sm:$0xf]
        %v3894 = vld [vmem:[%s3887 + $0x18] sm:$0xf]
        %v3895 = vld [vmem:[%s3887 + $0x1c] sm:$0xf]
        %v3904 = vunpack.c.l.b16 %v3888
        %v3905 = vunpack.c.l.b16 %v3889
        %v3906 = vunpack.c.l.b16 %v3890
        %v3907 = vunpack.c.l.b16 %v3891
        %v3908 = vunpack.c.l.b16 %v3892
        %v3909 = vunpack.c.l.b16 %v3893
        %v3910 = vunpack.c.l.b16 %v3894
        %v3911 = vunpack.c.l.b16 %v3895
        %v3912 = vpack.c.b16 %v3905, %v3904
        %v3913 = vpack.c.b16 %v3907, %v3906
        %v3914 = vpack.c.b16 %v3909, %v3908
        %v3915 = vpack.c.b16 %v3911, %v3910
        %vm3920 = vcmask 523264
        %v3922 = vsel %vm3920, %v3885, 0
        %v3925 = vsel %vm3920, %v3886, 0
        %3927 = vmatprep.subr.bf16.mxu0 0
        %3928 = vmatpush1.bf16.msra.mxu0 0
        %3929 = vmatprep.subr.bf16.mxu0 0
        %3930 = vmatpush1.bf16.msra.mxu0 0
        %3931 = vmatprep.subr.bf16.mxu0 0
        %3932 = vmatpush1.bf16.msra.mxu0 0
        %3933 = vmatprep.subr.bf16.mxu0 0
        %3934 = vmatpush1.bf16.msra.mxu0 0
        %3935 = vmatprep.subr.bf16.mxu0 0
        %3936 = vmatpush1.bf16.msra.mxu0 %v3915
        %3937 = vmatprep.subr.bf16.mxu0 0
        %3938 = vmatpush1.bf16.msra.mxu0 %v3914
        %3939 = vmatprep.subr.bf16.mxu0 0
        %3940 = vmatpush1.bf16.msra.mxu0 %v3913
        %3941 = vmatprep.subr.bf16.mxu0 0
        %3942 = vmatpush1.bf16.msra.mxu0 %v3912
        %3943 = vmatprep.subr.bf16.mxu0 0
        %3944 = vmatpush2.bf16.msra.mxu0 0
        %3945 = vmatprep.subr.bf16.mxu0 0
        %3946 = vmatpush2.bf16.msra.mxu0 0
        %3947 = vmatprep.subr.bf16.mxu0 0
        %3948 = vmatpush2.bf16.msra.mxu0 0
        %3949 = vmatprep.subr.bf16.mxu0 0
        %3950 = vmatpush2.bf16.msra.mxu0 0
        %3951 = vmatprep.subr.bf16.mxu0 0
        %3952 = vmatpush2.bf16.msra.mxu0 0
        %3953 = vmatprep.subr.bf16.mxu0 0
        %3954 = vmatpush2.bf16.msra.mxu0 0
        %3955 = vmatprep.subr.bf16.mxu0 0
        %3956 = vmatpush2.bf16.msra.mxu0 0
        %3957 = vmatprep.subr.bf16.mxu0 0
        %3958 = vmatpush2.bf16.msra.mxu0 0
        %3959 = vmatprep.mubr.bf16.mxu0 0
        %3960 = vmatmul.mubr.bf16.gmra.mxu0 %v3922
        %v3961 = vpop.f32.mrf.mxu0
        %v3962 = vadd.f32 0.0, %v3961
        %v3963 = vpop.f32.mrf.mxu0
        %v3964 = vpop.f32.mrf.mxu0
        %v3965 = vadd.f32 0.0, %v3964
        %v3966 = vpop.f32.mrf.mxu0
        %3967 = vmatprep.mubr.bf16.mxu0 0
        %3968 = vmatmul.mubr.bf16.gmra.mxu0 %v3925
        %v3969 = vpop.f32.mrf.mxu0
        %v3970 = vadd.f32 0.0, %v3969
        %v3971 = vpop.f32.mrf.mxu0
        %v3972 = vpop.f32.mrf.mxu0
        %v3973 = vadd.f32 0.0, %v3972
        %v3974 = vpop.f32.mrf.mxu0
        %3975 = vdwg.mxu0
        %v3984 = vunpack.c.l.b16 %v3807
        %v3985 = vunpack.c.l.b16 %v3808
        %v3986 = vunpack.c.l.b16 %v3809
        %v3987 = vunpack.c.l.b16 %v3810
        %v3988 = vunpack.c.l.b16 %v3811
        %v3989 = vunpack.c.l.b16 %v3812
        %v3990 = vunpack.c.l.b16 %v3813
        %v3991 = vunpack.c.l.b16 %v3814
        %v3992 = vpack.c.b16 %v3985, %v3984
        %v3993 = vpack.c.b16 %v3987, %v3986
        %v3994 = vpack.c.b16 %v3989, %v3988
        %v3995 = vpack.c.b16 %v3991, %v3990
        %v4001 = vsel %vm3920, %v3805, 0
        %v4004 = vsel %vm3920, %v3806, 0
        %4006 = vmatprep.subr.bf16.mxu0 0
        %4007 = vmatpush1.bf16.msra.mxu0 0
        %4008 = vmatprep.subr.bf16.mxu0 0
        %4009 = vmatpush1.bf16.msra.mxu0 0
        %4010 = vmatprep.subr.bf16.mxu0 0
        %4011 = vmatpush1.bf16.msra.mxu0 0
        %4012 = vmatprep.subr.bf16.mxu0 0
        %4013 = vmatpush1.bf16.msra.mxu0 0
        %4014 = vmatprep.subr.bf16.mxu0 0
        %4015 = vmatpush1.bf16.msra.mxu0 %v3995
        %4016 = vmatprep.subr.bf16.mxu0 0
        %4017 = vmatpush1.bf16.msra.mxu0 %v3994
        %4018 = vmatprep.subr.bf16.mxu0 0
        %4019 = vmatpush1.bf16.msra.mxu0 %v3993
        %4020 = vmatprep.subr.bf16.mxu0 0
        %4021 = vmatpush1.bf16.msra.mxu0 %v3992
        %4022 = vmatprep.subr.bf16.mxu0 0
        %4023 = vmatpush2.bf16.msra.mxu0 0
        %4024 = vmatprep.subr.bf16.mxu0 0
        %4025 = vmatpush2.bf16.msra.mxu0 0
        %4026 = vmatprep.subr.bf16.mxu0 0
        %4027 = vmatpush2.bf16.msra.mxu0 0
        %4028 = vmatprep.subr.bf16.mxu0 0
        %4029 = vmatpush2.bf16.msra.mxu0 0
        %4030 = vmatprep.subr.bf16.mxu0 0
        %4031 = vmatpush2.bf16.msra.mxu0 0
        %4032 = vmatprep.subr.bf16.mxu0 0
        %4033 = vmatpush2.bf16.msra.mxu0 0
        %4034 = vmatprep.subr.bf16.mxu0 0
        %4035 = vmatpush2.bf16.msra.mxu0 0
        %4036 = vmatprep.subr.bf16.mxu0 0
        %4037 = vmatpush2.bf16.msra.mxu0 0
        %4038 = vmatprep.mubr.bf16.mxu0 0
        %4039 = vmatmul.mubr.bf16.gmra.mxu0 %v4001
        %v4040 = vpop.f32.mrf.mxu0
        %v4041 = vadd.f32 %v3962, %v4040
        %v4042 = vpop.f32.mrf.mxu0
        %v4043 = vpop.f32.mrf.mxu0
        %v4044 = vadd.f32 %v3965, %v4043
        %v4045 = vpop.f32.mrf.mxu0
        %4046 = vmatprep.mubr.bf16.mxu0 0
        %4047 = vmatmul.mubr.bf16.gmra.mxu0 %v4004
        %v4048 = vpop.f32.mrf.mxu0
        %v4049 = vadd.f32 %v3970, %v4048
        %v4050 = vpop.f32.mrf.mxu0
        %v4051 = vpop.f32.mrf.mxu0
        %v4052 = vadd.f32 %v3973, %v4051
        %v4053 = vpop.f32.mrf.mxu0
        %4054 = vdwg.mxu0
        %s4055 = scalar_lea.vmem %s6, 32
        %v4056 = vld [vmem:[%s4055] sm:$0xf]
        %v4057 = vld [vmem:[%s4055 + $0x4] sm:$0xf]
        %v4058 = vld [vmem:[%s4055 + $0x8] sm:$0xf]
        %v4059 = vld [vmem:[%s4055 + $0xc] sm:$0x1]
        %v4064 = vunpack.c.l.b16 %v4056
        %v4065 = vunpack.c.l.b16 %v4057
        %v4066 = vunpack.c.l.b16 %v4058
        %v4067 = vunpack.c.l.b16 %v4059
        %v4068 = vpack.c.b16 %v4065, %v4064
        %v4069 = vpack.c.b16 %v4067, %v4066
        %v4071 = vsel %vm3742, %v4068, 0
        %v4074 = vsel %vm3742, %v4069, 0
        %4076 = vmatprep.subr.bf16.mxu0 0
        %4077 = vmatpush1.bf16.msra.mxu0 0
        %4078 = vmatprep.subr.bf16.mxu0 0
        %4079 = vmatpush1.bf16.msra.mxu0 0
        %4080 = vmatprep.subr.bf16.mxu0 0
        %4081 = vmatpush1.bf16.msra.mxu0 0
        %4082 = vmatprep.subr.bf16.mxu0 0
        %4083 = vmatpush1.bf16.msra.mxu0 0
        %4084 = vmatprep.subr.bf16.mxu0 0
        %4085 = vmatpush1.bf16.msra.mxu0 0
        %4086 = vmatprep.subr.bf16.mxu0 0
        %4087 = vmatpush1.bf16.msra.mxu0 0
        %4088 = vmatprep.subr.bf16.mxu0 0
        %4089 = vmatpush1.bf16.msra.mxu0 %v3754
        %4090 = vmatprep.subr.bf16.mxu0 0
        %4091 = vmatpush1.bf16.msra.mxu0 %v3726
        %4092 = vmatprep.subr.bf16.mxu0 0
        %4093 = vmatpush2.bf16.msra.mxu0 0
        %4094 = vmatprep.subr.bf16.mxu0 0
        %4095 = vmatpush2.bf16.msra.mxu0 0
        %4096 = vmatprep.subr.bf16.mxu0 0
        %4097 = vmatpush2.bf16.msra.mxu0 0
        %4098 = vmatprep.subr.bf16.mxu0 0
        %4099 = vmatpush2.bf16.msra.mxu0 0
        %4100 = vmatprep.subr.bf16.mxu0 0
        %4101 = vmatpush2.bf16.msra.mxu0 0
        %4102 = vmatprep.subr.bf16.mxu0 0
        %4103 = vmatpush2.bf16.msra.mxu0 0
        %4104 = vmatprep.subr.bf16.mxu0 0
        %4105 = vmatpush2.bf16.msra.mxu0 0
        %4106 = vmatprep.subr.bf16.mxu0 0
        %4107 = vmatpush2.bf16.msra.mxu0 0
        %4108 = vmatprep.mubr.bf16.mxu0 0
        %4109 = vmatmul.mubr.bf16.gmra.mxu0 %v4071
        %v4110 = vpop.f32.mrf.mxu0
        %v4111 = vadd.f32 0.0, %v4110
        %v4112 = vpop.f32.mrf.mxu0
        %v4113 = vpop.f32.mrf.mxu0
        %v4114 = vadd.f32 0.0, %v4113
        %v4115 = vpop.f32.mrf.mxu0
        %4116 = vmatprep.mubr.bf16.mxu0 0
        %4117 = vmatmul.mubr.bf16.gmra.mxu0 %v4074
        %v4118 = vpop.f32.mrf.mxu0
        %v4119 = vadd.f32 0.0, %v4118
        %v4120 = vpop.f32.mrf.mxu0
        %v4121 = vpop.f32.mrf.mxu0
        %v4122 = vadd.f32 0.0, %v4121
        %v4123 = vpop.f32.mrf.mxu0
        %4124 = vdwg.mxu0
        %v4125 = vpack.c.bf16 %v4114, %v4111
        %v4126 = vpack.c.bf16 %v4122, %v4119
        %s4127 = scalar_lea.vmem %s7, 64
        %v4128 = vld [vmem:[%s4127] sm:$0xf]
        %v4129 = vld [vmem:[%s4127 + $0x4] sm:$0xf]
        %v4130 = vld [vmem:[%s4127 + $0x8] sm:$0xf]
        %v4131 = vld [vmem:[%s4127 + $0xc] sm:$0xf]
        %v4132 = vld [vmem:[%s4127 + $0x10] sm:$0xf]
        %v4133 = vld [vmem:[%s4127 + $0x14] sm:$0xf]
        %v4134 = vld [vmem:[%s4127 + $0x18] sm:$0xf]
        %v4135 = vld [vmem:[%s4127 + $0x1c] sm:$0xf]
        %v4144 = vunpack.c.l.b16 %v4128
        %v4145 = vunpack.c.l.b16 %v4129
        %v4146 = vunpack.c.l.b16 %v4130
        %v4147 = vunpack.c.l.b16 %v4131
        %v4148 = vunpack.c.l.b16 %v4132
        %v4149 = vunpack.c.l.b16 %v4133
        %v4150 = vunpack.c.l.b16 %v4134
        %v4151 = vunpack.c.l.b16 %v4135
        %v4152 = vpack.c.b16 %v4145, %v4144
        %v4153 = vpack.c.b16 %v4147, %v4146
        %v4154 = vpack.c.b16 %v4149, %v4148
        %v4155 = vpack.c.b16 %v4151, %v4150
        %v4161 = vsel %vm3920, %v4125, 0
        %v4164 = vsel %vm3920, %v4126, 0
        %4166 = vmatprep.subr.bf16.mxu0 0
        %4167 = vmatpush1.bf16.msra.mxu0 0
        %4168 = vmatprep.subr.bf16.mxu0 0
        %4169 = vmatpush1.bf16.msra.mxu0 0
        %4170 = vmatprep.subr.bf16.mxu0 0
        %4171 = vmatpush1.bf16.msra.mxu0 0
        %4172 = vmatprep.subr.bf16.mxu0 0
        %4173 = vmatpush1.bf16.msra.mxu0 0
        %4174 = vmatprep.subr.bf16.mxu0 0
        %4175 = vmatpush1.bf16.msra.mxu0 %v4155
        %4176 = vmatprep.subr.bf16.mxu0 0
        %4177 = vmatpush1.bf16.msra.mxu0 %v4154
        %4178 = vmatprep.subr.bf16.mxu0 0
        %4179 = vmatpush1.bf16.msra.mxu0 %v4153
        %4180 = vmatprep.subr.bf16.mxu0 0
        %4181 = vmatpush1.bf16.msra.mxu0 %v4152
        %4182 = vmatprep.subr.bf16.mxu0 0
        %4183 = vmatpush2.bf16.msra.mxu0 0
        %4184 = vmatprep.subr.bf16.mxu0 0
        %4185 = vmatpush2.bf16.msra.mxu0 0
        %4186 = vmatprep.subr.bf16.mxu0 0
        %4187 = vmatpush2.bf16.msra.mxu0 0
        %4188 = vmatprep.subr.bf16.mxu0 0
        %4189 = vmatpush2.bf16.msra.mxu0 0
        %4190 = vmatprep.subr.bf16.mxu0 0
        %4191 = vmatpush2.bf16.msra.mxu0 0
        %4192 = vmatprep.subr.bf16.mxu0 0
        %4193 = vmatpush2.bf16.msra.mxu0 0
        %4194 = vmatprep.subr.bf16.mxu0 0
        %4195 = vmatpush2.bf16.msra.mxu0 0
        %4196 = vmatprep.subr.bf16.mxu0 0
        %4197 = vmatpush2.bf16.msra.mxu0 0
        %4198 = vmatprep.mubr.bf16.mxu0 0
        %4199 = vmatmul.mubr.bf16.gmra.mxu0 %v4161
        %v4200 = vpop.f32.mrf.mxu0
        %v4201 = vadd.f32 0.0, %v4200
        %v4202 = vpop.f32.mrf.mxu0
        %v4203 = vpop.f32.mrf.mxu0
        %v4204 = vadd.f32 0.0, %v4203
        %v4205 = vpop.f32.mrf.mxu0
        %4206 = vmatprep.mubr.bf16.mxu0 0
        %4207 = vmatmul.mubr.bf16.gmra.mxu0 %v4164
        %v4208 = vpop.f32.mrf.mxu0
        %v4209 = vadd.f32 0.0, %v4208
        %v4210 = vpop.f32.mrf.mxu0
        %v4211 = vpop.f32.mrf.mxu0
        %v4212 = vadd.f32 0.0, %v4211
        %v4213 = vpop.f32.mrf.mxu0
        %4214 = vdwg.mxu0
        %v4215 = vadd.f32 %v4041, %v4201
        %v4216 = vadd.f32 %v4044, %v4204
        %v4217 = vadd.f32 %v4049, %v4209
        %v4218 = vadd.f32 %v4052, %v4212
        %s4219 = scalar_lea.vmem %s6, 48
        %v4220 = vld [vmem:[%s4219] sm:$0xf]
        %v4221 = vld [vmem:[%s4219 + $0x4] sm:$0xf]
        %v4222 = vld [vmem:[%s4219 + $0x8] sm:$0xf]
        %v4223 = vld [vmem:[%s4219 + $0xc] sm:$0x1]
        %v4228 = vunpack.c.l.b16 %v4220
        %v4229 = vunpack.c.l.b16 %v4221
        %v4230 = vunpack.c.l.b16 %v4222
        %v4231 = vunpack.c.l.b16 %v4223
        %v4232 = vpack.c.b16 %v4229, %v4228
        %v4233 = vpack.c.b16 %v4231, %v4230
        %v4235 = vsel %vm3742, %v4232, 0
        %v4238 = vsel %vm3742, %v4233, 0
        %4240 = vmatprep.subr.bf16.mxu0 0
        %4241 = vmatpush1.bf16.msra.mxu0 0
        %4242 = vmatprep.subr.bf16.mxu0 0
        %4243 = vmatpush1.bf16.msra.mxu0 0
        %4244 = vmatprep.subr.bf16.mxu0 0
        %4245 = vmatpush1.bf16.msra.mxu0 0
        %4246 = vmatprep.subr.bf16.mxu0 0
        %4247 = vmatpush1.bf16.msra.mxu0 0
        %4248 = vmatprep.subr.bf16.mxu0 0
        %4249 = vmatpush1.bf16.msra.mxu0 0
        %4250 = vmatprep.subr.bf16.mxu0 0
        %4251 = vmatpush1.bf16.msra.mxu0 0
        %4252 = vmatprep.subr.bf16.mxu0 0
        %4253 = vmatpush1.bf16.msra.mxu0 %v3754
        %4254 = vmatprep.subr.bf16.mxu0 0
        %4255 = vmatpush1.bf16.msra.mxu0 %v3726
        %4256 = vmatprep.subr.bf16.mxu0 0
        %4257 = vmatpush2.bf16.msra.mxu0 0
        %4258 = vmatprep.subr.bf16.mxu0 0
        %4259 = vmatpush2.bf16.msra.mxu0 0
        %4260 = vmatprep.subr.bf16.mxu0 0
        %4261 = vmatpush2.bf16.msra.mxu0 0
        %4262 = vmatprep.subr.bf16.mxu0 0
        %4263 = vmatpush2.bf16.msra.mxu0 0
        %4264 = vmatprep.subr.bf16.mxu0 0
        %4265 = vmatpush2.bf16.msra.mxu0 0
        %4266 = vmatprep.subr.bf16.mxu0 0
        %4267 = vmatpush2.bf16.msra.mxu0 0
        %4268 = vmatprep.subr.bf16.mxu0 0
        %4269 = vmatpush2.bf16.msra.mxu0 0
        %4270 = vmatprep.subr.bf16.mxu0 0
        %4271 = vmatpush2.bf16.msra.mxu0 0
        %4272 = vmatprep.mubr.bf16.mxu0 0
        %4273 = vmatmul.mubr.bf16.gmra.mxu0 %v4235
        %v4274 = vpop.f32.mrf.mxu0
        %v4275 = vadd.f32 0.0, %v4274
        %v4276 = vpop.f32.mrf.mxu0
        %v4277 = vpop.f32.mrf.mxu0
        %v4278 = vadd.f32 0.0, %v4277
        %v4279 = vpop.f32.mrf.mxu0
        %4280 = vmatprep.mubr.bf16.mxu0 0
        %4281 = vmatmul.mubr.bf16.gmra.mxu0 %v4238
        %v4282 = vpop.f32.mrf.mxu0
        %v4283 = vadd.f32 0.0, %v4282
        %v4284 = vpop.f32.mrf.mxu0
        %v4285 = vpop.f32.mrf.mxu0
        %v4286 = vadd.f32 0.0, %v4285
        %v4287 = vpop.f32.mrf.mxu0
        %4288 = vdwg.mxu0
        %v4289 = vpack.c.bf16 %v4278, %v4275
        %v4290 = vpack.c.bf16 %v4286, %v4283
        %s4291 = scalar_lea.vmem %s7, 96
        %v4292 = vld [vmem:[%s4291] sm:$0xf]
        %v4293 = vld [vmem:[%s4291 + $0x4] sm:$0xf]
        %v4294 = vld [vmem:[%s4291 + $0x8] sm:$0xf]
        %v4295 = vld [vmem:[%s4291 + $0xc] sm:$0xf]
        %v4296 = vld [vmem:[%s4291 + $0x10] sm:$0xf]
        %v4297 = vld [vmem:[%s4291 + $0x14] sm:$0xf]
        %v4298 = vld [vmem:[%s4291 + $0x18] sm:$0xf]
        %v4299 = vld [vmem:[%s4291 + $0x1c] sm:$0xf]
        %v4308 = vunpack.c.l.b16 %v4292
        %v4309 = vunpack.c.l.b16 %v4293
        %v4310 = vunpack.c.l.b16 %v4294
        %v4311 = vunpack.c.l.b16 %v4295
        %v4312 = vunpack.c.l.b16 %v4296
        %v4313 = vunpack.c.l.b16 %v4297
        %v4314 = vunpack.c.l.b16 %v4298
        %v4315 = vunpack.c.l.b16 %v4299
        %v4316 = vpack.c.b16 %v4309, %v4308
        %v4317 = vpack.c.b16 %v4311, %v4310
        %v4318 = vpack.c.b16 %v4313, %v4312
        %v4319 = vpack.c.b16 %v4315, %v4314
        %v4325 = vsel %vm3920, %v4289, 0
        %v4328 = vsel %vm3920, %v4290, 0
        %4330 = vmatprep.subr.bf16.mxu0 0
        %4331 = vmatpush1.bf16.msra.mxu0 0
        %4332 = vmatprep.subr.bf16.mxu0 0
        %4333 = vmatpush1.bf16.msra.mxu0 0
        %4334 = vmatprep.subr.bf16.mxu0 0
        %4335 = vmatpush1.bf16.msra.mxu0 0
        %4336 = vmatprep.subr.bf16.mxu0 0
        %4337 = vmatpush1.bf16.msra.mxu0 0
        %4338 = vmatprep.subr.bf16.mxu0 0
        %4339 = vmatpush1.bf16.msra.mxu0 %v4319
        %4340 = vmatprep.subr.bf16.mxu0 0
        %4341 = vmatpush1.bf16.msra.mxu0 %v4318
        %4342 = vmatprep.subr.bf16.mxu0 0
        %4343 = vmatpush1.bf16.msra.mxu0 %v4317
        %4344 = vmatprep.subr.bf16.mxu0 0
        %4345 = vmatpush1.bf16.msra.mxu0 %v4316
        %4346 = vmatprep.subr.bf16.mxu0 0
        %4347 = vmatpush2.bf16.msra.mxu0 0
        %4348 = vmatprep.subr.bf16.mxu0 0
        %4349 = vmatpush2.bf16.msra.mxu0 0
        %4350 = vmatprep.subr.bf16.mxu0 0
        %4351 = vmatpush2.bf16.msra.mxu0 0
        %4352 = vmatprep.subr.bf16.mxu0 0
        %4353 = vmatpush2.bf16.msra.mxu0 0
        %4354 = vmatprep.subr.bf16.mxu0 0
        %4355 = vmatpush2.bf16.msra.mxu0 0
        %4356 = vmatprep.subr.bf16.mxu0 0
        %4357 = vmatpush2.bf16.msra.mxu0 0
        %4358 = vmatprep.subr.bf16.mxu0 0
        %4359 = vmatpush2.bf16.msra.mxu0 0
        %4360 = vmatprep.subr.bf16.mxu0 0
        %4361 = vmatpush2.bf16.msra.mxu0 0
        %4362 = vmatprep.mubr.bf16.mxu0 0
        %4363 = vmatmul.mubr.bf16.gmra.mxu0 %v4325
        %v4364 = vpop.f32.mrf.mxu0
        %v4365 = vadd.f32 0.0, %v4364
        %v4366 = vpop.f32.mrf.mxu0
        %v4367 = vpop.f32.mrf.mxu0
        %v4368 = vadd.f32 0.0, %v4367
        %v4369 = vpop.f32.mrf.mxu0
        %4370 = vmatprep.mubr.bf16.mxu0 0
        %4371 = vmatmul.mubr.bf16.gmra.mxu0 %v4328
        %v4372 = vpop.f32.mrf.mxu0
        %v4373 = vadd.f32 0.0, %v4372
        %v4374 = vpop.f32.mrf.mxu0
        %v4375 = vpop.f32.mrf.mxu0
        %v4376 = vadd.f32 0.0, %v4375
        %v4377 = vpop.f32.mrf.mxu0
        %4378 = vdwg.mxu0
        %v4379 = vadd.f32 %v4215, %v4365
        %v4380 = vadd.f32 %v4216, %v4368
        %v4381 = vadd.f32 %v4217, %v4373
        %v4382 = vadd.f32 %v4218, %v4376
        %s4383 = scalar_lea.vmem %s6, 64
        %v4384 = vld [vmem:[%s4383] sm:$0xf]
        %v4385 = vld [vmem:[%s4383 + $0x4] sm:$0xf]
        %v4386 = vld [vmem:[%s4383 + $0x8] sm:$0xf]
        %v4387 = vld [vmem:[%s4383 + $0xc] sm:$0x1]
        %v4392 = vunpack.c.l.b16 %v4384
        %v4393 = vunpack.c.l.b16 %v4385
        %v4394 = vunpack.c.l.b16 %v4386
        %v4395 = vunpack.c.l.b16 %v4387
        %v4396 = vpack.c.b16 %v4393, %v4392
        %v4397 = vpack.c.b16 %v4395, %v4394
        %v4399 = vsel %vm3742, %v4396, 0
        %v4402 = vsel %vm3742, %v4397, 0
        %4404 = vmatprep.subr.bf16.mxu0 0
        %4405 = vmatpush1.bf16.msra.mxu0 0
        %4406 = vmatprep.subr.bf16.mxu0 0
        %4407 = vmatpush1.bf16.msra.mxu0 0
        %4408 = vmatprep.subr.bf16.mxu0 0
        %4409 = vmatpush1.bf16.msra.mxu0 0
        %4410 = vmatprep.subr.bf16.mxu0 0
        %4411 = vmatpush1.bf16.msra.mxu0 0
        %4412 = vmatprep.subr.bf16.mxu0 0
        %4413 = vmatpush1.bf16.msra.mxu0 0
        %4414 = vmatprep.subr.bf16.mxu0 0
        %4415 = vmatpush1.bf16.msra.mxu0 0
        %4416 = vmatprep.subr.bf16.mxu0 0
        %4417 = vmatpush1.bf16.msra.mxu0 %v3754
        %4418 = vmatprep.subr.bf16.mxu0 0
        %4419 = vmatpush1.bf16.msra.mxu0 %v3726
        %4420 = vmatprep.subr.bf16.mxu0 0
        %4421 = vmatpush2.bf16.msra.mxu0 0
        %4422 = vmatprep.subr.bf16.mxu0 0
        %4423 = vmatpush2.bf16.msra.mxu0 0
        %4424 = vmatprep.subr.bf16.mxu0 0
        %4425 = vmatpush2.bf16.msra.mxu0 0
        %4426 = vmatprep.subr.bf16.mxu0 0
        %4427 = vmatpush2.bf16.msra.mxu0 0
        %4428 = vmatprep.subr.bf16.mxu0 0
        %4429 = vmatpush2.bf16.msra.mxu0 0
        %4430 = vmatprep.subr.bf16.mxu0 0
        %4431 = vmatpush2.bf16.msra.mxu0 0
        %4432 = vmatprep.subr.bf16.mxu0 0
        %4433 = vmatpush2.bf16.msra.mxu0 0
        %4434 = vmatprep.subr.bf16.mxu0 0
        %4435 = vmatpush2.bf16.msra.mxu0 0
        %4436 = vmatprep.mubr.bf16.mxu0 0
        %4437 = vmatmul.mubr.bf16.gmra.mxu0 %v4399
        %v4438 = vpop.f32.mrf.mxu0
        %v4439 = vadd.f32 0.0, %v4438
        %v4440 = vpop.f32.mrf.mxu0
        %v4441 = vpop.f32.mrf.mxu0
        %v4442 = vadd.f32 0.0, %v4441
        %v4443 = vpop.f32.mrf.mxu0
        %4444 = vmatprep.mubr.bf16.mxu0 0
        %4445 = vmatmul.mubr.bf16.gmra.mxu0 %v4402
        %v4446 = vpop.f32.mrf.mxu0
        %v4447 = vadd.f32 0.0, %v4446
        %v4448 = vpop.f32.mrf.mxu0
        %v4449 = vpop.f32.mrf.mxu0
        %v4450 = vadd.f32 0.0, %v4449
        %v4451 = vpop.f32.mrf.mxu0
        %4452 = vdwg.mxu0
        %v4453 = vpack.c.bf16 %v4442, %v4439
        %v4454 = vpack.c.bf16 %v4450, %v4447
        %s4455 = scalar_lea.vmem %s7, 128
        %v4456 = vld [vmem:[%s4455] sm:$0xf]
        %v4457 = vld [vmem:[%s4455 + $0x4] sm:$0xf]
        %v4458 = vld [vmem:[%s4455 + $0x8] sm:$0xf]
        %v4459 = vld [vmem:[%s4455 + $0xc] sm:$0xf]
        %v4460 = vld [vmem:[%s4455 + $0x10] sm:$0xf]
        %v4461 = vld [vmem:[%s4455 + $0x14] sm:$0xf]
        %v4462 = vld [vmem:[%s4455 + $0x18] sm:$0xf]
        %v4463 = vld [vmem:[%s4455 + $0x1c] sm:$0xf]
        %v4472 = vunpack.c.l.b16 %v4456
        %v4473 = vunpack.c.l.b16 %v4457
        %v4474 = vunpack.c.l.b16 %v4458
        %v4475 = vunpack.c.l.b16 %v4459
        %v4476 = vunpack.c.l.b16 %v4460
        %v4477 = vunpack.c.l.b16 %v4461
        %v4478 = vunpack.c.l.b16 %v4462
        %v4479 = vunpack.c.l.b16 %v4463
        %v4480 = vpack.c.b16 %v4473, %v4472
        %v4481 = vpack.c.b16 %v4475, %v4474
        %v4482 = vpack.c.b16 %v4477, %v4476
        %v4483 = vpack.c.b16 %v4479, %v4478
        %v4489 = vsel %vm3920, %v4453, 0
        %v4492 = vsel %vm3920, %v4454, 0
        %4494 = vmatprep.subr.bf16.mxu0 0
        %4495 = vmatpush1.bf16.msra.mxu0 0
        %4496 = vmatprep.subr.bf16.mxu0 0
        %4497 = vmatpush1.bf16.msra.mxu0 0
        %4498 = vmatprep.subr.bf16.mxu0 0
        %4499 = vmatpush1.bf16.msra.mxu0 0
        %4500 = vmatprep.subr.bf16.mxu0 0
        %4501 = vmatpush1.bf16.msra.mxu0 0
        %4502 = vmatprep.subr.bf16.mxu0 0
        %4503 = vmatpush1.bf16.msra.mxu0 %v4483
        %4504 = vmatprep.subr.bf16.mxu0 0
        %4505 = vmatpush1.bf16.msra.mxu0 %v4482
        %4506 = vmatprep.subr.bf16.mxu0 0
        %4507 = vmatpush1.bf16.msra.mxu0 %v4481
        %4508 = vmatprep.subr.bf16.mxu0 0
        %4509 = vmatpush1.bf16.msra.mxu0 %v4480
        %4510 = vmatprep.subr.bf16.mxu0 0
        %4511 = vmatpush2.bf16.msra.mxu0 0
        %4512 = vmatprep.subr.bf16.mxu0 0
        %4513 = vmatpush2.bf16.msra.mxu0 0
        %4514 = vmatprep.subr.bf16.mxu0 0
        %4515 = vmatpush2.bf16.msra.mxu0 0
        %4516 = vmatprep.subr.bf16.mxu0 0
        %4517 = vmatpush2.bf16.msra.mxu0 0
        %4518 = vmatprep.subr.bf16.mxu0 0
        %4519 = vmatpush2.bf16.msra.mxu0 0
        %4520 = vmatprep.subr.bf16.mxu0 0
        %4521 = vmatpush2.bf16.msra.mxu0 0
        %4522 = vmatprep.subr.bf16.mxu0 0
        %4523 = vmatpush2.bf16.msra.mxu0 0
        %4524 = vmatprep.subr.bf16.mxu0 0
        %4525 = vmatpush2.bf16.msra.mxu0 0
        %4526 = vmatprep.mubr.bf16.mxu0 0
        %4527 = vmatmul.mubr.bf16.gmra.mxu0 %v4489
        %v4528 = vpop.f32.mrf.mxu0
        %v4529 = vadd.f32 0.0, %v4528
        %v4530 = vpop.f32.mrf.mxu0
        %v4531 = vpop.f32.mrf.mxu0
        %v4532 = vadd.f32 0.0, %v4531
        %v4533 = vpop.f32.mrf.mxu0
        %4534 = vmatprep.mubr.bf16.mxu0 0
        %4535 = vmatmul.mubr.bf16.gmra.mxu0 %v4492
        %v4536 = vpop.f32.mrf.mxu0
        %v4537 = vadd.f32 0.0, %v4536
        %v4538 = vpop.f32.mrf.mxu0
        %v4539 = vpop.f32.mrf.mxu0
        %v4540 = vadd.f32 0.0, %v4539
        %v4541 = vpop.f32.mrf.mxu0
        %4542 = vdwg.mxu0
        %v4543 = vadd.f32 %v4379, %v4529
        %v4544 = vadd.f32 %v4380, %v4532
        %v4545 = vadd.f32 %v4381, %v4537
        %v4546 = vadd.f32 %v4382, %v4540
        %s4547 = scalar_lea.vmem %s6, 80
        %v4548 = vld [vmem:[%s4547] sm:$0xf]
        %v4549 = vld [vmem:[%s4547 + $0x4] sm:$0xf]
        %v4550 = vld [vmem:[%s4547 + $0x8] sm:$0xf]
        %v4551 = vld [vmem:[%s4547 + $0xc] sm:$0x1]
        %v4556 = vunpack.c.l.b16 %v4548
        %v4557 = vunpack.c.l.b16 %v4549
        %v4558 = vunpack.c.l.b16 %v4550
        %v4559 = vunpack.c.l.b16 %v4551
        %v4560 = vpack.c.b16 %v4557, %v4556
        %v4561 = vpack.c.b16 %v4559, %v4558
        %v4563 = vsel %vm3742, %v4560, 0
        %v4566 = vsel %vm3742, %v4561, 0
        %4568 = vmatprep.subr.bf16.mxu0 0
        %4569 = vmatpush1.bf16.msra.mxu0 0
        %4570 = vmatprep.subr.bf16.mxu0 0
        %4571 = vmatpush1.bf16.msra.mxu0 0
        %4572 = vmatprep.subr.bf16.mxu0 0
        %4573 = vmatpush1.bf16.msra.mxu0 0
        %4574 = vmatprep.subr.bf16.mxu0 0
        %4575 = vmatpush1.bf16.msra.mxu0 0
        %4576 = vmatprep.subr.bf16.mxu0 0
        %4577 = vmatpush1.bf16.msra.mxu0 0
        %4578 = vmatprep.subr.bf16.mxu0 0
        %4579 = vmatpush1.bf16.msra.mxu0 0
        %4580 = vmatprep.subr.bf16.mxu0 0
        %4581 = vmatpush1.bf16.msra.mxu0 %v3754
        %4582 = vmatprep.subr.bf16.mxu0 0
        %4583 = vmatpush1.bf16.msra.mxu0 %v3726
        %4584 = vmatprep.subr.bf16.mxu0 0
        %4585 = vmatpush2.bf16.msra.mxu0 0
        %4586 = vmatprep.subr.bf16.mxu0 0
        %4587 = vmatpush2.bf16.msra.mxu0 0
        %4588 = vmatprep.subr.bf16.mxu0 0
        %4589 = vmatpush2.bf16.msra.mxu0 0
        %4590 = vmatprep.subr.bf16.mxu0 0
        %4591 = vmatpush2.bf16.msra.mxu0 0
        %4592 = vmatprep.subr.bf16.mxu0 0
        %4593 = vmatpush2.bf16.msra.mxu0 0
        %4594 = vmatprep.subr.bf16.mxu0 0
        %4595 = vmatpush2.bf16.msra.mxu0 0
        %4596 = vmatprep.subr.bf16.mxu0 0
        %4597 = vmatpush2.bf16.msra.mxu0 0
        %4598 = vmatprep.subr.bf16.mxu0 0
        %4599 = vmatpush2.bf16.msra.mxu0 0
        %4600 = vmatprep.mubr.bf16.mxu0 0
        %4601 = vmatmul.mubr.bf16.gmra.mxu0 %v4563
        %v4602 = vpop.f32.mrf.mxu0
        %v4603 = vadd.f32 0.0, %v4602
        %v4604 = vpop.f32.mrf.mxu0
        %v4605 = vpop.f32.mrf.mxu0
        %v4606 = vadd.f32 0.0, %v4605
        %v4607 = vpop.f32.mrf.mxu0
        %4608 = vmatprep.mubr.bf16.mxu0 0
        %4609 = vmatmul.mubr.bf16.gmra.mxu0 %v4566
        %v4610 = vpop.f32.mrf.mxu0
        %v4611 = vadd.f32 0.0, %v4610
        %v4612 = vpop.f32.mrf.mxu0
        %v4613 = vpop.f32.mrf.mxu0
        %v4614 = vadd.f32 0.0, %v4613
        %v4615 = vpop.f32.mrf.mxu0
        %4616 = vdwg.mxu0
        %v4617 = vpack.c.bf16 %v4606, %v4603
        %v4618 = vpack.c.bf16 %v4614, %v4611
        %s4619 = scalar_lea.vmem %s7, 160
        %v4620 = vld [vmem:[%s4619] sm:$0xf]
        %v4621 = vld [vmem:[%s4619 + $0x4] sm:$0xf]
        %v4622 = vld [vmem:[%s4619 + $0x8] sm:$0xf]
        %v4623 = vld [vmem:[%s4619 + $0xc] sm:$0xf]
        %v4624 = vld [vmem:[%s4619 + $0x10] sm:$0xf]
        %v4625 = vld [vmem:[%s4619 + $0x14] sm:$0xf]
        %v4626 = vld [vmem:[%s4619 + $0x18] sm:$0xf]
        %v4627 = vld [vmem:[%s4619 + $0x1c] sm:$0xf]
        %v4636 = vunpack.c.l.b16 %v4620
        %v4637 = vunpack.c.l.b16 %v4621
        %v4638 = vunpack.c.l.b16 %v4622
        %v4639 = vunpack.c.l.b16 %v4623
        %v4640 = vunpack.c.l.b16 %v4624
        %v4641 = vunpack.c.l.b16 %v4625
        %v4642 = vunpack.c.l.b16 %v4626
        %v4643 = vunpack.c.l.b16 %v4627
        %v4644 = vpack.c.b16 %v4637, %v4636
        %v4645 = vpack.c.b16 %v4639, %v4638
        %v4646 = vpack.c.b16 %v4641, %v4640
        %v4647 = vpack.c.b16 %v4643, %v4642
        %v4653 = vsel %vm3920, %v4617, 0
        %v4656 = vsel %vm3920, %v4618, 0
        %4658 = vmatprep.subr.bf16.mxu0 0
        %4659 = vmatpush1.bf16.msra.mxu0 0
        %4660 = vmatprep.subr.bf16.mxu0 0
        %4661 = vmatpush1.bf16.msra.mxu0 0
        %4662 = vmatprep.subr.bf16.mxu0 0
        %4663 = vmatpush1.bf16.msra.mxu0 0
        %4664 = vmatprep.subr.bf16.mxu0 0
        %4665 = vmatpush1.bf16.msra.mxu0 0
        %4666 = vmatprep.subr.bf16.mxu0 0
        %4667 = vmatpush1.bf16.msra.mxu0 %v4647
        %4668 = vmatprep.subr.bf16.mxu0 0
        %4669 = vmatpush1.bf16.msra.mxu0 %v4646
        %4670 = vmatprep.subr.bf16.mxu0 0
        %4671 = vmatpush1.bf16.msra.mxu0 %v4645
        %4672 = vmatprep.subr.bf16.mxu0 0
        %4673 = vmatpush1.bf16.msra.mxu0 %v4644
        %4674 = vmatprep.subr.bf16.mxu0 0
        %4675 = vmatpush2.bf16.msra.mxu0 0
        %4676 = vmatprep.subr.bf16.mxu0 0
        %4677 = vmatpush2.bf16.msra.mxu0 0
        %4678 = vmatprep.subr.bf16.mxu0 0
        %4679 = vmatpush2.bf16.msra.mxu0 0
        %4680 = vmatprep.subr.bf16.mxu0 0
        %4681 = vmatpush2.bf16.msra.mxu0 0
        %4682 = vmatprep.subr.bf16.mxu0 0
        %4683 = vmatpush2.bf16.msra.mxu0 0
        %4684 = vmatprep.subr.bf16.mxu0 0
        %4685 = vmatpush2.bf16.msra.mxu0 0
        %4686 = vmatprep.subr.bf16.mxu0 0
        %4687 = vmatpush2.bf16.msra.mxu0 0
        %4688 = vmatprep.subr.bf16.mxu0 0
        %4689 = vmatpush2.bf16.msra.mxu0 0
        %4690 = vmatprep.mubr.bf16.mxu0 0
        %4691 = vmatmul.mubr.bf16.gmra.mxu0 %v4653
        %v4692 = vpop.f32.mrf.mxu0
        %v4693 = vadd.f32 0.0, %v4692
        %v4694 = vpop.f32.mrf.mxu0
        %v4695 = vpop.f32.mrf.mxu0
        %v4696 = vadd.f32 0.0, %v4695
        %v4697 = vpop.f32.mrf.mxu0
        %4698 = vmatprep.mubr.bf16.mxu0 0
        %4699 = vmatmul.mubr.bf16.gmra.mxu0 %v4656
        %v4700 = vpop.f32.mrf.mxu0
        %v4701 = vadd.f32 0.0, %v4700
        %v4702 = vpop.f32.mrf.mxu0
        %v4703 = vpop.f32.mrf.mxu0
        %v4704 = vadd.f32 0.0, %v4703
        %v4705 = vpop.f32.mrf.mxu0
        %4706 = vdwg.mxu0
        %v4707 = vadd.f32 %v4543, %v4693
        %v4708 = vadd.f32 %v4544, %v4696
        %v4709 = vadd.f32 %v4545, %v4701
        %v4710 = vadd.f32 %v4546, %v4704
        %s4711 = scalar_lea.vmem %s6, 96
        %v4712 = vld [vmem:[%s4711] sm:$0xf]
        %v4713 = vld [vmem:[%s4711 + $0x4] sm:$0xf]
        %v4714 = vld [vmem:[%s4711 + $0x8] sm:$0xf]
        %v4715 = vld [vmem:[%s4711 + $0xc] sm:$0x1]
        %v4720 = vunpack.c.l.b16 %v4712
        %v4721 = vunpack.c.l.b16 %v4713
        %v4722 = vunpack.c.l.b16 %v4714
        %v4723 = vunpack.c.l.b16 %v4715
        %v4724 = vpack.c.b16 %v4721, %v4720
        %v4725 = vpack.c.b16 %v4723, %v4722
        %v4727 = vsel %vm3742, %v4724, 0
        %v4730 = vsel %vm3742, %v4725, 0
        %4732 = vmatprep.subr.bf16.mxu0 0
        %4733 = vmatpush1.bf16.msra.mxu0 0
        %4734 = vmatprep.subr.bf16.mxu0 0
        %4735 = vmatpush1.bf16.msra.mxu0 0
        %4736 = vmatprep.subr.bf16.mxu0 0
        %4737 = vmatpush1.bf16.msra.mxu0 0
        %4738 = vmatprep.subr.bf16.mxu0 0
        %4739 = vmatpush1.bf16.msra.mxu0 0
        %4740 = vmatprep.subr.bf16.mxu0 0
        %4741 = vmatpush1.bf16.msra.mxu0 0
        %4742 = vmatprep.subr.bf16.mxu0 0
        %4743 = vmatpush1.bf16.msra.mxu0 0
        %4744 = vmatprep.subr.bf16.mxu0 0
        %4745 = vmatpush1.bf16.msra.mxu0 %v3754
        %4746 = vmatprep.subr.bf16.mxu0 0
        %4747 = vmatpush1.bf16.msra.mxu0 %v3726
        %4748 = vmatprep.subr.bf16.mxu0 0
        %4749 = vmatpush2.bf16.msra.mxu0 0
        %4750 = vmatprep.subr.bf16.mxu0 0
        %4751 = vmatpush2.bf16.msra.mxu0 0
        %4752 = vmatprep.subr.bf16.mxu0 0
        %4753 = vmatpush2.bf16.msra.mxu0 0
        %4754 = vmatprep.subr.bf16.mxu0 0
        %4755 = vmatpush2.bf16.msra.mxu0 0
        %4756 = vmatprep.subr.bf16.mxu0 0
        %4757 = vmatpush2.bf16.msra.mxu0 0
        %4758 = vmatprep.subr.bf16.mxu0 0
        %4759 = vmatpush2.bf16.msra.mxu0 0
        %4760 = vmatprep.subr.bf16.mxu0 0
        %4761 = vmatpush2.bf16.msra.mxu0 0
        %4762 = vmatprep.subr.bf16.mxu0 0
        %4763 = vmatpush2.bf16.msra.mxu0 0
        %4764 = vmatprep.mubr.bf16.mxu0 0
        %4765 = vmatmul.mubr.bf16.gmra.mxu0 %v4727
        %v4766 = vpop.f32.mrf.mxu0
        %v4767 = vadd.f32 0.0, %v4766
        %v4768 = vpop.f32.mrf.mxu0
        %v4769 = vpop.f32.mrf.mxu0
        %v4770 = vadd.f32 0.0, %v4769
        %v4771 = vpop.f32.mrf.mxu0
        %4772 = vmatprep.mubr.bf16.mxu0 0
        %4773 = vmatmul.mubr.bf16.gmra.mxu0 %v4730
        %v4774 = vpop.f32.mrf.mxu0
        %v4775 = vadd.f32 0.0, %v4774
        %v4776 = vpop.f32.mrf.mxu0
        %v4777 = vpop.f32.mrf.mxu0
        %v4778 = vadd.f32 0.0, %v4777
        %v4779 = vpop.f32.mrf.mxu0
        %4780 = vdwg.mxu0
        %v4781 = vpack.c.bf16 %v4770, %v4767
        %v4782 = vpack.c.bf16 %v4778, %v4775
        %s4783 = scalar_lea.vmem %s7, 192
        %v4784 = vld [vmem:[%s4783] sm:$0xf]
        %v4785 = vld [vmem:[%s4783 + $0x4] sm:$0xf]
        %v4786 = vld [vmem:[%s4783 + $0x8] sm:$0xf]
        %v4787 = vld [vmem:[%s4783 + $0xc] sm:$0xf]
        %v4788 = vld [vmem:[%s4783 + $0x10] sm:$0xf]
        %v4789 = vld [vmem:[%s4783 + $0x14] sm:$0xf]
        %v4790 = vld [vmem:[%s4783 + $0x18] sm:$0xf]
        %v4791 = vld [vmem:[%s4783 + $0x1c] sm:$0xf]
        %v4800 = vunpack.c.l.b16 %v4784
        %v4801 = vunpack.c.l.b16 %v4785
        %v4802 = vunpack.c.l.b16 %v4786
        %v4803 = vunpack.c.l.b16 %v4787
        %v4804 = vunpack.c.l.b16 %v4788
        %v4805 = vunpack.c.l.b16 %v4789
        %v4806 = vunpack.c.l.b16 %v4790
        %v4807 = vunpack.c.l.b16 %v4791
        %v4808 = vpack.c.b16 %v4801, %v4800
        %v4809 = vpack.c.b16 %v4803, %v4802
        %v4810 = vpack.c.b16 %v4805, %v4804
        %v4811 = vpack.c.b16 %v4807, %v4806
        %v4817 = vsel %vm3920, %v4781, 0
        %v4820 = vsel %vm3920, %v4782, 0
        %4822 = vmatprep.subr.bf16.mxu0 0
        %4823 = vmatpush1.bf16.msra.mxu0 0
        %4824 = vmatprep.subr.bf16.mxu0 0
        %4825 = vmatpush1.bf16.msra.mxu0 0
        %4826 = vmatprep.subr.bf16.mxu0 0
        %4827 = vmatpush1.bf16.msra.mxu0 0
        %4828 = vmatprep.subr.bf16.mxu0 0
        %4829 = vmatpush1.bf16.msra.mxu0 0
        %4830 = vmatprep.subr.bf16.mxu0 0
        %4831 = vmatpush1.bf16.msra.mxu0 %v4811
        %4832 = vmatprep.subr.bf16.mxu0 0
        %4833 = vmatpush1.bf16.msra.mxu0 %v4810
        %4834 = vmatprep.subr.bf16.mxu0 0
        %4835 = vmatpush1.bf16.msra.mxu0 %v4809
        %4836 = vmatprep.subr.bf16.mxu0 0
        %4837 = vmatpush1.bf16.msra.mxu0 %v4808
        %4838 = vmatprep.subr.bf16.mxu0 0
        %4839 = vmatpush2.bf16.msra.mxu0 0
        %4840 = vmatprep.subr.bf16.mxu0 0
        %4841 = vmatpush2.bf16.msra.mxu0 0
        %4842 = vmatprep.subr.bf16.mxu0 0
        %4843 = vmatpush2.bf16.msra.mxu0 0
        %4844 = vmatprep.subr.bf16.mxu0 0
        %4845 = vmatpush2.bf16.msra.mxu0 0
        %4846 = vmatprep.subr.bf16.mxu0 0
        %4847 = vmatpush2.bf16.msra.mxu0 0
        %4848 = vmatprep.subr.bf16.mxu0 0
        %4849 = vmatpush2.bf16.msra.mxu0 0
        %4850 = vmatprep.subr.bf16.mxu0 0
        %4851 = vmatpush2.bf16.msra.mxu0 0
        %4852 = vmatprep.subr.bf16.mxu0 0
        %4853 = vmatpush2.bf16.msra.mxu0 0
        %4854 = vmatprep.mubr.bf16.mxu0 0
        %4855 = vmatmul.mubr.bf16.gmra.mxu0 %v4817
        %v4856 = vpop.f32.mrf.mxu0
        %v4857 = vadd.f32 0.0, %v4856
        %v4858 = vpop.f32.mrf.mxu0
        %v4859 = vpop.f32.mrf.mxu0
        %v4860 = vadd.f32 0.0, %v4859
        %v4861 = vpop.f32.mrf.mxu0
        %4862 = vmatprep.mubr.bf16.mxu0 0
        %4863 = vmatmul.mubr.bf16.gmra.mxu0 %v4820
        %v4864 = vpop.f32.mrf.mxu0
        %v4865 = vadd.f32 0.0, %v4864
        %v4866 = vpop.f32.mrf.mxu0
        %v4867 = vpop.f32.mrf.mxu0
        %v4868 = vadd.f32 0.0, %v4867
        %v4869 = vpop.f32.mrf.mxu0
        %4870 = vdwg.mxu0
        %v4871 = vadd.f32 %v4707, %v4857
        %v4872 = vadd.f32 %v4708, %v4860
        %v4873 = vadd.f32 %v4709, %v4865
        %v4874 = vadd.f32 %v4710, %v4868
        %s4875 = scalar_lea.vmem %s6, 112
        %v4876 = vld [vmem:[%s4875] sm:$0xf]
        %v4877 = vld [vmem:[%s4875 + $0x4] sm:$0xf]
        %v4878 = vld [vmem:[%s4875 + $0x8] sm:$0xf]
        %v4879 = vld [vmem:[%s4875 + $0xc] sm:$0x1]
        %v4884 = vunpack.c.l.b16 %v4876
        %v4885 = vunpack.c.l.b16 %v4877
        %v4886 = vunpack.c.l.b16 %v4878
        %v4887 = vunpack.c.l.b16 %v4879
        %v4888 = vpack.c.b16 %v4885, %v4884
        %v4889 = vpack.c.b16 %v4887, %v4886
        %v4891 = vsel %vm3742, %v4888, 0
        %v4894 = vsel %vm3742, %v4889, 0
        %4896 = vmatprep.subr.bf16.mxu0 0
        %4897 = vmatpush1.bf16.msra.mxu0 0
        %4898 = vmatprep.subr.bf16.mxu0 0
        %4899 = vmatpush1.bf16.msra.mxu0 0
        %4900 = vmatprep.subr.bf16.mxu0 0
        %4901 = vmatpush1.bf16.msra.mxu0 0
        %4902 = vmatprep.subr.bf16.mxu0 0
        %4903 = vmatpush1.bf16.msra.mxu0 0
        %4904 = vmatprep.subr.bf16.mxu0 0
        %4905 = vmatpush1.bf16.msra.mxu0 0
        %4906 = vmatprep.subr.bf16.mxu0 0
        %4907 = vmatpush1.bf16.msra.mxu0 0
        %4908 = vmatprep.subr.bf16.mxu0 0
        %4909 = vmatpush1.bf16.msra.mxu0 %v3754
        %4910 = vmatprep.subr.bf16.mxu0 0
        %4911 = vmatpush1.bf16.msra.mxu0 %v3726
        %4912 = vmatprep.subr.bf16.mxu0 0
        %4913 = vmatpush2.bf16.msra.mxu0 0
        %4914 = vmatprep.subr.bf16.mxu0 0
        %4915 = vmatpush2.bf16.msra.mxu0 0
        %4916 = vmatprep.subr.bf16.mxu0 0
        %4917 = vmatpush2.bf16.msra.mxu0 0
        %4918 = vmatprep.subr.bf16.mxu0 0
        %4919 = vmatpush2.bf16.msra.mxu0 0
        %4920 = vmatprep.subr.bf16.mxu0 0
        %4921 = vmatpush2.bf16.msra.mxu0 0
        %4922 = vmatprep.subr.bf16.mxu0 0
        %4923 = vmatpush2.bf16.msra.mxu0 0
        %4924 = vmatprep.subr.bf16.mxu0 0
        %4925 = vmatpush2.bf16.msra.mxu0 0
        %4926 = vmatprep.subr.bf16.mxu0 0
        %4927 = vmatpush2.bf16.msra.mxu0 0
        %4928 = vmatprep.mubr.bf16.mxu0 0
        %4929 = vmatmul.mubr.bf16.gmra.mxu0 %v4891
        %v4930 = vpop.f32.mrf.mxu0
        %v4931 = vadd.f32 0.0, %v4930
        %v4932 = vpop.f32.mrf.mxu0
        %v4933 = vpop.f32.mrf.mxu0
        %v4934 = vadd.f32 0.0, %v4933
        %v4935 = vpop.f32.mrf.mxu0
        %4936 = vmatprep.mubr.bf16.mxu0 0
        %4937 = vmatmul.mubr.bf16.gmra.mxu0 %v4894
        %v4938 = vpop.f32.mrf.mxu0
        %v4939 = vadd.f32 0.0, %v4938
        %v4940 = vpop.f32.mrf.mxu0
        %v4941 = vpop.f32.mrf.mxu0
        %v4942 = vadd.f32 0.0, %v4941
        %v4943 = vpop.f32.mrf.mxu0
        %4944 = vdwg.mxu0
        %v4945 = vpack.c.bf16 %v4934, %v4931
        %v4946 = vpack.c.bf16 %v4942, %v4939
        %s4947 = scalar_lea.vmem %s7, 224
        %v4948 = vld [vmem:[%s4947] sm:$0xf]
        %v4949 = vld [vmem:[%s4947 + $0x4] sm:$0xf]
        %v4950 = vld [vmem:[%s4947 + $0x8] sm:$0xf]
        %v4951 = vld [vmem:[%s4947 + $0xc] sm:$0xf]
        %v4952 = vld [vmem:[%s4947 + $0x10] sm:$0xf]
        %v4953 = vld [vmem:[%s4947 + $0x14] sm:$0xf]
        %v4954 = vld [vmem:[%s4947 + $0x18] sm:$0xf]
        %v4955 = vld [vmem:[%s4947 + $0x1c] sm:$0xf]
        %v4964 = vunpack.c.l.b16 %v4948
        %v4965 = vunpack.c.l.b16 %v4949
        %v4966 = vunpack.c.l.b16 %v4950
        %v4967 = vunpack.c.l.b16 %v4951
        %v4968 = vunpack.c.l.b16 %v4952
        %v4969 = vunpack.c.l.b16 %v4953
        %v4970 = vunpack.c.l.b16 %v4954
        %v4971 = vunpack.c.l.b16 %v4955
        %v4972 = vpack.c.b16 %v4965, %v4964
        %v4973 = vpack.c.b16 %v4967, %v4966
        %v4974 = vpack.c.b16 %v4969, %v4968
        %v4975 = vpack.c.b16 %v4971, %v4970
        %v4981 = vsel %vm3920, %v4945, 0
        %v4984 = vsel %vm3920, %v4946, 0
        %4986 = vmatprep.subr.bf16.mxu0 0
        %4987 = vmatpush1.bf16.msra.mxu0 0
        %4988 = vmatprep.subr.bf16.mxu0 0
        %4989 = vmatpush1.bf16.msra.mxu0 0
        %4990 = vmatprep.subr.bf16.mxu0 0
        %4991 = vmatpush1.bf16.msra.mxu0 0
        %4992 = vmatprep.subr.bf16.mxu0 0
        %4993 = vmatpush1.bf16.msra.mxu0 0
        %4994 = vmatprep.subr.bf16.mxu0 0
        %4995 = vmatpush1.bf16.msra.mxu0 %v4975
        %4996 = vmatprep.subr.bf16.mxu0 0
        %4997 = vmatpush1.bf16.msra.mxu0 %v4974
        %4998 = vmatprep.subr.bf16.mxu0 0
        %4999 = vmatpush1.bf16.msra.mxu0 %v4973
        %5000 = vmatprep.subr.bf16.mxu0 0
        %5001 = vmatpush1.bf16.msra.mxu0 %v4972
        %5002 = vmatprep.subr.bf16.mxu0 0
        %5003 = vmatpush2.bf16.msra.mxu0 0
        %5004 = vmatprep.subr.bf16.mxu0 0
        %5005 = vmatpush2.bf16.msra.mxu0 0
        %5006 = vmatprep.subr.bf16.mxu0 0
        %5007 = vmatpush2.bf16.msra.mxu0 0
        %5008 = vmatprep.subr.bf16.mxu0 0
        %5009 = vmatpush2.bf16.msra.mxu0 0
        %5010 = vmatprep.subr.bf16.mxu0 0
        %5011 = vmatpush2.bf16.msra.mxu0 0
        %5012 = vmatprep.subr.bf16.mxu0 0
        %5013 = vmatpush2.bf16.msra.mxu0 0
        %5014 = vmatprep.subr.bf16.mxu0 0
        %5015 = vmatpush2.bf16.msra.mxu0 0
        %5016 = vmatprep.subr.bf16.mxu0 0
        %5017 = vmatpush2.bf16.msra.mxu0 0
        %5018 = vmatprep.mubr.bf16.mxu0 0
        %5019 = vmatmul.mubr.bf16.gmra.mxu0 %v4981
        %v5020 = vpop.f32.mrf.mxu0
        %v5021 = vadd.f32 0.0, %v5020
        %v5022 = vpop.f32.mrf.mxu0
        %v5023 = vpop.f32.mrf.mxu0
        %v5024 = vadd.f32 0.0, %v5023
        %v5025 = vpop.f32.mrf.mxu0
        %5026 = vmatprep.mubr.bf16.mxu0 0
        %5027 = vmatmul.mubr.bf16.gmra.mxu0 %v4984
        %v5028 = vpop.f32.mrf.mxu0
        %v5029 = vadd.f32 0.0, %v5028
        %v5030 = vpop.f32.mrf.mxu0
        %v5031 = vpop.f32.mrf.mxu0
        %v5032 = vadd.f32 0.0, %v5031
        %v5033 = vpop.f32.mrf.mxu0
        %5034 = vdwg.mxu0
        %v5035 = vadd.f32 %v4871, %v5021
        %v5036 = vadd.f32 %v4872, %v5024
        %v5037 = vadd.f32 %v4873, %v5029
        %v5038 = vadd.f32 %v4874, %v5032
        %s5039 = scalar_lea.vmem %s6, 128
        %v5040 = vld [vmem:[%s5039] sm:$0xf]
        %v5041 = vld [vmem:[%s5039 + $0x4] sm:$0xf]
        %v5042 = vld [vmem:[%s5039 + $0x8] sm:$0xf]
        %v5043 = vld [vmem:[%s5039 + $0xc] sm:$0x1]
        %v5048 = vunpack.c.l.b16 %v5040
        %v5049 = vunpack.c.l.b16 %v5041
        %v5050 = vunpack.c.l.b16 %v5042
        %v5051 = vunpack.c.l.b16 %v5043
        %v5052 = vpack.c.b16 %v5049, %v5048
        %v5053 = vpack.c.b16 %v5051, %v5050
        %v5055 = vsel %vm3742, %v5052, 0
        %v5058 = vsel %vm3742, %v5053, 0
        %5060 = vmatprep.subr.bf16.mxu0 0
        %5061 = vmatpush1.bf16.msra.mxu0 0
        %5062 = vmatprep.subr.bf16.mxu0 0
        %5063 = vmatpush1.bf16.msra.mxu0 0
        %5064 = vmatprep.subr.bf16.mxu0 0
        %5065 = vmatpush1.bf16.msra.mxu0 0
        %5066 = vmatprep.subr.bf16.mxu0 0
        %5067 = vmatpush1.bf16.msra.mxu0 0
        %5068 = vmatprep.subr.bf16.mxu0 0
        %5069 = vmatpush1.bf16.msra.mxu0 0
        %5070 = vmatprep.subr.bf16.mxu0 0
        %5071 = vmatpush1.bf16.msra.mxu0 0
        %5072 = vmatprep.subr.bf16.mxu0 0
        %5073 = vmatpush1.bf16.msra.mxu0 %v3754
        %5074 = vmatprep.subr.bf16.mxu0 0
        %5075 = vmatpush1.bf16.msra.mxu0 %v3726
        %5076 = vmatprep.subr.bf16.mxu0 0
        %5077 = vmatpush2.bf16.msra.mxu0 0
        %5078 = vmatprep.subr.bf16.mxu0 0
        %5079 = vmatpush2.bf16.msra.mxu0 0
        %5080 = vmatprep.subr.bf16.mxu0 0
        %5081 = vmatpush2.bf16.msra.mxu0 0
        %5082 = vmatprep.subr.bf16.mxu0 0
        %5083 = vmatpush2.bf16.msra.mxu0 0
        %5084 = vmatprep.subr.bf16.mxu0 0
        %5085 = vmatpush2.bf16.msra.mxu0 0
        %5086 = vmatprep.subr.bf16.mxu0 0
        %5087 = vmatpush2.bf16.msra.mxu0 0
        %5088 = vmatprep.subr.bf16.mxu0 0
        %5089 = vmatpush2.bf16.msra.mxu0 0
        %5090 = vmatprep.subr.bf16.mxu0 0
        %5091 = vmatpush2.bf16.msra.mxu0 0
        %5092 = vmatprep.mubr.bf16.mxu0 0
        %5093 = vmatmul.mubr.bf16.gmra.mxu0 %v5055
        %v5094 = vpop.f32.mrf.mxu0
        %v5095 = vadd.f32 0.0, %v5094
        %v5096 = vpop.f32.mrf.mxu0
        %v5097 = vpop.f32.mrf.mxu0
        %v5098 = vadd.f32 0.0, %v5097
        %v5099 = vpop.f32.mrf.mxu0
        %5100 = vmatprep.mubr.bf16.mxu0 0
        %5101 = vmatmul.mubr.bf16.gmra.mxu0 %v5058
        %v5102 = vpop.f32.mrf.mxu0
        %v5103 = vadd.f32 0.0, %v5102
        %v5104 = vpop.f32.mrf.mxu0
        %v5105 = vpop.f32.mrf.mxu0
        %v5106 = vadd.f32 0.0, %v5105
        %v5107 = vpop.f32.mrf.mxu0
        %5108 = vdwg.mxu0
        %v5109 = vpack.c.bf16 %v5098, %v5095
        %v5110 = vpack.c.bf16 %v5106, %v5103
        %s5111 = scalar_lea.vmem %s7, 256
        %v5112 = vld [vmem:[%s5111] sm:$0xf]
        %v5113 = vld [vmem:[%s5111 + $0x4] sm:$0xf]
        %v5114 = vld [vmem:[%s5111 + $0x8] sm:$0xf]
        %v5115 = vld [vmem:[%s5111 + $0xc] sm:$0xf]
        %v5116 = vld [vmem:[%s5111 + $0x10] sm:$0xf]
        %v5117 = vld [vmem:[%s5111 + $0x14] sm:$0xf]
        %v5118 = vld [vmem:[%s5111 + $0x18] sm:$0xf]
        %v5119 = vld [vmem:[%s5111 + $0x1c] sm:$0xf]
        %v5128 = vunpack.c.l.b16 %v5112
        %v5129 = vunpack.c.l.b16 %v5113
        %v5130 = vunpack.c.l.b16 %v5114
        %v5131 = vunpack.c.l.b16 %v5115
        %v5132 = vunpack.c.l.b16 %v5116
        %v5133 = vunpack.c.l.b16 %v5117
        %v5134 = vunpack.c.l.b16 %v5118
        %v5135 = vunpack.c.l.b16 %v5119
        %v5136 = vpack.c.b16 %v5129, %v5128
        %v5137 = vpack.c.b16 %v5131, %v5130
        %v5138 = vpack.c.b16 %v5133, %v5132
        %v5139 = vpack.c.b16 %v5135, %v5134
        %v5145 = vsel %vm3920, %v5109, 0
        %v5148 = vsel %vm3920, %v5110, 0
        %5150 = vmatprep.subr.bf16.mxu0 0
        %5151 = vmatpush1.bf16.msra.mxu0 0
        %5152 = vmatprep.subr.bf16.mxu0 0
        %5153 = vmatpush1.bf16.msra.mxu0 0
        %5154 = vmatprep.subr.bf16.mxu0 0
        %5155 = vmatpush1.bf16.msra.mxu0 0
        %5156 = vmatprep.subr.bf16.mxu0 0
        %5157 = vmatpush1.bf16.msra.mxu0 0
        %5158 = vmatprep.subr.bf16.mxu0 0
        %5159 = vmatpush1.bf16.msra.mxu0 %v5139
        %5160 = vmatprep.subr.bf16.mxu0 0
        %5161 = vmatpush1.bf16.msra.mxu0 %v5138
        %5162 = vmatprep.subr.bf16.mxu0 0
        %5163 = vmatpush1.bf16.msra.mxu0 %v5137
        %5164 = vmatprep.subr.bf16.mxu0 0
        %5165 = vmatpush1.bf16.msra.mxu0 %v5136
        %5166 = vmatprep.subr.bf16.mxu0 0
        %5167 = vmatpush2.bf16.msra.mxu0 0
        %5168 = vmatprep.subr.bf16.mxu0 0
        %5169 = vmatpush2.bf16.msra.mxu0 0
        %5170 = vmatprep.subr.bf16.mxu0 0
        %5171 = vmatpush2.bf16.msra.mxu0 0
        %5172 = vmatprep.subr.bf16.mxu0 0
        %5173 = vmatpush2.bf16.msra.mxu0 0
        %5174 = vmatprep.subr.bf16.mxu0 0
        %5175 = vmatpush2.bf16.msra.mxu0 0
        %5176 = vmatprep.subr.bf16.mxu0 0
        %5177 = vmatpush2.bf16.msra.mxu0 0
        %5178 = vmatprep.subr.bf16.mxu0 0
        %5179 = vmatpush2.bf16.msra.mxu0 0
        %5180 = vmatprep.subr.bf16.mxu0 0
        %5181 = vmatpush2.bf16.msra.mxu0 0
        %5182 = vmatprep.mubr.bf16.mxu0 0
        %5183 = vmatmul.mubr.bf16.gmra.mxu0 %v5145
        %v5184 = vpop.f32.mrf.mxu0
        %v5185 = vadd.f32 0.0, %v5184
        %v5186 = vpop.f32.mrf.mxu0
        %v5187 = vpop.f32.mrf.mxu0
        %v5188 = vadd.f32 0.0, %v5187
        %v5189 = vpop.f32.mrf.mxu0
        %5190 = vmatprep.mubr.bf16.mxu0 0
        %5191 = vmatmul.mubr.bf16.gmra.mxu0 %v5148
        %v5192 = vpop.f32.mrf.mxu0
        %v5193 = vadd.f32 0.0, %v5192
        %v5194 = vpop.f32.mrf.mxu0
        %v5195 = vpop.f32.mrf.mxu0
        %v5196 = vadd.f32 0.0, %v5195
        %v5197 = vpop.f32.mrf.mxu0
        %5198 = vdwg.mxu0
        %v5199 = vadd.f32 %v5035, %v5185
        %v5200 = vadd.f32 %v5036, %v5188
        %v5201 = vadd.f32 %v5037, %v5193
        %v5202 = vadd.f32 %v5038, %v5196
        %v5203 = vld [vmem:[%s8] sm:$0x1]
        %v5205 = vlaneseq
        %v5206 = vshrl.u32 %v5205, 7
        %v5207 = vsub.s32 0, %v5206
        %v5208 = vrot.slane %v5203, %v5207
        %v5210 = vadd.f32 %v5199, %v5208
        %v5211 = vadd.f32 %v5200, %v5208
        %v5212 = vadd.f32 %v5201, %v5208
        %v5213 = vadd.f32 %v5202, %v5208
        %v5214 = vmax.f32 %v5210, 0.0
        %v5215 = vmax.f32 %v5211, 0.0
        %v5216 = vmax.f32 %v5212, 0.0
        %v5217 = vmax.f32 %v5213, 0.0
        %v5218 = vpack.c.bf16 %v5214, %v5214
        %v5219 = vld [vmem:[%s9] sm:$0xff]
        %v5220 = vld [vmem:[%s9 + $0x8] sm:$0xff]
        %v5221 = vld [vmem:[%s9 + $0x10] sm:$0xff]
        %v5222 = vld [vmem:[%s9 + $0x18] sm:$0xff]
        %v5223 = vld [vmem:[%s9 + $0x20] sm:$0xff]
        %v5224 = vld [vmem:[%s9 + $0x28] sm:$0xff]
        %v5225 = vld [vmem:[%s9 + $0x30] sm:$0xff]
        %v5226 = vld [vmem:[%s9 + $0x38] sm:$0xff]
        %s5227 = scalar_lea.vmem %s9, 64
        %v5228 = vld [vmem:[%s5227] sm:$0xff]
        %v5229 = vld [vmem:[%s5227 + $0x8] sm:$0xff]
        %v5230 = vld [vmem:[%s5227 + $0x10] sm:$0xff]
        %v5231 = vld [vmem:[%s5227 + $0x18] sm:$0xff]
        %v5232 = vld [vmem:[%s5227 + $0x20] sm:$0xff]
        %v5233 = vld [vmem:[%s5227 + $0x28] sm:$0xff]
        %v5234 = vld [vmem:[%s5227 + $0x30] sm:$0xff]
        %v5235 = vld [vmem:[%s5227 + $0x38] sm:$0xff]
        %v5237 = vshrl.u32 %v5218, 16
        %v5247 = vunpack.c.l.b16 %v5228
        %v5248 = vunpack.c.h.b16 %v5228
        %v5249 = vunpack.c.l.b16 %v5229
        %v5250 = vunpack.c.h.b16 %v5229
        %v5251 = vunpack.c.l.b16 %v5230
        %v5252 = vunpack.c.h.b16 %v5230
        %v5253 = vunpack.c.l.b16 %v5231
        %v5254 = vunpack.c.h.b16 %v5231
        %v5255 = vunpack.c.l.b16 %v5232
        %v5256 = vunpack.c.h.b16 %v5232
        %v5257 = vunpack.c.l.b16 %v5233
        %v5258 = vunpack.c.h.b16 %v5233
        %v5259 = vunpack.c.l.b16 %v5234
        %v5260 = vunpack.c.h.b16 %v5234
        %v5261 = vunpack.c.l.b16 %v5235
        %v5262 = vunpack.c.h.b16 %v5235
        %v5263 = vpack.c.b16 %v5249, %v5247
        %v5264 = vpack.c.b16 %v5250, %v5248
        %v5265 = vpack.c.b16 %v5253, %v5251
        %v5266 = vpack.c.b16 %v5254, %v5252
        %v5267 = vpack.c.b16 %v5257, %v5255
        %v5268 = vpack.c.b16 %v5258, %v5256
        %v5269 = vpack.c.b16 %v5261, %v5259
        %v5270 = vpack.c.b16 %v5262, %v5260
        %v5280 = vsel %vm3920, %v5237, 0
        %5282 = vmatprep.subr.bf16.mxu0 0
        %5283 = vmatpush1.bf16.msra.mxu0 0
        %5284 = vmatprep.subr.bf16.mxu0 0
        %5285 = vmatpush1.bf16.msra.mxu0 0
        %5286 = vmatprep.subr.bf16.mxu0 0
        %5287 = vmatpush1.bf16.msra.mxu0 0
        %5288 = vmatprep.subr.bf16.mxu0 0
        %5289 = vmatpush1.bf16.msra.mxu0 0
        %5290 = vmatprep.subr.bf16.mxu0 %v5270
        %5291 = vmatpush1.bf16.msra.mxu0 %v5269
        %5292 = vmatprep.subr.bf16.mxu0 %v5268
        %5293 = vmatpush1.bf16.msra.mxu0 %v5267
        %5294 = vmatprep.subr.bf16.mxu0 %v5266
        %5295 = vmatpush1.bf16.msra.mxu0 %v5265
        %5296 = vmatprep.subr.bf16.mxu0 %v5264
        %5297 = vmatpush1.bf16.msra.mxu0 %v5263
        %5298 = vmatprep.subr.bf16.mxu0 0
        %5299 = vmatpush2.bf16.msra.mxu0 0
        %5300 = vmatprep.subr.bf16.mxu0 0
        %5301 = vmatpush2.bf16.msra.mxu0 0
        %5302 = vmatprep.subr.bf16.mxu0 0
        %5303 = vmatpush2.bf16.msra.mxu0 0
        %5304 = vmatprep.subr.bf16.mxu0 0
        %5305 = vmatpush2.bf16.msra.mxu0 0
        %5306 = vmatprep.subr.bf16.mxu0 0
        %5307 = vmatpush2.bf16.msra.mxu0 0
        %5308 = vmatprep.subr.bf16.mxu0 0
        %5309 = vmatpush2.bf16.msra.mxu0 0
        %5310 = vmatprep.subr.bf16.mxu0 0
        %5311 = vmatpush2.bf16.msra.mxu0 0
        %5312 = vmatprep.subr.bf16.mxu0 0
        %5313 = vmatpush2.bf16.msra.mxu0 0
        %5314 = vmatprep.mubr.bf16.mxu0 0
        %5315 = vmatmul.mubr.bf16.gmra.mxu0 %v5280
        %v5316 = vpop.f32.mrf.mxu0
        %v5317 = vadd.f32 0.0, %v5316
        %v5318 = vpop.f32.mrf.mxu0
        %v5319 = vadd.f32 0.0, %v5318
        %v5320 = vpop.f32.mrf.mxu0
        %v5321 = vpop.f32.mrf.mxu0
        %5322 = vdwg.mxu0
        %v5331 = vunpack.c.l.b16 %v5219
        %v5332 = vunpack.c.h.b16 %v5219
        %v5333 = vunpack.c.l.b16 %v5220
        %v5334 = vunpack.c.h.b16 %v5220
        %v5335 = vunpack.c.l.b16 %v5221
        %v5336 = vunpack.c.h.b16 %v5221
        %v5337 = vunpack.c.l.b16 %v5222
        %v5338 = vunpack.c.h.b16 %v5222
        %v5339 = vunpack.c.l.b16 %v5223
        %v5340 = vunpack.c.h.b16 %v5223
        %v5341 = vunpack.c.l.b16 %v5224
        %v5342 = vunpack.c.h.b16 %v5224
        %v5343 = vunpack.c.l.b16 %v5225
        %v5344 = vunpack.c.h.b16 %v5225
        %v5345 = vunpack.c.l.b16 %v5226
        %v5346 = vunpack.c.h.b16 %v5226
        %v5347 = vpack.c.b16 %v5333, %v5331
        %v5348 = vpack.c.b16 %v5334, %v5332
        %v5349 = vpack.c.b16 %v5337, %v5335
        %v5350 = vpack.c.b16 %v5338, %v5336
        %v5351 = vpack.c.b16 %v5341, %v5339
        %v5352 = vpack.c.b16 %v5342, %v5340
        %v5353 = vpack.c.b16 %v5345, %v5343
        %v5354 = vpack.c.b16 %v5346, %v5344
        %v5363 = vsel %vm3920, %v5218, 0
        %5365 = vmatprep.subr.bf16.mxu0 0
        %5366 = vmatpush1.bf16.msra.mxu0 0
        %5367 = vmatprep.subr.bf16.mxu0 0
        %5368 = vmatpush1.bf16.msra.mxu0 0
        %5369 = vmatprep.subr.bf16.mxu0 0
        %5370 = vmatpush1.bf16.msra.mxu0 0
        %5371 = vmatprep.subr.bf16.mxu0 0
        %5372 = vmatpush1.bf16.msra.mxu0 0
        %5373 = vmatprep.subr.bf16.mxu0 %v5354
        %5374 = vmatpush1.bf16.msra.mxu0 %v5353
        %5375 = vmatprep.subr.bf16.mxu0 %v5352
        %5376 = vmatpush1.bf16.msra.mxu0 %v5351
        %5377 = vmatprep.subr.bf16.mxu0 %v5350
        %5378 = vmatpush1.bf16.msra.mxu0 %v5349
        %5379 = vmatprep.subr.bf16.mxu0 %v5348
        %5380 = vmatpush1.bf16.msra.mxu0 %v5347
        %5381 = vmatprep.subr.bf16.mxu0 0
        %5382 = vmatpush2.bf16.msra.mxu0 0
        %5383 = vmatprep.subr.bf16.mxu0 0
        %5384 = vmatpush2.bf16.msra.mxu0 0
        %5385 = vmatprep.subr.bf16.mxu0 0
        %5386 = vmatpush2.bf16.msra.mxu0 0
        %5387 = vmatprep.subr.bf16.mxu0 0
        %5388 = vmatpush2.bf16.msra.mxu0 0
        %5389 = vmatprep.subr.bf16.mxu0 0
        %5390 = vmatpush2.bf16.msra.mxu0 0
        %5391 = vmatprep.subr.bf16.mxu0 0
        %5392 = vmatpush2.bf16.msra.mxu0 0
        %5393 = vmatprep.subr.bf16.mxu0 0
        %5394 = vmatpush2.bf16.msra.mxu0 0
        %5395 = vmatprep.subr.bf16.mxu0 0
        %5396 = vmatpush2.bf16.msra.mxu0 0
        %5397 = vmatprep.mubr.bf16.mxu0 0
        %5398 = vmatmul.mubr.bf16.gmra.mxu0 %v5363
        %v5399 = vpop.f32.mrf.mxu0
        %v5400 = vadd.f32 %v5317, %v5399
        %v5401 = vpop.f32.mrf.mxu0
        %v5402 = vadd.f32 %v5319, %v5401
        %v5403 = vpop.f32.mrf.mxu0
        %v5404 = vpop.f32.mrf.mxu0
        %5405 = vdwg.mxu0
        %s5406 = scalar_lea.vmem %s9, 128
        %v5407 = vld [vmem:[%s5406] sm:$0xff]
        %v5408 = vld [vmem:[%s5406 + $0x8] sm:$0xff]
        %v5409 = vld [vmem:[%s5406 + $0x10] sm:$0xff]
        %v5410 = vld [vmem:[%s5406 + $0x18] sm:$0xff]
        %v5411 = vld [vmem:[%s5406 + $0x20] sm:$0xff]
        %v5412 = vld [vmem:[%s5406 + $0x28] sm:$0xff]
        %v5413 = vld [vmem:[%s5406 + $0x30] sm:$0xff]
        %v5414 = vld [vmem:[%s5406 + $0x38] sm:$0xff]
        %v5416 = vrot.slane %v5218, 1
        %v5425 = vunpack.c.l.b16 %v5407
        %v5426 = vunpack.c.h.b16 %v5407
        %v5427 = vunpack.c.l.b16 %v5408
        %v5428 = vunpack.c.h.b16 %v5408
        %v5429 = vunpack.c.l.b16 %v5409
        %v5430 = vunpack.c.h.b16 %v5409
        %v5431 = vunpack.c.l.b16 %v5410
        %v5432 = vunpack.c.h.b16 %v5410
        %v5433 = vunpack.c.l.b16 %v5411
        %v5434 = vunpack.c.h.b16 %v5411
        %v5435 = vunpack.c.l.b16 %v5412
        %v5436 = vunpack.c.h.b16 %v5412
        %v5437 = vunpack.c.l.b16 %v5413
        %v5438 = vunpack.c.h.b16 %v5413
        %v5439 = vunpack.c.l.b16 %v5414
        %v5440 = vunpack.c.h.b16 %v5414
        %v5441 = vpack.c.b16 %v5427, %v5425
        %v5442 = vpack.c.b16 %v5428, %v5426
        %v5443 = vpack.c.b16 %v5431, %v5429
        %v5444 = vpack.c.b16 %v5432, %v5430
        %v5445 = vpack.c.b16 %v5435, %v5433
        %v5446 = vpack.c.b16 %v5436, %v5434
        %v5447 = vpack.c.b16 %v5439, %v5437
        %v5448 = vpack.c.b16 %v5440, %v5438
        %v5458 = vsel %vm3920, %v5416, 0
        %5460 = vmatprep.subr.bf16.mxu0 0
        %5461 = vmatpush1.bf16.msra.mxu0 0
        %5462 = vmatprep.subr.bf16.mxu0 0
        %5463 = vmatpush1.bf16.msra.mxu0 0
        %5464 = vmatprep.subr.bf16.mxu0 0
        %5465 = vmatpush1.bf16.msra.mxu0 0
        %5466 = vmatprep.subr.bf16.mxu0 0
        %5467 = vmatpush1.bf16.msra.mxu0 0
        %5468 = vmatprep.subr.bf16.mxu0 %v5448
        %5469 = vmatpush1.bf16.msra.mxu0 %v5447
        %5470 = vmatprep.subr.bf16.mxu0 %v5446
        %5471 = vmatpush1.bf16.msra.mxu0 %v5445
        %5472 = vmatprep.subr.bf16.mxu0 %v5444
        %5473 = vmatpush1.bf16.msra.mxu0 %v5443
        %5474 = vmatprep.subr.bf16.mxu0 %v5442
        %5475 = vmatpush1.bf16.msra.mxu0 %v5441
        %5476 = vmatprep.subr.bf16.mxu0 0
        %5477 = vmatpush2.bf16.msra.mxu0 0
        %5478 = vmatprep.subr.bf16.mxu0 0
        %5479 = vmatpush2.bf16.msra.mxu0 0
        %5480 = vmatprep.subr.bf16.mxu0 0
        %5481 = vmatpush2.bf16.msra.mxu0 0
        %5482 = vmatprep.subr.bf16.mxu0 0
        %5483 = vmatpush2.bf16.msra.mxu0 0
        %5484 = vmatprep.subr.bf16.mxu0 0
        %5485 = vmatpush2.bf16.msra.mxu0 0
        %5486 = vmatprep.subr.bf16.mxu0 0
        %5487 = vmatpush2.bf16.msra.mxu0 0
        %5488 = vmatprep.subr.bf16.mxu0 0
        %5489 = vmatpush2.bf16.msra.mxu0 0
        %5490 = vmatprep.subr.bf16.mxu0 0
        %5491 = vmatpush2.bf16.msra.mxu0 0
        %5492 = vmatprep.mubr.bf16.mxu0 0
        %5493 = vmatmul.mubr.bf16.gmra.mxu0 %v5458
        %v5494 = vpop.f32.mrf.mxu0
        %v5495 = vadd.f32 0.0, %v5494
        %v5496 = vpop.f32.mrf.mxu0
        %v5497 = vadd.f32 0.0, %v5496
        %v5498 = vpop.f32.mrf.mxu0
        %v5499 = vpop.f32.mrf.mxu0
        %5500 = vdwg.mxu0
        %v5501 = vadd.f32 %v5400, %v5495
        %v5502 = vadd.f32 %v5402, %v5497
        %s5503 = scalar_lea.vmem %s9, 192
        %v5504 = vld [vmem:[%s5503] sm:$0xff]
        %v5505 = vld [vmem:[%s5503 + $0x8] sm:$0xff]
        %v5506 = vld [vmem:[%s5503 + $0x10] sm:$0xff]
        %v5507 = vld [vmem:[%s5503 + $0x18] sm:$0xff]
        %v5508 = vld [vmem:[%s5503 + $0x20] sm:$0xff]
        %v5509 = vld [vmem:[%s5503 + $0x28] sm:$0xff]
        %v5510 = vld [vmem:[%s5503 + $0x30] sm:$0xff]
        %v5511 = vld [vmem:[%s5503 + $0x38] sm:$0xff]
        %v5512 = vrot.slane %v5237, 1
        %v5521 = vunpack.c.l.b16 %v5504
        %v5522 = vunpack.c.h.b16 %v5504
        %v5523 = vunpack.c.l.b16 %v5505
        %v5524 = vunpack.c.h.b16 %v5505
        %v5525 = vunpack.c.l.b16 %v5506
        %v5526 = vunpack.c.h.b16 %v5506
        %v5527 = vunpack.c.l.b16 %v5507
        %v5528 = vunpack.c.h.b16 %v5507
        %v5529 = vunpack.c.l.b16 %v5508
        %v5530 = vunpack.c.h.b16 %v5508
        %v5531 = vunpack.c.l.b16 %v5509
        %v5532 = vunpack.c.h.b16 %v5509
        %v5533 = vunpack.c.l.b16 %v5510
        %v5534 = vunpack.c.h.b16 %v5510
        %v5535 = vunpack.c.l.b16 %v5511
        %v5536 = vunpack.c.h.b16 %v5511
        %v5537 = vpack.c.b16 %v5523, %v5521
        %v5538 = vpack.c.b16 %v5524, %v5522
        %v5539 = vpack.c.b16 %v5527, %v5525
        %v5540 = vpack.c.b16 %v5528, %v5526
        %v5541 = vpack.c.b16 %v5531, %v5529
        %v5542 = vpack.c.b16 %v5532, %v5530
        %v5543 = vpack.c.b16 %v5535, %v5533
        %v5544 = vpack.c.b16 %v5536, %v5534
        %v5554 = vsel %vm3920, %v5512, 0
        %5556 = vmatprep.subr.bf16.mxu0 0
        %5557 = vmatpush1.bf16.msra.mxu0 0
        %5558 = vmatprep.subr.bf16.mxu0 0
        %5559 = vmatpush1.bf16.msra.mxu0 0
        %5560 = vmatprep.subr.bf16.mxu0 0
        %5561 = vmatpush1.bf16.msra.mxu0 0
        %5562 = vmatprep.subr.bf16.mxu0 0
        %5563 = vmatpush1.bf16.msra.mxu0 0
        %5564 = vmatprep.subr.bf16.mxu0 %v5544
        %5565 = vmatpush1.bf16.msra.mxu0 %v5543
        %5566 = vmatprep.subr.bf16.mxu0 %v5542
        %5567 = vmatpush1.bf16.msra.mxu0 %v5541
        %5568 = vmatprep.subr.bf16.mxu0 %v5540
        %5569 = vmatpush1.bf16.msra.mxu0 %v5539
        %5570 = vmatprep.subr.bf16.mxu0 %v5538
        %5571 = vmatpush1.bf16.msra.mxu0 %v5537
        %5572 = vmatprep.subr.bf16.mxu0 0
        %5573 = vmatpush2.bf16.msra.mxu0 0
        %5574 = vmatprep.subr.bf16.mxu0 0
        %5575 = vmatpush2.bf16.msra.mxu0 0
        %5576 = vmatprep.subr.bf16.mxu0 0
        %5577 = vmatpush2.bf16.msra.mxu0 0
        %5578 = vmatprep.subr.bf16.mxu0 0
        %5579 = vmatpush2.bf16.msra.mxu0 0
        %5580 = vmatprep.subr.bf16.mxu0 0
        %5581 = vmatpush2.bf16.msra.mxu0 0
        %5582 = vmatprep.subr.bf16.mxu0 0
        %5583 = vmatpush2.bf16.msra.mxu0 0
        %5584 = vmatprep.subr.bf16.mxu0 0
        %5585 = vmatpush2.bf16.msra.mxu0 0
        %5586 = vmatprep.subr.bf16.mxu0 0
        %5587 = vmatpush2.bf16.msra.mxu0 0
        %5588 = vmatprep.mubr.bf16.mxu0 0
        %5589 = vmatmul.mubr.bf16.gmra.mxu0 %v5554
        %v5590 = vpop.f32.mrf.mxu0
        %v5591 = vadd.f32 0.0, %v5590
        %v5592 = vpop.f32.mrf.mxu0
        %v5593 = vadd.f32 0.0, %v5592
        %v5594 = vpop.f32.mrf.mxu0
        %v5595 = vpop.f32.mrf.mxu0
        %5596 = vdwg.mxu0
        %v5597 = vadd.f32 %v5501, %v5591
        %v5598 = vadd.f32 %v5502, %v5593
        %s5599 = scalar_lea.vmem %s9, 256
        %v5600 = vld [vmem:[%s5599] sm:$0xff]
        %v5601 = vld [vmem:[%s5599 + $0x8] sm:$0xff]
        %v5602 = vld [vmem:[%s5599 + $0x10] sm:$0xff]
        %v5603 = vld [vmem:[%s5599 + $0x18] sm:$0xff]
        %v5604 = vld [vmem:[%s5599 + $0x20] sm:$0xff]
        %v5605 = vld [vmem:[%s5599 + $0x28] sm:$0xff]
        %v5606 = vld [vmem:[%s5599 + $0x30] sm:$0xff]
        %v5607 = vld [vmem:[%s5599 + $0x38] sm:$0xff]
        %v5608 = vrot.slane %v5218, 2
        %v5617 = vunpack.c.l.b16 %v5600
        %v5618 = vunpack.c.h.b16 %v5600
        %v5619 = vunpack.c.l.b16 %v5601
        %v5620 = vunpack.c.h.b16 %v5601
        %v5621 = vunpack.c.l.b16 %v5602
        %v5622 = vunpack.c.h.b16 %v5602
        %v5623 = vunpack.c.l.b16 %v5603
        %v5624 = vunpack.c.h.b16 %v5603
        %v5625 = vunpack.c.l.b16 %v5604
        %v5626 = vunpack.c.h.b16 %v5604
        %v5627 = vunpack.c.l.b16 %v5605
        %v5628 = vunpack.c.h.b16 %v5605
        %v5629 = vunpack.c.l.b16 %v5606
        %v5630 = vunpack.c.h.b16 %v5606
        %v5631 = vunpack.c.l.b16 %v5607
        %v5632 = vunpack.c.h.b16 %v5607
        %v5633 = vpack.c.b16 %v5619, %v5617
        %v5634 = vpack.c.b16 %v5620, %v5618
        %v5635 = vpack.c.b16 %v5623, %v5621
        %v5636 = vpack.c.b16 %v5624, %v5622
        %v5637 = vpack.c.b16 %v5627, %v5625
        %v5638 = vpack.c.b16 %v5628, %v5626
        %v5639 = vpack.c.b16 %v5631, %v5629
        %v5640 = vpack.c.b16 %v5632, %v5630
        %v5650 = vsel %vm3920, %v5608, 0
        %5652 = vmatprep.subr.bf16.mxu0 0
        %5653 = vmatpush1.bf16.msra.mxu0 0
        %5654 = vmatprep.subr.bf16.mxu0 0
        %5655 = vmatpush1.bf16.msra.mxu0 0
        %5656 = vmatprep.subr.bf16.mxu0 0
        %5657 = vmatpush1.bf16.msra.mxu0 0
        %5658 = vmatprep.subr.bf16.mxu0 0
        %5659 = vmatpush1.bf16.msra.mxu0 0
        %5660 = vmatprep.subr.bf16.mxu0 %v5640
        %5661 = vmatpush1.bf16.msra.mxu0 %v5639
        %5662 = vmatprep.subr.bf16.mxu0 %v5638
        %5663 = vmatpush1.bf16.msra.mxu0 %v5637
        %5664 = vmatprep.subr.bf16.mxu0 %v5636
        %5665 = vmatpush1.bf16.msra.mxu0 %v5635
        %5666 = vmatprep.subr.bf16.mxu0 %v5634
        %5667 = vmatpush1.bf16.msra.mxu0 %v5633
        %5668 = vmatprep.subr.bf16.mxu0 0
        %5669 = vmatpush2.bf16.msra.mxu0 0
        %5670 = vmatprep.subr.bf16.mxu0 0
        %5671 = vmatpush2.bf16.msra.mxu0 0
        %5672 = vmatprep.subr.bf16.mxu0 0
        %5673 = vmatpush2.bf16.msra.mxu0 0
        %5674 = vmatprep.subr.bf16.mxu0 0
        %5675 = vmatpush2.bf16.msra.mxu0 0
        %5676 = vmatprep.subr.bf16.mxu0 0
        %5677 = vmatpush2.bf16.msra.mxu0 0
        %5678 = vmatprep.subr.bf16.mxu0 0
        %5679 = vmatpush2.bf16.msra.mxu0 0
        %5680 = vmatprep.subr.bf16.mxu0 0
        %5681 = vmatpush2.bf16.msra.mxu0 0
        %5682 = vmatprep.subr.bf16.mxu0 0
        %5683 = vmatpush2.bf16.msra.mxu0 0
        %5684 = vmatprep.mubr.bf16.mxu0 0
        %5685 = vmatmul.mubr.bf16.gmra.mxu0 %v5650
        %v5686 = vpop.f32.mrf.mxu0
        %v5687 = vadd.f32 0.0, %v5686
        %v5688 = vpop.f32.mrf.mxu0
        %v5689 = vadd.f32 0.0, %v5688
        %v5690 = vpop.f32.mrf.mxu0
        %v5691 = vpop.f32.mrf.mxu0
        %5692 = vdwg.mxu0
        %v5693 = vadd.f32 %v5597, %v5687
        %v5694 = vadd.f32 %v5598, %v5689
        %s5695 = scalar_lea.vmem %s9, 320
        %v5696 = vld [vmem:[%s5695] sm:$0xff]
        %v5697 = vld [vmem:[%s5695 + $0x8] sm:$0xff]
        %v5698 = vld [vmem:[%s5695 + $0x10] sm:$0xff]
        %v5699 = vld [vmem:[%s5695 + $0x18] sm:$0xff]
        %v5700 = vld [vmem:[%s5695 + $0x20] sm:$0xff]
        %v5701 = vld [vmem:[%s5695 + $0x28] sm:$0xff]
        %v5702 = vld [vmem:[%s5695 + $0x30] sm:$0xff]
        %v5703 = vld [vmem:[%s5695 + $0x38] sm:$0xff]
        %v5704 = vrot.slane %v5237, 2
        %v5713 = vunpack.c.l.b16 %v5696
        %v5714 = vunpack.c.h.b16 %v5696
        %v5715 = vunpack.c.l.b16 %v5697
        %v5716 = vunpack.c.h.b16 %v5697
        %v5717 = vunpack.c.l.b16 %v5698
        %v5718 = vunpack.c.h.b16 %v5698
        %v5719 = vunpack.c.l.b16 %v5699
        %v5720 = vunpack.c.h.b16 %v5699
        %v5721 = vunpack.c.l.b16 %v5700
        %v5722 = vunpack.c.h.b16 %v5700
        %v5723 = vunpack.c.l.b16 %v5701
        %v5724 = vunpack.c.h.b16 %v5701
        %v5725 = vunpack.c.l.b16 %v5702
        %v5726 = vunpack.c.h.b16 %v5702
        %v5727 = vunpack.c.l.b16 %v5703
        %v5728 = vunpack.c.h.b16 %v5703
        %v5729 = vpack.c.b16 %v5715, %v5713
        %v5730 = vpack.c.b16 %v5716, %v5714
        %v5731 = vpack.c.b16 %v5719, %v5717
        %v5732 = vpack.c.b16 %v5720, %v5718
        %v5733 = vpack.c.b16 %v5723, %v5721
        %v5734 = vpack.c.b16 %v5724, %v5722
        %v5735 = vpack.c.b16 %v5727, %v5725
        %v5736 = vpack.c.b16 %v5728, %v5726
        %v5746 = vsel %vm3920, %v5704, 0
        %5748 = vmatprep.subr.bf16.mxu0 0
        %5749 = vmatpush1.bf16.msra.mxu0 0
        %5750 = vmatprep.subr.bf16.mxu0 0
        %5751 = vmatpush1.bf16.msra.mxu0 0
        %5752 = vmatprep.subr.bf16.mxu0 0
        %5753 = vmatpush1.bf16.msra.mxu0 0
        %5754 = vmatprep.subr.bf16.mxu0 0
        %5755 = vmatpush1.bf16.msra.mxu0 0
        %5756 = vmatprep.subr.bf16.mxu0 %v5736
        %5757 = vmatpush1.bf16.msra.mxu0 %v5735
        %5758 = vmatprep.subr.bf16.mxu0 %v5734
        %5759 = vmatpush1.bf16.msra.mxu0 %v5733
        %5760 = vmatprep.subr.bf16.mxu0 %v5732
        %5761 = vmatpush1.bf16.msra.mxu0 %v5731
        %5762 = vmatprep.subr.bf16.mxu0 %v5730
        %5763 = vmatpush1.bf16.msra.mxu0 %v5729
        %5764 = vmatprep.subr.bf16.mxu0 0
        %5765 = vmatpush2.bf16.msra.mxu0 0
        %5766 = vmatprep.subr.bf16.mxu0 0
        %5767 = vmatpush2.bf16.msra.mxu0 0
        %5768 = vmatprep.subr.bf16.mxu0 0
        %5769 = vmatpush2.bf16.msra.mxu0 0
        %5770 = vmatprep.subr.bf16.mxu0 0
        %5771 = vmatpush2.bf16.msra.mxu0 0
        %5772 = vmatprep.subr.bf16.mxu0 0
        %5773 = vmatpush2.bf16.msra.mxu0 0
        %5774 = vmatprep.subr.bf16.mxu0 0
        %5775 = vmatpush2.bf16.msra.mxu0 0
        %5776 = vmatprep.subr.bf16.mxu0 0
        %5777 = vmatpush2.bf16.msra.mxu0 0
        %5778 = vmatprep.subr.bf16.mxu0 0
        %5779 = vmatpush2.bf16.msra.mxu0 0
        %5780 = vmatprep.mubr.bf16.mxu0 0
        %5781 = vmatmul.mubr.bf16.gmra.mxu0 %v5746
        %v5782 = vpop.f32.mrf.mxu0
        %v5783 = vadd.f32 0.0, %v5782
        %v5784 = vpop.f32.mrf.mxu0
        %v5785 = vadd.f32 0.0, %v5784
        %v5786 = vpop.f32.mrf.mxu0
        %v5787 = vpop.f32.mrf.mxu0
        %5788 = vdwg.mxu0
        %v5789 = vadd.f32 %v5693, %v5783
        %v5790 = vadd.f32 %v5694, %v5785
        %s5791 = scalar_lea.vmem %s9, 384
        %v5792 = vld [vmem:[%s5791] sm:$0xff]
        %v5793 = vld [vmem:[%s5791 + $0x8] sm:$0xff]
        %v5794 = vld [vmem:[%s5791 + $0x10] sm:$0xff]
        %v5795 = vld [vmem:[%s5791 + $0x18] sm:$0xff]
        %v5796 = vld [vmem:[%s5791 + $0x20] sm:$0xff]
        %v5797 = vld [vmem:[%s5791 + $0x28] sm:$0xff]
        %v5798 = vld [vmem:[%s5791 + $0x30] sm:$0xff]
        %v5799 = vld [vmem:[%s5791 + $0x38] sm:$0xff]
        %v5800 = vrot.slane %v5218, 3
        %v5809 = vunpack.c.l.b16 %v5792
        %v5810 = vunpack.c.h.b16 %v5792
        %v5811 = vunpack.c.l.b16 %v5793
        %v5812 = vunpack.c.h.b16 %v5793
        %v5813 = vunpack.c.l.b16 %v5794
        %v5814 = vunpack.c.h.b16 %v5794
        %v5815 = vunpack.c.l.b16 %v5795
        %v5816 = vunpack.c.h.b16 %v5795
        %v5817 = vunpack.c.l.b16 %v5796
        %v5818 = vunpack.c.h.b16 %v5796
        %v5819 = vunpack.c.l.b16 %v5797
        %v5820 = vunpack.c.h.b16 %v5797
        %v5821 = vunpack.c.l.b16 %v5798
        %v5822 = vunpack.c.h.b16 %v5798
        %v5823 = vunpack.c.l.b16 %v5799
        %v5824 = vunpack.c.h.b16 %v5799
        %v5825 = vpack.c.b16 %v5811, %v5809
        %v5826 = vpack.c.b16 %v5812, %v5810
        %v5827 = vpack.c.b16 %v5815, %v5813
        %v5828 = vpack.c.b16 %v5816, %v5814
        %v5829 = vpack.c.b16 %v5819, %v5817
        %v5830 = vpack.c.b16 %v5820, %v5818
        %v5831 = vpack.c.b16 %v5823, %v5821
        %v5832 = vpack.c.b16 %v5824, %v5822
        %v5842 = vsel %vm3920, %v5800, 0
        %5844 = vmatprep.subr.bf16.mxu0 0
        %5845 = vmatpush1.bf16.msra.mxu0 0
        %5846 = vmatprep.subr.bf16.mxu0 0
        %5847 = vmatpush1.bf16.msra.mxu0 0
        %5848 = vmatprep.subr.bf16.mxu0 0
        %5849 = vmatpush1.bf16.msra.mxu0 0
        %5850 = vmatprep.subr.bf16.mxu0 0
        %5851 = vmatpush1.bf16.msra.mxu0 0
        %5852 = vmatprep.subr.bf16.mxu0 %v5832
        %5853 = vmatpush1.bf16.msra.mxu0 %v5831
        %5854 = vmatprep.subr.bf16.mxu0 %v5830
        %5855 = vmatpush1.bf16.msra.mxu0 %v5829
        %5856 = vmatprep.subr.bf16.mxu0 %v5828
        %5857 = vmatpush1.bf16.msra.mxu0 %v5827
        %5858 = vmatprep.subr.bf16.mxu0 %v5826
        %5859 = vmatpush1.bf16.msra.mxu0 %v5825
        %5860 = vmatprep.subr.bf16.mxu0 0
        %5861 = vmatpush2.bf16.msra.mxu0 0
        %5862 = vmatprep.subr.bf16.mxu0 0
        %5863 = vmatpush2.bf16.msra.mxu0 0
        %5864 = vmatprep.subr.bf16.mxu0 0
        %5865 = vmatpush2.bf16.msra.mxu0 0
        %5866 = vmatprep.subr.bf16.mxu0 0
        %5867 = vmatpush2.bf16.msra.mxu0 0
        %5868 = vmatprep.subr.bf16.mxu0 0
        %5869 = vmatpush2.bf16.msra.mxu0 0
        %5870 = vmatprep.subr.bf16.mxu0 0
        %5871 = vmatpush2.bf16.msra.mxu0 0
        %5872 = vmatprep.subr.bf16.mxu0 0
        %5873 = vmatpush2.bf16.msra.mxu0 0
        %5874 = vmatprep.subr.bf16.mxu0 0
        %5875 = vmatpush2.bf16.msra.mxu0 0
        %5876 = vmatprep.mubr.bf16.mxu0 0
        %5877 = vmatmul.mubr.bf16.gmra.mxu0 %v5842
        %v5878 = vpop.f32.mrf.mxu0
        %v5879 = vadd.f32 0.0, %v5878
        %v5880 = vpop.f32.mrf.mxu0
        %v5881 = vadd.f32 0.0, %v5880
        %v5882 = vpop.f32.mrf.mxu0
        %v5883 = vpop.f32.mrf.mxu0
        %5884 = vdwg.mxu0
        %v5885 = vadd.f32 %v5789, %v5879
        %v5886 = vadd.f32 %v5790, %v5881
        %s5887 = scalar_lea.vmem %s9, 448
        %v5888 = vld [vmem:[%s5887] sm:$0xff]
        %v5889 = vld [vmem:[%s5887 + $0x8] sm:$0xff]
        %v5890 = vld [vmem:[%s5887 + $0x10] sm:$0xff]
        %v5891 = vld [vmem:[%s5887 + $0x18] sm:$0xff]
        %v5892 = vld [vmem:[%s5887 + $0x20] sm:$0xff]
        %v5893 = vld [vmem:[%s5887 + $0x28] sm:$0xff]
        %v5894 = vld [vmem:[%s5887 + $0x30] sm:$0xff]
        %v5895 = vld [vmem:[%s5887 + $0x38] sm:$0xff]
        %v5896 = vrot.slane %v5237, 3
        %v5905 = vunpack.c.l.b16 %v5888
        %v5906 = vunpack.c.h.b16 %v5888
        %v5907 = vunpack.c.l.b16 %v5889
        %v5908 = vunpack.c.h.b16 %v5889
        %v5909 = vunpack.c.l.b16 %v5890
        %v5910 = vunpack.c.h.b16 %v5890
        %v5911 = vunpack.c.l.b16 %v5891
        %v5912 = vunpack.c.h.b16 %v5891
        %v5913 = vunpack.c.l.b16 %v5892
        %v5914 = vunpack.c.h.b16 %v5892
        %v5915 = vunpack.c.l.b16 %v5893
        %v5916 = vunpack.c.h.b16 %v5893
        %v5917 = vunpack.c.l.b16 %v5894
        %v5918 = vunpack.c.h.b16 %v5894
        %v5919 = vunpack.c.l.b16 %v5895
        %v5920 = vunpack.c.h.b16 %v5895
        %v5921 = vpack.c.b16 %v5907, %v5905
        %v5922 = vpack.c.b16 %v5908, %v5906
        %v5923 = vpack.c.b16 %v5911, %v5909
        %v5924 = vpack.c.b16 %v5912, %v5910
        %v5925 = vpack.c.b16 %v5915, %v5913
        %v5926 = vpack.c.b16 %v5916, %v5914
        %v5927 = vpack.c.b16 %v5919, %v5917
        %v5928 = vpack.c.b16 %v5920, %v5918
        %v5938 = vsel %vm3920, %v5896, 0
        %5940 = vmatprep.subr.bf16.mxu0 0
        %5941 = vmatpush1.bf16.msra.mxu0 0
        %5942 = vmatprep.subr.bf16.mxu0 0
        %5943 = vmatpush1.bf16.msra.mxu0 0
        %5944 = vmatprep.subr.bf16.mxu0 0
        %5945 = vmatpush1.bf16.msra.mxu0 0
        %5946 = vmatprep.subr.bf16.mxu0 0
        %5947 = vmatpush1.bf16.msra.mxu0 0
        %5948 = vmatprep.subr.bf16.mxu0 %v5928
        %5949 = vmatpush1.bf16.msra.mxu0 %v5927
        %5950 = vmatprep.subr.bf16.mxu0 %v5926
        %5951 = vmatpush1.bf16.msra.mxu0 %v5925
        %5952 = vmatprep.subr.bf16.mxu0 %v5924
        %5953 = vmatpush1.bf16.msra.mxu0 %v5923
        %5954 = vmatprep.subr.bf16.mxu0 %v5922
        %5955 = vmatpush1.bf16.msra.mxu0 %v5921
        %5956 = vmatprep.subr.bf16.mxu0 0
        %5957 = vmatpush2.bf16.msra.mxu0 0
        %5958 = vmatprep.subr.bf16.mxu0 0
        %5959 = vmatpush2.bf16.msra.mxu0 0
        %5960 = vmatprep.subr.bf16.mxu0 0
        %5961 = vmatpush2.bf16.msra.mxu0 0
        %5962 = vmatprep.subr.bf16.mxu0 0
        %5963 = vmatpush2.bf16.msra.mxu0 0
        %5964 = vmatprep.subr.bf16.mxu0 0
        %5965 = vmatpush2.bf16.msra.mxu0 0
        %5966 = vmatprep.subr.bf16.mxu0 0
        %5967 = vmatpush2.bf16.msra.mxu0 0
        %5968 = vmatprep.subr.bf16.mxu0 0
        %5969 = vmatpush2.bf16.msra.mxu0 0
        %5970 = vmatprep.subr.bf16.mxu0 0
        %5971 = vmatpush2.bf16.msra.mxu0 0
        %5972 = vmatprep.mubr.bf16.mxu0 0
        %5973 = vmatmul.mubr.bf16.gmra.mxu0 %v5938
        %v5974 = vpop.f32.mrf.mxu0
        %v5975 = vadd.f32 0.0, %v5974
        %v5976 = vpop.f32.mrf.mxu0
        %v5977 = vadd.f32 0.0, %v5976
        %v5978 = vpop.f32.mrf.mxu0
        %v5979 = vpop.f32.mrf.mxu0
        %5980 = vdwg.mxu0
        %v5981 = vadd.f32 %v5885, %v5975
        %v5982 = vadd.f32 %v5886, %v5977
        %v5983 = vpack.c.bf16 %v5215, %v5215
        %s5984 = scalar_lea.vmem %s9, 512
        %v5985 = vld [vmem:[%s5984] sm:$0xff]
        %v5986 = vld [vmem:[%s5984 + $0x8] sm:$0xff]
        %v5987 = vld [vmem:[%s5984 + $0x10] sm:$0xff]
        %v5988 = vld [vmem:[%s5984 + $0x18] sm:$0xff]
        %v5989 = vld [vmem:[%s5984 + $0x20] sm:$0xff]
        %v5990 = vld [vmem:[%s5984 + $0x28] sm:$0xff]
        %v5991 = vld [vmem:[%s5984 + $0x30] sm:$0xff]
        %v5992 = vld [vmem:[%s5984 + $0x38] sm:$0xff]
        %v6001 = vunpack.c.l.b16 %v5985
        %v6002 = vunpack.c.h.b16 %v5985
        %v6003 = vunpack.c.l.b16 %v5986
        %v6004 = vunpack.c.h.b16 %v5986
        %v6005 = vunpack.c.l.b16 %v5987
        %v6006 = vunpack.c.h.b16 %v5987
        %v6007 = vunpack.c.l.b16 %v5988
        %v6008 = vunpack.c.h.b16 %v5988
        %v6009 = vunpack.c.l.b16 %v5989
        %v6010 = vunpack.c.h.b16 %v5989
        %v6011 = vunpack.c.l.b16 %v5990
        %v6012 = vunpack.c.h.b16 %v5990
        %v6013 = vunpack.c.l.b16 %v5991
        %v6014 = vunpack.c.h.b16 %v5991
        %v6015 = vunpack.c.l.b16 %v5992
        %v6016 = vunpack.c.h.b16 %v5992
        %v6017 = vpack.c.b16 %v6003, %v6001
        %v6018 = vpack.c.b16 %v6004, %v6002
        %v6019 = vpack.c.b16 %v6007, %v6005
        %v6020 = vpack.c.b16 %v6008, %v6006
        %v6021 = vpack.c.b16 %v6011, %v6009
        %v6022 = vpack.c.b16 %v6012, %v6010
        %v6023 = vpack.c.b16 %v6015, %v6013
        %v6024 = vpack.c.b16 %v6016, %v6014
        %v6034 = vsel %vm3920, %v5983, 0
        %6036 = vmatprep.subr.bf16.mxu0 0
        %6037 = vmatpush1.bf16.msra.mxu0 0
        %6038 = vmatprep.subr.bf16.mxu0 0
        %6039 = vmatpush1.bf16.msra.mxu0 0
        %6040 = vmatprep.subr.bf16.mxu0 0
        %6041 = vmatpush1.bf16.msra.mxu0 0
        %6042 = vmatprep.subr.bf16.mxu0 0
        %6043 = vmatpush1.bf16.msra.mxu0 0
        %6044 = vmatprep.subr.bf16.mxu0 %v6024
        %6045 = vmatpush1.bf16.msra.mxu0 %v6023
        %6046 = vmatprep.subr.bf16.mxu0 %v6022
        %6047 = vmatpush1.bf16.msra.mxu0 %v6021
        %6048 = vmatprep.subr.bf16.mxu0 %v6020
        %6049 = vmatpush1.bf16.msra.mxu0 %v6019
        %6050 = vmatprep.subr.bf16.mxu0 %v6018
        %6051 = vmatpush1.bf16.msra.mxu0 %v6017
        %6052 = vmatprep.subr.bf16.mxu0 0
        %6053 = vmatpush2.bf16.msra.mxu0 0
        %6054 = vmatprep.subr.bf16.mxu0 0
        %6055 = vmatpush2.bf16.msra.mxu0 0
        %6056 = vmatprep.subr.bf16.mxu0 0
        %6057 = vmatpush2.bf16.msra.mxu0 0
        %6058 = vmatprep.subr.bf16.mxu0 0
        %6059 = vmatpush2.bf16.msra.mxu0 0
        %6060 = vmatprep.subr.bf16.mxu0 0
        %6061 = vmatpush2.bf16.msra.mxu0 0
        %6062 = vmatprep.subr.bf16.mxu0 0
        %6063 = vmatpush2.bf16.msra.mxu0 0
        %6064 = vmatprep.subr.bf16.mxu0 0
        %6065 = vmatpush2.bf16.msra.mxu0 0
        %6066 = vmatprep.subr.bf16.mxu0 0
        %6067 = vmatpush2.bf16.msra.mxu0 0
        %6068 = vmatprep.mubr.bf16.mxu0 0
        %6069 = vmatmul.mubr.bf16.gmra.mxu0 %v6034
        %v6070 = vpop.f32.mrf.mxu0
        %v6071 = vadd.f32 0.0, %v6070
        %v6072 = vpop.f32.mrf.mxu0
        %v6073 = vadd.f32 0.0, %v6072
        %v6074 = vpop.f32.mrf.mxu0
        %v6075 = vpop.f32.mrf.mxu0
        %6076 = vdwg.mxu0
        %v6077 = vadd.f32 %v5981, %v6071
        %v6078 = vadd.f32 %v5982, %v6073
        %s6079 = scalar_lea.vmem %s9, 576
        %v6080 = vld [vmem:[%s6079] sm:$0xff]
        %v6081 = vld [vmem:[%s6079 + $0x8] sm:$0xff]
        %v6082 = vld [vmem:[%s6079 + $0x10] sm:$0xff]
        %v6083 = vld [vmem:[%s6079 + $0x18] sm:$0xff]
        %v6084 = vld [vmem:[%s6079 + $0x20] sm:$0xff]
        %v6085 = vld [vmem:[%s6079 + $0x28] sm:$0xff]
        %v6086 = vld [vmem:[%s6079 + $0x30] sm:$0xff]
        %v6087 = vld [vmem:[%s6079 + $0x38] sm:$0xff]
        %v6088 = vshrl.u32 %v5983, 16
        %v6098 = vunpack.c.l.b16 %v6080
        %v6099 = vunpack.c.h.b16 %v6080
        %v6100 = vunpack.c.l.b16 %v6081
        %v6101 = vunpack.c.h.b16 %v6081
        %v6102 = vunpack.c.l.b16 %v6082
        %v6103 = vunpack.c.h.b16 %v6082
        %v6104 = vunpack.c.l.b16 %v6083
        %v6105 = vunpack.c.h.b16 %v6083
        %v6106 = vunpack.c.l.b16 %v6084
        %v6107 = vunpack.c.h.b16 %v6084
        %v6108 = vunpack.c.l.b16 %v6085
        %v6109 = vunpack.c.h.b16 %v6085
        %v6110 = vunpack.c.l.b16 %v6086
        %v6111 = vunpack.c.h.b16 %v6086
        %v6112 = vunpack.c.l.b16 %v6087
        %v6113 = vunpack.c.h.b16 %v6087
        %v6114 = vpack.c.b16 %v6100, %v6098
        %v6115 = vpack.c.b16 %v6101, %v6099
        %v6116 = vpack.c.b16 %v6104, %v6102
        %v6117 = vpack.c.b16 %v6105, %v6103
        %v6118 = vpack.c.b16 %v6108, %v6106
        %v6119 = vpack.c.b16 %v6109, %v6107
        %v6120 = vpack.c.b16 %v6112, %v6110
        %v6121 = vpack.c.b16 %v6113, %v6111
        %v6131 = vsel %vm3920, %v6088, 0
        %6133 = vmatprep.subr.bf16.mxu0 0
        %6134 = vmatpush1.bf16.msra.mxu0 0
        %6135 = vmatprep.subr.bf16.mxu0 0
        %6136 = vmatpush1.bf16.msra.mxu0 0
        %6137 = vmatprep.subr.bf16.mxu0 0
        %6138 = vmatpush1.bf16.msra.mxu0 0
        %6139 = vmatprep.subr.bf16.mxu0 0
        %6140 = vmatpush1.bf16.msra.mxu0 0
        %6141 = vmatprep.subr.bf16.mxu0 %v6121
        %6142 = vmatpush1.bf16.msra.mxu0 %v6120
        %6143 = vmatprep.subr.bf16.mxu0 %v6119
        %6144 = vmatpush1.bf16.msra.mxu0 %v6118
        %6145 = vmatprep.subr.bf16.mxu0 %v6117
        %6146 = vmatpush1.bf16.msra.mxu0 %v6116
        %6147 = vmatprep.subr.bf16.mxu0 %v6115
        %6148 = vmatpush1.bf16.msra.mxu0 %v6114
        %6149 = vmatprep.subr.bf16.mxu0 0
        %6150 = vmatpush2.bf16.msra.mxu0 0
        %6151 = vmatprep.subr.bf16.mxu0 0
        %6152 = vmatpush2.bf16.msra.mxu0 0
        %6153 = vmatprep.subr.bf16.mxu0 0
        %6154 = vmatpush2.bf16.msra.mxu0 0
        %6155 = vmatprep.subr.bf16.mxu0 0
        %6156 = vmatpush2.bf16.msra.mxu0 0
        %6157 = vmatprep.subr.bf16.mxu0 0
        %6158 = vmatpush2.bf16.msra.mxu0 0
        %6159 = vmatprep.subr.bf16.mxu0 0
        %6160 = vmatpush2.bf16.msra.mxu0 0
        %6161 = vmatprep.subr.bf16.mxu0 0
        %6162 = vmatpush2.bf16.msra.mxu0 0
        %6163 = vmatprep.subr.bf16.mxu0 0
        %6164 = vmatpush2.bf16.msra.mxu0 0
        %6165 = vmatprep.mubr.bf16.mxu0 0
        %6166 = vmatmul.mubr.bf16.gmra.mxu0 %v6131
        %v6167 = vpop.f32.mrf.mxu0
        %v6168 = vadd.f32 0.0, %v6167
        %v6169 = vpop.f32.mrf.mxu0
        %v6170 = vadd.f32 0.0, %v6169
        %v6171 = vpop.f32.mrf.mxu0
        %v6172 = vpop.f32.mrf.mxu0
        %6173 = vdwg.mxu0
        %v6174 = vadd.f32 %v6077, %v6168
        %v6175 = vadd.f32 %v6078, %v6170
        %s6176 = scalar_lea.vmem %s9, 640
        %v6177 = vld [vmem:[%s6176] sm:$0xff]
        %v6178 = vld [vmem:[%s6176 + $0x8] sm:$0xff]
        %v6179 = vld [vmem:[%s6176 + $0x10] sm:$0xff]
        %v6180 = vld [vmem:[%s6176 + $0x18] sm:$0xff]
        %v6181 = vld [vmem:[%s6176 + $0x20] sm:$0xff]
        %v6182 = vld [vmem:[%s6176 + $0x28] sm:$0xff]
        %v6183 = vld [vmem:[%s6176 + $0x30] sm:$0xff]
        %v6184 = vld [vmem:[%s6176 + $0x38] sm:$0xff]
        %v6186 = vrot.slane %v5983, 1
        %v6195 = vunpack.c.l.b16 %v6177
        %v6196 = vunpack.c.h.b16 %v6177
        %v6197 = vunpack.c.l.b16 %v6178
        %v6198 = vunpack.c.h.b16 %v6178
        %v6199 = vunpack.c.l.b16 %v6179
        %v6200 = vunpack.c.h.b16 %v6179
        %v6201 = vunpack.c.l.b16 %v6180
        %v6202 = vunpack.c.h.b16 %v6180
        %v6203 = vunpack.c.l.b16 %v6181
        %v6204 = vunpack.c.h.b16 %v6181
        %v6205 = vunpack.c.l.b16 %v6182
        %v6206 = vunpack.c.h.b16 %v6182
        %v6207 = vunpack.c.l.b16 %v6183
        %v6208 = vunpack.c.h.b16 %v6183
        %v6209 = vunpack.c.l.b16 %v6184
        %v6210 = vunpack.c.h.b16 %v6184
        %v6211 = vpack.c.b16 %v6197, %v6195
        %v6212 = vpack.c.b16 %v6198, %v6196
        %v6213 = vpack.c.b16 %v6201, %v6199
        %v6214 = vpack.c.b16 %v6202, %v6200
        %v6215 = vpack.c.b16 %v6205, %v6203
        %v6216 = vpack.c.b16 %v6206, %v6204
        %v6217 = vpack.c.b16 %v6209, %v6207
        %v6218 = vpack.c.b16 %v6210, %v6208
        %v6228 = vsel %vm3920, %v6186, 0
        %6230 = vmatprep.subr.bf16.mxu0 0
        %6231 = vmatpush1.bf16.msra.mxu0 0
        %6232 = vmatprep.subr.bf16.mxu0 0
        %6233 = vmatpush1.bf16.msra.mxu0 0
        %6234 = vmatprep.subr.bf16.mxu0 0
        %6235 = vmatpush1.bf16.msra.mxu0 0
        %6236 = vmatprep.subr.bf16.mxu0 0
        %6237 = vmatpush1.bf16.msra.mxu0 0
        %6238 = vmatprep.subr.bf16.mxu0 %v6218
        %6239 = vmatpush1.bf16.msra.mxu0 %v6217
        %6240 = vmatprep.subr.bf16.mxu0 %v6216
        %6241 = vmatpush1.bf16.msra.mxu0 %v6215
        %6242 = vmatprep.subr.bf16.mxu0 %v6214
        %6243 = vmatpush1.bf16.msra.mxu0 %v6213
        %6244 = vmatprep.subr.bf16.mxu0 %v6212
        %6245 = vmatpush1.bf16.msra.mxu0 %v6211
        %6246 = vmatprep.subr.bf16.mxu0 0
        %6247 = vmatpush2.bf16.msra.mxu0 0
        %6248 = vmatprep.subr.bf16.mxu0 0
        %6249 = vmatpush2.bf16.msra.mxu0 0
        %6250 = vmatprep.subr.bf16.mxu0 0
        %6251 = vmatpush2.bf16.msra.mxu0 0
        %6252 = vmatprep.subr.bf16.mxu0 0
        %6253 = vmatpush2.bf16.msra.mxu0 0
        %6254 = vmatprep.subr.bf16.mxu0 0
        %6255 = vmatpush2.bf16.msra.mxu0 0
        %6256 = vmatprep.subr.bf16.mxu0 0
        %6257 = vmatpush2.bf16.msra.mxu0 0
        %6258 = vmatprep.subr.bf16.mxu0 0
        %6259 = vmatpush2.bf16.msra.mxu0 0
        %6260 = vmatprep.subr.bf16.mxu0 0
        %6261 = vmatpush2.bf16.msra.mxu0 0
        %6262 = vmatprep.mubr.bf16.mxu0 0
        %6263 = vmatmul.mubr.bf16.gmra.mxu0 %v6228
        %v6264 = vpop.f32.mrf.mxu0
        %v6265 = vadd.f32 0.0, %v6264
        %v6266 = vpop.f32.mrf.mxu0
        %v6267 = vadd.f32 0.0, %v6266
        %v6268 = vpop.f32.mrf.mxu0
        %v6269 = vpop.f32.mrf.mxu0
        %6270 = vdwg.mxu0
        %v6271 = vadd.f32 %v6174, %v6265
        %v6272 = vadd.f32 %v6175, %v6267
        %s6273 = scalar_lea.vmem %s9, 704
        %v6274 = vld [vmem:[%s6273] sm:$0xff]
        %v6275 = vld [vmem:[%s6273 + $0x8] sm:$0xff]
        %v6276 = vld [vmem:[%s6273 + $0x10] sm:$0xff]
        %v6277 = vld [vmem:[%s6273 + $0x18] sm:$0xff]
        %v6278 = vld [vmem:[%s6273 + $0x20] sm:$0xff]
        %v6279 = vld [vmem:[%s6273 + $0x28] sm:$0xff]
        %v6280 = vld [vmem:[%s6273 + $0x30] sm:$0xff]
        %v6281 = vld [vmem:[%s6273 + $0x38] sm:$0xff]
        %v6282 = vrot.slane %v6088, 1
        %v6291 = vunpack.c.l.b16 %v6274
        %v6292 = vunpack.c.h.b16 %v6274
        %v6293 = vunpack.c.l.b16 %v6275
        %v6294 = vunpack.c.h.b16 %v6275
        %v6295 = vunpack.c.l.b16 %v6276
        %v6296 = vunpack.c.h.b16 %v6276
        %v6297 = vunpack.c.l.b16 %v6277
        %v6298 = vunpack.c.h.b16 %v6277
        %v6299 = vunpack.c.l.b16 %v6278
        %v6300 = vunpack.c.h.b16 %v6278
        %v6301 = vunpack.c.l.b16 %v6279
        %v6302 = vunpack.c.h.b16 %v6279
        %v6303 = vunpack.c.l.b16 %v6280
        %v6304 = vunpack.c.h.b16 %v6280
        %v6305 = vunpack.c.l.b16 %v6281
        %v6306 = vunpack.c.h.b16 %v6281
        %v6307 = vpack.c.b16 %v6293, %v6291
        %v6308 = vpack.c.b16 %v6294, %v6292
        %v6309 = vpack.c.b16 %v6297, %v6295
        %v6310 = vpack.c.b16 %v6298, %v6296
        %v6311 = vpack.c.b16 %v6301, %v6299
        %v6312 = vpack.c.b16 %v6302, %v6300
        %v6313 = vpack.c.b16 %v6305, %v6303
        %v6314 = vpack.c.b16 %v6306, %v6304
        %v6324 = vsel %vm3920, %v6282, 0
        %6326 = vmatprep.subr.bf16.mxu0 0
        %6327 = vmatpush1.bf16.msra.mxu0 0
        %6328 = vmatprep.subr.bf16.mxu0 0
        %6329 = vmatpush1.bf16.msra.mxu0 0
        %6330 = vmatprep.subr.bf16.mxu0 0
        %6331 = vmatpush1.bf16.msra.mxu0 0
        %6332 = vmatprep.subr.bf16.mxu0 0
        %6333 = vmatpush1.bf16.msra.mxu0 0
        %6334 = vmatprep.subr.bf16.mxu0 %v6314
        %6335 = vmatpush1.bf16.msra.mxu0 %v6313
        %6336 = vmatprep.subr.bf16.mxu0 %v6312
        %6337 = vmatpush1.bf16.msra.mxu0 %v6311
        %6338 = vmatprep.subr.bf16.mxu0 %v6310
        %6339 = vmatpush1.bf16.msra.mxu0 %v6309
        %6340 = vmatprep.subr.bf16.mxu0 %v6308
        %6341 = vmatpush1.bf16.msra.mxu0 %v6307
        %6342 = vmatprep.subr.bf16.mxu0 0
        %6343 = vmatpush2.bf16.msra.mxu0 0
        %6344 = vmatprep.subr.bf16.mxu0 0
        %6345 = vmatpush2.bf16.msra.mxu0 0
        %6346 = vmatprep.subr.bf16.mxu0 0
        %6347 = vmatpush2.bf16.msra.mxu0 0
        %6348 = vmatprep.subr.bf16.mxu0 0
        %6349 = vmatpush2.bf16.msra.mxu0 0
        %6350 = vmatprep.subr.bf16.mxu0 0
        %6351 = vmatpush2.bf16.msra.mxu0 0
        %6352 = vmatprep.subr.bf16.mxu0 0
        %6353 = vmatpush2.bf16.msra.mxu0 0
        %6354 = vmatprep.subr.bf16.mxu0 0
        %6355 = vmatpush2.bf16.msra.mxu0 0
        %6356 = vmatprep.subr.bf16.mxu0 0
        %6357 = vmatpush2.bf16.msra.mxu0 0
        %6358 = vmatprep.mubr.bf16.mxu0 0
        %6359 = vmatmul.mubr.bf16.gmra.mxu0 %v6324
        %v6360 = vpop.f32.mrf.mxu0
        %v6361 = vadd.f32 0.0, %v6360
        %v6362 = vpop.f32.mrf.mxu0
        %v6363 = vadd.f32 0.0, %v6362
        %v6364 = vpop.f32.mrf.mxu0
        %v6365 = vpop.f32.mrf.mxu0
        %6366 = vdwg.mxu0
        %v6367 = vadd.f32 %v6271, %v6361
        %v6368 = vadd.f32 %v6272, %v6363
        %s6369 = scalar_lea.vmem %s9, 768
        %v6370 = vld [vmem:[%s6369] sm:$0xff]
        %v6371 = vld [vmem:[%s6369 + $0x8] sm:$0xff]
        %v6372 = vld [vmem:[%s6369 + $0x10] sm:$0xff]
        %v6373 = vld [vmem:[%s6369 + $0x18] sm:$0xff]
        %v6374 = vld [vmem:[%s6369 + $0x20] sm:$0xff]
        %v6375 = vld [vmem:[%s6369 + $0x28] sm:$0xff]
        %v6376 = vld [vmem:[%s6369 + $0x30] sm:$0xff]
        %v6377 = vld [vmem:[%s6369 + $0x38] sm:$0xff]
        %v6378 = vrot.slane %v5983, 2
        %v6387 = vunpack.c.l.b16 %v6370
        %v6388 = vunpack.c.h.b16 %v6370
        %v6389 = vunpack.c.l.b16 %v6371
        %v6390 = vunpack.c.h.b16 %v6371
        %v6391 = vunpack.c.l.b16 %v6372
        %v6392 = vunpack.c.h.b16 %v6372
        %v6393 = vunpack.c.l.b16 %v6373
        %v6394 = vunpack.c.h.b16 %v6373
        %v6395 = vunpack.c.l.b16 %v6374
        %v6396 = vunpack.c.h.b16 %v6374
        %v6397 = vunpack.c.l.b16 %v6375
        %v6398 = vunpack.c.h.b16 %v6375
        %v6399 = vunpack.c.l.b16 %v6376
        %v6400 = vunpack.c.h.b16 %v6376
        %v6401 = vunpack.c.l.b16 %v6377
        %v6402 = vunpack.c.h.b16 %v6377
        %v6403 = vpack.c.b16 %v6389, %v6387
        %v6404 = vpack.c.b16 %v6390, %v6388
        %v6405 = vpack.c.b16 %v6393, %v6391
        %v6406 = vpack.c.b16 %v6394, %v6392
        %v6407 = vpack.c.b16 %v6397, %v6395
        %v6408 = vpack.c.b16 %v6398, %v6396
        %v6409 = vpack.c.b16 %v6401, %v6399
        %v6410 = vpack.c.b16 %v6402, %v6400
        %v6420 = vsel %vm3920, %v6378, 0
        %6422 = vmatprep.subr.bf16.mxu0 0
        %6423 = vmatpush1.bf16.msra.mxu0 0
        %6424 = vmatprep.subr.bf16.mxu0 0
        %6425 = vmatpush1.bf16.msra.mxu0 0
        %6426 = vmatprep.subr.bf16.mxu0 0
        %6427 = vmatpush1.bf16.msra.mxu0 0
        %6428 = vmatprep.subr.bf16.mxu0 0
        %6429 = vmatpush1.bf16.msra.mxu0 0
        %6430 = vmatprep.subr.bf16.mxu0 %v6410
        %6431 = vmatpush1.bf16.msra.mxu0 %v6409
        %6432 = vmatprep.subr.bf16.mxu0 %v6408
        %6433 = vmatpush1.bf16.msra.mxu0 %v6407
        %6434 = vmatprep.subr.bf16.mxu0 %v6406
        %6435 = vmatpush1.bf16.msra.mxu0 %v6405
        %6436 = vmatprep.subr.bf16.mxu0 %v6404
        %6437 = vmatpush1.bf16.msra.mxu0 %v6403
        %6438 = vmatprep.subr.bf16.mxu0 0
        %6439 = vmatpush2.bf16.msra.mxu0 0
        %6440 = vmatprep.subr.bf16.mxu0 0
        %6441 = vmatpush2.bf16.msra.mxu0 0
        %6442 = vmatprep.subr.bf16.mxu0 0
        %6443 = vmatpush2.bf16.msra.mxu0 0
        %6444 = vmatprep.subr.bf16.mxu0 0
        %6445 = vmatpush2.bf16.msra.mxu0 0
        %6446 = vmatprep.subr.bf16.mxu0 0
        %6447 = vmatpush2.bf16.msra.mxu0 0
        %6448 = vmatprep.subr.bf16.mxu0 0
        %6449 = vmatpush2.bf16.msra.mxu0 0
        %6450 = vmatprep.subr.bf16.mxu0 0
        %6451 = vmatpush2.bf16.msra.mxu0 0
        %6452 = vmatprep.subr.bf16.mxu0 0
        %6453 = vmatpush2.bf16.msra.mxu0 0
        %6454 = vmatprep.mubr.bf16.mxu0 0
        %6455 = vmatmul.mubr.bf16.gmra.mxu0 %v6420
        %v6456 = vpop.f32.mrf.mxu0
        %v6457 = vadd.f32 0.0, %v6456
        %v6458 = vpop.f32.mrf.mxu0
        %v6459 = vadd.f32 0.0, %v6458
        %v6460 = vpop.f32.mrf.mxu0
        %v6461 = vpop.f32.mrf.mxu0
        %6462 = vdwg.mxu0
        %v6463 = vadd.f32 %v6367, %v6457
        %v6464 = vadd.f32 %v6368, %v6459
        %s6465 = scalar_lea.vmem %s9, 832
        %v6466 = vld [vmem:[%s6465] sm:$0xff]
        %v6467 = vld [vmem:[%s6465 + $0x8] sm:$0xff]
        %v6468 = vld [vmem:[%s6465 + $0x10] sm:$0xff]
        %v6469 = vld [vmem:[%s6465 + $0x18] sm:$0xff]
        %v6470 = vld [vmem:[%s6465 + $0x20] sm:$0xff]
        %v6471 = vld [vmem:[%s6465 + $0x28] sm:$0xff]
        %v6472 = vld [vmem:[%s6465 + $0x30] sm:$0xff]
        %v6473 = vld [vmem:[%s6465 + $0x38] sm:$0xff]
        %v6474 = vrot.slane %v6088, 2
        %v6483 = vunpack.c.l.b16 %v6466
        %v6484 = vunpack.c.h.b16 %v6466
        %v6485 = vunpack.c.l.b16 %v6467
        %v6486 = vunpack.c.h.b16 %v6467
        %v6487 = vunpack.c.l.b16 %v6468
        %v6488 = vunpack.c.h.b16 %v6468
        %v6489 = vunpack.c.l.b16 %v6469
        %v6490 = vunpack.c.h.b16 %v6469
        %v6491 = vunpack.c.l.b16 %v6470
        %v6492 = vunpack.c.h.b16 %v6470
        %v6493 = vunpack.c.l.b16 %v6471
        %v6494 = vunpack.c.h.b16 %v6471
        %v6495 = vunpack.c.l.b16 %v6472
        %v6496 = vunpack.c.h.b16 %v6472
        %v6497 = vunpack.c.l.b16 %v6473
        %v6498 = vunpack.c.h.b16 %v6473
        %v6499 = vpack.c.b16 %v6485, %v6483
        %v6500 = vpack.c.b16 %v6486, %v6484
        %v6501 = vpack.c.b16 %v6489, %v6487
        %v6502 = vpack.c.b16 %v6490, %v6488
        %v6503 = vpack.c.b16 %v6493, %v6491
        %v6504 = vpack.c.b16 %v6494, %v6492
        %v6505 = vpack.c.b16 %v6497, %v6495
        %v6506 = vpack.c.b16 %v6498, %v6496
        %v6516 = vsel %vm3920, %v6474, 0
        %6518 = vmatprep.subr.bf16.mxu0 0
        %6519 = vmatpush1.bf16.msra.mxu0 0
        %6520 = vmatprep.subr.bf16.mxu0 0
        %6521 = vmatpush1.bf16.msra.mxu0 0
        %6522 = vmatprep.subr.bf16.mxu0 0
        %6523 = vmatpush1.bf16.msra.mxu0 0
        %6524 = vmatprep.subr.bf16.mxu0 0
        %6525 = vmatpush1.bf16.msra.mxu0 0
        %6526 = vmatprep.subr.bf16.mxu0 %v6506
        %6527 = vmatpush1.bf16.msra.mxu0 %v6505
        %6528 = vmatprep.subr.bf16.mxu0 %v6504
        %6529 = vmatpush1.bf16.msra.mxu0 %v6503
        %6530 = vmatprep.subr.bf16.mxu0 %v6502
        %6531 = vmatpush1.bf16.msra.mxu0 %v6501
        %6532 = vmatprep.subr.bf16.mxu0 %v6500
        %6533 = vmatpush1.bf16.msra.mxu0 %v6499
        %6534 = vmatprep.subr.bf16.mxu0 0
        %6535 = vmatpush2.bf16.msra.mxu0 0
        %6536 = vmatprep.subr.bf16.mxu0 0
        %6537 = vmatpush2.bf16.msra.mxu0 0
        %6538 = vmatprep.subr.bf16.mxu0 0
        %6539 = vmatpush2.bf16.msra.mxu0 0
        %6540 = vmatprep.subr.bf16.mxu0 0
        %6541 = vmatpush2.bf16.msra.mxu0 0
        %6542 = vmatprep.subr.bf16.mxu0 0
        %6543 = vmatpush2.bf16.msra.mxu0 0
        %6544 = vmatprep.subr.bf16.mxu0 0
        %6545 = vmatpush2.bf16.msra.mxu0 0
        %6546 = vmatprep.subr.bf16.mxu0 0
        %6547 = vmatpush2.bf16.msra.mxu0 0
        %6548 = vmatprep.subr.bf16.mxu0 0
        %6549 = vmatpush2.bf16.msra.mxu0 0
        %6550 = vmatprep.mubr.bf16.mxu0 0
        %6551 = vmatmul.mubr.bf16.gmra.mxu0 %v6516
        %v6552 = vpop.f32.mrf.mxu0
        %v6553 = vadd.f32 0.0, %v6552
        %v6554 = vpop.f32.mrf.mxu0
        %v6555 = vadd.f32 0.0, %v6554
        %v6556 = vpop.f32.mrf.mxu0
        %v6557 = vpop.f32.mrf.mxu0
        %6558 = vdwg.mxu0
        %v6559 = vadd.f32 %v6463, %v6553
        %v6560 = vadd.f32 %v6464, %v6555
        %s6561 = scalar_lea.vmem %s9, 896
        %v6562 = vld [vmem:[%s6561] sm:$0xff]
        %v6563 = vld [vmem:[%s6561 + $0x8] sm:$0xff]
        %v6564 = vld [vmem:[%s6561 + $0x10] sm:$0xff]
        %v6565 = vld [vmem:[%s6561 + $0x18] sm:$0xff]
        %v6566 = vld [vmem:[%s6561 + $0x20] sm:$0xff]
        %v6567 = vld [vmem:[%s6561 + $0x28] sm:$0xff]
        %v6568 = vld [vmem:[%s6561 + $0x30] sm:$0xff]
        %v6569 = vld [vmem:[%s6561 + $0x38] sm:$0xff]
        %v6570 = vrot.slane %v5983, 3
        %v6579 = vunpack.c.l.b16 %v6562
        %v6580 = vunpack.c.h.b16 %v6562
        %v6581 = vunpack.c.l.b16 %v6563
        %v6582 = vunpack.c.h.b16 %v6563
        %v6583 = vunpack.c.l.b16 %v6564
        %v6584 = vunpack.c.h.b16 %v6564
        %v6585 = vunpack.c.l.b16 %v6565
        %v6586 = vunpack.c.h.b16 %v6565
        %v6587 = vunpack.c.l.b16 %v6566
        %v6588 = vunpack.c.h.b16 %v6566
        %v6589 = vunpack.c.l.b16 %v6567
        %v6590 = vunpack.c.h.b16 %v6567
        %v6591 = vunpack.c.l.b16 %v6568
        %v6592 = vunpack.c.h.b16 %v6568
        %v6593 = vunpack.c.l.b16 %v6569
        %v6594 = vunpack.c.h.b16 %v6569
        %v6595 = vpack.c.b16 %v6581, %v6579
        %v6596 = vpack.c.b16 %v6582, %v6580
        %v6597 = vpack.c.b16 %v6585, %v6583
        %v6598 = vpack.c.b16 %v6586, %v6584
        %v6599 = vpack.c.b16 %v6589, %v6587
        %v6600 = vpack.c.b16 %v6590, %v6588
        %v6601 = vpack.c.b16 %v6593, %v6591
        %v6602 = vpack.c.b16 %v6594, %v6592
        %v6612 = vsel %vm3920, %v6570, 0
        %6614 = vmatprep.subr.bf16.mxu0 0
        %6615 = vmatpush1.bf16.msra.mxu0 0
        %6616 = vmatprep.subr.bf16.mxu0 0
        %6617 = vmatpush1.bf16.msra.mxu0 0
        %6618 = vmatprep.subr.bf16.mxu0 0
        %6619 = vmatpush1.bf16.msra.mxu0 0
        %6620 = vmatprep.subr.bf16.mxu0 0
        %6621 = vmatpush1.bf16.msra.mxu0 0
        %6622 = vmatprep.subr.bf16.mxu0 %v6602
        %6623 = vmatpush1.bf16.msra.mxu0 %v6601
        %6624 = vmatprep.subr.bf16.mxu0 %v6600
        %6625 = vmatpush1.bf16.msra.mxu0 %v6599
        %6626 = vmatprep.subr.bf16.mxu0 %v6598
        %6627 = vmatpush1.bf16.msra.mxu0 %v6597
        %6628 = vmatprep.subr.bf16.mxu0 %v6596
        %6629 = vmatpush1.bf16.msra.mxu0 %v6595
        %6630 = vmatprep.subr.bf16.mxu0 0
        %6631 = vmatpush2.bf16.msra.mxu0 0
        %6632 = vmatprep.subr.bf16.mxu0 0
        %6633 = vmatpush2.bf16.msra.mxu0 0
        %6634 = vmatprep.subr.bf16.mxu0 0
        %6635 = vmatpush2.bf16.msra.mxu0 0
        %6636 = vmatprep.subr.bf16.mxu0 0
        %6637 = vmatpush2.bf16.msra.mxu0 0
        %6638 = vmatprep.subr.bf16.mxu0 0
        %6639 = vmatpush2.bf16.msra.mxu0 0
        %6640 = vmatprep.subr.bf16.mxu0 0
        %6641 = vmatpush2.bf16.msra.mxu0 0
        %6642 = vmatprep.subr.bf16.mxu0 0
        %6643 = vmatpush2.bf16.msra.mxu0 0
        %6644 = vmatprep.subr.bf16.mxu0 0
        %6645 = vmatpush2.bf16.msra.mxu0 0
        %6646 = vmatprep.mubr.bf16.mxu0 0
        %6647 = vmatmul.mubr.bf16.gmra.mxu0 %v6612
        %v6648 = vpop.f32.mrf.mxu0
        %v6649 = vadd.f32 0.0, %v6648
        %v6650 = vpop.f32.mrf.mxu0
        %v6651 = vadd.f32 0.0, %v6650
        %v6652 = vpop.f32.mrf.mxu0
        %v6653 = vpop.f32.mrf.mxu0
        %6654 = vdwg.mxu0
        %v6655 = vadd.f32 %v6559, %v6649
        %v6656 = vadd.f32 %v6560, %v6651
        %s6657 = scalar_lea.vmem %s9, 960
        %v6658 = vld [vmem:[%s6657] sm:$0xff]
        %v6659 = vld [vmem:[%s6657 + $0x8] sm:$0xff]
        %v6660 = vld [vmem:[%s6657 + $0x10] sm:$0xff]
        %v6661 = vld [vmem:[%s6657 + $0x18] sm:$0xff]
        %v6662 = vld [vmem:[%s6657 + $0x20] sm:$0xff]
        %v6663 = vld [vmem:[%s6657 + $0x28] sm:$0xff]
        %v6664 = vld [vmem:[%s6657 + $0x30] sm:$0xff]
        %v6665 = vld [vmem:[%s6657 + $0x38] sm:$0xff]
        %v6666 = vrot.slane %v6088, 3
        %v6675 = vunpack.c.l.b16 %v6658
        %v6676 = vunpack.c.h.b16 %v6658
        %v6677 = vunpack.c.l.b16 %v6659
        %v6678 = vunpack.c.h.b16 %v6659
        %v6679 = vunpack.c.l.b16 %v6660
        %v6680 = vunpack.c.h.b16 %v6660
        %v6681 = vunpack.c.l.b16 %v6661
        %v6682 = vunpack.c.h.b16 %v6661
        %v6683 = vunpack.c.l.b16 %v6662
        %v6684 = vunpack.c.h.b16 %v6662
        %v6685 = vunpack.c.l.b16 %v6663
        %v6686 = vunpack.c.h.b16 %v6663
        %v6687 = vunpack.c.l.b16 %v6664
        %v6688 = vunpack.c.h.b16 %v6664
        %v6689 = vunpack.c.l.b16 %v6665
        %v6690 = vunpack.c.h.b16 %v6665
        %v6691 = vpack.c.b16 %v6677, %v6675
        %v6692 = vpack.c.b16 %v6678, %v6676
        %v6693 = vpack.c.b16 %v6681, %v6679
        %v6694 = vpack.c.b16 %v6682, %v6680
        %v6695 = vpack.c.b16 %v6685, %v6683
        %v6696 = vpack.c.b16 %v6686, %v6684
        %v6697 = vpack.c.b16 %v6689, %v6687
        %v6698 = vpack.c.b16 %v6690, %v6688
        %v6708 = vsel %vm3920, %v6666, 0
        %6710 = vmatprep.subr.bf16.mxu0 0
        %6711 = vmatpush1.bf16.msra.mxu0 0
        %6712 = vmatprep.subr.bf16.mxu0 0
        %6713 = vmatpush1.bf16.msra.mxu0 0
        %6714 = vmatprep.subr.bf16.mxu0 0
        %6715 = vmatpush1.bf16.msra.mxu0 0
        %6716 = vmatprep.subr.bf16.mxu0 0
        %6717 = vmatpush1.bf16.msra.mxu0 0
        %6718 = vmatprep.subr.bf16.mxu0 %v6698
        %6719 = vmatpush1.bf16.msra.mxu0 %v6697
        %6720 = vmatprep.subr.bf16.mxu0 %v6696
        %6721 = vmatpush1.bf16.msra.mxu0 %v6695
        %6722 = vmatprep.subr.bf16.mxu0 %v6694
        %6723 = vmatpush1.bf16.msra.mxu0 %v6693
        %6724 = vmatprep.subr.bf16.mxu0 %v6692
        %6725 = vmatpush1.bf16.msra.mxu0 %v6691
        %6726 = vmatprep.subr.bf16.mxu0 0
        %6727 = vmatpush2.bf16.msra.mxu0 0
        %6728 = vmatprep.subr.bf16.mxu0 0
        %6729 = vmatpush2.bf16.msra.mxu0 0
        %6730 = vmatprep.subr.bf16.mxu0 0
        %6731 = vmatpush2.bf16.msra.mxu0 0
        %6732 = vmatprep.subr.bf16.mxu0 0
        %6733 = vmatpush2.bf16.msra.mxu0 0
        %6734 = vmatprep.subr.bf16.mxu0 0
        %6735 = vmatpush2.bf16.msra.mxu0 0
        %6736 = vmatprep.subr.bf16.mxu0 0
        %6737 = vmatpush2.bf16.msra.mxu0 0
        %6738 = vmatprep.subr.bf16.mxu0 0
        %6739 = vmatpush2.bf16.msra.mxu0 0
        %6740 = vmatprep.subr.bf16.mxu0 0
        %6741 = vmatpush2.bf16.msra.mxu0 0
        %6742 = vmatprep.mubr.bf16.mxu0 0
        %6743 = vmatmul.mubr.bf16.gmra.mxu0 %v6708
        %v6744 = vpop.f32.mrf.mxu0
        %v6745 = vadd.f32 0.0, %v6744
        %v6746 = vpop.f32.mrf.mxu0
        %v6747 = vadd.f32 0.0, %v6746
        %v6748 = vpop.f32.mrf.mxu0
        %v6749 = vpop.f32.mrf.mxu0
        %6750 = vdwg.mxu0
        %v6751 = vadd.f32 %v6655, %v6745
        %v6752 = vadd.f32 %v6656, %v6747
        %v6753 = vpack.c.bf16 %v5216, %v5216
        %s6754 = scalar_lea.vmem %s9, 1024
        %v6755 = vld [vmem:[%s6754] sm:$0xff]
        %v6756 = vld [vmem:[%s6754 + $0x8] sm:$0xff]
        %v6757 = vld [vmem:[%s6754 + $0x10] sm:$0xff]
        %v6758 = vld [vmem:[%s6754 + $0x18] sm:$0xff]
        %v6759 = vld [vmem:[%s6754 + $0x20] sm:$0xff]
        %v6760 = vld [vmem:[%s6754 + $0x28] sm:$0xff]
        %v6761 = vld [vmem:[%s6754 + $0x30] sm:$0xff]
        %v6762 = vld [vmem:[%s6754 + $0x38] sm:$0xff]
        %v6771 = vunpack.c.l.b16 %v6755
        %v6772 = vunpack.c.h.b16 %v6755
        %v6773 = vunpack.c.l.b16 %v6756
        %v6774 = vunpack.c.h.b16 %v6756
        %v6775 = vunpack.c.l.b16 %v6757
        %v6776 = vunpack.c.h.b16 %v6757
        %v6777 = vunpack.c.l.b16 %v6758
        %v6778 = vunpack.c.h.b16 %v6758
        %v6779 = vunpack.c.l.b16 %v6759
        %v6780 = vunpack.c.h.b16 %v6759
        %v6781 = vunpack.c.l.b16 %v6760
        %v6782 = vunpack.c.h.b16 %v6760
        %v6783 = vunpack.c.l.b16 %v6761
        %v6784 = vunpack.c.h.b16 %v6761
        %v6785 = vunpack.c.l.b16 %v6762
        %v6786 = vunpack.c.h.b16 %v6762
        %v6787 = vpack.c.b16 %v6773, %v6771
        %v6788 = vpack.c.b16 %v6774, %v6772
        %v6789 = vpack.c.b16 %v6777, %v6775
        %v6790 = vpack.c.b16 %v6778, %v6776
        %v6791 = vpack.c.b16 %v6781, %v6779
        %v6792 = vpack.c.b16 %v6782, %v6780
        %v6793 = vpack.c.b16 %v6785, %v6783
        %v6794 = vpack.c.b16 %v6786, %v6784
        %v6804 = vsel %vm3920, %v6753, 0
        %6806 = vmatprep.subr.bf16.mxu0 0
        %6807 = vmatpush1.bf16.msra.mxu0 0
        %6808 = vmatprep.subr.bf16.mxu0 0
        %6809 = vmatpush1.bf16.msra.mxu0 0
        %6810 = vmatprep.subr.bf16.mxu0 0
        %6811 = vmatpush1.bf16.msra.mxu0 0
        %6812 = vmatprep.subr.bf16.mxu0 0
        %6813 = vmatpush1.bf16.msra.mxu0 0
        %6814 = vmatprep.subr.bf16.mxu0 %v6794
        %6815 = vmatpush1.bf16.msra.mxu0 %v6793
        %6816 = vmatprep.subr.bf16.mxu0 %v6792
        %6817 = vmatpush1.bf16.msra.mxu0 %v6791
        %6818 = vmatprep.subr.bf16.mxu0 %v6790
        %6819 = vmatpush1.bf16.msra.mxu0 %v6789
        %6820 = vmatprep.subr.bf16.mxu0 %v6788
        %6821 = vmatpush1.bf16.msra.mxu0 %v6787
        %6822 = vmatprep.subr.bf16.mxu0 0
        %6823 = vmatpush2.bf16.msra.mxu0 0
        %6824 = vmatprep.subr.bf16.mxu0 0
        %6825 = vmatpush2.bf16.msra.mxu0 0
        %6826 = vmatprep.subr.bf16.mxu0 0
        %6827 = vmatpush2.bf16.msra.mxu0 0
        %6828 = vmatprep.subr.bf16.mxu0 0
        %6829 = vmatpush2.bf16.msra.mxu0 0
        %6830 = vmatprep.subr.bf16.mxu0 0
        %6831 = vmatpush2.bf16.msra.mxu0 0
        %6832 = vmatprep.subr.bf16.mxu0 0
        %6833 = vmatpush2.bf16.msra.mxu0 0
        %6834 = vmatprep.subr.bf16.mxu0 0
        %6835 = vmatpush2.bf16.msra.mxu0 0
        %6836 = vmatprep.subr.bf16.mxu0 0
        %6837 = vmatpush2.bf16.msra.mxu0 0
        %6838 = vmatprep.mubr.bf16.mxu0 0
        %6839 = vmatmul.mubr.bf16.gmra.mxu0 %v6804
        %v6840 = vpop.f32.mrf.mxu0
        %v6841 = vadd.f32 0.0, %v6840
        %v6842 = vpop.f32.mrf.mxu0
        %v6843 = vadd.f32 0.0, %v6842
        %v6844 = vpop.f32.mrf.mxu0
        %v6845 = vpop.f32.mrf.mxu0
        %6846 = vdwg.mxu0
        %v6847 = vadd.f32 %v6751, %v6841
        %v6848 = vadd.f32 %v6752, %v6843
        %s6849 = scalar_lea.vmem %s9, 1088
        %v6850 = vld [vmem:[%s6849] sm:$0xff]
        %v6851 = vld [vmem:[%s6849 + $0x8] sm:$0xff]
        %v6852 = vld [vmem:[%s6849 + $0x10] sm:$0xff]
        %v6853 = vld [vmem:[%s6849 + $0x18] sm:$0xff]
        %v6854 = vld [vmem:[%s6849 + $0x20] sm:$0xff]
        %v6855 = vld [vmem:[%s6849 + $0x28] sm:$0xff]
        %v6856 = vld [vmem:[%s6849 + $0x30] sm:$0xff]
        %v6857 = vld [vmem:[%s6849 + $0x38] sm:$0xff]
        %v6858 = vshrl.u32 %v6753, 16
        %v6868 = vunpack.c.l.b16 %v6850
        %v6869 = vunpack.c.h.b16 %v6850
        %v6870 = vunpack.c.l.b16 %v6851
        %v6871 = vunpack.c.h.b16 %v6851
        %v6872 = vunpack.c.l.b16 %v6852
        %v6873 = vunpack.c.h.b16 %v6852
        %v6874 = vunpack.c.l.b16 %v6853
        %v6875 = vunpack.c.h.b16 %v6853
        %v6876 = vunpack.c.l.b16 %v6854
        %v6877 = vunpack.c.h.b16 %v6854
        %v6878 = vunpack.c.l.b16 %v6855
        %v6879 = vunpack.c.h.b16 %v6855
        %v6880 = vunpack.c.l.b16 %v6856
        %v6881 = vunpack.c.h.b16 %v6856
        %v6882 = vunpack.c.l.b16 %v6857
        %v6883 = vunpack.c.h.b16 %v6857
        %v6884 = vpack.c.b16 %v6870, %v6868
        %v6885 = vpack.c.b16 %v6871, %v6869
        %v6886 = vpack.c.b16 %v6874, %v6872
        %v6887 = vpack.c.b16 %v6875, %v6873
        %v6888 = vpack.c.b16 %v6878, %v6876
        %v6889 = vpack.c.b16 %v6879, %v6877
        %v6890 = vpack.c.b16 %v6882, %v6880
        %v6891 = vpack.c.b16 %v6883, %v6881
        %v6901 = vsel %vm3920, %v6858, 0
        %6903 = vmatprep.subr.bf16.mxu0 0
        %6904 = vmatpush1.bf16.msra.mxu0 0
        %6905 = vmatprep.subr.bf16.mxu0 0
        %6906 = vmatpush1.bf16.msra.mxu0 0
        %6907 = vmatprep.subr.bf16.mxu0 0
        %6908 = vmatpush1.bf16.msra.mxu0 0
        %6909 = vmatprep.subr.bf16.mxu0 0
        %6910 = vmatpush1.bf16.msra.mxu0 0
        %6911 = vmatprep.subr.bf16.mxu0 %v6891
        %6912 = vmatpush1.bf16.msra.mxu0 %v6890
        %6913 = vmatprep.subr.bf16.mxu0 %v6889
        %6914 = vmatpush1.bf16.msra.mxu0 %v6888
        %6915 = vmatprep.subr.bf16.mxu0 %v6887
        %6916 = vmatpush1.bf16.msra.mxu0 %v6886
        %6917 = vmatprep.subr.bf16.mxu0 %v6885
        %6918 = vmatpush1.bf16.msra.mxu0 %v6884
        %6919 = vmatprep.subr.bf16.mxu0 0
        %6920 = vmatpush2.bf16.msra.mxu0 0
        %6921 = vmatprep.subr.bf16.mxu0 0
        %6922 = vmatpush2.bf16.msra.mxu0 0
        %6923 = vmatprep.subr.bf16.mxu0 0
        %6924 = vmatpush2.bf16.msra.mxu0 0
        %6925 = vmatprep.subr.bf16.mxu0 0
        %6926 = vmatpush2.bf16.msra.mxu0 0
        %6927 = vmatprep.subr.bf16.mxu0 0
        %6928 = vmatpush2.bf16.msra.mxu0 0
        %6929 = vmatprep.subr.bf16.mxu0 0
        %6930 = vmatpush2.bf16.msra.mxu0 0
        %6931 = vmatprep.subr.bf16.mxu0 0
        %6932 = vmatpush2.bf16.msra.mxu0 0
        %6933 = vmatprep.subr.bf16.mxu0 0
        %6934 = vmatpush2.bf16.msra.mxu0 0
        %6935 = vmatprep.mubr.bf16.mxu0 0
        %6936 = vmatmul.mubr.bf16.gmra.mxu0 %v6901
        %v6937 = vpop.f32.mrf.mxu0
        %v6938 = vadd.f32 0.0, %v6937
        %v6939 = vpop.f32.mrf.mxu0
        %v6940 = vadd.f32 0.0, %v6939
        %v6941 = vpop.f32.mrf.mxu0
        %v6942 = vpop.f32.mrf.mxu0
        %6943 = vdwg.mxu0
        %v6944 = vadd.f32 %v6847, %v6938
        %v6945 = vadd.f32 %v6848, %v6940
        %s6946 = scalar_lea.vmem %s9, 1152
        %v6947 = vld [vmem:[%s6946] sm:$0xff]
        %v6948 = vld [vmem:[%s6946 + $0x8] sm:$0xff]
        %v6949 = vld [vmem:[%s6946 + $0x10] sm:$0xff]
        %v6950 = vld [vmem:[%s6946 + $0x18] sm:$0xff]
        %v6951 = vld [vmem:[%s6946 + $0x20] sm:$0xff]
        %v6952 = vld [vmem:[%s6946 + $0x28] sm:$0xff]
        %v6953 = vld [vmem:[%s6946 + $0x30] sm:$0xff]
        %v6954 = vld [vmem:[%s6946 + $0x38] sm:$0xff]
        %v6956 = vrot.slane %v6753, 1
        %v6965 = vunpack.c.l.b16 %v6947
        %v6966 = vunpack.c.h.b16 %v6947
        %v6967 = vunpack.c.l.b16 %v6948
        %v6968 = vunpack.c.h.b16 %v6948
        %v6969 = vunpack.c.l.b16 %v6949
        %v6970 = vunpack.c.h.b16 %v6949
        %v6971 = vunpack.c.l.b16 %v6950
        %v6972 = vunpack.c.h.b16 %v6950
        %v6973 = vunpack.c.l.b16 %v6951
        %v6974 = vunpack.c.h.b16 %v6951
        %v6975 = vunpack.c.l.b16 %v6952
        %v6976 = vunpack.c.h.b16 %v6952
        %v6977 = vunpack.c.l.b16 %v6953
        %v6978 = vunpack.c.h.b16 %v6953
        %v6979 = vunpack.c.l.b16 %v6954
        %v6980 = vunpack.c.h.b16 %v6954
        %v6981 = vpack.c.b16 %v6967, %v6965
        %v6982 = vpack.c.b16 %v6968, %v6966
        %v6983 = vpack.c.b16 %v6971, %v6969
        %v6984 = vpack.c.b16 %v6972, %v6970
        %v6985 = vpack.c.b16 %v6975, %v6973
        %v6986 = vpack.c.b16 %v6976, %v6974
        %v6987 = vpack.c.b16 %v6979, %v6977
        %v6988 = vpack.c.b16 %v6980, %v6978
        %v6998 = vsel %vm3920, %v6956, 0
        %7000 = vmatprep.subr.bf16.mxu0 0
        %7001 = vmatpush1.bf16.msra.mxu0 0
        %7002 = vmatprep.subr.bf16.mxu0 0
        %7003 = vmatpush1.bf16.msra.mxu0 0
        %7004 = vmatprep.subr.bf16.mxu0 0
        %7005 = vmatpush1.bf16.msra.mxu0 0
        %7006 = vmatprep.subr.bf16.mxu0 0
        %7007 = vmatpush1.bf16.msra.mxu0 0
        %7008 = vmatprep.subr.bf16.mxu0 %v6988
        %7009 = vmatpush1.bf16.msra.mxu0 %v6987
        %7010 = vmatprep.subr.bf16.mxu0 %v6986
        %7011 = vmatpush1.bf16.msra.mxu0 %v6985
        %7012 = vmatprep.subr.bf16.mxu0 %v6984
        %7013 = vmatpush1.bf16.msra.mxu0 %v6983
        %7014 = vmatprep.subr.bf16.mxu0 %v6982
        %7015 = vmatpush1.bf16.msra.mxu0 %v6981
        %7016 = vmatprep.subr.bf16.mxu0 0
        %7017 = vmatpush2.bf16.msra.mxu0 0
        %7018 = vmatprep.subr.bf16.mxu0 0
        %7019 = vmatpush2.bf16.msra.mxu0 0
        %7020 = vmatprep.subr.bf16.mxu0 0
        %7021 = vmatpush2.bf16.msra.mxu0 0
        %7022 = vmatprep.subr.bf16.mxu0 0
        %7023 = vmatpush2.bf16.msra.mxu0 0
        %7024 = vmatprep.subr.bf16.mxu0 0
        %7025 = vmatpush2.bf16.msra.mxu0 0
        %7026 = vmatprep.subr.bf16.mxu0 0
        %7027 = vmatpush2.bf16.msra.mxu0 0
        %7028 = vmatprep.subr.bf16.mxu0 0
        %7029 = vmatpush2.bf16.msra.mxu0 0
        %7030 = vmatprep.subr.bf16.mxu0 0
        %7031 = vmatpush2.bf16.msra.mxu0 0
        %7032 = vmatprep.mubr.bf16.mxu0 0
        %7033 = vmatmul.mubr.bf16.gmra.mxu0 %v6998
        %v7034 = vpop.f32.mrf.mxu0
        %v7035 = vadd.f32 0.0, %v7034
        %v7036 = vpop.f32.mrf.mxu0
        %v7037 = vadd.f32 0.0, %v7036
        %v7038 = vpop.f32.mrf.mxu0
        %v7039 = vpop.f32.mrf.mxu0
        %7040 = vdwg.mxu0
        %v7041 = vadd.f32 %v6944, %v7035
        %v7042 = vadd.f32 %v6945, %v7037
        %s7043 = scalar_lea.vmem %s9, 1216
        %v7044 = vld [vmem:[%s7043] sm:$0xff]
        %v7045 = vld [vmem:[%s7043 + $0x8] sm:$0xff]
        %v7046 = vld [vmem:[%s7043 + $0x10] sm:$0xff]
        %v7047 = vld [vmem:[%s7043 + $0x18] sm:$0xff]
        %v7048 = vld [vmem:[%s7043 + $0x20] sm:$0xff]
        %v7049 = vld [vmem:[%s7043 + $0x28] sm:$0xff]
        %v7050 = vld [vmem:[%s7043 + $0x30] sm:$0xff]
        %v7051 = vld [vmem:[%s7043 + $0x38] sm:$0xff]
        %v7052 = vrot.slane %v6858, 1
        %v7061 = vunpack.c.l.b16 %v7044
        %v7062 = vunpack.c.h.b16 %v7044
        %v7063 = vunpack.c.l.b16 %v7045
        %v7064 = vunpack.c.h.b16 %v7045
        %v7065 = vunpack.c.l.b16 %v7046
        %v7066 = vunpack.c.h.b16 %v7046
        %v7067 = vunpack.c.l.b16 %v7047
        %v7068 = vunpack.c.h.b16 %v7047
        %v7069 = vunpack.c.l.b16 %v7048
        %v7070 = vunpack.c.h.b16 %v7048
        %v7071 = vunpack.c.l.b16 %v7049
        %v7072 = vunpack.c.h.b16 %v7049
        %v7073 = vunpack.c.l.b16 %v7050
        %v7074 = vunpack.c.h.b16 %v7050
        %v7075 = vunpack.c.l.b16 %v7051
        %v7076 = vunpack.c.h.b16 %v7051
        %v7077 = vpack.c.b16 %v7063, %v7061
        %v7078 = vpack.c.b16 %v7064, %v7062
        %v7079 = vpack.c.b16 %v7067, %v7065
        %v7080 = vpack.c.b16 %v7068, %v7066
        %v7081 = vpack.c.b16 %v7071, %v7069
        %v7082 = vpack.c.b16 %v7072, %v7070
        %v7083 = vpack.c.b16 %v7075, %v7073
        %v7084 = vpack.c.b16 %v7076, %v7074
        %v7094 = vsel %vm3920, %v7052, 0
        %7096 = vmatprep.subr.bf16.mxu0 0
        %7097 = vmatpush1.bf16.msra.mxu0 0
        %7098 = vmatprep.subr.bf16.mxu0 0
        %7099 = vmatpush1.bf16.msra.mxu0 0
        %7100 = vmatprep.subr.bf16.mxu0 0
        %7101 = vmatpush1.bf16.msra.mxu0 0
        %7102 = vmatprep.subr.bf16.mxu0 0
        %7103 = vmatpush1.bf16.msra.mxu0 0
        %7104 = vmatprep.subr.bf16.mxu0 %v7084
        %7105 = vmatpush1.bf16.msra.mxu0 %v7083
        %7106 = vmatprep.subr.bf16.mxu0 %v7082
        %7107 = vmatpush1.bf16.msra.mxu0 %v7081
        %7108 = vmatprep.subr.bf16.mxu0 %v7080
        %7109 = vmatpush1.bf16.msra.mxu0 %v7079
        %7110 = vmatprep.subr.bf16.mxu0 %v7078
        %7111 = vmatpush1.bf16.msra.mxu0 %v7077
        %7112 = vmatprep.subr.bf16.mxu0 0
        %7113 = vmatpush2.bf16.msra.mxu0 0
        %7114 = vmatprep.subr.bf16.mxu0 0
        %7115 = vmatpush2.bf16.msra.mxu0 0
        %7116 = vmatprep.subr.bf16.mxu0 0
        %7117 = vmatpush2.bf16.msra.mxu0 0
        %7118 = vmatprep.subr.bf16.mxu0 0
        %7119 = vmatpush2.bf16.msra.mxu0 0
        %7120 = vmatprep.subr.bf16.mxu0 0
        %7121 = vmatpush2.bf16.msra.mxu0 0
        %7122 = vmatprep.subr.bf16.mxu0 0
        %7123 = vmatpush2.bf16.msra.mxu0 0
        %7124 = vmatprep.subr.bf16.mxu0 0
        %7125 = vmatpush2.bf16.msra.mxu0 0
        %7126 = vmatprep.subr.bf16.mxu0 0
        %7127 = vmatpush2.bf16.msra.mxu0 0
        %7128 = vmatprep.mubr.bf16.mxu0 0
        %7129 = vmatmul.mubr.bf16.gmra.mxu0 %v7094
        %v7130 = vpop.f32.mrf.mxu0
        %v7131 = vadd.f32 0.0, %v7130
        %v7132 = vpop.f32.mrf.mxu0
        %v7133 = vadd.f32 0.0, %v7132
        %v7134 = vpop.f32.mrf.mxu0
        %v7135 = vpop.f32.mrf.mxu0
        %7136 = vdwg.mxu0
        %v7137 = vadd.f32 %v7041, %v7131
        %v7138 = vadd.f32 %v7042, %v7133
        %s7139 = scalar_lea.vmem %s9, 1280
        %v7140 = vld [vmem:[%s7139] sm:$0xff]
        %v7141 = vld [vmem:[%s7139 + $0x8] sm:$0xff]
        %v7142 = vld [vmem:[%s7139 + $0x10] sm:$0xff]
        %v7143 = vld [vmem:[%s7139 + $0x18] sm:$0xff]
        %v7144 = vld [vmem:[%s7139 + $0x20] sm:$0xff]
        %v7145 = vld [vmem:[%s7139 + $0x28] sm:$0xff]
        %v7146 = vld [vmem:[%s7139 + $0x30] sm:$0xff]
        %v7147 = vld [vmem:[%s7139 + $0x38] sm:$0xff]
        %v7148 = vrot.slane %v6753, 2
        %v7157 = vunpack.c.l.b16 %v7140
        %v7158 = vunpack.c.h.b16 %v7140
        %v7159 = vunpack.c.l.b16 %v7141
        %v7160 = vunpack.c.h.b16 %v7141
        %v7161 = vunpack.c.l.b16 %v7142
        %v7162 = vunpack.c.h.b16 %v7142
        %v7163 = vunpack.c.l.b16 %v7143
        %v7164 = vunpack.c.h.b16 %v7143
        %v7165 = vunpack.c.l.b16 %v7144
        %v7166 = vunpack.c.h.b16 %v7144
        %v7167 = vunpack.c.l.b16 %v7145
        %v7168 = vunpack.c.h.b16 %v7145
        %v7169 = vunpack.c.l.b16 %v7146
        %v7170 = vunpack.c.h.b16 %v7146
        %v7171 = vunpack.c.l.b16 %v7147
        %v7172 = vunpack.c.h.b16 %v7147
        %v7173 = vpack.c.b16 %v7159, %v7157
        %v7174 = vpack.c.b16 %v7160, %v7158
        %v7175 = vpack.c.b16 %v7163, %v7161
        %v7176 = vpack.c.b16 %v7164, %v7162
        %v7177 = vpack.c.b16 %v7167, %v7165
        %v7178 = vpack.c.b16 %v7168, %v7166
        %v7179 = vpack.c.b16 %v7171, %v7169
        %v7180 = vpack.c.b16 %v7172, %v7170
        %v7190 = vsel %vm3920, %v7148, 0
        %7192 = vmatprep.subr.bf16.mxu0 0
        %7193 = vmatpush1.bf16.msra.mxu0 0
        %7194 = vmatprep.subr.bf16.mxu0 0
        %7195 = vmatpush1.bf16.msra.mxu0 0
        %7196 = vmatprep.subr.bf16.mxu0 0
        %7197 = vmatpush1.bf16.msra.mxu0 0
        %7198 = vmatprep.subr.bf16.mxu0 0
        %7199 = vmatpush1.bf16.msra.mxu0 0
        %7200 = vmatprep.subr.bf16.mxu0 %v7180
        %7201 = vmatpush1.bf16.msra.mxu0 %v7179
        %7202 = vmatprep.subr.bf16.mxu0 %v7178
        %7203 = vmatpush1.bf16.msra.mxu0 %v7177
        %7204 = vmatprep.subr.bf16.mxu0 %v7176
        %7205 = vmatpush1.bf16.msra.mxu0 %v7175
        %7206 = vmatprep.subr.bf16.mxu0 %v7174
        %7207 = vmatpush1.bf16.msra.mxu0 %v7173
        %7208 = vmatprep.subr.bf16.mxu0 0
        %7209 = vmatpush2.bf16.msra.mxu0 0
        %7210 = vmatprep.subr.bf16.mxu0 0
        %7211 = vmatpush2.bf16.msra.mxu0 0
        %7212 = vmatprep.subr.bf16.mxu0 0
        %7213 = vmatpush2.bf16.msra.mxu0 0
        %7214 = vmatprep.subr.bf16.mxu0 0
        %7215 = vmatpush2.bf16.msra.mxu0 0
        %7216 = vmatprep.subr.bf16.mxu0 0
        %7217 = vmatpush2.bf16.msra.mxu0 0
        %7218 = vmatprep.subr.bf16.mxu0 0
        %7219 = vmatpush2.bf16.msra.mxu0 0
        %7220 = vmatprep.subr.bf16.mxu0 0
        %7221 = vmatpush2.bf16.msra.mxu0 0
        %7222 = vmatprep.subr.bf16.mxu0 0
        %7223 = vmatpush2.bf16.msra.mxu0 0
        %7224 = vmatprep.mubr.bf16.mxu0 0
        %7225 = vmatmul.mubr.bf16.gmra.mxu0 %v7190
        %v7226 = vpop.f32.mrf.mxu0
        %v7227 = vadd.f32 0.0, %v7226
        %v7228 = vpop.f32.mrf.mxu0
        %v7229 = vadd.f32 0.0, %v7228
        %v7230 = vpop.f32.mrf.mxu0
        %v7231 = vpop.f32.mrf.mxu0
        %7232 = vdwg.mxu0
        %v7233 = vadd.f32 %v7137, %v7227
        %v7234 = vadd.f32 %v7138, %v7229
        %s7235 = scalar_lea.vmem %s9, 1344
        %v7236 = vld [vmem:[%s7235] sm:$0xff]
        %v7237 = vld [vmem:[%s7235 + $0x8] sm:$0xff]
        %v7238 = vld [vmem:[%s7235 + $0x10] sm:$0xff]
        %v7239 = vld [vmem:[%s7235 + $0x18] sm:$0xff]
        %v7240 = vld [vmem:[%s7235 + $0x20] sm:$0xff]
        %v7241 = vld [vmem:[%s7235 + $0x28] sm:$0xff]
        %v7242 = vld [vmem:[%s7235 + $0x30] sm:$0xff]
        %v7243 = vld [vmem:[%s7235 + $0x38] sm:$0xff]
        %v7244 = vrot.slane %v6858, 2
        %v7253 = vunpack.c.l.b16 %v7236
        %v7254 = vunpack.c.h.b16 %v7236
        %v7255 = vunpack.c.l.b16 %v7237
        %v7256 = vunpack.c.h.b16 %v7237
        %v7257 = vunpack.c.l.b16 %v7238
        %v7258 = vunpack.c.h.b16 %v7238
        %v7259 = vunpack.c.l.b16 %v7239
        %v7260 = vunpack.c.h.b16 %v7239
        %v7261 = vunpack.c.l.b16 %v7240
        %v7262 = vunpack.c.h.b16 %v7240
        %v7263 = vunpack.c.l.b16 %v7241
        %v7264 = vunpack.c.h.b16 %v7241
        %v7265 = vunpack.c.l.b16 %v7242
        %v7266 = vunpack.c.h.b16 %v7242
        %v7267 = vunpack.c.l.b16 %v7243
        %v7268 = vunpack.c.h.b16 %v7243
        %v7269 = vpack.c.b16 %v7255, %v7253
        %v7270 = vpack.c.b16 %v7256, %v7254
        %v7271 = vpack.c.b16 %v7259, %v7257
        %v7272 = vpack.c.b16 %v7260, %v7258
        %v7273 = vpack.c.b16 %v7263, %v7261
        %v7274 = vpack.c.b16 %v7264, %v7262
        %v7275 = vpack.c.b16 %v7267, %v7265
        %v7276 = vpack.c.b16 %v7268, %v7266
        %v7286 = vsel %vm3920, %v7244, 0
        %7288 = vmatprep.subr.bf16.mxu0 0
        %7289 = vmatpush1.bf16.msra.mxu0 0
        %7290 = vmatprep.subr.bf16.mxu0 0
        %7291 = vmatpush1.bf16.msra.mxu0 0
        %7292 = vmatprep.subr.bf16.mxu0 0
        %7293 = vmatpush1.bf16.msra.mxu0 0
        %7294 = vmatprep.subr.bf16.mxu0 0
        %7295 = vmatpush1.bf16.msra.mxu0 0
        %7296 = vmatprep.subr.bf16.mxu0 %v7276
        %7297 = vmatpush1.bf16.msra.mxu0 %v7275
        %7298 = vmatprep.subr.bf16.mxu0 %v7274
        %7299 = vmatpush1.bf16.msra.mxu0 %v7273
        %7300 = vmatprep.subr.bf16.mxu0 %v7272
        %7301 = vmatpush1.bf16.msra.mxu0 %v7271
        %7302 = vmatprep.subr.bf16.mxu0 %v7270
        %7303 = vmatpush1.bf16.msra.mxu0 %v7269
        %7304 = vmatprep.subr.bf16.mxu0 0
        %7305 = vmatpush2.bf16.msra.mxu0 0
        %7306 = vmatprep.subr.bf16.mxu0 0
        %7307 = vmatpush2.bf16.msra.mxu0 0
        %7308 = vmatprep.subr.bf16.mxu0 0
        %7309 = vmatpush2.bf16.msra.mxu0 0
        %7310 = vmatprep.subr.bf16.mxu0 0
        %7311 = vmatpush2.bf16.msra.mxu0 0
        %7312 = vmatprep.subr.bf16.mxu0 0
        %7313 = vmatpush2.bf16.msra.mxu0 0
        %7314 = vmatprep.subr.bf16.mxu0 0
        %7315 = vmatpush2.bf16.msra.mxu0 0
        %7316 = vmatprep.subr.bf16.mxu0 0
        %7317 = vmatpush2.bf16.msra.mxu0 0
        %7318 = vmatprep.subr.bf16.mxu0 0
        %7319 = vmatpush2.bf16.msra.mxu0 0
        %7320 = vmatprep.mubr.bf16.mxu0 0
        %7321 = vmatmul.mubr.bf16.gmra.mxu0 %v7286
        %v7322 = vpop.f32.mrf.mxu0
        %v7323 = vadd.f32 0.0, %v7322
        %v7324 = vpop.f32.mrf.mxu0
        %v7325 = vadd.f32 0.0, %v7324
        %v7326 = vpop.f32.mrf.mxu0
        %v7327 = vpop.f32.mrf.mxu0
        %7328 = vdwg.mxu0
        %v7329 = vadd.f32 %v7233, %v7323
        %v7330 = vadd.f32 %v7234, %v7325
        %s7331 = scalar_lea.vmem %s9, 1408
        %v7332 = vld [vmem:[%s7331] sm:$0xff]
        %v7333 = vld [vmem:[%s7331 + $0x8] sm:$0xff]
        %v7334 = vld [vmem:[%s7331 + $0x10] sm:$0xff]
        %v7335 = vld [vmem:[%s7331 + $0x18] sm:$0xff]
        %v7336 = vld [vmem:[%s7331 + $0x20] sm:$0xff]
        %v7337 = vld [vmem:[%s7331 + $0x28] sm:$0xff]
        %v7338 = vld [vmem:[%s7331 + $0x30] sm:$0xff]
        %v7339 = vld [vmem:[%s7331 + $0x38] sm:$0xff]
        %v7340 = vrot.slane %v6753, 3
        %v7349 = vunpack.c.l.b16 %v7332
        %v7350 = vunpack.c.h.b16 %v7332
        %v7351 = vunpack.c.l.b16 %v7333
        %v7352 = vunpack.c.h.b16 %v7333
        %v7353 = vunpack.c.l.b16 %v7334
        %v7354 = vunpack.c.h.b16 %v7334
        %v7355 = vunpack.c.l.b16 %v7335
        %v7356 = vunpack.c.h.b16 %v7335
        %v7357 = vunpack.c.l.b16 %v7336
        %v7358 = vunpack.c.h.b16 %v7336
        %v7359 = vunpack.c.l.b16 %v7337
        %v7360 = vunpack.c.h.b16 %v7337
        %v7361 = vunpack.c.l.b16 %v7338
        %v7362 = vunpack.c.h.b16 %v7338
        %v7363 = vunpack.c.l.b16 %v7339
        %v7364 = vunpack.c.h.b16 %v7339
        %v7365 = vpack.c.b16 %v7351, %v7349
        %v7366 = vpack.c.b16 %v7352, %v7350
        %v7367 = vpack.c.b16 %v7355, %v7353
        %v7368 = vpack.c.b16 %v7356, %v7354
        %v7369 = vpack.c.b16 %v7359, %v7357
        %v7370 = vpack.c.b16 %v7360, %v7358
        %v7371 = vpack.c.b16 %v7363, %v7361
        %v7372 = vpack.c.b16 %v7364, %v7362
        %v7382 = vsel %vm3920, %v7340, 0
        %7384 = vmatprep.subr.bf16.mxu0 0
        %7385 = vmatpush1.bf16.msra.mxu0 0
        %7386 = vmatprep.subr.bf16.mxu0 0
        %7387 = vmatpush1.bf16.msra.mxu0 0
        %7388 = vmatprep.subr.bf16.mxu0 0
        %7389 = vmatpush1.bf16.msra.mxu0 0
        %7390 = vmatprep.subr.bf16.mxu0 0
        %7391 = vmatpush1.bf16.msra.mxu0 0
        %7392 = vmatprep.subr.bf16.mxu0 %v7372
        %7393 = vmatpush1.bf16.msra.mxu0 %v7371
        %7394 = vmatprep.subr.bf16.mxu0 %v7370
        %7395 = vmatpush1.bf16.msra.mxu0 %v7369
        %7396 = vmatprep.subr.bf16.mxu0 %v7368
        %7397 = vmatpush1.bf16.msra.mxu0 %v7367
        %7398 = vmatprep.subr.bf16.mxu0 %v7366
        %7399 = vmatpush1.bf16.msra.mxu0 %v7365
        %7400 = vmatprep.subr.bf16.mxu0 0
        %7401 = vmatpush2.bf16.msra.mxu0 0
        %7402 = vmatprep.subr.bf16.mxu0 0
        %7403 = vmatpush2.bf16.msra.mxu0 0
        %7404 = vmatprep.subr.bf16.mxu0 0
        %7405 = vmatpush2.bf16.msra.mxu0 0
        %7406 = vmatprep.subr.bf16.mxu0 0
        %7407 = vmatpush2.bf16.msra.mxu0 0
        %7408 = vmatprep.subr.bf16.mxu0 0
        %7409 = vmatpush2.bf16.msra.mxu0 0
        %7410 = vmatprep.subr.bf16.mxu0 0
        %7411 = vmatpush2.bf16.msra.mxu0 0
        %7412 = vmatprep.subr.bf16.mxu0 0
        %7413 = vmatpush2.bf16.msra.mxu0 0
        %7414 = vmatprep.subr.bf16.mxu0 0
        %7415 = vmatpush2.bf16.msra.mxu0 0
        %7416 = vmatprep.mubr.bf16.mxu0 0
        %7417 = vmatmul.mubr.bf16.gmra.mxu0 %v7382
        %v7418 = vpop.f32.mrf.mxu0
        %v7419 = vadd.f32 0.0, %v7418
        %v7420 = vpop.f32.mrf.mxu0
        %v7421 = vadd.f32 0.0, %v7420
        %v7422 = vpop.f32.mrf.mxu0
        %v7423 = vpop.f32.mrf.mxu0
        %7424 = vdwg.mxu0
        %v7425 = vadd.f32 %v7329, %v7419
        %v7426 = vadd.f32 %v7330, %v7421
        %s7427 = scalar_lea.vmem %s9, 1472
        %v7428 = vld [vmem:[%s7427] sm:$0xff]
        %v7429 = vld [vmem:[%s7427 + $0x8] sm:$0xff]
        %v7430 = vld [vmem:[%s7427 + $0x10] sm:$0xff]
        %v7431 = vld [vmem:[%s7427 + $0x18] sm:$0xff]
        %v7432 = vld [vmem:[%s7427 + $0x20] sm:$0xff]
        %v7433 = vld [vmem:[%s7427 + $0x28] sm:$0xff]
        %v7434 = vld [vmem:[%s7427 + $0x30] sm:$0xff]
        %v7435 = vld [vmem:[%s7427 + $0x38] sm:$0xff]
        %v7436 = vrot.slane %v6858, 3
        %v7445 = vunpack.c.l.b16 %v7428
        %v7446 = vunpack.c.h.b16 %v7428
        %v7447 = vunpack.c.l.b16 %v7429
        %v7448 = vunpack.c.h.b16 %v7429
        %v7449 = vunpack.c.l.b16 %v7430
        %v7450 = vunpack.c.h.b16 %v7430
        %v7451 = vunpack.c.l.b16 %v7431
        %v7452 = vunpack.c.h.b16 %v7431
        %v7453 = vunpack.c.l.b16 %v7432
        %v7454 = vunpack.c.h.b16 %v7432
        %v7455 = vunpack.c.l.b16 %v7433
        %v7456 = vunpack.c.h.b16 %v7433
        %v7457 = vunpack.c.l.b16 %v7434
        %v7458 = vunpack.c.h.b16 %v7434
        %v7459 = vunpack.c.l.b16 %v7435
        %v7460 = vunpack.c.h.b16 %v7435
        %v7461 = vpack.c.b16 %v7447, %v7445
        %v7462 = vpack.c.b16 %v7448, %v7446
        %v7463 = vpack.c.b16 %v7451, %v7449
        %v7464 = vpack.c.b16 %v7452, %v7450
        %v7465 = vpack.c.b16 %v7455, %v7453
        %v7466 = vpack.c.b16 %v7456, %v7454
        %v7467 = vpack.c.b16 %v7459, %v7457
        %v7468 = vpack.c.b16 %v7460, %v7458
        %v7478 = vsel %vm3920, %v7436, 0
        %7480 = vmatprep.subr.bf16.mxu0 0
        %7481 = vmatpush1.bf16.msra.mxu0 0
        %7482 = vmatprep.subr.bf16.mxu0 0
        %7483 = vmatpush1.bf16.msra.mxu0 0
        %7484 = vmatprep.subr.bf16.mxu0 0
        %7485 = vmatpush1.bf16.msra.mxu0 0
        %7486 = vmatprep.subr.bf16.mxu0 0
        %7487 = vmatpush1.bf16.msra.mxu0 0
        %7488 = vmatprep.subr.bf16.mxu0 %v7468
        %7489 = vmatpush1.bf16.msra.mxu0 %v7467
        %7490 = vmatprep.subr.bf16.mxu0 %v7466
        %7491 = vmatpush1.bf16.msra.mxu0 %v7465
        %7492 = vmatprep.subr.bf16.mxu0 %v7464
        %7493 = vmatpush1.bf16.msra.mxu0 %v7463
        %7494 = vmatprep.subr.bf16.mxu0 %v7462
        %7495 = vmatpush1.bf16.msra.mxu0 %v7461
        %7496 = vmatprep.subr.bf16.mxu0 0
        %7497 = vmatpush2.bf16.msra.mxu0 0
        %7498 = vmatprep.subr.bf16.mxu0 0
        %7499 = vmatpush2.bf16.msra.mxu0 0
        %7500 = vmatprep.subr.bf16.mxu0 0
        %7501 = vmatpush2.bf16.msra.mxu0 0
        %7502 = vmatprep.subr.bf16.mxu0 0
        %7503 = vmatpush2.bf16.msra.mxu0 0
        %7504 = vmatprep.subr.bf16.mxu0 0
        %7505 = vmatpush2.bf16.msra.mxu0 0
        %7506 = vmatprep.subr.bf16.mxu0 0
        %7507 = vmatpush2.bf16.msra.mxu0 0
        %7508 = vmatprep.subr.bf16.mxu0 0
        %7509 = vmatpush2.bf16.msra.mxu0 0
        %7510 = vmatprep.subr.bf16.mxu0 0
        %7511 = vmatpush2.bf16.msra.mxu0 0
        %7512 = vmatprep.mubr.bf16.mxu0 0
        %7513 = vmatmul.mubr.bf16.gmra.mxu0 %v7478
        %v7514 = vpop.f32.mrf.mxu0
        %v7515 = vadd.f32 0.0, %v7514
        %v7516 = vpop.f32.mrf.mxu0
        %v7517 = vadd.f32 0.0, %v7516
        %v7518 = vpop.f32.mrf.mxu0
        %v7519 = vpop.f32.mrf.mxu0
        %7520 = vdwg.mxu0
        %v7521 = vadd.f32 %v7425, %v7515
        %v7522 = vadd.f32 %v7426, %v7517
        %v7523 = vpack.c.bf16 %v5217, %v5217
        %s7524 = scalar_lea.vmem %s9, 1536
        %v7525 = vld [vmem:[%s7524] sm:$0xff]
        %v7526 = vld [vmem:[%s7524 + $0x8] sm:$0xff]
        %v7527 = vld [vmem:[%s7524 + $0x10] sm:$0xff]
        %v7528 = vld [vmem:[%s7524 + $0x18] sm:$0xff]
        %v7529 = vld [vmem:[%s7524 + $0x20] sm:$0xff]
        %v7530 = vld [vmem:[%s7524 + $0x28] sm:$0xff]
        %v7531 = vld [vmem:[%s7524 + $0x30] sm:$0xff]
        %v7532 = vld [vmem:[%s7524 + $0x38] sm:$0xff]
        %v7541 = vunpack.c.l.b16 %v7525
        %v7542 = vunpack.c.h.b16 %v7525
        %v7543 = vunpack.c.l.b16 %v7526
        %v7544 = vunpack.c.h.b16 %v7526
        %v7545 = vunpack.c.l.b16 %v7527
        %v7546 = vunpack.c.h.b16 %v7527
        %v7547 = vunpack.c.l.b16 %v7528
        %v7548 = vunpack.c.h.b16 %v7528
        %v7549 = vunpack.c.l.b16 %v7529
        %v7550 = vunpack.c.h.b16 %v7529
        %v7551 = vunpack.c.l.b16 %v7530
        %v7552 = vunpack.c.h.b16 %v7530
        %v7553 = vunpack.c.l.b16 %v7531
        %v7554 = vunpack.c.h.b16 %v7531
        %v7555 = vunpack.c.l.b16 %v7532
        %v7556 = vunpack.c.h.b16 %v7532
        %v7557 = vpack.c.b16 %v7543, %v7541
        %v7558 = vpack.c.b16 %v7544, %v7542
        %v7559 = vpack.c.b16 %v7547, %v7545
        %v7560 = vpack.c.b16 %v7548, %v7546
        %v7561 = vpack.c.b16 %v7551, %v7549
        %v7562 = vpack.c.b16 %v7552, %v7550
        %v7563 = vpack.c.b16 %v7555, %v7553
        %v7564 = vpack.c.b16 %v7556, %v7554
        %v7574 = vsel %vm3920, %v7523, 0
        %7576 = vmatprep.subr.bf16.mxu0 0
        %7577 = vmatpush1.bf16.msra.mxu0 0
        %7578 = vmatprep.subr.bf16.mxu0 0
        %7579 = vmatpush1.bf16.msra.mxu0 0
        %7580 = vmatprep.subr.bf16.mxu0 0
        %7581 = vmatpush1.bf16.msra.mxu0 0
        %7582 = vmatprep.subr.bf16.mxu0 0
        %7583 = vmatpush1.bf16.msra.mxu0 0
        %7584 = vmatprep.subr.bf16.mxu0 %v7564
        %7585 = vmatpush1.bf16.msra.mxu0 %v7563
        %7586 = vmatprep.subr.bf16.mxu0 %v7562
        %7587 = vmatpush1.bf16.msra.mxu0 %v7561
        %7588 = vmatprep.subr.bf16.mxu0 %v7560
        %7589 = vmatpush1.bf16.msra.mxu0 %v7559
        %7590 = vmatprep.subr.bf16.mxu0 %v7558
        %7591 = vmatpush1.bf16.msra.mxu0 %v7557
        %7592 = vmatprep.subr.bf16.mxu0 0
        %7593 = vmatpush2.bf16.msra.mxu0 0
        %7594 = vmatprep.subr.bf16.mxu0 0
        %7595 = vmatpush2.bf16.msra.mxu0 0
        %7596 = vmatprep.subr.bf16.mxu0 0
        %7597 = vmatpush2.bf16.msra.mxu0 0
        %7598 = vmatprep.subr.bf16.mxu0 0
        %7599 = vmatpush2.bf16.msra.mxu0 0
        %7600 = vmatprep.subr.bf16.mxu0 0
        %7601 = vmatpush2.bf16.msra.mxu0 0
        %7602 = vmatprep.subr.bf16.mxu0 0
        %7603 = vmatpush2.bf16.msra.mxu0 0
        %7604 = vmatprep.subr.bf16.mxu0 0
        %7605 = vmatpush2.bf16.msra.mxu0 0
        %7606 = vmatprep.subr.bf16.mxu0 0
        %7607 = vmatpush2.bf16.msra.mxu0 0
        %7608 = vmatprep.mubr.bf16.mxu0 0
        %7609 = vmatmul.mubr.bf16.gmra.mxu0 %v7574
        %v7610 = vpop.f32.mrf.mxu0
        %v7611 = vadd.f32 0.0, %v7610
        %v7612 = vpop.f32.mrf.mxu0
        %v7613 = vadd.f32 0.0, %v7612
        %v7614 = vpop.f32.mrf.mxu0
        %v7615 = vpop.f32.mrf.mxu0
        %7616 = vdwg.mxu0
        %v7617 = vadd.f32 %v7521, %v7611
        %v7618 = vadd.f32 %v7522, %v7613
        %v7619 = vld [vmem:[%s10] sm:$0x3]
        %v7621 = vlaneseq
        %v7622 = vshrl.u32 %v7621, 7
        %v7623 = vsub.s32 0, %v7622
        %v7624 = vrot.slane %v7619, %v7623
        %v7625 = vlaneseq
        %v7626 = vshrl.u32 %v7625, 7
        %v7627 = vsub.s32 1, %v7626
        %v7628 = vrot.slane %v7619, %v7627
        %v7631 = vadd.f32 %v7617, %v7624
        %v7632 = vadd.f32 %v7618, %v7628
        %v7633 = vmax.f32 %v7631, 0.0
        %v7634 = vmax.f32 %v7632, 0.0
        %v7635 = vpack.c.bf16 %v7633, %v7633
        %v7636 = vpack.c.bf16 %v7634, %v7634
        %v7637 = vld [vmem:[%s11] sm:$0xf]
        %v7638 = vld [vmem:[%s11 + $0x4] sm:$0xf]
        %v7639 = vld [vmem:[%s11 + $0x8] sm:$0xf]
        %v7640 = vld [vmem:[%s11 + $0xc] sm:$0xf]
        %v7641 = vld [vmem:[%s11 + $0x10] sm:$0xf]
        %v7642 = vld [vmem:[%s11 + $0x14] sm:$0xf]
        %v7643 = vld [vmem:[%s11 + $0x18] sm:$0xf]
        %v7644 = vld [vmem:[%s11 + $0x1c] sm:$0xf]
        %v7645 = vld [vmem:[%s11 + $0x20] sm:$0xf]
        %v7646 = vld [vmem:[%s11 + $0x24] sm:$0xf]
        %v7647 = vld [vmem:[%s11 + $0x28] sm:$0xf]
        %v7648 = vld [vmem:[%s11 + $0x2c] sm:$0xf]
        %v7649 = vld [vmem:[%s11 + $0x30] sm:$0xf]
        %v7650 = vld [vmem:[%s11 + $0x34] sm:$0xf]
        %v7651 = vld [vmem:[%s11 + $0x38] sm:$0xf]
        %v7652 = vld [vmem:[%s11 + $0x3c] sm:$0xf]
        %v7653 = vld [vmem:[%s11 + $0x40] sm:$0xf]
        %v7654 = vld [vmem:[%s11 + $0x44] sm:$0xf]
        %v7655 = vld [vmem:[%s11 + $0x48] sm:$0xf]
        %v7656 = vld [vmem:[%s11 + $0x4c] sm:$0xf]
        %v7657 = vld [vmem:[%s11 + $0x50] sm:$0xf]
        %v7658 = vld [vmem:[%s11 + $0x54] sm:$0xf]
        %v7659 = vld [vmem:[%s11 + $0x58] sm:$0xf]
        %v7660 = vld [vmem:[%s11 + $0x5c] sm:$0xf]
        %v7661 = vld [vmem:[%s11 + $0x60] sm:$0xf]
        %v7662 = vld [vmem:[%s11 + $0x64] sm:$0xf]
        %v7663 = vld [vmem:[%s11 + $0x68] sm:$0xf]
        %v7664 = vld [vmem:[%s11 + $0x6c] sm:$0xf]
        %v7665 = vld [vmem:[%s11 + $0x70] sm:$0xf]
        %v7666 = vld [vmem:[%s11 + $0x74] sm:$0xf]
        %v7667 = vld [vmem:[%s11 + $0x78] sm:$0xf]
        %v7668 = vld [vmem:[%s11 + $0x7c] sm:$0xf]
        %v7669 = vld [vmem:[%s12] sm:$0x1]
        %v7702 = vunpack.c.l.b16 %v7637
        %v7703 = vunpack.c.l.b16 %v7638
        %v7704 = vunpack.c.l.b16 %v7639
        %v7705 = vunpack.c.l.b16 %v7640
        %v7706 = vunpack.c.l.b16 %v7641
        %v7707 = vunpack.c.l.b16 %v7642
        %v7708 = vunpack.c.l.b16 %v7643
        %v7709 = vunpack.c.l.b16 %v7644
        %v7710 = vunpack.c.l.b16 %v7645
        %v7711 = vunpack.c.l.b16 %v7646
        %v7712 = vunpack.c.l.b16 %v7647
        %v7713 = vunpack.c.l.b16 %v7648
        %v7714 = vunpack.c.l.b16 %v7649
        %v7715 = vunpack.c.l.b16 %v7650
        %v7716 = vunpack.c.l.b16 %v7651
        %v7717 = vunpack.c.l.b16 %v7652
        %v7718 = vunpack.c.l.b16 %v7653
        %v7719 = vunpack.c.l.b16 %v7654
        %v7720 = vunpack.c.l.b16 %v7655
        %v7721 = vunpack.c.l.b16 %v7656
        %v7722 = vunpack.c.l.b16 %v7657
        %v7723 = vunpack.c.l.b16 %v7658
        %v7724 = vunpack.c.l.b16 %v7659
        %v7725 = vunpack.c.l.b16 %v7660
        %v7726 = vunpack.c.l.b16 %v7661
        %v7727 = vunpack.c.l.b16 %v7662
        %v7728 = vunpack.c.l.b16 %v7663
        %v7729 = vunpack.c.l.b16 %v7664
        %v7730 = vunpack.c.l.b16 %v7665
        %v7731 = vunpack.c.l.b16 %v7666
        %v7732 = vunpack.c.l.b16 %v7667
        %v7733 = vunpack.c.l.b16 %v7668
        %v7734 = vpack.c.b16 %v7703, %v7702
        %v7735 = vpack.c.b16 %v7705, %v7704
        %v7736 = vpack.c.b16 %v7707, %v7706
        %v7737 = vpack.c.b16 %v7709, %v7708
        %v7738 = vpack.c.b16 %v7711, %v7710
        %v7739 = vpack.c.b16 %v7713, %v7712
        %v7740 = vpack.c.b16 %v7715, %v7714
        %v7741 = vpack.c.b16 %v7717, %v7716
        %v7742 = vpack.c.b16 %v7719, %v7718
        %v7743 = vpack.c.b16 %v7721, %v7720
        %v7744 = vpack.c.b16 %v7723, %v7722
        %v7745 = vpack.c.b16 %v7725, %v7724
        %v7746 = vpack.c.b16 %v7727, %v7726
        %v7747 = vpack.c.b16 %v7729, %v7728
        %v7748 = vpack.c.b16 %v7731, %v7730
        %v7749 = vpack.c.b16 %v7733, %v7732
        %7766 = vmatprep.subr.bf16.mxu0 0
        %7767 = vmatpush1.bf16.msra.mxu0 %v7741
        %7768 = vmatprep.subr.bf16.mxu0 0
        %7769 = vmatpush1.bf16.msra.mxu0 %v7740
        %7770 = vmatprep.subr.bf16.mxu0 0
        %7771 = vmatpush1.bf16.msra.mxu0 %v7739
        %7772 = vmatprep.subr.bf16.mxu0 0
        %7773 = vmatpush1.bf16.msra.mxu0 %v7738
        %7774 = vmatprep.subr.bf16.mxu0 0
        %7775 = vmatpush1.bf16.msra.mxu0 %v7737
        %7776 = vmatprep.subr.bf16.mxu0 0
        %7777 = vmatpush1.bf16.msra.mxu0 %v7736
        %7778 = vmatprep.subr.bf16.mxu0 0
        %7779 = vmatpush1.bf16.msra.mxu0 %v7735
        %7780 = vmatprep.subr.bf16.mxu0 0
        %7781 = vmatpush1.bf16.msra.mxu0 %v7734
        %7782 = vmatprep.subr.bf16.mxu0 0
        %7783 = vmatpush2.bf16.msra.mxu0 %v7749
        %7784 = vmatprep.subr.bf16.mxu0 0
        %7785 = vmatpush2.bf16.msra.mxu0 %v7748
        %7786 = vmatprep.subr.bf16.mxu0 0
        %7787 = vmatpush2.bf16.msra.mxu0 %v7747
        %7788 = vmatprep.subr.bf16.mxu0 0
        %7789 = vmatpush2.bf16.msra.mxu0 %v7746
        %7790 = vmatprep.subr.bf16.mxu0 0
        %7791 = vmatpush2.bf16.msra.mxu0 %v7745
        %7792 = vmatprep.subr.bf16.mxu0 0
        %7793 = vmatpush2.bf16.msra.mxu0 %v7744
        %7794 = vmatprep.subr.bf16.mxu0 0
        %7795 = vmatpush2.bf16.msra.mxu0 %v7743
        %7796 = vmatprep.subr.bf16.mxu0 0
        %7797 = vmatpush2.bf16.msra.mxu0 %v7742
        %7798 = vmatprep.mubr.bf16.mxu0 %v7636
        %7799 = vmatmul.mubr.bf16.gmra.mxu0 %v7635
        %v7800 = vpop.f32.mrf.mxu0
        %v7801 = vadd.f32 %v7669, %v7800
        %v7802 = vpop.f32.mrf.mxu0
        %v7803 = vpop.f32.mrf.mxu0
        %v7804 = vpop.f32.mrf.mxu0
        %7805 = vdwg.mxu0
        %7806 = vst [vmem:[%s432] sm:$0x1] %v7801
        %s7807 = sand.u32 %s313, 1
        %s7808 = scalar_lea.sflag [#allocation3], %s7807
        %s7809 = sand.u32 %s313, 1
        %s7810 = scalar_lea.vmem [#allocation2], %s7809
        // Predicated region
        $region73: #{qnet_forward.1} parent=71 // pred_check
          %p7811 = pneg %p323
        $region74: #{qnet_forward.1} parent=71 // pred_check_branch
          %7813 = sbr.rel (%p7811) target = $region76
        $region75: #{qnet_forward.1} parent=71 // pred_region
          %s7815 = ssub.s32 16, 16
          %7816 = vsyncadd %s7808, %s7815
          %s7817 = smul.addr %s27, 16
          %s7818 = scalar_lea.hbm %s13, %s7817
          %s7820 = sshll.u32 %s7810, 4
          %s7821 = int_to_ptr.vmem [resolvable:$true] %s7820
          %7823 = dma.vmem_to_hbm [thread:$0]  %s7821, 16, %s7818, %s7808
        $region76: #{qnet_forward.1} parent=71 // pred_fallthru
          _
      $region72: #{qnet_forward.1} parent=5 // pred_fallthru
        _
      %p7824 = scmp.le.s32.totalorder 2, %s22
      // Predicated region
      $region77: #{qnet_forward.1} parent=5 // pred_check
        %p7825 = pneg %p7824
      $region78: #{qnet_forward.1} parent=5 // pred_check_branch
        %7827 = sbr.rel (%p7825) target = $region80
      $region79: #{qnet_forward.1} parent=5 // pred_region
        %s7828 = ssub.s32 %s22, 2
        // Predicated region
        $region81: #{qnet_forward.1} parent=79 // pred_check
          %p7829 = pneg %p329
        $region82: #{qnet_forward.1} parent=79 // pred_check_branch
          %7831 = sbr.rel (%p7829) target = $region84
        $region83: #{qnet_forward.1} parent=79 // pred_region
          %s7832 = sand.u32 %s314, 1
          %s7833 = scalar_lea.sflag [#allocation3], %s7832
          %s7834 = sand.u32 %s314, 1
          %s7835 = scalar_lea.vmem [#allocation2], %s7834
          %7836 = dma.done %s7833, 16
        $region84: #{qnet_forward.1} parent=79 // pred_fallthru
          _
      $region80: #{qnet_forward.1} parent=5 // pred_fallthru
        _
    $region6: #{qnet_forward.1} parent=1 // loop_footer
      %s26 = sadd.s32 1, %s22
    $region7: #{qnet_forward.1} parent=1 // loop_footer_branch
      %21 = sbr.rel target = $region3
    $region8: #{qnet_forward.1} parent=1 // loop_exit
      _
    %7837 = vsyncpa [#allocation3], 1
    %s7838 = scalar_lea.sflag [#allocation3], 1
    %7839 = vsyncpa %s7838, 1

</llo_original>
